<compile_context>
chip_gen: v5e
topology: v5e:2x2
jax: 0.10.0
libtpu: 0.0.40
codegen_flags: <defaults>
</compile_context>

<pallas_src>
import jax
import jax.numpy as jnp
from jax.experimental import pallas as pl
from jax.experimental.pallas import tpu as pltpu


# ---------------------------------------------------------------------------
# Fused forward kernel (one grid step == one image)
# ---------------------------------------------------------------------------
def _detect_cnn_kernel(x_ref, w1_ref, b1_ref, w2_ref, b2_ref, w3_ref, b3_ref,
                       fc1w_ref, fc1b_ref, fc2w_ref, fc2b_ref, o_ref,
                       pat1, a1, p1, pat2, a2, p2, pat3):
    f32, bf16 = jnp.float32, jnp.bfloat16

    x = x_ref[0]                 # (20, 20, 3) image, VMEM resident
    w1 = w1_ref[...]             # (80, 32)  bf16  (K padded 75 -> 80)
    w2 = w2_ref[...]             # (288, 64) bf16
    w3 = w3_ref[...]             # (576, 64) bf16
    fw1 = fc1w_ref[...]          # (64, 512) bf16
    fw2 = fc2w_ref[...]          # (512, 8)  bf16
    b1, b2, b3 = b1_ref[...], b2_ref[...], b3_ref[...]
    fb1, fb2 = fc1b_ref[...], fc2b_ref[...]

    # 0/1 selection matrices for the stride-2 column pairing of MaxPool2x2
    # (row-pair max is done with plain integer indexing, column-pair max via
    #  two tiny MXU matmuls -> no strided/reshape ops needed).
    def make_sel(rows, cols):
        r = jax.lax.broadcasted_iota(jnp.int32, (rows, cols), 0)
        c = jax.lax.broadcasted_iota(jnp.int32, (rows, cols), 1)
        return (c == 2 * r).astype(f32), (c == 2 * r + 1).astype(f32)

    e16, o16 = make_sel(8, 16)   # pool1: 16 cols -> 8
    e6, o6 = make_sel(3, 6)      # pool2: 6 cols -> 3

    # ---- conv1: 5x5, 3->32, valid, ReLU  (20,20,3) -> (16,16,32) ----------
    pat1[...] = jnp.zeros((16, 16, 80), f32)          # also zeroes the K-pad
    for kh in range(5):
        for kw in range(5):
            c0 = (kh * 5 + kw) * 3
            pat1[:, :, c0:c0 + 3] = x[kh:kh + 16, kw:kw + 16, :]
    for oh in range(16):
        acc = jnp.dot(pat1[oh].astype(bf16), w1, preferred_element_type=f32)
        a1[oh] = jnp.maximum(acc + b1, 0.0)

    # ---- maxpool 2x2: (16,16,32) -> (8,8,32) -------------------------------
    for ph in range(8):
        rm = jnp.maximum(a1[2 * ph], a1[2 * ph + 1])              # (16, 32)
        p1[ph] = jnp.maximum(jnp.dot(e16, rm, preferred_element_type=f32),
                             jnp.dot(o16, rm, preferred_element_type=f32))

    # ---- conv2: 3x3, 32->64, valid, ReLU  (8,8,32) -> (6,6,64) -------------
    for kh in range(3):
        for kw in range(3):
            c0 = (kh * 3 + kw) * 32
            pat2[:, :, c0:c0 + 32] = p1[kh:kh + 6, kw:kw + 6, :]
    for oh in range(6):
        acc = jnp.dot(pat2[oh].astype(bf16), w2, preferred_element_type=f32)
        a2[oh] = jnp.maximum(acc + b2, 0.0)

    # ---- maxpool 2x2: (6,6,64) -> (3,3,64) ---------------------------------
    for ph in range(3):
        rm = jnp.maximum(a2[2 * ph], a2[2 * ph + 1])              # (6, 64)
        p2[ph] = jnp.maximum(jnp.dot(e6, rm, preferred_element_type=f32),
                             jnp.dot(o6, rm, preferred_element_type=f32))

    # ---- conv3: 3x3, 64->64, valid, ReLU  (3,3,64) -> (1,64) ---------------
    for kh in range(3):
        for kw in range(3):
            c0 = (kh * 3 + kw) * 64
            pat3[:, :, c0:c0 + 64] = p2[kh:kh + 1, kw:kw + 1, :]
    z = jnp.dot(pat3[0].astype(bf16), w3, preferred_element_type=f32)   # (1, 64)
    z = jnp.maximum(z + b3, 0.0)

    # ---- mlp: fc1 + ReLU, Dropout(0.4)=identity (eval), fc2 + boxing head --
    h = jnp.dot(z.astype(bf16), fw1, preferred_element_type=f32) + fb1  # (1, 512)
    h = jnp.maximum(h, 0.0)
    out = jnp.dot(h.astype(bf16), fw2, preferred_element_type=f32) + fb2  # (1, 8)
    # boxing head: sigmoid on output columns {0, 3, 4, 7}, identity elsewhere
    col = jax.lax.broadcasted_iota(jnp.int32, out.shape, 1)
    mask = (col == 0) | (col == 3) | (col == 4) | (col == 7)
    out = jnp.where(mask, jax.nn.sigmoid(out), out)

    o_ref[0] = out.astype(o_ref.dtype)


# ---------------------------------------------------------------------------
# Wrapper: parameter prep + single pallas_call
# ---------------------------------------------------------------------------
def detect_cnn_forward(params, x_nchw):
    n = x_nchw.shape[0]
    # NCHW (PyTorch) -> NHWC (kernel layout); expects (N, 3, 20, 20)
    x = jnp.transpose(x_nchw, (0, 2, 3, 1)).astype(jnp.float32)

    # One-time weight prep (tiny): HWIO -> (K, Cout), pad conv1 K 75 -> 80,
    # bf16 MXU operands (biases stay f32 for the f32 epilogues).
    w1 = jnp.pad(params["w1"].reshape(75, 32), ((0, 5), (0, 0))).astype(jnp.bfloat16)
    w2 = params["w2"].reshape(288, 64).astype(jnp.bfloat16)
    w3 = params["w3"].reshape(576, 64).astype(jnp.bfloat16)
    fw1 = params["fc1_w"].astype(jnp.bfloat16)           # (64, 512)
    fw2 = params["fc2_w"].astype(jnp.bfloat16)           # (512, 8)
    b1 = params["b1"].reshape(1, 32).astype(jnp.float32)
    b2 = params["b2"].reshape(1, 64).astype(jnp.float32)
    b3 = params["b3"].reshape(1, 64).astype(jnp.float32)
    fb1 = params["fc1_b"].reshape(1, 512).astype(jnp.float32)
    fb2 = params["fc2_b"].reshape(1, 8).astype(jnp.float32)

    out3 = pl.pallas_call(
        _detect_cnn_kernel,
        out_shape=jax.ShapeDtypeStruct((n, 1, 8), jnp.float32),
        grid=(n,),
        in_specs=[
            pl.BlockSpec((1, 20, 20, 3), lambda i: (i, 0, 0, 0)),   # image
            pl.BlockSpec((80, 32), lambda i: (0, 0)),               # w1 (padded)
            pl.BlockSpec((1, 32), lambda i: (0, 0)),                # b1
            pl.BlockSpec((288, 64), lambda i: (0, 0)),              # w2
            pl.BlockSpec((1, 64), lambda i: (0, 0)),                # b2
            pl.BlockSpec((576, 64), lambda i: (0, 0)),              # w3
            pl.BlockSpec((1, 64), lambda i: (0, 0)),                # b3
            pl.BlockSpec((64, 512), lambda i: (0, 0)),              # fc1_w
            pl.BlockSpec((1, 512), lambda i: (0, 0)),               # fc1_b
            pl.BlockSpec((512, 8), lambda i: (0, 0)),               # fc2_w
            pl.BlockSpec((1, 8), lambda i: (0, 0)),                 # fc2_b
        ],
        out_specs=pl.BlockSpec((1, 1, 8), lambda i: (i, 0, 0)),
        scratch_shapes=[
            pltpu.VMEM((16, 16, 80), jnp.float32),   # conv1 im2col patches
            pltpu.VMEM((16, 16, 32), jnp.float32),   # conv1 + ReLU output
            pltpu.VMEM((8, 8, 32), jnp.float32),     # maxpool1 output
            pltpu.VMEM((6, 6, 288), jnp.float32),    # conv2 im2col patches
            pltpu.VMEM((6, 6, 64), jnp.float32),     # conv2 + ReLU output
            pltpu.VMEM((3, 3, 64), jnp.float32),     # maxpool2 output
            pltpu.VMEM((1, 1, 576), jnp.float32),    # conv3 im2col patches
        ],
        compiler_params=pltpu.CompilerParams(
            dimension_semantics=("parallel",)),       # batch across TCs (v7x)
    )(x, w1, b1, w2, b2, w3, b3, fw1, fb1, fw2, fb2)
    return out3.reshape(n, 8)


# ---------------------------------------------------------------------------
# Synthetic parameters (deterministic)
# ---------------------------------------------------------------------------
def init_params(key, num_channels, flat_size, output_dim):
    ks = jax.random.split(key, 10)
    s = 0.05
    rnd = lambda k, shape: jax.random.normal(k, shape, jnp.float32) * s
    return {
        "w1": rnd(ks[0], (5, 5, num_channels, 32)), "b1": rnd(ks[1], (32,)),
        "w2": rnd(ks[2], (3, 3, 32, 64)),           "b2": rnd(ks[3], (64,)),
        "w3": rnd(ks[4], (3, 3, 64, 64)),           "b3": rnd(ks[5], (64,)),
        "fc1_w": rnd(ks[6], (flat_size, 512)),      "fc1_b": rnd(ks[7], (512,)),
        "fc2_w": rnd(ks[8], (512, output_dim)),     "fc2_b": rnd(ks[9], (output_dim,)),
    }


if __name__ == "__main__":
    # env_n='boxing' -> output_dim=8; 20x20x3 input gives conv stack output
    # (N, 64, 1, 1) -> flat_size = 64 (matches the PyTorch flat-size probe).
    N, C, HX, HY = 2, 3, 20, 20
    key = jax.random.PRNGKey(0)
    kx, kp = jax.random.split(key)
    x = jax.random.normal(kx, (N, C, HX, HY), jnp.float32)
    params = init_params(kp, num_channels=C, flat_size=64, output_dim=8)

    out = jax.jit(detect_cnn_forward)(params, x)
    out = jax.block_until_ready(out)
    assert out.shape == (N, 8) and out.dtype == jnp.float32
    assert bool(jnp.all(jnp.isfinite(out)))
    print("KERNEL_OK")
</pallas_src>

<mosaic_0001>
module attributes {stable_mosaic.version = 11 : i64} {
  func.func @_detect_cnn_kernel(%arg0: i32, %arg1: memref<1x20x20x3xf32, #tpu.memory_space<vmem>>, %arg2: memref<80x32xbf16, #tpu.memory_space<vmem>>, %arg3: memref<1x32xf32, #tpu.memory_space<vmem>>, %arg4: memref<288x64xbf16, #tpu.memory_space<vmem>>, %arg5: memref<1x64xf32, #tpu.memory_space<vmem>>, %arg6: memref<576x64xbf16, #tpu.memory_space<vmem>>, %arg7: memref<1x64xf32, #tpu.memory_space<vmem>>, %arg8: memref<64x512xbf16, #tpu.memory_space<vmem>>, %arg9: memref<1x512xf32, #tpu.memory_space<vmem>>, %arg10: memref<512x8xbf16, #tpu.memory_space<vmem>>, %arg11: memref<1x8xf32, #tpu.memory_space<vmem>>, %arg12: memref<1x1x8xf32, #tpu.memory_space<vmem>>, %arg13: memref<16x16x80xf32, #tpu.memory_space<vmem>>, %arg14: memref<16x16x32xf32, #tpu.memory_space<vmem>>, %arg15: memref<8x8x32xf32, #tpu.memory_space<vmem>>, %arg16: memref<6x6x288xf32, #tpu.memory_space<vmem>>, %arg17: memref<6x6x64xf32, #tpu.memory_space<vmem>>, %arg18: memref<3x3x64xf32, #tpu.memory_space<vmem>>, %arg19: memref<1x1x576xf32, #tpu.memory_space<vmem>>) attributes {dimension_semantics = [#tpu.dimension_semantics<parallel>], iteration_bounds = array<i64: 2>, scalar_prefetch = 0 : i64, scratch_operands = 7 : i64, tpu.core_type = #tpu.core_type<tc>, window_params = [{transform_indices = @transform_0, window_bounds = array<i64: 1, 20, 20, 3>}, {pipeline_mode = #tpu.pipeline_mode<synchronous>, transform_indices = @transform_1, window_bounds = array<i64: 80, 32>}, {pipeline_mode = #tpu.pipeline_mode<synchronous>, transform_indices = @transform_2, window_bounds = array<i64: 1, 32>}, {pipeline_mode = #tpu.pipeline_mode<synchronous>, transform_indices = @transform_3, window_bounds = array<i64: 288, 64>}, {pipeline_mode = #tpu.pipeline_mode<synchronous>, transform_indices = @transform_4, window_bounds = array<i64: 1, 64>}, {pipeline_mode = #tpu.pipeline_mode<synchronous>, transform_indices = @transform_5, window_bounds = array<i64: 576, 64>}, {pipeline_mode = #tpu.pipeline_mode<synchronous>, transform_indices = @transform_6, window_bounds = array<i64: 1, 64>}, {pipeline_mode = #tpu.pipeline_mode<synchronous>, transform_indices = @transform_7, window_bounds = array<i64: 64, 512>}, {pipeline_mode = #tpu.pipeline_mode<synchronous>, transform_indices = @transform_8, window_bounds = array<i64: 1, 512>}, {pipeline_mode = #tpu.pipeline_mode<synchronous>, transform_indices = @transform_9, window_bounds = array<i64: 512, 8>}, {pipeline_mode = #tpu.pipeline_mode<synchronous>, transform_indices = @transform_10, window_bounds = array<i64: 1, 8>}, {transform_indices = @transform_11, window_bounds = array<i64: 1, 1, 8>}]} {
    %c0 = arith.constant 0 : index
    %c0_0 = arith.constant 0 : index
    %c0_1 = arith.constant 0 : index
    %c0_2 = arith.constant 0 : index
    %0 = vector.load %arg1[%c0, %c0_0, %c0_1, %c0_2] : memref<1x20x20x3xf32, #tpu.memory_space<vmem>>, vector<1x20x20x3xf32>
    %1 = vector.shape_cast %0 : vector<1x20x20x3xf32> to vector<20x20x3xf32>
    %c0_3 = arith.constant 0 : index
    %c0_4 = arith.constant 0 : index
    %2 = vector.load %arg2[%c0_3, %c0_4] : memref<80x32xbf16, #tpu.memory_space<vmem>>, vector<80x32xbf16>
    %c0_5 = arith.constant 0 : index
    %c0_6 = arith.constant 0 : index
    %3 = vector.load %arg4[%c0_5, %c0_6] : memref<288x64xbf16, #tpu.memory_space<vmem>>, vector<288x64xbf16>
    %c0_7 = arith.constant 0 : index
    %c0_8 = arith.constant 0 : index
    %4 = vector.load %arg6[%c0_7, %c0_8] : memref<576x64xbf16, #tpu.memory_space<vmem>>, vector<576x64xbf16>
    %c0_9 = arith.constant 0 : index
    %c0_10 = arith.constant 0 : index
    %5 = vector.load %arg8[%c0_9, %c0_10] : memref<64x512xbf16, #tpu.memory_space<vmem>>, vector<64x512xbf16>
    %c0_11 = arith.constant 0 : index
    %c0_12 = arith.constant 0 : index
    %6 = vector.load %arg10[%c0_11, %c0_12] : memref<512x8xbf16, #tpu.memory_space<vmem>>, vector<512x8xbf16>
    %c0_13 = arith.constant 0 : index
    %c0_14 = arith.constant 0 : index
    %7 = vector.load %arg3[%c0_13, %c0_14] : memref<1x32xf32, #tpu.memory_space<vmem>>, vector<1x32xf32>
    %c0_15 = arith.constant 0 : index
    %c0_16 = arith.constant 0 : index
    %8 = vector.load %arg5[%c0_15, %c0_16] : memref<1x64xf32, #tpu.memory_space<vmem>>, vector<1x64xf32>
    %c0_17 = arith.constant 0 : index
    %c0_18 = arith.constant 0 : index
    %9 = vector.load %arg7[%c0_17, %c0_18] : memref<1x64xf32, #tpu.memory_space<vmem>>, vector<1x64xf32>
    %c0_19 = arith.constant 0 : index
    %c0_20 = arith.constant 0 : index
    %10 = vector.load %arg9[%c0_19, %c0_20] : memref<1x512xf32, #tpu.memory_space<vmem>>, vector<1x512xf32>
    %c0_21 = arith.constant 0 : index
    %c0_22 = arith.constant 0 : index
    %11 = vector.load %arg11[%c0_21, %c0_22] : memref<1x8xf32, #tpu.memory_space<vmem>>, vector<1x8xf32>
    %12 = tpu.iota {dimensions = array<i32: 0>} : vector<8x16xi32>
    %13 = tpu.iota {dimensions = array<i32: 1>} : vector<8x16xi32>
    %c2_i32 = arith.constant 2 : i32
    %14 = vector.broadcast %c2_i32 : i32 to vector<8x16xi32>
    %15 = arith.muli %14, %12 : vector<8x16xi32>
    %16 = arith.cmpi eq, %13, %15 : vector<8x16xi32>
    %17 = arith.extui %16 : vector<8x16xi1> to vector<8x16xi32>
    %18 = arith.sitofp %17 : vector<8x16xi32> to vector<8x16xf32>
    %c2_i32_23 = arith.constant 2 : i32
    %19 = vector.broadcast %c2_i32_23 : i32 to vector<8x16xi32>
    %20 = arith.muli %19, %12 : vector<8x16xi32>
    %c1_i32 = arith.constant 1 : i32
    %21 = vector.broadcast %c1_i32 : i32 to vector<8x16xi32>
    %22 = arith.addi %20, %21 : vector<8x16xi32>
    %23 = arith.cmpi eq, %13, %22 : vector<8x16xi32>
    %24 = arith.extui %23 : vector<8x16xi1> to vector<8x16xi32>
    %25 = arith.sitofp %24 : vector<8x16xi32> to vector<8x16xf32>
    %26 = tpu.iota {dimensions = array<i32: 0>} : vector<3x6xi32>
    %27 = tpu.iota {dimensions = array<i32: 1>} : vector<3x6xi32>
    %c2_i32_24 = arith.constant 2 : i32
    %28 = vector.broadcast %c2_i32_24 : i32 to vector<3x6xi32>
    %29 = arith.muli %28, %26 : vector<3x6xi32>
    %30 = arith.cmpi eq, %27, %29 : vector<3x6xi32>
    %31 = arith.extui %30 : vector<3x6xi1> to vector<3x6xi32>
    %32 = arith.sitofp %31 : vector<3x6xi32> to vector<3x6xf32>
    %c2_i32_25 = arith.constant 2 : i32
    %33 = vector.broadcast %c2_i32_25 : i32 to vector<3x6xi32>
    %34 = arith.muli %33, %26 : vector<3x6xi32>
    %c1_i32_26 = arith.constant 1 : i32
    %35 = vector.broadcast %c1_i32_26 : i32 to vector<3x6xi32>
    %36 = arith.addi %34, %35 : vector<3x6xi32>
    %37 = arith.cmpi eq, %27, %36 : vector<3x6xi32>
    %38 = arith.extui %37 : vector<3x6xi1> to vector<3x6xi32>
    %39 = arith.sitofp %38 : vector<3x6xi32> to vector<3x6xf32>
    %cst = arith.constant 0.000000e+00 : f32
    %40 = vector.broadcast %cst : f32 to vector<16x16x80xf32>
    %c0_27 = arith.constant 0 : index
    %c0_28 = arith.constant 0 : index
    %c0_29 = arith.constant 0 : index
    %41 = vector.load %arg13[%c0_27, %c0_28, %c0_29] : memref<16x16x80xf32, #tpu.memory_space<vmem>>, vector<16x16x80xf32>
    tpu.vector_store %arg13[%c0_27, %c0_28, %c0_29], %40 {strides = array<i32>} : memref<16x16x80xf32, #tpu.memory_space<vmem>>, vector<16x16x80xf32>,
    %42 = vector.extract_strided_slice %1 {offsets = [0, 0, 0], sizes = [16, 16, 3], strides = [1, 1, 1]} : vector<20x20x3xf32> to vector<16x16x3xf32>
    %c0_30 = arith.constant 0 : index
    %c0_31 = arith.constant 0 : index
    %c0_32 = arith.constant 0 : index
    %43 = vector.load %arg13[%c0_30, %c0_31, %c0_32] : memref<16x16x80xf32, #tpu.memory_space<vmem>>, vector<16x16x3xf32>
    tpu.vector_store %arg13[%c0_30, %c0_31, %c0_32], %42 {strides = array<i32>} : memref<16x16x80xf32, #tpu.memory_space<vmem>>, vector<16x16x3xf32>,
    %44 = vector.extract_strided_slice %1 {offsets = [0, 1, 0], sizes = [16, 16, 3], strides = [1, 1, 1]} : vector<20x20x3xf32> to vector<16x16x3xf32>
    %c0_33 = arith.constant 0 : index
    %c0_34 = arith.constant 0 : index
    %c3 = arith.constant 3 : index
    %45 = vector.load %arg13[%c0_33, %c0_34, %c3] : memref<16x16x80xf32, #tpu.memory_space<vmem>>, vector<16x16x3xf32>
    tpu.vector_store %arg13[%c0_33, %c0_34, %c3], %44 {strides = array<i32>} : memref<16x16x80xf32, #tpu.memory_space<vmem>>, vector<16x16x3xf32>,
    %46 = vector.extract_strided_slice %1 {offsets = [0, 2, 0], sizes = [16, 16, 3], strides = [1, 1, 1]} : vector<20x20x3xf32> to vector<16x16x3xf32>
    %c0_35 = arith.constant 0 : index
    %c0_36 = arith.constant 0 : index
    %c6 = arith.constant 6 : index
    %47 = vector.load %arg13[%c0_35, %c0_36, %c6] : memref<16x16x80xf32, #tpu.memory_space<vmem>>, vector<16x16x3xf32>
    tpu.vector_store %arg13[%c0_35, %c0_36, %c6], %46 {strides = array<i32>} : memref<16x16x80xf32, #tpu.memory_space<vmem>>, vector<16x16x3xf32>,
    %48 = vector.extract_strided_slice %1 {offsets = [0, 3, 0], sizes = [16, 16, 3], strides = [1, 1, 1]} : vector<20x20x3xf32> to vector<16x16x3xf32>
    %c0_37 = arith.constant 0 : index
    %c0_38 = arith.constant 0 : index
    %c9 = arith.constant 9 : index
    %49 = vector.load %arg13[%c0_37, %c0_38, %c9] : memref<16x16x80xf32, #tpu.memory_space<vmem>>, vector<16x16x3xf32>
    tpu.vector_store %arg13[%c0_37, %c0_38, %c9], %48 {strides = array<i32>} : memref<16x16x80xf32, #tpu.memory_space<vmem>>, vector<16x16x3xf32>,
    %50 = vector.extract_strided_slice %1 {offsets = [0, 4, 0], sizes = [16, 16, 3], strides = [1, 1, 1]} : vector<20x20x3xf32> to vector<16x16x3xf32>
    %c0_39 = arith.constant 0 : index
    %c0_40 = arith.constant 0 : index
    %c12 = arith.constant 12 : index
    %51 = vector.load %arg13[%c0_39, %c0_40, %c12] : memref<16x16x80xf32, #tpu.memory_space<vmem>>, vector<16x16x3xf32>
    tpu.vector_store %arg13[%c0_39, %c0_40, %c12], %50 {strides = array<i32>} : memref<16x16x80xf32, #tpu.memory_space<vmem>>, vector<16x16x3xf32>,
    %52 = vector.extract_strided_slice %1 {offsets = [1, 0, 0], sizes = [16, 16, 3], strides = [1, 1, 1]} : vector<20x20x3xf32> to vector<16x16x3xf32>
    %c0_41 = arith.constant 0 : index
    %c0_42 = arith.constant 0 : index
    %c15 = arith.constant 15 : index
    %53 = vector.load %arg13[%c0_41, %c0_42, %c15] : memref<16x16x80xf32, #tpu.memory_space<vmem>>, vector<16x16x3xf32>
    tpu.vector_store %arg13[%c0_41, %c0_42, %c15], %52 {strides = array<i32>} : memref<16x16x80xf32, #tpu.memory_space<vmem>>, vector<16x16x3xf32>,
    %54 = vector.extract_strided_slice %1 {offsets = [1, 1, 0], sizes = [16, 16, 3], strides = [1, 1, 1]} : vector<20x20x3xf32> to vector<16x16x3xf32>
    %c0_43 = arith.constant 0 : index
    %c0_44 = arith.constant 0 : index
    %c18 = arith.constant 18 : index
    %55 = vector.load %arg13[%c0_43, %c0_44, %c18] : memref<16x16x80xf32, #tpu.memory_space<vmem>>, vector<16x16x3xf32>
    tpu.vector_store %arg13[%c0_43, %c0_44, %c18], %54 {strides = array<i32>} : memref<16x16x80xf32, #tpu.memory_space<vmem>>, vector<16x16x3xf32>,
    %56 = vector.extract_strided_slice %1 {offsets = [1, 2, 0], sizes = [16, 16, 3], strides = [1, 1, 1]} : vector<20x20x3xf32> to vector<16x16x3xf32>
    %c0_45 = arith.constant 0 : index
    %c0_46 = arith.constant 0 : index
    %c21 = arith.constant 21 : index
    %57 = vector.load %arg13[%c0_45, %c0_46, %c21] : memref<16x16x80xf32, #tpu.memory_space<vmem>>, vector<16x16x3xf32>
    tpu.vector_store %arg13[%c0_45, %c0_46, %c21], %56 {strides = array<i32>} : memref<16x16x80xf32, #tpu.memory_space<vmem>>, vector<16x16x3xf32>,
    %58 = vector.extract_strided_slice %1 {offsets = [1, 3, 0], sizes = [16, 16, 3], strides = [1, 1, 1]} : vector<20x20x3xf32> to vector<16x16x3xf32>
    %c0_47 = arith.constant 0 : index
    %c0_48 = arith.constant 0 : index
    %c24 = arith.constant 24 : index
    %59 = vector.load %arg13[%c0_47, %c0_48, %c24] : memref<16x16x80xf32, #tpu.memory_space<vmem>>, vector<16x16x3xf32>
    tpu.vector_store %arg13[%c0_47, %c0_48, %c24], %58 {strides = array<i32>} : memref<16x16x80xf32, #tpu.memory_space<vmem>>, vector<16x16x3xf32>,
    %60 = vector.extract_strided_slice %1 {offsets = [1, 4, 0], sizes = [16, 16, 3], strides = [1, 1, 1]} : vector<20x20x3xf32> to vector<16x16x3xf32>
    %c0_49 = arith.constant 0 : index
    %c0_50 = arith.constant 0 : index
    %c27 = arith.constant 27 : index
    %61 = vector.load %arg13[%c0_49, %c0_50, %c27] : memref<16x16x80xf32, #tpu.memory_space<vmem>>, vector<16x16x3xf32>
    tpu.vector_store %arg13[%c0_49, %c0_50, %c27], %60 {strides = array<i32>} : memref<16x16x80xf32, #tpu.memory_space<vmem>>, vector<16x16x3xf32>,
    %62 = vector.extract_strided_slice %1 {offsets = [2, 0, 0], sizes = [16, 16, 3], strides = [1, 1, 1]} : vector<20x20x3xf32> to vector<16x16x3xf32>
    %c0_51 = arith.constant 0 : index
    %c0_52 = arith.constant 0 : index
    %c30 = arith.constant 30 : index
    %63 = vector.load %arg13[%c0_51, %c0_52, %c30] : memref<16x16x80xf32, #tpu.memory_space<vmem>>, vector<16x16x3xf32>
    tpu.vector_store %arg13[%c0_51, %c0_52, %c30], %62 {strides = array<i32>} : memref<16x16x80xf32, #tpu.memory_space<vmem>>, vector<16x16x3xf32>,
    %64 = vector.extract_strided_slice %1 {offsets = [2, 1, 0], sizes = [16, 16, 3], strides = [1, 1, 1]} : vector<20x20x3xf32> to vector<16x16x3xf32>
    %c0_53 = arith.constant 0 : index
    %c0_54 = arith.constant 0 : index
    %c33 = arith.constant 33 : index
    %65 = vector.load %arg13[%c0_53, %c0_54, %c33] : memref<16x16x80xf32, #tpu.memory_space<vmem>>, vector<16x16x3xf32>
    tpu.vector_store %arg13[%c0_53, %c0_54, %c33], %64 {strides = array<i32>} : memref<16x16x80xf32, #tpu.memory_space<vmem>>, vector<16x16x3xf32>,
    %66 = vector.extract_strided_slice %1 {offsets = [2, 2, 0], sizes = [16, 16, 3], strides = [1, 1, 1]} : vector<20x20x3xf32> to vector<16x16x3xf32>
    %c0_55 = arith.constant 0 : index
    %c0_56 = arith.constant 0 : index
    %c36 = arith.constant 36 : index
    %67 = vector.load %arg13[%c0_55, %c0_56, %c36] : memref<16x16x80xf32, #tpu.memory_space<vmem>>, vector<16x16x3xf32>
    tpu.vector_store %arg13[%c0_55, %c0_56, %c36], %66 {strides = array<i32>} : memref<16x16x80xf32, #tpu.memory_space<vmem>>, vector<16x16x3xf32>,
    %68 = vector.extract_strided_slice %1 {offsets = [2, 3, 0], sizes = [16, 16, 3], strides = [1, 1, 1]} : vector<20x20x3xf32> to vector<16x16x3xf32>
    %c0_57 = arith.constant 0 : index
    %c0_58 = arith.constant 0 : index
    %c39 = arith.constant 39 : index
    %69 = vector.load %arg13[%c0_57, %c0_58, %c39] : memref<16x16x80xf32, #tpu.memory_space<vmem>>, vector<16x16x3xf32>
    tpu.vector_store %arg13[%c0_57, %c0_58, %c39], %68 {strides = array<i32>} : memref<16x16x80xf32, #tpu.memory_space<vmem>>, vector<16x16x3xf32>,
    %70 = vector.extract_strided_slice %1 {offsets = [2, 4, 0], sizes = [16, 16, 3], strides = [1, 1, 1]} : vector<20x20x3xf32> to vector<16x16x3xf32>
    %c0_59 = arith.constant 0 : index
    %c0_60 = arith.constant 0 : index
    %c42 = arith.constant 42 : index
    %71 = vector.load %arg13[%c0_59, %c0_60, %c42] : memref<16x16x80xf32, #tpu.memory_space<vmem>>, vector<16x16x3xf32>
    tpu.vector_store %arg13[%c0_59, %c0_60, %c42], %70 {strides = array<i32>} : memref<16x16x80xf32, #tpu.memory_space<vmem>>, vector<16x16x3xf32>,
    %72 = vector.extract_strided_slice %1 {offsets = [3, 0, 0], sizes = [16, 16, 3], strides = [1, 1, 1]} : vector<20x20x3xf32> to vector<16x16x3xf32>
    %c0_61 = arith.constant 0 : index
    %c0_62 = arith.constant 0 : index
    %c45 = arith.constant 45 : index
    %73 = vector.load %arg13[%c0_61, %c0_62, %c45] : memref<16x16x80xf32, #tpu.memory_space<vmem>>, vector<16x16x3xf32>
    tpu.vector_store %arg13[%c0_61, %c0_62, %c45], %72 {strides = array<i32>} : memref<16x16x80xf32, #tpu.memory_space<vmem>>, vector<16x16x3xf32>,
    %74 = vector.extract_strided_slice %1 {offsets = [3, 1, 0], sizes = [16, 16, 3], strides = [1, 1, 1]} : vector<20x20x3xf32> to vector<16x16x3xf32>
    %c0_63 = arith.constant 0 : index
    %c0_64 = arith.constant 0 : index
    %c48 = arith.constant 48 : index
    %75 = vector.load %arg13[%c0_63, %c0_64, %c48] : memref<16x16x80xf32, #tpu.memory_space<vmem>>, vector<16x16x3xf32>
    tpu.vector_store %arg13[%c0_63, %c0_64, %c48], %74 {strides = array<i32>} : memref<16x16x80xf32, #tpu.memory_space<vmem>>, vector<16x16x3xf32>,
    %76 = vector.extract_strided_slice %1 {offsets = [3, 2, 0], sizes = [16, 16, 3], strides = [1, 1, 1]} : vector<20x20x3xf32> to vector<16x16x3xf32>
    %c0_65 = arith.constant 0 : index
    %c0_66 = arith.constant 0 : index
    %c51 = arith.constant 51 : index
    %77 = vector.load %arg13[%c0_65, %c0_66, %c51] : memref<16x16x80xf32, #tpu.memory_space<vmem>>, vector<16x16x3xf32>
    tpu.vector_store %arg13[%c0_65, %c0_66, %c51], %76 {strides = array<i32>} : memref<16x16x80xf32, #tpu.memory_space<vmem>>, vector<16x16x3xf32>,
    %78 = vector.extract_strided_slice %1 {offsets = [3, 3, 0], sizes = [16, 16, 3], strides = [1, 1, 1]} : vector<20x20x3xf32> to vector<16x16x3xf32>
    %c0_67 = arith.constant 0 : index
    %c0_68 = arith.constant 0 : index
    %c54 = arith.constant 54 : index
    %79 = vector.load %arg13[%c0_67, %c0_68, %c54] : memref<16x16x80xf32, #tpu.memory_space<vmem>>, vector<16x16x3xf32>
    tpu.vector_store %arg13[%c0_67, %c0_68, %c54], %78 {strides = array<i32>} : memref<16x16x80xf32, #tpu.memory_space<vmem>>, vector<16x16x3xf32>,
    %80 = vector.extract_strided_slice %1 {offsets = [3, 4, 0], sizes = [16, 16, 3], strides = [1, 1, 1]} : vector<20x20x3xf32> to vector<16x16x3xf32>
    %c0_69 = arith.constant 0 : index
    %c0_70 = arith.constant 0 : index
    %c57 = arith.constant 57 : index
    %81 = vector.load %arg13[%c0_69, %c0_70, %c57] : memref<16x16x80xf32, #tpu.memory_space<vmem>>, vector<16x16x3xf32>
    tpu.vector_store %arg13[%c0_69, %c0_70, %c57], %80 {strides = array<i32>} : memref<16x16x80xf32, #tpu.memory_space<vmem>>, vector<16x16x3xf32>,
    %82 = vector.extract_strided_slice %1 {offsets = [4, 0, 0], sizes = [16, 16, 3], strides = [1, 1, 1]} : vector<20x20x3xf32> to vector<16x16x3xf32>
    %c0_71 = arith.constant 0 : index
    %c0_72 = arith.constant 0 : index
    %c60 = arith.constant 60 : index
    %83 = vector.load %arg13[%c0_71, %c0_72, %c60] : memref<16x16x80xf32, #tpu.memory_space<vmem>>, vector<16x16x3xf32>
    tpu.vector_store %arg13[%c0_71, %c0_72, %c60], %82 {strides = array<i32>} : memref<16x16x80xf32, #tpu.memory_space<vmem>>, vector<16x16x3xf32>,
    %84 = vector.extract_strided_slice %1 {offsets = [4, 1, 0], sizes = [16, 16, 3], strides = [1, 1, 1]} : vector<20x20x3xf32> to vector<16x16x3xf32>
    %c0_73 = arith.constant 0 : index
    %c0_74 = arith.constant 0 : index
    %c63 = arith.constant 63 : index
    %85 = vector.load %arg13[%c0_73, %c0_74, %c63] : memref<16x16x80xf32, #tpu.memory_space<vmem>>, vector<16x16x3xf32>
    tpu.vector_store %arg13[%c0_73, %c0_74, %c63], %84 {strides = array<i32>} : memref<16x16x80xf32, #tpu.memory_space<vmem>>, vector<16x16x3xf32>,
    %86 = vector.extract_strided_slice %1 {offsets = [4, 2, 0], sizes = [16, 16, 3], strides = [1, 1, 1]} : vector<20x20x3xf32> to vector<16x16x3xf32>
    %c0_75 = arith.constant 0 : index
    %c0_76 = arith.constant 0 : index
    %c66 = arith.constant 66 : index
    %87 = vector.load %arg13[%c0_75, %c0_76, %c66] : memref<16x16x80xf32, #tpu.memory_space<vmem>>, vector<16x16x3xf32>
    tpu.vector_store %arg13[%c0_75, %c0_76, %c66], %86 {strides = array<i32>} : memref<16x16x80xf32, #tpu.memory_space<vmem>>, vector<16x16x3xf32>,
    %88 = vector.extract_strided_slice %1 {offsets = [4, 3, 0], sizes = [16, 16, 3], strides = [1, 1, 1]} : vector<20x20x3xf32> to vector<16x16x3xf32>
    %c0_77 = arith.constant 0 : index
    %c0_78 = arith.constant 0 : index
    %c69 = arith.constant 69 : index
    %89 = vector.load %arg13[%c0_77, %c0_78, %c69] : memref<16x16x80xf32, #tpu.memory_space<vmem>>, vector<16x16x3xf32>
    tpu.vector_store %arg13[%c0_77, %c0_78, %c69], %88 {strides = array<i32>} : memref<16x16x80xf32, #tpu.memory_space<vmem>>, vector<16x16x3xf32>,
    %90 = vector.extract_strided_slice %1 {offsets = [4, 4, 0], sizes = [16, 16, 3], strides = [1, 1, 1]} : vector<20x20x3xf32> to vector<16x16x3xf32>
    %c0_79 = arith.constant 0 : index
    %c0_80 = arith.constant 0 : index
    %c72 = arith.constant 72 : index
    %91 = vector.load %arg13[%c0_79, %c0_80, %c72] : memref<16x16x80xf32, #tpu.memory_space<vmem>>, vector<16x16x3xf32>
    tpu.vector_store %arg13[%c0_79, %c0_80, %c72], %90 {strides = array<i32>} : memref<16x16x80xf32, #tpu.memory_space<vmem>>, vector<16x16x3xf32>,
    %c0_81 = arith.constant 0 : index
    %c0_82 = arith.constant 0 : index
    %c0_83 = arith.constant 0 : index
    %92 = vector.load %arg13[%c0_81, %c0_82, %c0_83] : memref<16x16x80xf32, #tpu.memory_space<vmem>>, vector<1x16x80xf32>
    %93 = vector.shape_cast %92 : vector<1x16x80xf32> to vector<16x80xf32>
    %94 = arith.truncf %93 : vector<16x80xf32> to vector<16x80xbf16>
    %cst_84 = arith.constant dense<0.000000e+00> : vector<16x32xf32>
    %95 = tpu.matmul %94, %2, %cst_84 {dimension_numbers = #tpu.dot_dimension_numbers<[1], [0], [0], [1], [0, 0, 1, 1], [], []>} : vector<16x80xbf16>, vector<80x32xbf16>, vector<16x32xf32> -> vector<16x32xf32>
    %96 = vector.broadcast %7 : vector<1x32xf32> to vector<16x32xf32>
    %97 = arith.addf %95, %96 : vector<16x32xf32>
    %cst_85 = arith.constant 0.000000e+00 : f32
    %98 = vector.broadcast %cst_85 : f32 to vector<16x32xf32>
    %99 = arith.maximumf %97, %98 : vector<16x32xf32>
    %c0_86 = arith.constant 0 : index
    %c0_87 = arith.constant 0 : index
    %c0_88 = arith.constant 0 : index
    %100 = vector.load %arg14[%c0_86, %c0_87, %c0_88] : memref<16x16x32xf32, #tpu.memory_space<vmem>>, vector<1x16x32xf32>
    %101 = vector.shape_cast %100 : vector<1x16x32xf32> to vector<16x32xf32>
    %102 = vector.shape_cast %99 : vector<16x32xf32> to vector<1x16x32xf32>
    tpu.vector_store %arg14[%c0_86, %c0_87, %c0_88], %102 {strides = array<i32>} : memref<16x16x32xf32, #tpu.memory_space<vmem>>, vector<1x16x32xf32>,
    %c1 = arith.constant 1 : index
    %c0_89 = arith.constant 0 : index
    %c0_90 = arith.constant 0 : index
    %103 = vector.load %arg13[%c1, %c0_89, %c0_90] : memref<16x16x80xf32, #tpu.memory_space<vmem>>, vector<1x16x80xf32>
    %104 = vector.shape_cast %103 : vector<1x16x80xf32> to vector<16x80xf32>
    %105 = arith.truncf %104 : vector<16x80xf32> to vector<16x80xbf16>
    %cst_91 = arith.constant dense<0.000000e+00> : vector<16x32xf32>
    %106 = tpu.matmul %105, %2, %cst_91 {dimension_numbers = #tpu.dot_dimension_numbers<[1], [0], [0], [1], [0, 0, 1, 1], [], []>} : vector<16x80xbf16>, vector<80x32xbf16>, vector<16x32xf32> -> vector<16x32xf32>
    %107 = vector.broadcast %7 : vector<1x32xf32> to vector<16x32xf32>
    %108 = arith.addf %106, %107 : vector<16x32xf32>
    %cst_92 = arith.constant 0.000000e+00 : f32
    %109 = vector.broadcast %cst_92 : f32 to vector<16x32xf32>
    %110 = arith.maximumf %108, %109 : vector<16x32xf32>
    %c1_93 = arith.constant 1 : index
    %c0_94 = arith.constant 0 : index
    %c0_95 = arith.constant 0 : index
    %111 = vector.load %arg14[%c1_93, %c0_94, %c0_95] : memref<16x16x32xf32, #tpu.memory_space<vmem>>, vector<1x16x32xf32>
    %112 = vector.shape_cast %111 : vector<1x16x32xf32> to vector<16x32xf32>
    %113 = vector.shape_cast %110 : vector<16x32xf32> to vector<1x16x32xf32>
    tpu.vector_store %arg14[%c1_93, %c0_94, %c0_95], %113 {strides = array<i32>} : memref<16x16x32xf32, #tpu.memory_space<vmem>>, vector<1x16x32xf32>,
    %c2 = arith.constant 2 : index
    %c0_96 = arith.constant 0 : index
    %c0_97 = arith.constant 0 : index
    %114 = vector.load %arg13[%c2, %c0_96, %c0_97] : memref<16x16x80xf32, #tpu.memory_space<vmem>>, vector<1x16x80xf32>
    %115 = vector.shape_cast %114 : vector<1x16x80xf32> to vector<16x80xf32>
    %116 = arith.truncf %115 : vector<16x80xf32> to vector<16x80xbf16>
    %cst_98 = arith.constant dense<0.000000e+00> : vector<16x32xf32>
    %117 = tpu.matmul %116, %2, %cst_98 {dimension_numbers = #tpu.dot_dimension_numbers<[1], [0], [0], [1], [0, 0, 1, 1], [], []>} : vector<16x80xbf16>, vector<80x32xbf16>, vector<16x32xf32> -> vector<16x32xf32>
    %118 = vector.broadcast %7 : vector<1x32xf32> to vector<16x32xf32>
    %119 = arith.addf %117, %118 : vector<16x32xf32>
    %cst_99 = arith.constant 0.000000e+00 : f32
    %120 = vector.broadcast %cst_99 : f32 to vector<16x32xf32>
    %121 = arith.maximumf %119, %120 : vector<16x32xf32>
    %c2_100 = arith.constant 2 : index
    %c0_101 = arith.constant 0 : index
    %c0_102 = arith.constant 0 : index
    %122 = vector.load %arg14[%c2_100, %c0_101, %c0_102] : memref<16x16x32xf32, #tpu.memory_space<vmem>>, vector<1x16x32xf32>
    %123 = vector.shape_cast %122 : vector<1x16x32xf32> to vector<16x32xf32>
    %124 = vector.shape_cast %121 : vector<16x32xf32> to vector<1x16x32xf32>
    tpu.vector_store %arg14[%c2_100, %c0_101, %c0_102], %124 {strides = array<i32>} : memref<16x16x32xf32, #tpu.memory_space<vmem>>, vector<1x16x32xf32>,
    %c3_103 = arith.constant 3 : index
    %c0_104 = arith.constant 0 : index
    %c0_105 = arith.constant 0 : index
    %125 = vector.load %arg13[%c3_103, %c0_104, %c0_105] : memref<16x16x80xf32, #tpu.memory_space<vmem>>, vector<1x16x80xf32>
    %126 = vector.shape_cast %125 : vector<1x16x80xf32> to vector<16x80xf32>
    %127 = arith.truncf %126 : vector<16x80xf32> to vector<16x80xbf16>
    %cst_106 = arith.constant dense<0.000000e+00> : vector<16x32xf32>
    %128 = tpu.matmul %127, %2, %cst_106 {dimension_numbers = #tpu.dot_dimension_numbers<[1], [0], [0], [1], [0, 0, 1, 1], [], []>} : vector<16x80xbf16>, vector<80x32xbf16>, vector<16x32xf32> -> vector<16x32xf32>
    %129 = vector.broadcast %7 : vector<1x32xf32> to vector<16x32xf32>
    %130 = arith.addf %128, %129 : vector<16x32xf32>
    %cst_107 = arith.constant 0.000000e+00 : f32
    %131 = vector.broadcast %cst_107 : f32 to vector<16x32xf32>
    %132 = arith.maximumf %130, %131 : vector<16x32xf32>
    %c3_108 = arith.constant 3 : index
    %c0_109 = arith.constant 0 : index
    %c0_110 = arith.constant 0 : index
    %133 = vector.load %arg14[%c3_108, %c0_109, %c0_110] : memref<16x16x32xf32, #tpu.memory_space<vmem>>, vector<1x16x32xf32>
    %134 = vector.shape_cast %133 : vector<1x16x32xf32> to vector<16x32xf32>
    %135 = vector.shape_cast %132 : vector<16x32xf32> to vector<1x16x32xf32>
    tpu.vector_store %arg14[%c3_108, %c0_109, %c0_110], %135 {strides = array<i32>} : memref<16x16x32xf32, #tpu.memory_space<vmem>>, vector<1x16x32xf32>,
    %c4 = arith.constant 4 : index
    %c0_111 = arith.constant 0 : index
    %c0_112 = arith.constant 0 : index
    %136 = vector.load %arg13[%c4, %c0_111, %c0_112] : memref<16x16x80xf32, #tpu.memory_space<vmem>>, vector<1x16x80xf32>
    %137 = vector.shape_cast %136 : vector<1x16x80xf32> to vector<16x80xf32>
    %138 = arith.truncf %137 : vector<16x80xf32> to vector<16x80xbf16>
    %cst_113 = arith.constant dense<0.000000e+00> : vector<16x32xf32>
    %139 = tpu.matmul %138, %2, %cst_113 {dimension_numbers = #tpu.dot_dimension_numbers<[1], [0], [0], [1], [0, 0, 1, 1], [], []>} : vector<16x80xbf16>, vector<80x32xbf16>, vector<16x32xf32> -> vector<16x32xf32>
    %140 = vector.broadcast %7 : vector<1x32xf32> to vector<16x32xf32>
    %141 = arith.addf %139, %140 : vector<16x32xf32>
    %cst_114 = arith.constant 0.000000e+00 : f32
    %142 = vector.broadcast %cst_114 : f32 to vector<16x32xf32>
    %143 = arith.maximumf %141, %142 : vector<16x32xf32>
    %c4_115 = arith.constant 4 : index
    %c0_116 = arith.constant 0 : index
    %c0_117 = arith.constant 0 : index
    %144 = vector.load %arg14[%c4_115, %c0_116, %c0_117] : memref<16x16x32xf32, #tpu.memory_space<vmem>>, vector<1x16x32xf32>
    %145 = vector.shape_cast %144 : vector<1x16x32xf32> to vector<16x32xf32>
    %146 = vector.shape_cast %143 : vector<16x32xf32> to vector<1x16x32xf32>
    tpu.vector_store %arg14[%c4_115, %c0_116, %c0_117], %146 {strides = array<i32>} : memref<16x16x32xf32, #tpu.memory_space<vmem>>, vector<1x16x32xf32>,
    %c5 = arith.constant 5 : index
    %c0_118 = arith.constant 0 : index
    %c0_119 = arith.constant 0 : index
    %147 = vector.load %arg13[%c5, %c0_118, %c0_119] : memref<16x16x80xf32, #tpu.memory_space<vmem>>, vector<1x16x80xf32>
    %148 = vector.shape_cast %147 : vector<1x16x80xf32> to vector<16x80xf32>
    %149 = arith.truncf %148 : vector<16x80xf32> to vector<16x80xbf16>
    %cst_120 = arith.constant dense<0.000000e+00> : vector<16x32xf32>
    %150 = tpu.matmul %149, %2, %cst_120 {dimension_numbers = #tpu.dot_dimension_numbers<[1], [0], [0], [1], [0, 0, 1, 1], [], []>} : vector<16x80xbf16>, vector<80x32xbf16>, vector<16x32xf32> -> vector<16x32xf32>
    %151 = vector.broadcast %7 : vector<1x32xf32> to vector<16x32xf32>
    %152 = arith.addf %150, %151 : vector<16x32xf32>
    %cst_121 = arith.constant 0.000000e+00 : f32
    %153 = vector.broadcast %cst_121 : f32 to vector<16x32xf32>
    %154 = arith.maximumf %152, %153 : vector<16x32xf32>
    %c5_122 = arith.constant 5 : index
    %c0_123 = arith.constant 0 : index
    %c0_124 = arith.constant 0 : index
    %155 = vector.load %arg14[%c5_122, %c0_123, %c0_124] : memref<16x16x32xf32, #tpu.memory_space<vmem>>, vector<1x16x32xf32>
    %156 = vector.shape_cast %155 : vector<1x16x32xf32> to vector<16x32xf32>
    %157 = vector.shape_cast %154 : vector<16x32xf32> to vector<1x16x32xf32>
    tpu.vector_store %arg14[%c5_122, %c0_123, %c0_124], %157 {strides = array<i32>} : memref<16x16x32xf32, #tpu.memory_space<vmem>>, vector<1x16x32xf32>,
    %c6_125 = arith.constant 6 : index
    %c0_126 = arith.constant 0 : index
    %c0_127 = arith.constant 0 : index
    %158 = vector.load %arg13[%c6_125, %c0_126, %c0_127] : memref<16x16x80xf32, #tpu.memory_space<vmem>>, vector<1x16x80xf32>
    %159 = vector.shape_cast %158 : vector<1x16x80xf32> to vector<16x80xf32>
    %160 = arith.truncf %159 : vector<16x80xf32> to vector<16x80xbf16>
    %cst_128 = arith.constant dense<0.000000e+00> : vector<16x32xf32>
    %161 = tpu.matmul %160, %2, %cst_128 {dimension_numbers = #tpu.dot_dimension_numbers<[1], [0], [0], [1], [0, 0, 1, 1], [], []>} : vector<16x80xbf16>, vector<80x32xbf16>, vector<16x32xf32> -> vector<16x32xf32>
    %162 = vector.broadcast %7 : vector<1x32xf32> to vector<16x32xf32>
    %163 = arith.addf %161, %162 : vector<16x32xf32>
    %cst_129 = arith.constant 0.000000e+00 : f32
    %164 = vector.broadcast %cst_129 : f32 to vector<16x32xf32>
    %165 = arith.maximumf %163, %164 : vector<16x32xf32>
    %c6_130 = arith.constant 6 : index
    %c0_131 = arith.constant 0 : index
    %c0_132 = arith.constant 0 : index
    %166 = vector.load %arg14[%c6_130, %c0_131, %c0_132] : memref<16x16x32xf32, #tpu.memory_space<vmem>>, vector<1x16x32xf32>
    %167 = vector.shape_cast %166 : vector<1x16x32xf32> to vector<16x32xf32>
    %168 = vector.shape_cast %165 : vector<16x32xf32> to vector<1x16x32xf32>
    tpu.vector_store %arg14[%c6_130, %c0_131, %c0_132], %168 {strides = array<i32>} : memref<16x16x32xf32, #tpu.memory_space<vmem>>, vector<1x16x32xf32>,
    %c7 = arith.constant 7 : index
    %c0_133 = arith.constant 0 : index
    %c0_134 = arith.constant 0 : index
    %169 = vector.load %arg13[%c7, %c0_133, %c0_134] : memref<16x16x80xf32, #tpu.memory_space<vmem>>, vector<1x16x80xf32>
    %170 = vector.shape_cast %169 : vector<1x16x80xf32> to vector<16x80xf32>
    %171 = arith.truncf %170 : vector<16x80xf32> to vector<16x80xbf16>
    %cst_135 = arith.constant dense<0.000000e+00> : vector<16x32xf32>
    %172 = tpu.matmul %171, %2, %cst_135 {dimension_numbers = #tpu.dot_dimension_numbers<[1], [0], [0], [1], [0, 0, 1, 1], [], []>} : vector<16x80xbf16>, vector<80x32xbf16>, vector<16x32xf32> -> vector<16x32xf32>
    %173 = vector.broadcast %7 : vector<1x32xf32> to vector<16x32xf32>
    %174 = arith.addf %172, %173 : vector<16x32xf32>
    %cst_136 = arith.constant 0.000000e+00 : f32
    %175 = vector.broadcast %cst_136 : f32 to vector<16x32xf32>
    %176 = arith.maximumf %174, %175 : vector<16x32xf32>
    %c7_137 = arith.constant 7 : index
    %c0_138 = arith.constant 0 : index
    %c0_139 = arith.constant 0 : index
    %177 = vector.load %arg14[%c7_137, %c0_138, %c0_139] : memref<16x16x32xf32, #tpu.memory_space<vmem>>, vector<1x16x32xf32>
    %178 = vector.shape_cast %177 : vector<1x16x32xf32> to vector<16x32xf32>
    %179 = vector.shape_cast %176 : vector<16x32xf32> to vector<1x16x32xf32>
    tpu.vector_store %arg14[%c7_137, %c0_138, %c0_139], %179 {strides = array<i32>} : memref<16x16x32xf32, #tpu.memory_space<vmem>>, vector<1x16x32xf32>,
    %c8 = arith.constant 8 : index
    %c0_140 = arith.constant 0 : index
    %c0_141 = arith.constant 0 : index
    %180 = vector.load %arg13[%c8, %c0_140, %c0_141] : memref<16x16x80xf32, #tpu.memory_space<vmem>>, vector<1x16x80xf32>
    %181 = vector.shape_cast %180 : vector<1x16x80xf32> to vector<16x80xf32>
    %182 = arith.truncf %181 : vector<16x80xf32> to vector<16x80xbf16>
    %cst_142 = arith.constant dense<0.000000e+00> : vector<16x32xf32>
    %183 = tpu.matmul %182, %2, %cst_142 {dimension_numbers = #tpu.dot_dimension_numbers<[1], [0], [0], [1], [0, 0, 1, 1], [], []>} : vector<16x80xbf16>, vector<80x32xbf16>, vector<16x32xf32> -> vector<16x32xf32>
    %184 = vector.broadcast %7 : vector<1x32xf32> to vector<16x32xf32>
    %185 = arith.addf %183, %184 : vector<16x32xf32>
    %cst_143 = arith.constant 0.000000e+00 : f32
    %186 = vector.broadcast %cst_143 : f32 to vector<16x32xf32>
    %187 = arith.maximumf %185, %186 : vector<16x32xf32>
    %c8_144 = arith.constant 8 : index
    %c0_145 = arith.constant 0 : index
    %c0_146 = arith.constant 0 : index
    %188 = vector.load %arg14[%c8_144, %c0_145, %c0_146] : memref<16x16x32xf32, #tpu.memory_space<vmem>>, vector<1x16x32xf32>
    %189 = vector.shape_cast %188 : vector<1x16x32xf32> to vector<16x32xf32>
    %190 = vector.shape_cast %187 : vector<16x32xf32> to vector<1x16x32xf32>
    tpu.vector_store %arg14[%c8_144, %c0_145, %c0_146], %190 {strides = array<i32>} : memref<16x16x32xf32, #tpu.memory_space<vmem>>, vector<1x16x32xf32>,
    %c9_147 = arith.constant 9 : index
    %c0_148 = arith.constant 0 : index
    %c0_149 = arith.constant 0 : index
    %191 = vector.load %arg13[%c9_147, %c0_148, %c0_149] : memref<16x16x80xf32, #tpu.memory_space<vmem>>, vector<1x16x80xf32>
    %192 = vector.shape_cast %191 : vector<1x16x80xf32> to vector<16x80xf32>
    %193 = arith.truncf %192 : vector<16x80xf32> to vector<16x80xbf16>
    %cst_150 = arith.constant dense<0.000000e+00> : vector<16x32xf32>
    %194 = tpu.matmul %193, %2, %cst_150 {dimension_numbers = #tpu.dot_dimension_numbers<[1], [0], [0], [1], [0, 0, 1, 1], [], []>} : vector<16x80xbf16>, vector<80x32xbf16>, vector<16x32xf32> -> vector<16x32xf32>
    %195 = vector.broadcast %7 : vector<1x32xf32> to vector<16x32xf32>
    %196 = arith.addf %194, %195 : vector<16x32xf32>
    %cst_151 = arith.constant 0.000000e+00 : f32
    %197 = vector.broadcast %cst_151 : f32 to vector<16x32xf32>
    %198 = arith.maximumf %196, %197 : vector<16x32xf32>
    %c9_152 = arith.constant 9 : index
    %c0_153 = arith.constant 0 : index
    %c0_154 = arith.constant 0 : index
    %199 = vector.load %arg14[%c9_152, %c0_153, %c0_154] : memref<16x16x32xf32, #tpu.memory_space<vmem>>, vector<1x16x32xf32>
    %200 = vector.shape_cast %199 : vector<1x16x32xf32> to vector<16x32xf32>
    %201 = vector.shape_cast %198 : vector<16x32xf32> to vector<1x16x32xf32>
    tpu.vector_store %arg14[%c9_152, %c0_153, %c0_154], %201 {strides = array<i32>} : memref<16x16x32xf32, #tpu.memory_space<vmem>>, vector<1x16x32xf32>,
    %c10 = arith.constant 10 : index
    %c0_155 = arith.constant 0 : index
    %c0_156 = arith.constant 0 : index
    %202 = vector.load %arg13[%c10, %c0_155, %c0_156] : memref<16x16x80xf32, #tpu.memory_space<vmem>>, vector<1x16x80xf32>
    %203 = vector.shape_cast %202 : vector<1x16x80xf32> to vector<16x80xf32>
    %204 = arith.truncf %203 : vector<16x80xf32> to vector<16x80xbf16>
    %cst_157 = arith.constant dense<0.000000e+00> : vector<16x32xf32>
    %205 = tpu.matmul %204, %2, %cst_157 {dimension_numbers = #tpu.dot_dimension_numbers<[1], [0], [0], [1], [0, 0, 1, 1], [], []>} : vector<16x80xbf16>, vector<80x32xbf16>, vector<16x32xf32> -> vector<16x32xf32>
    %206 = vector.broadcast %7 : vector<1x32xf32> to vector<16x32xf32>
    %207 = arith.addf %205, %206 : vector<16x32xf32>
    %cst_158 = arith.constant 0.000000e+00 : f32
    %208 = vector.broadcast %cst_158 : f32 to vector<16x32xf32>
    %209 = arith.maximumf %207, %208 : vector<16x32xf32>
    %c10_159 = arith.constant 10 : index
    %c0_160 = arith.constant 0 : index
    %c0_161 = arith.constant 0 : index
    %210 = vector.load %arg14[%c10_159, %c0_160, %c0_161] : memref<16x16x32xf32, #tpu.memory_space<vmem>>, vector<1x16x32xf32>
    %211 = vector.shape_cast %210 : vector<1x16x32xf32> to vector<16x32xf32>
    %212 = vector.shape_cast %209 : vector<16x32xf32> to vector<1x16x32xf32>
    tpu.vector_store %arg14[%c10_159, %c0_160, %c0_161], %212 {strides = array<i32>} : memref<16x16x32xf32, #tpu.memory_space<vmem>>, vector<1x16x32xf32>,
    %c11 = arith.constant 11 : index
    %c0_162 = arith.constant 0 : index
    %c0_163 = arith.constant 0 : index
    %213 = vector.load %arg13[%c11, %c0_162, %c0_163] : memref<16x16x80xf32, #tpu.memory_space<vmem>>, vector<1x16x80xf32>
    %214 = vector.shape_cast %213 : vector<1x16x80xf32> to vector<16x80xf32>
    %215 = arith.truncf %214 : vector<16x80xf32> to vector<16x80xbf16>
    %cst_164 = arith.constant dense<0.000000e+00> : vector<16x32xf32>
    %216 = tpu.matmul %215, %2, %cst_164 {dimension_numbers = #tpu.dot_dimension_numbers<[1], [0], [0], [1], [0, 0, 1, 1], [], []>} : vector<16x80xbf16>, vector<80x32xbf16>, vector<16x32xf32> -> vector<16x32xf32>
    %217 = vector.broadcast %7 : vector<1x32xf32> to vector<16x32xf32>
    %218 = arith.addf %216, %217 : vector<16x32xf32>
    %cst_165 = arith.constant 0.000000e+00 : f32
    %219 = vector.broadcast %cst_165 : f32 to vector<16x32xf32>
    %220 = arith.maximumf %218, %219 : vector<16x32xf32>
    %c11_166 = arith.constant 11 : index
    %c0_167 = arith.constant 0 : index
    %c0_168 = arith.constant 0 : index
    %221 = vector.load %arg14[%c11_166, %c0_167, %c0_168] : memref<16x16x32xf32, #tpu.memory_space<vmem>>, vector<1x16x32xf32>
    %222 = vector.shape_cast %221 : vector<1x16x32xf32> to vector<16x32xf32>
    %223 = vector.shape_cast %220 : vector<16x32xf32> to vector<1x16x32xf32>
    tpu.vector_store %arg14[%c11_166, %c0_167, %c0_168], %223 {strides = array<i32>} : memref<16x16x32xf32, #tpu.memory_space<vmem>>, vector<1x16x32xf32>,
    %c12_169 = arith.constant 12 : index
    %c0_170 = arith.constant 0 : index
    %c0_171 = arith.constant 0 : index
    %224 = vector.load %arg13[%c12_169, %c0_170, %c0_171] : memref<16x16x80xf32, #tpu.memory_space<vmem>>, vector<1x16x80xf32>
    %225 = vector.shape_cast %224 : vector<1x16x80xf32> to vector<16x80xf32>
    %226 = arith.truncf %225 : vector<16x80xf32> to vector<16x80xbf16>
    %cst_172 = arith.constant dense<0.000000e+00> : vector<16x32xf32>
    %227 = tpu.matmul %226, %2, %cst_172 {dimension_numbers = #tpu.dot_dimension_numbers<[1], [0], [0], [1], [0, 0, 1, 1], [], []>} : vector<16x80xbf16>, vector<80x32xbf16>, vector<16x32xf32> -> vector<16x32xf32>
    %228 = vector.broadcast %7 : vector<1x32xf32> to vector<16x32xf32>
    %229 = arith.addf %227, %228 : vector<16x32xf32>
    %cst_173 = arith.constant 0.000000e+00 : f32
    %230 = vector.broadcast %cst_173 : f32 to vector<16x32xf32>
    %231 = arith.maximumf %229, %230 : vector<16x32xf32>
    %c12_174 = arith.constant 12 : index
    %c0_175 = arith.constant 0 : index
    %c0_176 = arith.constant 0 : index
    %232 = vector.load %arg14[%c12_174, %c0_175, %c0_176] : memref<16x16x32xf32, #tpu.memory_space<vmem>>, vector<1x16x32xf32>
    %233 = vector.shape_cast %232 : vector<1x16x32xf32> to vector<16x32xf32>
    %234 = vector.shape_cast %231 : vector<16x32xf32> to vector<1x16x32xf32>
    tpu.vector_store %arg14[%c12_174, %c0_175, %c0_176], %234 {strides = array<i32>} : memref<16x16x32xf32, #tpu.memory_space<vmem>>, vector<1x16x32xf32>,
    %c13 = arith.constant 13 : index
    %c0_177 = arith.constant 0 : index
    %c0_178 = arith.constant 0 : index
    %235 = vector.load %arg13[%c13, %c0_177, %c0_178] : memref<16x16x80xf32, #tpu.memory_space<vmem>>, vector<1x16x80xf32>
    %236 = vector.shape_cast %235 : vector<1x16x80xf32> to vector<16x80xf32>
    %237 = arith.truncf %236 : vector<16x80xf32> to vector<16x80xbf16>
    %cst_179 = arith.constant dense<0.000000e+00> : vector<16x32xf32>
    %238 = tpu.matmul %237, %2, %cst_179 {dimension_numbers = #tpu.dot_dimension_numbers<[1], [0], [0], [1], [0, 0, 1, 1], [], []>} : vector<16x80xbf16>, vector<80x32xbf16>, vector<16x32xf32> -> vector<16x32xf32>
    %239 = vector.broadcast %7 : vector<1x32xf32> to vector<16x32xf32>
    %240 = arith.addf %238, %239 : vector<16x32xf32>
    %cst_180 = arith.constant 0.000000e+00 : f32
    %241 = vector.broadcast %cst_180 : f32 to vector<16x32xf32>
    %242 = arith.maximumf %240, %241 : vector<16x32xf32>
    %c13_181 = arith.constant 13 : index
    %c0_182 = arith.constant 0 : index
    %c0_183 = arith.constant 0 : index
    %243 = vector.load %arg14[%c13_181, %c0_182, %c0_183] : memref<16x16x32xf32, #tpu.memory_space<vmem>>, vector<1x16x32xf32>
    %244 = vector.shape_cast %243 : vector<1x16x32xf32> to vector<16x32xf32>
    %245 = vector.shape_cast %242 : vector<16x32xf32> to vector<1x16x32xf32>
    tpu.vector_store %arg14[%c13_181, %c0_182, %c0_183], %245 {strides = array<i32>} : memref<16x16x32xf32, #tpu.memory_space<vmem>>, vector<1x16x32xf32>,
    %c14 = arith.constant 14 : index
    %c0_184 = arith.constant 0 : index
    %c0_185 = arith.constant 0 : index
    %246 = vector.load %arg13[%c14, %c0_184, %c0_185] : memref<16x16x80xf32, #tpu.memory_space<vmem>>, vector<1x16x80xf32>
    %247 = vector.shape_cast %246 : vector<1x16x80xf32> to vector<16x80xf32>
    %248 = arith.truncf %247 : vector<16x80xf32> to vector<16x80xbf16>
    %cst_186 = arith.constant dense<0.000000e+00> : vector<16x32xf32>
    %249 = tpu.matmul %248, %2, %cst_186 {dimension_numbers = #tpu.dot_dimension_numbers<[1], [0], [0], [1], [0, 0, 1, 1], [], []>} : vector<16x80xbf16>, vector<80x32xbf16>, vector<16x32xf32> -> vector<16x32xf32>
    %250 = vector.broadcast %7 : vector<1x32xf32> to vector<16x32xf32>
    %251 = arith.addf %249, %250 : vector<16x32xf32>
    %cst_187 = arith.constant 0.000000e+00 : f32
    %252 = vector.broadcast %cst_187 : f32 to vector<16x32xf32>
    %253 = arith.maximumf %251, %252 : vector<16x32xf32>
    %c14_188 = arith.constant 14 : index
    %c0_189 = arith.constant 0 : index
    %c0_190 = arith.constant 0 : index
    %254 = vector.load %arg14[%c14_188, %c0_189, %c0_190] : memref<16x16x32xf32, #tpu.memory_space<vmem>>, vector<1x16x32xf32>
    %255 = vector.shape_cast %254 : vector<1x16x32xf32> to vector<16x32xf32>
    %256 = vector.shape_cast %253 : vector<16x32xf32> to vector<1x16x32xf32>
    tpu.vector_store %arg14[%c14_188, %c0_189, %c0_190], %256 {strides = array<i32>} : memref<16x16x32xf32, #tpu.memory_space<vmem>>, vector<1x16x32xf32>,
    %c15_191 = arith.constant 15 : index
    %c0_192 = arith.constant 0 : index
    %c0_193 = arith.constant 0 : index
    %257 = vector.load %arg13[%c15_191, %c0_192, %c0_193] : memref<16x16x80xf32, #tpu.memory_space<vmem>>, vector<1x16x80xf32>
    %258 = vector.shape_cast %257 : vector<1x16x80xf32> to vector<16x80xf32>
    %259 = arith.truncf %258 : vector<16x80xf32> to vector<16x80xbf16>
    %cst_194 = arith.constant dense<0.000000e+00> : vector<16x32xf32>
    %260 = tpu.matmul %259, %2, %cst_194 {dimension_numbers = #tpu.dot_dimension_numbers<[1], [0], [0], [1], [0, 0, 1, 1], [], []>} : vector<16x80xbf16>, vector<80x32xbf16>, vector<16x32xf32> -> vector<16x32xf32>
    %261 = vector.broadcast %7 : vector<1x32xf32> to vector<16x32xf32>
    %262 = arith.addf %260, %261 : vector<16x32xf32>
    %cst_195 = arith.constant 0.000000e+00 : f32
    %263 = vector.broadcast %cst_195 : f32 to vector<16x32xf32>
    %264 = arith.maximumf %262, %263 : vector<16x32xf32>
    %c15_196 = arith.constant 15 : index
    %c0_197 = arith.constant 0 : index
    %c0_198 = arith.constant 0 : index
    %265 = vector.load %arg14[%c15_196, %c0_197, %c0_198] : memref<16x16x32xf32, #tpu.memory_space<vmem>>, vector<1x16x32xf32>
    %266 = vector.shape_cast %265 : vector<1x16x32xf32> to vector<16x32xf32>
    %267 = vector.shape_cast %264 : vector<16x32xf32> to vector<1x16x32xf32>
    tpu.vector_store %arg14[%c15_196, %c0_197, %c0_198], %267 {strides = array<i32>} : memref<16x16x32xf32, #tpu.memory_space<vmem>>, vector<1x16x32xf32>,
    %c0_199 = arith.constant 0 : index
    %c0_200 = arith.constant 0 : index
    %c0_201 = arith.constant 0 : index
    %268 = vector.load %arg14[%c0_199, %c0_200, %c0_201] : memref<16x16x32xf32, #tpu.memory_space<vmem>>, vector<1x16x32xf32>
    %269 = vector.shape_cast %268 : vector<1x16x32xf32> to vector<16x32xf32>
    %c1_202 = arith.constant 1 : index
    %c0_203 = arith.constant 0 : index
    %c0_204 = arith.constant 0 : index
    %270 = vector.load %arg14[%c1_202, %c0_203, %c0_204] : memref<16x16x32xf32, #tpu.memory_space<vmem>>, vector<1x16x32xf32>
    %271 = vector.shape_cast %270 : vector<1x16x32xf32> to vector<16x32xf32>
    %272 = arith.maximumf %269, %271 : vector<16x32xf32>
    %cst_205 = arith.constant dense<0.000000e+00> : vector<8x32xf32>
    %273 = tpu.matmul %18, %272, %cst_205 {dimension_numbers = #tpu.dot_dimension_numbers<[1], [0], [0], [1], [0, 0, 1, 1], [], []>} : vector<8x16xf32>, vector<16x32xf32>, vector<8x32xf32> -> vector<8x32xf32>
    %cst_206 = arith.constant dense<0.000000e+00> : vector<8x32xf32>
    %274 = tpu.matmul %25, %272, %cst_206 {dimension_numbers = #tpu.dot_dimension_numbers<[1], [0], [0], [1], [0, 0, 1, 1], [], []>} : vector<8x16xf32>, vector<16x32xf32>, vector<8x32xf32> -> vector<8x32xf32>
    %275 = arith.maximumf %273, %274 : vector<8x32xf32>
    %c0_207 = arith.constant 0 : index
    %c0_208 = arith.constant 0 : index
    %c0_209 = arith.constant 0 : index
    %276 = vector.load %arg15[%c0_207, %c0_208, %c0_209] : memref<8x8x32xf32, #tpu.memory_space<vmem>>, vector<1x8x32xf32>
    %277 = vector.shape_cast %276 : vector<1x8x32xf32> to vector<8x32xf32>
    %278 = vector.shape_cast %275 : vector<8x32xf32> to vector<1x8x32xf32>
    tpu.vector_store %arg15[%c0_207, %c0_208, %c0_209], %278 {strides = array<i32>} : memref<8x8x32xf32, #tpu.memory_space<vmem>>, vector<1x8x32xf32>,
    %c2_210 = arith.constant 2 : index
    %c0_211 = arith.constant 0 : index
    %c0_212 = arith.constant 0 : index
    %279 = vector.load %arg14[%c2_210, %c0_211, %c0_212] : memref<16x16x32xf32, #tpu.memory_space<vmem>>, vector<1x16x32xf32>
    %280 = vector.shape_cast %279 : vector<1x16x32xf32> to vector<16x32xf32>
    %c3_213 = arith.constant 3 : index
    %c0_214 = arith.constant 0 : index
    %c0_215 = arith.constant 0 : index
    %281 = vector.load %arg14[%c3_213, %c0_214, %c0_215] : memref<16x16x32xf32, #tpu.memory_space<vmem>>, vector<1x16x32xf32>
    %282 = vector.shape_cast %281 : vector<1x16x32xf32> to vector<16x32xf32>
    %283 = arith.maximumf %280, %282 : vector<16x32xf32>
    %cst_216 = arith.constant dense<0.000000e+00> : vector<8x32xf32>
    %284 = tpu.matmul %18, %283, %cst_216 {dimension_numbers = #tpu.dot_dimension_numbers<[1], [0], [0], [1], [0, 0, 1, 1], [], []>} : vector<8x16xf32>, vector<16x32xf32>, vector<8x32xf32> -> vector<8x32xf32>
    %cst_217 = arith.constant dense<0.000000e+00> : vector<8x32xf32>
    %285 = tpu.matmul %25, %283, %cst_217 {dimension_numbers = #tpu.dot_dimension_numbers<[1], [0], [0], [1], [0, 0, 1, 1], [], []>} : vector<8x16xf32>, vector<16x32xf32>, vector<8x32xf32> -> vector<8x32xf32>
    %286 = arith.maximumf %284, %285 : vector<8x32xf32>
    %c1_218 = arith.constant 1 : index
    %c0_219 = arith.constant 0 : index
    %c0_220 = arith.constant 0 : index
    %287 = vector.load %arg15[%c1_218, %c0_219, %c0_220] : memref<8x8x32xf32, #tpu.memory_space<vmem>>, vector<1x8x32xf32>
    %288 = vector.shape_cast %287 : vector<1x8x32xf32> to vector<8x32xf32>
    %289 = vector.shape_cast %286 : vector<8x32xf32> to vector<1x8x32xf32>
    tpu.vector_store %arg15[%c1_218, %c0_219, %c0_220], %289 {strides = array<i32>} : memref<8x8x32xf32, #tpu.memory_space<vmem>>, vector<1x8x32xf32>,
    %c4_221 = arith.constant 4 : index
    %c0_222 = arith.constant 0 : index
    %c0_223 = arith.constant 0 : index
    %290 = vector.load %arg14[%c4_221, %c0_222, %c0_223] : memref<16x16x32xf32, #tpu.memory_space<vmem>>, vector<1x16x32xf32>
    %291 = vector.shape_cast %290 : vector<1x16x32xf32> to vector<16x32xf32>
    %c5_224 = arith.constant 5 : index
    %c0_225 = arith.constant 0 : index
    %c0_226 = arith.constant 0 : index
    %292 = vector.load %arg14[%c5_224, %c0_225, %c0_226] : memref<16x16x32xf32, #tpu.memory_space<vmem>>, vector<1x16x32xf32>
    %293 = vector.shape_cast %292 : vector<1x16x32xf32> to vector<16x32xf32>
    %294 = arith.maximumf %291, %293 : vector<16x32xf32>
    %cst_227 = arith.constant dense<0.000000e+00> : vector<8x32xf32>
    %295 = tpu.matmul %18, %294, %cst_227 {dimension_numbers = #tpu.dot_dimension_numbers<[1], [0], [0], [1], [0, 0, 1, 1], [], []>} : vector<8x16xf32>, vector<16x32xf32>, vector<8x32xf32> -> vector<8x32xf32>
    %cst_228 = arith.constant dense<0.000000e+00> : vector<8x32xf32>
    %296 = tpu.matmul %25, %294, %cst_228 {dimension_numbers = #tpu.dot_dimension_numbers<[1], [0], [0], [1], [0, 0, 1, 1], [], []>} : vector<8x16xf32>, vector<16x32xf32>, vector<8x32xf32> -> vector<8x32xf32>
    %297 = arith.maximumf %295, %296 : vector<8x32xf32>
    %c2_229 = arith.constant 2 : index
    %c0_230 = arith.constant 0 : index
    %c0_231 = arith.constant 0 : index
    %298 = vector.load %arg15[%c2_229, %c0_230, %c0_231] : memref<8x8x32xf32, #tpu.memory_space<vmem>>, vector<1x8x32xf32>
    %299 = vector.shape_cast %298 : vector<1x8x32xf32> to vector<8x32xf32>
    %300 = vector.shape_cast %297 : vector<8x32xf32> to vector<1x8x32xf32>
    tpu.vector_store %arg15[%c2_229, %c0_230, %c0_231], %300 {strides = array<i32>} : memref<8x8x32xf32, #tpu.memory_space<vmem>>, vector<1x8x32xf32>,
    %c6_232 = arith.constant 6 : index
    %c0_233 = arith.constant 0 : index
    %c0_234 = arith.constant 0 : index
    %301 = vector.load %arg14[%c6_232, %c0_233, %c0_234] : memref<16x16x32xf32, #tpu.memory_space<vmem>>, vector<1x16x32xf32>
    %302 = vector.shape_cast %301 : vector<1x16x32xf32> to vector<16x32xf32>
    %c7_235 = arith.constant 7 : index
    %c0_236 = arith.constant 0 : index
    %c0_237 = arith.constant 0 : index
    %303 = vector.load %arg14[%c7_235, %c0_236, %c0_237] : memref<16x16x32xf32, #tpu.memory_space<vmem>>, vector<1x16x32xf32>
    %304 = vector.shape_cast %303 : vector<1x16x32xf32> to vector<16x32xf32>
    %305 = arith.maximumf %302, %304 : vector<16x32xf32>
    %cst_238 = arith.constant dense<0.000000e+00> : vector<8x32xf32>
    %306 = tpu.matmul %18, %305, %cst_238 {dimension_numbers = #tpu.dot_dimension_numbers<[1], [0], [0], [1], [0, 0, 1, 1], [], []>} : vector<8x16xf32>, vector<16x32xf32>, vector<8x32xf32> -> vector<8x32xf32>
    %cst_239 = arith.constant dense<0.000000e+00> : vector<8x32xf32>
    %307 = tpu.matmul %25, %305, %cst_239 {dimension_numbers = #tpu.dot_dimension_numbers<[1], [0], [0], [1], [0, 0, 1, 1], [], []>} : vector<8x16xf32>, vector<16x32xf32>, vector<8x32xf32> -> vector<8x32xf32>
    %308 = arith.maximumf %306, %307 : vector<8x32xf32>
    %c3_240 = arith.constant 3 : index
    %c0_241 = arith.constant 0 : index
    %c0_242 = arith.constant 0 : index
    %309 = vector.load %arg15[%c3_240, %c0_241, %c0_242] : memref<8x8x32xf32, #tpu.memory_space<vmem>>, vector<1x8x32xf32>
    %310 = vector.shape_cast %309 : vector<1x8x32xf32> to vector<8x32xf32>
    %311 = vector.shape_cast %308 : vector<8x32xf32> to vector<1x8x32xf32>
    tpu.vector_store %arg15[%c3_240, %c0_241, %c0_242], %311 {strides = array<i32>} : memref<8x8x32xf32, #tpu.memory_space<vmem>>, vector<1x8x32xf32>,
    %c8_243 = arith.constant 8 : index
    %c0_244 = arith.constant 0 : index
    %c0_245 = arith.constant 0 : index
    %312 = vector.load %arg14[%c8_243, %c0_244, %c0_245] : memref<16x16x32xf32, #tpu.memory_space<vmem>>, vector<1x16x32xf32>
    %313 = vector.shape_cast %312 : vector<1x16x32xf32> to vector<16x32xf32>
    %c9_246 = arith.constant 9 : index
    %c0_247 = arith.constant 0 : index
    %c0_248 = arith.constant 0 : index
    %314 = vector.load %arg14[%c9_246, %c0_247, %c0_248] : memref<16x16x32xf32, #tpu.memory_space<vmem>>, vector<1x16x32xf32>
    %315 = vector.shape_cast %314 : vector<1x16x32xf32> to vector<16x32xf32>
    %316 = arith.maximumf %313, %315 : vector<16x32xf32>
    %cst_249 = arith.constant dense<0.000000e+00> : vector<8x32xf32>
    %317 = tpu.matmul %18, %316, %cst_249 {dimension_numbers = #tpu.dot_dimension_numbers<[1], [0], [0], [1], [0, 0, 1, 1], [], []>} : vector<8x16xf32>, vector<16x32xf32>, vector<8x32xf32> -> vector<8x32xf32>
    %cst_250 = arith.constant dense<0.000000e+00> : vector<8x32xf32>
    %318 = tpu.matmul %25, %316, %cst_250 {dimension_numbers = #tpu.dot_dimension_numbers<[1], [0], [0], [1], [0, 0, 1, 1], [], []>} : vector<8x16xf32>, vector<16x32xf32>, vector<8x32xf32> -> vector<8x32xf32>
    %319 = arith.maximumf %317, %318 : vector<8x32xf32>
    %c4_251 = arith.constant 4 : index
    %c0_252 = arith.constant 0 : index
    %c0_253 = arith.constant 0 : index
    %320 = vector.load %arg15[%c4_251, %c0_252, %c0_253] : memref<8x8x32xf32, #tpu.memory_space<vmem>>, vector<1x8x32xf32>
    %321 = vector.shape_cast %320 : vector<1x8x32xf32> to vector<8x32xf32>
    %322 = vector.shape_cast %319 : vector<8x32xf32> to vector<1x8x32xf32>
    tpu.vector_store %arg15[%c4_251, %c0_252, %c0_253], %322 {strides = array<i32>} : memref<8x8x32xf32, #tpu.memory_space<vmem>>, vector<1x8x32xf32>,
    %c10_254 = arith.constant 10 : index
    %c0_255 = arith.constant 0 : index
    %c0_256 = arith.constant 0 : index
    %323 = vector.load %arg14[%c10_254, %c0_255, %c0_256] : memref<16x16x32xf32, #tpu.memory_space<vmem>>, vector<1x16x32xf32>
    %324 = vector.shape_cast %323 : vector<1x16x32xf32> to vector<16x32xf32>
    %c11_257 = arith.constant 11 : index
    %c0_258 = arith.constant 0 : index
    %c0_259 = arith.constant 0 : index
    %325 = vector.load %arg14[%c11_257, %c0_258, %c0_259] : memref<16x16x32xf32, #tpu.memory_space<vmem>>, vector<1x16x32xf32>
    %326 = vector.shape_cast %325 : vector<1x16x32xf32> to vector<16x32xf32>
    %327 = arith.maximumf %324, %326 : vector<16x32xf32>
    %cst_260 = arith.constant dense<0.000000e+00> : vector<8x32xf32>
    %328 = tpu.matmul %18, %327, %cst_260 {dimension_numbers = #tpu.dot_dimension_numbers<[1], [0], [0], [1], [0, 0, 1, 1], [], []>} : vector<8x16xf32>, vector<16x32xf32>, vector<8x32xf32> -> vector<8x32xf32>
    %cst_261 = arith.constant dense<0.000000e+00> : vector<8x32xf32>
    %329 = tpu.matmul %25, %327, %cst_261 {dimension_numbers = #tpu.dot_dimension_numbers<[1], [0], [0], [1], [0, 0, 1, 1], [], []>} : vector<8x16xf32>, vector<16x32xf32>, vector<8x32xf32> -> vector<8x32xf32>
    %330 = arith.maximumf %328, %329 : vector<8x32xf32>
    %c5_262 = arith.constant 5 : index
    %c0_263 = arith.constant 0 : index
    %c0_264 = arith.constant 0 : index
    %331 = vector.load %arg15[%c5_262, %c0_263, %c0_264] : memref<8x8x32xf32, #tpu.memory_space<vmem>>, vector<1x8x32xf32>
    %332 = vector.shape_cast %331 : vector<1x8x32xf32> to vector<8x32xf32>
    %333 = vector.shape_cast %330 : vector<8x32xf32> to vector<1x8x32xf32>
    tpu.vector_store %arg15[%c5_262, %c0_263, %c0_264], %333 {strides = array<i32>} : memref<8x8x32xf32, #tpu.memory_space<vmem>>, vector<1x8x32xf32>,
    %c12_265 = arith.constant 12 : index
    %c0_266 = arith.constant 0 : index
    %c0_267 = arith.constant 0 : index
    %334 = vector.load %arg14[%c12_265, %c0_266, %c0_267] : memref<16x16x32xf32, #tpu.memory_space<vmem>>, vector<1x16x32xf32>
    %335 = vector.shape_cast %334 : vector<1x16x32xf32> to vector<16x32xf32>
    %c13_268 = arith.constant 13 : index
    %c0_269 = arith.constant 0 : index
    %c0_270 = arith.constant 0 : index
    %336 = vector.load %arg14[%c13_268, %c0_269, %c0_270] : memref<16x16x32xf32, #tpu.memory_space<vmem>>, vector<1x16x32xf32>
    %337 = vector.shape_cast %336 : vector<1x16x32xf32> to vector<16x32xf32>
    %338 = arith.maximumf %335, %337 : vector<16x32xf32>
    %cst_271 = arith.constant dense<0.000000e+00> : vector<8x32xf32>
    %339 = tpu.matmul %18, %338, %cst_271 {dimension_numbers = #tpu.dot_dimension_numbers<[1], [0], [0], [1], [0, 0, 1, 1], [], []>} : vector<8x16xf32>, vector<16x32xf32>, vector<8x32xf32> -> vector<8x32xf32>
    %cst_272 = arith.constant dense<0.000000e+00> : vector<8x32xf32>
    %340 = tpu.matmul %25, %338, %cst_272 {dimension_numbers = #tpu.dot_dimension_numbers<[1], [0], [0], [1], [0, 0, 1, 1], [], []>} : vector<8x16xf32>, vector<16x32xf32>, vector<8x32xf32> -> vector<8x32xf32>
    %341 = arith.maximumf %339, %340 : vector<8x32xf32>
    %c6_273 = arith.constant 6 : index
    %c0_274 = arith.constant 0 : index
    %c0_275 = arith.constant 0 : index
    %342 = vector.load %arg15[%c6_273, %c0_274, %c0_275] : memref<8x8x32xf32, #tpu.memory_space<vmem>>, vector<1x8x32xf32>
    %343 = vector.shape_cast %342 : vector<1x8x32xf32> to vector<8x32xf32>
    %344 = vector.shape_cast %341 : vector<8x32xf32> to vector<1x8x32xf32>
    tpu.vector_store %arg15[%c6_273, %c0_274, %c0_275], %344 {strides = array<i32>} : memref<8x8x32xf32, #tpu.memory_space<vmem>>, vector<1x8x32xf32>,
    %c14_276 = arith.constant 14 : index
    %c0_277 = arith.constant 0 : index
    %c0_278 = arith.constant 0 : index
    %345 = vector.load %arg14[%c14_276, %c0_277, %c0_278] : memref<16x16x32xf32, #tpu.memory_space<vmem>>, vector<1x16x32xf32>
    %346 = vector.shape_cast %345 : vector<1x16x32xf32> to vector<16x32xf32>
    %c15_279 = arith.constant 15 : index
    %c0_280 = arith.constant 0 : index
    %c0_281 = arith.constant 0 : index
    %347 = vector.load %arg14[%c15_279, %c0_280, %c0_281] : memref<16x16x32xf32, #tpu.memory_space<vmem>>, vector<1x16x32xf32>
    %348 = vector.shape_cast %347 : vector<1x16x32xf32> to vector<16x32xf32>
    %349 = arith.maximumf %346, %348 : vector<16x32xf32>
    %cst_282 = arith.constant dense<0.000000e+00> : vector<8x32xf32>
    %350 = tpu.matmul %18, %349, %cst_282 {dimension_numbers = #tpu.dot_dimension_numbers<[1], [0], [0], [1], [0, 0, 1, 1], [], []>} : vector<8x16xf32>, vector<16x32xf32>, vector<8x32xf32> -> vector<8x32xf32>
    %cst_283 = arith.constant dense<0.000000e+00> : vector<8x32xf32>
    %351 = tpu.matmul %25, %349, %cst_283 {dimension_numbers = #tpu.dot_dimension_numbers<[1], [0], [0], [1], [0, 0, 1, 1], [], []>} : vector<8x16xf32>, vector<16x32xf32>, vector<8x32xf32> -> vector<8x32xf32>
    %352 = arith.maximumf %350, %351 : vector<8x32xf32>
    %c7_284 = arith.constant 7 : index
    %c0_285 = arith.constant 0 : index
    %c0_286 = arith.constant 0 : index
    %353 = vector.load %arg15[%c7_284, %c0_285, %c0_286] : memref<8x8x32xf32, #tpu.memory_space<vmem>>, vector<1x8x32xf32>
    %354 = vector.shape_cast %353 : vector<1x8x32xf32> to vector<8x32xf32>
    %355 = vector.shape_cast %352 : vector<8x32xf32> to vector<1x8x32xf32>
    tpu.vector_store %arg15[%c7_284, %c0_285, %c0_286], %355 {strides = array<i32>} : memref<8x8x32xf32, #tpu.memory_space<vmem>>, vector<1x8x32xf32>,
    %c0_287 = arith.constant 0 : index
    %c0_288 = arith.constant 0 : index
    %c0_289 = arith.constant 0 : index
    %356 = vector.load %arg15[%c0_287, %c0_288, %c0_289] : memref<8x8x32xf32, #tpu.memory_space<vmem>>, vector<6x6x32xf32>
    %c0_290 = arith.constant 0 : index
    %c0_291 = arith.constant 0 : index
    %c0_292 = arith.constant 0 : index
    %357 = vector.load %arg16[%c0_290, %c0_291, %c0_292] : memref<6x6x288xf32, #tpu.memory_space<vmem>>, vector<6x6x32xf32>
    tpu.vector_store %arg16[%c0_290, %c0_291, %c0_292], %356 {strides = array<i32>} : memref<6x6x288xf32, #tpu.memory_space<vmem>>, vector<6x6x32xf32>,
    %c0_293 = arith.constant 0 : index
    %c1_294 = arith.constant 1 : index
    %c0_295 = arith.constant 0 : index
    %358 = vector.load %arg15[%c0_293, %c1_294, %c0_295] : memref<8x8x32xf32, #tpu.memory_space<vmem>>, vector<6x6x32xf32>
    %c0_296 = arith.constant 0 : index
    %c0_297 = arith.constant 0 : index
    %c32 = arith.constant 32 : index
    %359 = vector.load %arg16[%c0_296, %c0_297, %c32] : memref<6x6x288xf32, #tpu.memory_space<vmem>>, vector<6x6x32xf32>
    tpu.vector_store %arg16[%c0_296, %c0_297, %c32], %358 {strides = array<i32>} : memref<6x6x288xf32, #tpu.memory_space<vmem>>, vector<6x6x32xf32>,
    %c0_298 = arith.constant 0 : index
    %c2_299 = arith.constant 2 : index
    %c0_300 = arith.constant 0 : index
    %360 = vector.load %arg15[%c0_298, %c2_299, %c0_300] : memref<8x8x32xf32, #tpu.memory_space<vmem>>, vector<6x6x32xf32>
    %c0_301 = arith.constant 0 : index
    %c0_302 = arith.constant 0 : index
    %c64 = arith.constant 64 : index
    %361 = vector.load %arg16[%c0_301, %c0_302, %c64] : memref<6x6x288xf32, #tpu.memory_space<vmem>>, vector<6x6x32xf32>
    tpu.vector_store %arg16[%c0_301, %c0_302, %c64], %360 {strides = array<i32>} : memref<6x6x288xf32, #tpu.memory_space<vmem>>, vector<6x6x32xf32>,
    %c1_303 = arith.constant 1 : index
    %c0_304 = arith.constant 0 : index
    %c0_305 = arith.constant 0 : index
    %362 = vector.load %arg15[%c1_303, %c0_304, %c0_305] : memref<8x8x32xf32, #tpu.memory_space<vmem>>, vector<6x6x32xf32>
    %c0_306 = arith.constant 0 : index
    %c0_307 = arith.constant 0 : index
    %c96 = arith.constant 96 : index
    %363 = vector.load %arg16[%c0_306, %c0_307, %c96] : memref<6x6x288xf32, #tpu.memory_space<vmem>>, vector<6x6x32xf32>
    tpu.vector_store %arg16[%c0_306, %c0_307, %c96], %362 {strides = array<i32>} : memref<6x6x288xf32, #tpu.memory_space<vmem>>, vector<6x6x32xf32>,
    %c1_308 = arith.constant 1 : index
    %c1_309 = arith.constant 1 : index
    %c0_310 = arith.constant 0 : index
    %364 = vector.load %arg15[%c1_308, %c1_309, %c0_310] : memref<8x8x32xf32, #tpu.memory_space<vmem>>, vector<6x6x32xf32>
    %c0_311 = arith.constant 0 : index
    %c0_312 = arith.constant 0 : index
    %c128 = arith.constant 128 : index
    %365 = vector.load %arg16[%c0_311, %c0_312, %c128] : memref<6x6x288xf32, #tpu.memory_space<vmem>>, vector<6x6x32xf32>
    tpu.vector_store %arg16[%c0_311, %c0_312, %c128], %364 {strides = array<i32>} : memref<6x6x288xf32, #tpu.memory_space<vmem>>, vector<6x6x32xf32>,
    %c1_313 = arith.constant 1 : index
    %c2_314 = arith.constant 2 : index
    %c0_315 = arith.constant 0 : index
    %366 = vector.load %arg15[%c1_313, %c2_314, %c0_315] : memref<8x8x32xf32, #tpu.memory_space<vmem>>, vector<6x6x32xf32>
    %c0_316 = arith.constant 0 : index
    %c0_317 = arith.constant 0 : index
    %c160 = arith.constant 160 : index
    %367 = vector.load %arg16[%c0_316, %c0_317, %c160] : memref<6x6x288xf32, #tpu.memory_space<vmem>>, vector<6x6x32xf32>
    tpu.vector_store %arg16[%c0_316, %c0_317, %c160], %366 {strides = array<i32>} : memref<6x6x288xf32, #tpu.memory_space<vmem>>, vector<6x6x32xf32>,
    %c2_318 = arith.constant 2 : index
    %c0_319 = arith.constant 0 : index
    %c0_320 = arith.constant 0 : index
    %368 = vector.load %arg15[%c2_318, %c0_319, %c0_320] : memref<8x8x32xf32, #tpu.memory_space<vmem>>, vector<6x6x32xf32>
    %c0_321 = arith.constant 0 : index
    %c0_322 = arith.constant 0 : index
    %c192 = arith.constant 192 : index
    %369 = vector.load %arg16[%c0_321, %c0_322, %c192] : memref<6x6x288xf32, #tpu.memory_space<vmem>>, vector<6x6x32xf32>
    tpu.vector_store %arg16[%c0_321, %c0_322, %c192], %368 {strides = array<i32>} : memref<6x6x288xf32, #tpu.memory_space<vmem>>, vector<6x6x32xf32>,
    %c2_323 = arith.constant 2 : index
    %c1_324 = arith.constant 1 : index
    %c0_325 = arith.constant 0 : index
    %370 = vector.load %arg15[%c2_323, %c1_324, %c0_325] : memref<8x8x32xf32, #tpu.memory_space<vmem>>, vector<6x6x32xf32>
    %c0_326 = arith.constant 0 : index
    %c0_327 = arith.constant 0 : index
    %c224 = arith.constant 224 : index
    %371 = vector.load %arg16[%c0_326, %c0_327, %c224] : memref<6x6x288xf32, #tpu.memory_space<vmem>>, vector<6x6x32xf32>
    tpu.vector_store %arg16[%c0_326, %c0_327, %c224], %370 {strides = array<i32>} : memref<6x6x288xf32, #tpu.memory_space<vmem>>, vector<6x6x32xf32>,
    %c2_328 = arith.constant 2 : index
    %c2_329 = arith.constant 2 : index
    %c0_330 = arith.constant 0 : index
    %372 = vector.load %arg15[%c2_328, %c2_329, %c0_330] : memref<8x8x32xf32, #tpu.memory_space<vmem>>, vector<6x6x32xf32>
    %c0_331 = arith.constant 0 : index
    %c0_332 = arith.constant 0 : index
    %c256 = arith.constant 256 : index
    %373 = vector.load %arg16[%c0_331, %c0_332, %c256] : memref<6x6x288xf32, #tpu.memory_space<vmem>>, vector<6x6x32xf32>
    tpu.vector_store %arg16[%c0_331, %c0_332, %c256], %372 {strides = array<i32>} : memref<6x6x288xf32, #tpu.memory_space<vmem>>, vector<6x6x32xf32>,
    %c0_333 = arith.constant 0 : index
    %c0_334 = arith.constant 0 : index
    %c0_335 = arith.constant 0 : index
    %374 = vector.load %arg16[%c0_333, %c0_334, %c0_335] : memref<6x6x288xf32, #tpu.memory_space<vmem>>, vector<1x6x288xf32>
    %375 = vector.shape_cast %374 : vector<1x6x288xf32> to vector<6x288xf32>
    %376 = arith.truncf %375 : vector<6x288xf32> to vector<6x288xbf16>
    %cst_336 = arith.constant dense<0.000000e+00> : vector<6x64xf32>
    %377 = tpu.matmul %376, %3, %cst_336 {dimension_numbers = #tpu.dot_dimension_numbers<[1], [0], [0], [1], [0, 0, 1, 1], [], []>} : vector<6x288xbf16>, vector<288x64xbf16>, vector<6x64xf32> -> vector<6x64xf32>
    %378 = vector.broadcast %8 : vector<1x64xf32> to vector<6x64xf32>
    %379 = arith.addf %377, %378 : vector<6x64xf32>
    %cst_337 = arith.constant 0.000000e+00 : f32
    %380 = vector.broadcast %cst_337 : f32 to vector<6x64xf32>
    %381 = arith.maximumf %379, %380 : vector<6x64xf32>
    %c0_338 = arith.constant 0 : index
    %c0_339 = arith.constant 0 : index
    %c0_340 = arith.constant 0 : index
    %382 = vector.load %arg17[%c0_338, %c0_339, %c0_340] : memref<6x6x64xf32, #tpu.memory_space<vmem>>, vector<1x6x64xf32>
    %383 = vector.shape_cast %382 : vector<1x6x64xf32> to vector<6x64xf32>
    %384 = vector.shape_cast %381 : vector<6x64xf32> to vector<1x6x64xf32>
    tpu.vector_store %arg17[%c0_338, %c0_339, %c0_340], %384 {strides = array<i32>} : memref<6x6x64xf32, #tpu.memory_space<vmem>>, vector<1x6x64xf32>,
    %c1_341 = arith.constant 1 : index
    %c0_342 = arith.constant 0 : index
    %c0_343 = arith.constant 0 : index
    %385 = vector.load %arg16[%c1_341, %c0_342, %c0_343] : memref<6x6x288xf32, #tpu.memory_space<vmem>>, vector<1x6x288xf32>
    %386 = vector.shape_cast %385 : vector<1x6x288xf32> to vector<6x288xf32>
    %387 = arith.truncf %386 : vector<6x288xf32> to vector<6x288xbf16>
    %cst_344 = arith.constant dense<0.000000e+00> : vector<6x64xf32>
    %388 = tpu.matmul %387, %3, %cst_344 {dimension_numbers = #tpu.dot_dimension_numbers<[1], [0], [0], [1], [0, 0, 1, 1], [], []>} : vector<6x288xbf16>, vector<288x64xbf16>, vector<6x64xf32> -> vector<6x64xf32>
    %389 = vector.broadcast %8 : vector<1x64xf32> to vector<6x64xf32>
    %390 = arith.addf %388, %389 : vector<6x64xf32>
    %cst_345 = arith.constant 0.000000e+00 : f32
    %391 = vector.broadcast %cst_345 : f32 to vector<6x64xf32>
    %392 = arith.maximumf %390, %391 : vector<6x64xf32>
    %c1_346 = arith.constant 1 : index
    %c0_347 = arith.constant 0 : index
    %c0_348 = arith.constant 0 : index
    %393 = vector.load %arg17[%c1_346, %c0_347, %c0_348] : memref<6x6x64xf32, #tpu.memory_space<vmem>>, vector<1x6x64xf32>
    %394 = vector.shape_cast %393 : vector<1x6x64xf32> to vector<6x64xf32>
    %395 = vector.shape_cast %392 : vector<6x64xf32> to vector<1x6x64xf32>
    tpu.vector_store %arg17[%c1_346, %c0_347, %c0_348], %395 {strides = array<i32>} : memref<6x6x64xf32, #tpu.memory_space<vmem>>, vector<1x6x64xf32>,
    %c2_349 = arith.constant 2 : index
    %c0_350 = arith.constant 0 : index
    %c0_351 = arith.constant 0 : index
    %396 = vector.load %arg16[%c2_349, %c0_350, %c0_351] : memref<6x6x288xf32, #tpu.memory_space<vmem>>, vector<1x6x288xf32>
    %397 = vector.shape_cast %396 : vector<1x6x288xf32> to vector<6x288xf32>
    %398 = arith.truncf %397 : vector<6x288xf32> to vector<6x288xbf16>
    %cst_352 = arith.constant dense<0.000000e+00> : vector<6x64xf32>
    %399 = tpu.matmul %398, %3, %cst_352 {dimension_numbers = #tpu.dot_dimension_numbers<[1], [0], [0], [1], [0, 0, 1, 1], [], []>} : vector<6x288xbf16>, vector<288x64xbf16>, vector<6x64xf32> -> vector<6x64xf32>
    %400 = vector.broadcast %8 : vector<1x64xf32> to vector<6x64xf32>
    %401 = arith.addf %399, %400 : vector<6x64xf32>
    %cst_353 = arith.constant 0.000000e+00 : f32
    %402 = vector.broadcast %cst_353 : f32 to vector<6x64xf32>
    %403 = arith.maximumf %401, %402 : vector<6x64xf32>
    %c2_354 = arith.constant 2 : index
    %c0_355 = arith.constant 0 : index
    %c0_356 = arith.constant 0 : index
    %404 = vector.load %arg17[%c2_354, %c0_355, %c0_356] : memref<6x6x64xf32, #tpu.memory_space<vmem>>, vector<1x6x64xf32>
    %405 = vector.shape_cast %404 : vector<1x6x64xf32> to vector<6x64xf32>
    %406 = vector.shape_cast %403 : vector<6x64xf32> to vector<1x6x64xf32>
    tpu.vector_store %arg17[%c2_354, %c0_355, %c0_356], %406 {strides = array<i32>} : memref<6x6x64xf32, #tpu.memory_space<vmem>>, vector<1x6x64xf32>,
    %c3_357 = arith.constant 3 : index
    %c0_358 = arith.constant 0 : index
    %c0_359 = arith.constant 0 : index
    %407 = vector.load %arg16[%c3_357, %c0_358, %c0_359] : memref<6x6x288xf32, #tpu.memory_space<vmem>>, vector<1x6x288xf32>
    %408 = vector.shape_cast %407 : vector<1x6x288xf32> to vector<6x288xf32>
    %409 = arith.truncf %408 : vector<6x288xf32> to vector<6x288xbf16>
    %cst_360 = arith.constant dense<0.000000e+00> : vector<6x64xf32>
    %410 = tpu.matmul %409, %3, %cst_360 {dimension_numbers = #tpu.dot_dimension_numbers<[1], [0], [0], [1], [0, 0, 1, 1], [], []>} : vector<6x288xbf16>, vector<288x64xbf16>, vector<6x64xf32> -> vector<6x64xf32>
    %411 = vector.broadcast %8 : vector<1x64xf32> to vector<6x64xf32>
    %412 = arith.addf %410, %411 : vector<6x64xf32>
    %cst_361 = arith.constant 0.000000e+00 : f32
    %413 = vector.broadcast %cst_361 : f32 to vector<6x64xf32>
    %414 = arith.maximumf %412, %413 : vector<6x64xf32>
    %c3_362 = arith.constant 3 : index
    %c0_363 = arith.constant 0 : index
    %c0_364 = arith.constant 0 : index
    %415 = vector.load %arg17[%c3_362, %c0_363, %c0_364] : memref<6x6x64xf32, #tpu.memory_space<vmem>>, vector<1x6x64xf32>
    %416 = vector.shape_cast %415 : vector<1x6x64xf32> to vector<6x64xf32>
    %417 = vector.shape_cast %414 : vector<6x64xf32> to vector<1x6x64xf32>
    tpu.vector_store %arg17[%c3_362, %c0_363, %c0_364], %417 {strides = array<i32>} : memref<6x6x64xf32, #tpu.memory_space<vmem>>, vector<1x6x64xf32>,
    %c4_365 = arith.constant 4 : index
    %c0_366 = arith.constant 0 : index
    %c0_367 = arith.constant 0 : index
    %418 = vector.load %arg16[%c4_365, %c0_366, %c0_367] : memref<6x6x288xf32, #tpu.memory_space<vmem>>, vector<1x6x288xf32>
    %419 = vector.shape_cast %418 : vector<1x6x288xf32> to vector<6x288xf32>
    %420 = arith.truncf %419 : vector<6x288xf32> to vector<6x288xbf16>
    %cst_368 = arith.constant dense<0.000000e+00> : vector<6x64xf32>
    %421 = tpu.matmul %420, %3, %cst_368 {dimension_numbers = #tpu.dot_dimension_numbers<[1], [0], [0], [1], [0, 0, 1, 1], [], []>} : vector<6x288xbf16>, vector<288x64xbf16>, vector<6x64xf32> -> vector<6x64xf32>
    %422 = vector.broadcast %8 : vector<1x64xf32> to vector<6x64xf32>
    %423 = arith.addf %421, %422 : vector<6x64xf32>
    %cst_369 = arith.constant 0.000000e+00 : f32
    %424 = vector.broadcast %cst_369 : f32 to vector<6x64xf32>
    %425 = arith.maximumf %423, %424 : vector<6x64xf32>
    %c4_370 = arith.constant 4 : index
    %c0_371 = arith.constant 0 : index
    %c0_372 = arith.constant 0 : index
    %426 = vector.load %arg17[%c4_370, %c0_371, %c0_372] : memref<6x6x64xf32, #tpu.memory_space<vmem>>, vector<1x6x64xf32>
    %427 = vector.shape_cast %426 : vector<1x6x64xf32> to vector<6x64xf32>
    %428 = vector.shape_cast %425 : vector<6x64xf32> to vector<1x6x64xf32>
    tpu.vector_store %arg17[%c4_370, %c0_371, %c0_372], %428 {strides = array<i32>} : memref<6x6x64xf32, #tpu.memory_space<vmem>>, vector<1x6x64xf32>,
    %c5_373 = arith.constant 5 : index
    %c0_374 = arith.constant 0 : index
    %c0_375 = arith.constant 0 : index
    %429 = vector.load %arg16[%c5_373, %c0_374, %c0_375] : memref<6x6x288xf32, #tpu.memory_space<vmem>>, vector<1x6x288xf32>
    %430 = vector.shape_cast %429 : vector<1x6x288xf32> to vector<6x288xf32>
    %431 = arith.truncf %430 : vector<6x288xf32> to vector<6x288xbf16>
    %cst_376 = arith.constant dense<0.000000e+00> : vector<6x64xf32>
    %432 = tpu.matmul %431, %3, %cst_376 {dimension_numbers = #tpu.dot_dimension_numbers<[1], [0], [0], [1], [0, 0, 1, 1], [], []>} : vector<6x288xbf16>, vector<288x64xbf16>, vector<6x64xf32> -> vector<6x64xf32>
    %433 = vector.broadcast %8 : vector<1x64xf32> to vector<6x64xf32>
    %434 = arith.addf %432, %433 : vector<6x64xf32>
    %cst_377 = arith.constant 0.000000e+00 : f32
    %435 = vector.broadcast %cst_377 : f32 to vector<6x64xf32>
    %436 = arith.maximumf %434, %435 : vector<6x64xf32>
    %c5_378 = arith.constant 5 : index
    %c0_379 = arith.constant 0 : index
    %c0_380 = arith.constant 0 : index
    %437 = vector.load %arg17[%c5_378, %c0_379, %c0_380] : memref<6x6x64xf32, #tpu.memory_space<vmem>>, vector<1x6x64xf32>
    %438 = vector.shape_cast %437 : vector<1x6x64xf32> to vector<6x64xf32>
    %439 = vector.shape_cast %436 : vector<6x64xf32> to vector<1x6x64xf32>
    tpu.vector_store %arg17[%c5_378, %c0_379, %c0_380], %439 {strides = array<i32>} : memref<6x6x64xf32, #tpu.memory_space<vmem>>, vector<1x6x64xf32>,
    %c0_381 = arith.constant 0 : index
    %c0_382 = arith.constant 0 : index
    %c0_383 = arith.constant 0 : index
    %440 = vector.load %arg17[%c0_381, %c0_382, %c0_383] : memref<6x6x64xf32, #tpu.memory_space<vmem>>, vector<1x6x64xf32>
    %441 = vector.shape_cast %440 : vector<1x6x64xf32> to vector<6x64xf32>
    %c1_384 = arith.constant 1 : index
    %c0_385 = arith.constant 0 : index
    %c0_386 = arith.constant 0 : index
    %442 = vector.load %arg17[%c1_384, %c0_385, %c0_386] : memref<6x6x64xf32, #tpu.memory_space<vmem>>, vector<1x6x64xf32>
    %443 = vector.shape_cast %442 : vector<1x6x64xf32> to vector<6x64xf32>
    %444 = arith.maximumf %441, %443 : vector<6x64xf32>
    %cst_387 = arith.constant dense<0.000000e+00> : vector<3x64xf32>
    %445 = tpu.matmul %32, %444, %cst_387 {dimension_numbers = #tpu.dot_dimension_numbers<[1], [0], [0], [1], [0, 0, 1, 1], [], []>} : vector<3x6xf32>, vector<6x64xf32>, vector<3x64xf32> -> vector<3x64xf32>
    %cst_388 = arith.constant dense<0.000000e+00> : vector<3x64xf32>
    %446 = tpu.matmul %39, %444, %cst_388 {dimension_numbers = #tpu.dot_dimension_numbers<[1], [0], [0], [1], [0, 0, 1, 1], [], []>} : vector<3x6xf32>, vector<6x64xf32>, vector<3x64xf32> -> vector<3x64xf32>
    %447 = arith.maximumf %445, %446 : vector<3x64xf32>
    %c0_389 = arith.constant 0 : index
    %c0_390 = arith.constant 0 : index
    %c0_391 = arith.constant 0 : index
    %448 = vector.load %arg18[%c0_389, %c0_390, %c0_391] : memref<3x3x64xf32, #tpu.memory_space<vmem>>, vector<1x3x64xf32>
    %449 = vector.shape_cast %448 : vector<1x3x64xf32> to vector<3x64xf32>
    %450 = vector.shape_cast %447 : vector<3x64xf32> to vector<1x3x64xf32>
    tpu.vector_store %arg18[%c0_389, %c0_390, %c0_391], %450 {strides = array<i32>} : memref<3x3x64xf32, #tpu.memory_space<vmem>>, vector<1x3x64xf32>,
    %c2_392 = arith.constant 2 : index
    %c0_393 = arith.constant 0 : index
    %c0_394 = arith.constant 0 : index
    %451 = vector.load %arg17[%c2_392, %c0_393, %c0_394] : memref<6x6x64xf32, #tpu.memory_space<vmem>>, vector<1x6x64xf32>
    %452 = vector.shape_cast %451 : vector<1x6x64xf32> to vector<6x64xf32>
    %c3_395 = arith.constant 3 : index
    %c0_396 = arith.constant 0 : index
    %c0_397 = arith.constant 0 : index
    %453 = vector.load %arg17[%c3_395, %c0_396, %c0_397] : memref<6x6x64xf32, #tpu.memory_space<vmem>>, vector<1x6x64xf32>
    %454 = vector.shape_cast %453 : vector<1x6x64xf32> to vector<6x64xf32>
    %455 = arith.maximumf %452, %454 : vector<6x64xf32>
    %cst_398 = arith.constant dense<0.000000e+00> : vector<3x64xf32>
    %456 = tpu.matmul %32, %455, %cst_398 {dimension_numbers = #tpu.dot_dimension_numbers<[1], [0], [0], [1], [0, 0, 1, 1], [], []>} : vector<3x6xf32>, vector<6x64xf32>, vector<3x64xf32> -> vector<3x64xf32>
    %cst_399 = arith.constant dense<0.000000e+00> : vector<3x64xf32>
    %457 = tpu.matmul %39, %455, %cst_399 {dimension_numbers = #tpu.dot_dimension_numbers<[1], [0], [0], [1], [0, 0, 1, 1], [], []>} : vector<3x6xf32>, vector<6x64xf32>, vector<3x64xf32> -> vector<3x64xf32>
    %458 = arith.maximumf %456, %457 : vector<3x64xf32>
    %c1_400 = arith.constant 1 : index
    %c0_401 = arith.constant 0 : index
    %c0_402 = arith.constant 0 : index
    %459 = vector.load %arg18[%c1_400, %c0_401, %c0_402] : memref<3x3x64xf32, #tpu.memory_space<vmem>>, vector<1x3x64xf32>
    %460 = vector.shape_cast %459 : vector<1x3x64xf32> to vector<3x64xf32>
    %461 = vector.shape_cast %458 : vector<3x64xf32> to vector<1x3x64xf32>
    tpu.vector_store %arg18[%c1_400, %c0_401, %c0_402], %461 {strides = array<i32>} : memref<3x3x64xf32, #tpu.memory_space<vmem>>, vector<1x3x64xf32>,
    %c4_403 = arith.constant 4 : index
    %c0_404 = arith.constant 0 : index
    %c0_405 = arith.constant 0 : index
    %462 = vector.load %arg17[%c4_403, %c0_404, %c0_405] : memref<6x6x64xf32, #tpu.memory_space<vmem>>, vector<1x6x64xf32>
    %463 = vector.shape_cast %462 : vector<1x6x64xf32> to vector<6x64xf32>
    %c5_406 = arith.constant 5 : index
    %c0_407 = arith.constant 0 : index
    %c0_408 = arith.constant 0 : index
    %464 = vector.load %arg17[%c5_406, %c0_407, %c0_408] : memref<6x6x64xf32, #tpu.memory_space<vmem>>, vector<1x6x64xf32>
    %465 = vector.shape_cast %464 : vector<1x6x64xf32> to vector<6x64xf32>
    %466 = arith.maximumf %463, %465 : vector<6x64xf32>
    %cst_409 = arith.constant dense<0.000000e+00> : vector<3x64xf32>
    %467 = tpu.matmul %32, %466, %cst_409 {dimension_numbers = #tpu.dot_dimension_numbers<[1], [0], [0], [1], [0, 0, 1, 1], [], []>} : vector<3x6xf32>, vector<6x64xf32>, vector<3x64xf32> -> vector<3x64xf32>
    %cst_410 = arith.constant dense<0.000000e+00> : vector<3x64xf32>
    %468 = tpu.matmul %39, %466, %cst_410 {dimension_numbers = #tpu.dot_dimension_numbers<[1], [0], [0], [1], [0, 0, 1, 1], [], []>} : vector<3x6xf32>, vector<6x64xf32>, vector<3x64xf32> -> vector<3x64xf32>
    %469 = arith.maximumf %467, %468 : vector<3x64xf32>
    %c2_411 = arith.constant 2 : index
    %c0_412 = arith.constant 0 : index
    %c0_413 = arith.constant 0 : index
    %470 = vector.load %arg18[%c2_411, %c0_412, %c0_413] : memref<3x3x64xf32, #tpu.memory_space<vmem>>, vector<1x3x64xf32>
    %471 = vector.shape_cast %470 : vector<1x3x64xf32> to vector<3x64xf32>
    %472 = vector.shape_cast %469 : vector<3x64xf32> to vector<1x3x64xf32>
    tpu.vector_store %arg18[%c2_411, %c0_412, %c0_413], %472 {strides = array<i32>} : memref<3x3x64xf32, #tpu.memory_space<vmem>>, vector<1x3x64xf32>,
    %c0_414 = arith.constant 0 : index
    %c0_415 = arith.constant 0 : index
    %c0_416 = arith.constant 0 : index
    %473 = vector.load %arg18[%c0_414, %c0_415, %c0_416] : memref<3x3x64xf32, #tpu.memory_space<vmem>>, vector<1x1x64xf32>
    %c0_417 = arith.constant 0 : index
    %c0_418 = arith.constant 0 : index
    %c0_419 = arith.constant 0 : index
    %474 = vector.load %arg19[%c0_417, %c0_418, %c0_419] : memref<1x1x576xf32, #tpu.memory_space<vmem>>, vector<1x1x64xf32>
    tpu.vector_store %arg19[%c0_417, %c0_418, %c0_419], %473 {strides = array<i32>} : memref<1x1x576xf32, #tpu.memory_space<vmem>>, vector<1x1x64xf32>,
    %c0_420 = arith.constant 0 : index
    %c1_421 = arith.constant 1 : index
    %c0_422 = arith.constant 0 : index
    %475 = vector.load %arg18[%c0_420, %c1_421, %c0_422] : memref<3x3x64xf32, #tpu.memory_space<vmem>>, vector<1x1x64xf32>
    %c0_423 = arith.constant 0 : index
    %c0_424 = arith.constant 0 : index
    %c64_425 = arith.constant 64 : index
    %476 = vector.load %arg19[%c0_423, %c0_424, %c64_425] : memref<1x1x576xf32, #tpu.memory_space<vmem>>, vector<1x1x64xf32>
    tpu.vector_store %arg19[%c0_423, %c0_424, %c64_425], %475 {strides = array<i32>} : memref<1x1x576xf32, #tpu.memory_space<vmem>>, vector<1x1x64xf32>,
    %c0_426 = arith.constant 0 : index
    %c2_427 = arith.constant 2 : index
    %c0_428 = arith.constant 0 : index
    %477 = vector.load %arg18[%c0_426, %c2_427, %c0_428] : memref<3x3x64xf32, #tpu.memory_space<vmem>>, vector<1x1x64xf32>
    %c0_429 = arith.constant 0 : index
    %c0_430 = arith.constant 0 : index
    %c128_431 = arith.constant 128 : index
    %478 = vector.load %arg19[%c0_429, %c0_430, %c128_431] : memref<1x1x576xf32, #tpu.memory_space<vmem>>, vector<1x1x64xf32>
    tpu.vector_store %arg19[%c0_429, %c0_430, %c128_431], %477 {strides = array<i32>} : memref<1x1x576xf32, #tpu.memory_space<vmem>>, vector<1x1x64xf32>,
    %c1_432 = arith.constant 1 : index
    %c0_433 = arith.constant 0 : index
    %c0_434 = arith.constant 0 : index
    %479 = vector.load %arg18[%c1_432, %c0_433, %c0_434] : memref<3x3x64xf32, #tpu.memory_space<vmem>>, vector<1x1x64xf32>
    %c0_435 = arith.constant 0 : index
    %c0_436 = arith.constant 0 : index
    %c192_437 = arith.constant 192 : index
    %480 = vector.load %arg19[%c0_435, %c0_436, %c192_437] : memref<1x1x576xf32, #tpu.memory_space<vmem>>, vector<1x1x64xf32>
    tpu.vector_store %arg19[%c0_435, %c0_436, %c192_437], %479 {strides = array<i32>} : memref<1x1x576xf32, #tpu.memory_space<vmem>>, vector<1x1x64xf32>,
    %c1_438 = arith.constant 1 : index
    %c1_439 = arith.constant 1 : index
    %c0_440 = arith.constant 0 : index
    %481 = vector.load %arg18[%c1_438, %c1_439, %c0_440] : memref<3x3x64xf32, #tpu.memory_space<vmem>>, vector<1x1x64xf32>
    %c0_441 = arith.constant 0 : index
    %c0_442 = arith.constant 0 : index
    %c256_443 = arith.constant 256 : index
    %482 = vector.load %arg19[%c0_441, %c0_442, %c256_443] : memref<1x1x576xf32, #tpu.memory_space<vmem>>, vector<1x1x64xf32>
    tpu.vector_store %arg19[%c0_441, %c0_442, %c256_443], %481 {strides = array<i32>} : memref<1x1x576xf32, #tpu.memory_space<vmem>>, vector<1x1x64xf32>,
    %c1_444 = arith.constant 1 : index
    %c2_445 = arith.constant 2 : index
    %c0_446 = arith.constant 0 : index
    %483 = vector.load %arg18[%c1_444, %c2_445, %c0_446] : memref<3x3x64xf32, #tpu.memory_space<vmem>>, vector<1x1x64xf32>
    %c0_447 = arith.constant 0 : index
    %c0_448 = arith.constant 0 : index
    %c320 = arith.constant 320 : index
    %484 = vector.load %arg19[%c0_447, %c0_448, %c320] : memref<1x1x576xf32, #tpu.memory_space<vmem>>, vector<1x1x64xf32>
    tpu.vector_store %arg19[%c0_447, %c0_448, %c320], %483 {strides = array<i32>} : memref<1x1x576xf32, #tpu.memory_space<vmem>>, vector<1x1x64xf32>,
    %c2_449 = arith.constant 2 : index
    %c0_450 = arith.constant 0 : index
    %c0_451 = arith.constant 0 : index
    %485 = vector.load %arg18[%c2_449, %c0_450, %c0_451] : memref<3x3x64xf32, #tpu.memory_space<vmem>>, vector<1x1x64xf32>
    %c0_452 = arith.constant 0 : index
    %c0_453 = arith.constant 0 : index
    %c384 = arith.constant 384 : index
    %486 = vector.load %arg19[%c0_452, %c0_453, %c384] : memref<1x1x576xf32, #tpu.memory_space<vmem>>, vector<1x1x64xf32>
    tpu.vector_store %arg19[%c0_452, %c0_453, %c384], %485 {strides = array<i32>} : memref<1x1x576xf32, #tpu.memory_space<vmem>>, vector<1x1x64xf32>,
    %c2_454 = arith.constant 2 : index
    %c1_455 = arith.constant 1 : index
    %c0_456 = arith.constant 0 : index
    %487 = vector.load %arg18[%c2_454, %c1_455, %c0_456] : memref<3x3x64xf32, #tpu.memory_space<vmem>>, vector<1x1x64xf32>
    %c0_457 = arith.constant 0 : index
    %c0_458 = arith.constant 0 : index
    %c448 = arith.constant 448 : index
    %488 = vector.load %arg19[%c0_457, %c0_458, %c448] : memref<1x1x576xf32, #tpu.memory_space<vmem>>, vector<1x1x64xf32>
    tpu.vector_store %arg19[%c0_457, %c0_458, %c448], %487 {strides = array<i32>} : memref<1x1x576xf32, #tpu.memory_space<vmem>>, vector<1x1x64xf32>,
    %c2_459 = arith.constant 2 : index
    %c2_460 = arith.constant 2 : index
    %c0_461 = arith.constant 0 : index
    %489 = vector.load %arg18[%c2_459, %c2_460, %c0_461] : memref<3x3x64xf32, #tpu.memory_space<vmem>>, vector<1x1x64xf32>
    %c0_462 = arith.constant 0 : index
    %c0_463 = arith.constant 0 : index
    %c512 = arith.constant 512 : index
    %490 = vector.load %arg19[%c0_462, %c0_463, %c512] : memref<1x1x576xf32, #tpu.memory_space<vmem>>, vector<1x1x64xf32>
    tpu.vector_store %arg19[%c0_462, %c0_463, %c512], %489 {strides = array<i32>} : memref<1x1x576xf32, #tpu.memory_space<vmem>>, vector<1x1x64xf32>,
    %c0_464 = arith.constant 0 : index
    %c0_465 = arith.constant 0 : index
    %c0_466 = arith.constant 0 : index
    %491 = vector.load %arg19[%c0_464, %c0_465, %c0_466] : memref<1x1x576xf32, #tpu.memory_space<vmem>>, vector<1x1x576xf32>
    %492 = vector.shape_cast %491 : vector<1x1x576xf32> to vector<1x576xf32>
    %493 = arith.truncf %492 : vector<1x576xf32> to vector<1x576xbf16>
    %cst_467 = arith.constant dense<0.000000e+00> : vector<1x64xf32>
    %494 = tpu.matmul %493, %4, %cst_467 {dimension_numbers = #tpu.dot_dimension_numbers<[1], [0], [0], [1], [0, 0, 1, 1], [], []>} : vector<1x576xbf16>, vector<576x64xbf16>, vector<1x64xf32> -> vector<1x64xf32>
    %495 = arith.addf %494, %9 : vector<1x64xf32>
    %cst_468 = arith.constant 0.000000e+00 : f32
    %496 = vector.broadcast %cst_468 : f32 to vector<1x64xf32>
    %497 = arith.maximumf %495, %496 : vector<1x64xf32>
    %498 = arith.truncf %497 : vector<1x64xf32> to vector<1x64xbf16>
    %cst_469 = arith.constant dense<0.000000e+00> : vector<1x512xf32>
    %499 = tpu.matmul %498, %5, %cst_469 {dimension_numbers = #tpu.dot_dimension_numbers<[1], [0], [0], [1], [0, 0, 1, 1], [], []>} : vector<1x64xbf16>, vector<64x512xbf16>, vector<1x512xf32> -> vector<1x512xf32>
    %500 = arith.addf %499, %10 : vector<1x512xf32>
    %cst_470 = arith.constant 0.000000e+00 : f32
    %501 = vector.broadcast %cst_470 : f32 to vector<1x512xf32>
    %502 = arith.maximumf %500, %501 : vector<1x512xf32>
    %503 = arith.truncf %502 : vector<1x512xf32> to vector<1x512xbf16>
    %cst_471 = arith.constant dense<0.000000e+00> : vector<1x8xf32>
    %504 = tpu.matmul %503, %6, %cst_471 {dimension_numbers = #tpu.dot_dimension_numbers<[1], [0], [0], [1], [0, 0, 1, 1], [], []>} : vector<1x512xbf16>, vector<512x8xbf16>, vector<1x8xf32> -> vector<1x8xf32>
    %505 = arith.addf %504, %11 : vector<1x8xf32>
    %506 = tpu.iota {dimensions = array<i32: 1>} : vector<1x8xi32>
    %c0_i32 = arith.constant 0 : i32
    %507 = vector.broadcast %c0_i32 : i32 to vector<1x8xi32>
    %508 = arith.cmpi eq, %506, %507 : vector<1x8xi32>
    %c3_i32 = arith.constant 3 : i32
    %509 = vector.broadcast %c3_i32 : i32 to vector<1x8xi32>
    %510 = arith.cmpi eq, %506, %509 : vector<1x8xi32>
    %511 = arith.ori %508, %510 : vector<1x8xi1>
    %c4_i32 = arith.constant 4 : i32
    %512 = vector.broadcast %c4_i32 : i32 to vector<1x8xi32>
    %513 = arith.cmpi eq, %506, %512 : vector<1x8xi32>
    %514 = arith.ori %511, %513 : vector<1x8xi1>
    %c7_i32 = arith.constant 7 : i32
    %515 = vector.broadcast %c7_i32 : i32 to vector<1x8xi32>
    %516 = arith.cmpi eq, %506, %515 : vector<1x8xi32>
    %517 = arith.ori %514, %516 : vector<1x8xi1>
    %518 = arith.negf %505 : vector<1x8xf32>
    %519 = math.exp %518 : vector<1x8xf32>
    %cst_472 = arith.constant 1.000000e+00 : f32
    %520 = vector.broadcast %cst_472 : f32 to vector<1x8xf32>
    %521 = arith.addf %520, %519 : vector<1x8xf32>
    %522 = arith.divf %520, %521 : vector<1x8xf32>
    %523 = arith.select %517, %522, %505 : vector<1x8xi1>, vector<1x8xf32>
    %c0_473 = arith.constant 0 : index
    %c0_474 = arith.constant 0 : index
    %c0_475 = arith.constant 0 : index
    %524 = vector.load %arg12[%c0_473, %c0_474, %c0_475] : memref<1x1x8xf32, #tpu.memory_space<vmem>>, vector<1x1x8xf32>
    %525 = vector.shape_cast %524 : vector<1x1x8xf32> to vector<1x8xf32>
    %526 = vector.shape_cast %523 : vector<1x8xf32> to vector<1x1x8xf32>
    tpu.vector_store %arg12[%c0_473, %c0_474, %c0_475], %526 {strides = array<i32>} : memref<1x1x8xf32, #tpu.memory_space<vmem>>, vector<1x1x8xf32>,
    return
  }
  func.func @transform_0(%arg0: i32) -> (i32, i32, i32, i32) {
    %c0_i32 = arith.constant 0 : i32
    %c0_i32_0 = arith.constant 0 : i32
    %c0_i32_1 = arith.constant 0 : i32
    %c0_i32_2 = arith.constant 0 : i32
    return %arg0, %c0_i32, %c0_i32_0, %c0_i32_1 : i32, i32, i32, i32
  }
  func.func @transform_1(%arg0: i32) -> (i32, i32) {
    %c0_i32 = arith.constant 0 : i32
    %c0_i32_0 = arith.constant 0 : i32
    %c0_i32_1 = arith.constant 0 : i32
    return %c0_i32, %c0_i32_0 : i32, i32
  }
  func.func @transform_2(%arg0: i32) -> (i32, i32) {
    %c0_i32 = arith.constant 0 : i32
    %c0_i32_0 = arith.constant 0 : i32
    %c0_i32_1 = arith.constant 0 : i32
    return %c0_i32, %c0_i32_0 : i32, i32
  }
  func.func @transform_3(%arg0: i32) -> (i32, i32) {
    %c0_i32 = arith.constant 0 : i32
    %c0_i32_0 = arith.constant 0 : i32
    %c0_i32_1 = arith.constant 0 : i32
    return %c0_i32, %c0_i32_0 : i32, i32
  }
  func.func @transform_4(%arg0: i32) -> (i32, i32) {
    %c0_i32 = arith.constant 0 : i32
    %c0_i32_0 = arith.constant 0 : i32
    %c0_i32_1 = arith.constant 0 : i32
    return %c0_i32, %c0_i32_0 : i32, i32
  }
  func.func @transform_5(%arg0: i32) -> (i32, i32) {
    %c0_i32 = arith.constant 0 : i32
    %c0_i32_0 = arith.constant 0 : i32
    %c0_i32_1 = arith.constant 0 : i32
    return %c0_i32, %c0_i32_0 : i32, i32
  }
  func.func @transform_6(%arg0: i32) -> (i32, i32) {
    %c0_i32 = arith.constant 0 : i32
    %c0_i32_0 = arith.constant 0 : i32
    %c0_i32_1 = arith.constant 0 : i32
    return %c0_i32, %c0_i32_0 : i32, i32
  }
  func.func @transform_7(%arg0: i32) -> (i32, i32) {
    %c0_i32 = arith.constant 0 : i32
    %c0_i32_0 = arith.constant 0 : i32
    %c0_i32_1 = arith.constant 0 : i32
    return %c0_i32, %c0_i32_0 : i32, i32
  }
  func.func @transform_8(%arg0: i32) -> (i32, i32) {
    %c0_i32 = arith.constant 0 : i32
    %c0_i32_0 = arith.constant 0 : i32
    %c0_i32_1 = arith.constant 0 : i32
    return %c0_i32, %c0_i32_0 : i32, i32
  }
  func.func @transform_9(%arg0: i32) -> (i32, i32) {
    %c0_i32 = arith.constant 0 : i32
    %c0_i32_0 = arith.constant 0 : i32
    %c0_i32_1 = arith.constant 0 : i32
    return %c0_i32, %c0_i32_0 : i32, i32
  }
  func.func @transform_10(%arg0: i32) -> (i32, i32) {
    %c0_i32 = arith.constant 0 : i32
    %c0_i32_0 = arith.constant 0 : i32
    %c0_i32_1 = arith.constant 0 : i32
    return %c0_i32, %c0_i32_0 : i32, i32
  }
  func.func @transform_11(%arg0: i32) -> (i32, i32, i32) {
    %c0_i32 = arith.constant 0 : i32
    %c0_i32_0 = arith.constant 0 : i32
    %c0_i32_1 = arith.constant 0 : i32
    return %arg0, %c0_i32, %c0_i32_0 : i32, i32, i32
  }
}

</mosaic_0001>

<llo_original>
// kernel: detect_cnn_forward.1
$region0: #{detect_cnn_forward.1}
  #allocation0 [shape = 'u32[]', space=smem, size = 0x4, offset = 0x4, fixed_abs, tag = 'smem constant byte address 0x4 - core index']
  #allocation1 [shape = 'u32[72,128]{1,0:T(1,128)}', space=vmem, size = 0x9000, scoped, tag = 'internal scratch']
  #allocation2 [shape = 'f32[16,16,80]{2,1,0:T(8,128)}', space=vmem, size = 0x20000, scoped, tag = 'scratch operand']
  #allocation3 [shape = 'f32[16,16,32]{2,1,0:T(8,128)}', space=vmem, size = 0x20000, scoped, tag = 'scratch operand']
  #allocation4 [shape = 'f32[8,8,32]{2,1,0:T(8,128)}', space=vmem, size = 0x8000, scoped, tag = 'scratch operand']
  #allocation5 [shape = 'f32[6,6,288]{2,1,0:T(8,128)}', space=vmem, size = 0x12000, scoped, tag = 'scratch operand']
  #allocation6 [shape = 'f32[6,6,64]{2,1,0:T(8,128)}', space=vmem, size = 0x6000, scoped, tag = 'scratch operand']
  #allocation7 [shape = 'f32[3,3,64]{2,1,0:T(4,128)}', space=vmem, size = 0x1800, scoped, tag = 'scratch operand']
  #allocation8 [shape = 'f32[1,1,576]{2,1,0:T(1,128)}', space=vmem, size = 0xa00, scoped, tag = 'scratch operand']
  %s0 = inlined_call_operand.vmem [shape: f32[2,20,20,3], index: 0, kind: input, shape index: {}]
  %s1 = inlined_call_operand.vmem [shape: bf16[80,32], index: 1, kind: input, shape index: {}]
  %s2 = inlined_call_operand.vmem [shape: f32[1,32], index: 2, kind: input, shape index: {}]
  %s3 = inlined_call_operand.vmem [shape: bf16[288,64], index: 3, kind: input, shape index: {}]
  %s4 = inlined_call_operand.vmem [shape: f32[1,64], index: 4, kind: input, shape index: {}]
  %s5 = inlined_call_operand.vmem [shape: bf16[576,64], index: 5, kind: input, shape index: {}]
  %s6 = inlined_call_operand.vmem [shape: f32[1,64], index: 6, kind: input, shape index: {}]
  %s7 = inlined_call_operand.vmem [shape: bf16[64,512], index: 7, kind: input, shape index: {}]
  %s8 = inlined_call_operand.vmem [shape: f32[1,512], index: 8, kind: input, shape index: {}]
  %s9 = inlined_call_operand.vmem [shape: bf16[512,8], index: 9, kind: input, shape index: {}]
  %s10 = inlined_call_operand.vmem [shape: f32[1,8], index: 10, kind: input, shape index: {}]
  %s11 = inlined_call_operand.hbm [shape: f32[2,1,8], index: 11, kind: output, shape index: {}]
  %s12 = sld [smem:[#allocation0]]
  $region77: #{detect_cnn_forward.1} parent=0
    _
  %s14 = ssub.s32 1, %s12
  %s15 = scalar_select 0, %s14, %s12
  $region1: #{detect_cnn_forward.1} parent=0
    #allocation9 [shape = 'u8[1024]{0}', space=vmem, size = 0x400, scoped, tag = 'output window, operand 0']
    #allocation10 [shape = 's32[2]{0}', space=sflag, size = 0x8, scoped, tag = 'scoped memory for detect_cnn_forward.1']
    %16 = vsyncpa [#allocation10], 0
    %s17 = scalar_lea.sflag [#allocation10], 1
    %18 = vsyncpa %s17, 0
    loop: start=0, step=1, limit=4
    $region2: #{detect_cnn_forward.1} parent=1 // loop_pre_header
      _
    $region3: #{detect_cnn_forward.1} parent=1 // loop_header
      %s20 = sphi 0, %s24
      %p21 = scmp.ge.s32.totalorder %s20, 4
      %s30 = sphi 0, %s32
      %s33 = sphi 0, %s30
      %s34 = sphi 0, %s33
      %s50 = sphi 0, %s34
      %s54 = sphi 0, %s54
      %s56 = sphi 0, %s54
      %s57 = sphi 0, %s56
      %s71 = sphi 0, %s57
      %s75 = sphi 0, %s75
      %s77 = sphi 0, %s75
      %s78 = sphi 0, %s77
      %s92 = sphi 0, %s78
      %s96 = sphi 0, %s96
      %s98 = sphi 0, %s96
      %s99 = sphi 0, %s98
      %s113 = sphi 0, %s99
      %s117 = sphi 0, %s117
      %s119 = sphi 0, %s117
      %s120 = sphi 0, %s119
      %s134 = sphi 0, %s120
      %s138 = sphi 0, %s138
      %s140 = sphi 0, %s138
      %s141 = sphi 0, %s140
      %s155 = sphi 0, %s141
      %s159 = sphi 0, %s159
      %s161 = sphi 0, %s159
      %s162 = sphi 0, %s161
      %s176 = sphi 0, %s162
      %s180 = sphi 0, %s180
      %s182 = sphi 0, %s180
      %s183 = sphi 0, %s182
      %s197 = sphi 0, %s183
      %s201 = sphi 0, %s201
      %s203 = sphi 0, %s201
      %s204 = sphi 0, %s203
      %s218 = sphi 0, %s204
      %s222 = sphi 0, %s222
      %s224 = sphi 0, %s222
      %s225 = sphi 0, %s224
      %s239 = sphi 0, %s225
      %s243 = sphi 0, %s243
      %s245 = sphi 0, %s243
      %s246 = sphi 0, %s245
      %s260 = sphi 0, %s246
      %s266 = sphi 0, %s268
      %s269 = sphi 0, %s266
      %s270 = sphi 0, %s269
      %s286 = sphi 0, %s270
    $region4: #{detect_cnn_forward.1} parent=1 // loop_header_branch
      %23 = sbr.rel (%p21) target = $region8
    $region5: #{detect_cnn_forward.1} parent=1 // loop_body
      %s25 = ssub.s32 %s20, 1
      %s26 = ssub.s32 %s20, 2
      %s27 = sadd.s32 %s20, 1
      %s28 = ssub.s32 %s20, %s27
      %p29 = scmp.eq.s32.totalorder %s28, 0
      %s31 = sadd.s32 %s30, 1
      %s32 = scalar_select %p29, %s30, %s31
      %p35 = pneg %p29
      %p36 = scmp.eq.s32.totalorder %s20, 1
      %p37 = por %p35, %p36
      %p38 = scmp.ne.s32.totalorder %s30, %s33
      %p39 = scmp.eq.s32.totalorder %s20, 0
      %p40 = por %p38, %p39
      %p41 = scmp.ne.s32.totalorder %s30, %s33
      %p42 = scmp.eq.s32.totalorder %s25, 1
      %p43 = por %p41, %p42
      %p44 = scmp.ne.s32.totalorder %s33, %s34
      %p45 = scmp.eq.s32.totalorder %s25, 0
      %p46 = por %p44, %p45
      %p47 = scmp.ne.s32.totalorder %s33, %s34
      %p48 = scmp.eq.s32.totalorder %s26, 1
      %p49 = por %p47, %p48
      %p51 = scmp.ne.s32.totalorder %s34, %s50
      %p52 = scmp.eq.s32.totalorder %s26, 0
      %p53 = por %p51, %p52
      %s55 = sadd.s32 %s54, 1
      %p58 = scmp.eq.s32.totalorder %s20, 1
      %p59 = scmp.ne.s32.totalorder %s54, %s56
      %p60 = scmp.eq.s32.totalorder %s20, 0
      %p61 = por %p59, %p60
      %p62 = scmp.ne.s32.totalorder %s54, %s56
      %p63 = scmp.eq.s32.totalorder %s25, 1
      %p64 = por %p62, %p63
      %p65 = scmp.ne.s32.totalorder %s56, %s57
      %p66 = scmp.eq.s32.totalorder %s25, 0
      %p67 = por %p65, %p66
      %p68 = scmp.ne.s32.totalorder %s56, %s57
      %p69 = scmp.eq.s32.totalorder %s26, 1
      %p70 = por %p68, %p69
      %p72 = scmp.ne.s32.totalorder %s57, %s71
      %p73 = scmp.eq.s32.totalorder %s26, 0
      %p74 = por %p72, %p73
      %s76 = sadd.s32 %s75, 1
      %p79 = scmp.eq.s32.totalorder %s20, 1
      %p80 = scmp.ne.s32.totalorder %s75, %s77
      %p81 = scmp.eq.s32.totalorder %s20, 0
      %p82 = por %p80, %p81
      %p83 = scmp.ne.s32.totalorder %s75, %s77
      %p84 = scmp.eq.s32.totalorder %s25, 1
      %p85 = por %p83, %p84
      %p86 = scmp.ne.s32.totalorder %s77, %s78
      %p87 = scmp.eq.s32.totalorder %s25, 0
      %p88 = por %p86, %p87
      %p89 = scmp.ne.s32.totalorder %s77, %s78
      %p90 = scmp.eq.s32.totalorder %s26, 1
      %p91 = por %p89, %p90
      %p93 = scmp.ne.s32.totalorder %s78, %s92
      %p94 = scmp.eq.s32.totalorder %s26, 0
      %p95 = por %p93, %p94
      %s97 = sadd.s32 %s96, 1
      %p100 = scmp.eq.s32.totalorder %s20, 1
      %p101 = scmp.ne.s32.totalorder %s96, %s98
      %p102 = scmp.eq.s32.totalorder %s20, 0
      %p103 = por %p101, %p102
      %p104 = scmp.ne.s32.totalorder %s96, %s98
      %p105 = scmp.eq.s32.totalorder %s25, 1
      %p106 = por %p104, %p105
      %p107 = scmp.ne.s32.totalorder %s98, %s99
      %p108 = scmp.eq.s32.totalorder %s25, 0
      %p109 = por %p107, %p108
      %p110 = scmp.ne.s32.totalorder %s98, %s99
      %p111 = scmp.eq.s32.totalorder %s26, 1
      %p112 = por %p110, %p111
      %p114 = scmp.ne.s32.totalorder %s99, %s113
      %p115 = scmp.eq.s32.totalorder %s26, 0
      %p116 = por %p114, %p115
      %s118 = sadd.s32 %s117, 1
      %p121 = scmp.eq.s32.totalorder %s20, 1
      %p122 = scmp.ne.s32.totalorder %s117, %s119
      %p123 = scmp.eq.s32.totalorder %s20, 0
      %p124 = por %p122, %p123
      %p125 = scmp.ne.s32.totalorder %s117, %s119
      %p126 = scmp.eq.s32.totalorder %s25, 1
      %p127 = por %p125, %p126
      %p128 = scmp.ne.s32.totalorder %s119, %s120
      %p129 = scmp.eq.s32.totalorder %s25, 0
      %p130 = por %p128, %p129
      %p131 = scmp.ne.s32.totalorder %s119, %s120
      %p132 = scmp.eq.s32.totalorder %s26, 1
      %p133 = por %p131, %p132
      %p135 = scmp.ne.s32.totalorder %s120, %s134
      %p136 = scmp.eq.s32.totalorder %s26, 0
      %p137 = por %p135, %p136
      %s139 = sadd.s32 %s138, 1
      %p142 = scmp.eq.s32.totalorder %s20, 1
      %p143 = scmp.ne.s32.totalorder %s138, %s140
      %p144 = scmp.eq.s32.totalorder %s20, 0
      %p145 = por %p143, %p144
      %p146 = scmp.ne.s32.totalorder %s138, %s140
      %p147 = scmp.eq.s32.totalorder %s25, 1
      %p148 = por %p146, %p147
      %p149 = scmp.ne.s32.totalorder %s140, %s141
      %p150 = scmp.eq.s32.totalorder %s25, 0
      %p151 = por %p149, %p150
      %p152 = scmp.ne.s32.totalorder %s140, %s141
      %p153 = scmp.eq.s32.totalorder %s26, 1
      %p154 = por %p152, %p153
      %p156 = scmp.ne.s32.totalorder %s141, %s155
      %p157 = scmp.eq.s32.totalorder %s26, 0
      %p158 = por %p156, %p157
      %s160 = sadd.s32 %s159, 1
      %p163 = scmp.eq.s32.totalorder %s20, 1
      %p164 = scmp.ne.s32.totalorder %s159, %s161
      %p165 = scmp.eq.s32.totalorder %s20, 0
      %p166 = por %p164, %p165
      %p167 = scmp.ne.s32.totalorder %s159, %s161
      %p168 = scmp.eq.s32.totalorder %s25, 1
      %p169 = por %p167, %p168
      %p170 = scmp.ne.s32.totalorder %s161, %s162
      %p171 = scmp.eq.s32.totalorder %s25, 0
      %p172 = por %p170, %p171
      %p173 = scmp.ne.s32.totalorder %s161, %s162
      %p174 = scmp.eq.s32.totalorder %s26, 1
      %p175 = por %p173, %p174
      %p177 = scmp.ne.s32.totalorder %s162, %s176
      %p178 = scmp.eq.s32.totalorder %s26, 0
      %p179 = por %p177, %p178
      %s181 = sadd.s32 %s180, 1
      %p184 = scmp.eq.s32.totalorder %s20, 1
      %p185 = scmp.ne.s32.totalorder %s180, %s182
      %p186 = scmp.eq.s32.totalorder %s20, 0
      %p187 = por %p185, %p186
      %p188 = scmp.ne.s32.totalorder %s180, %s182
      %p189 = scmp.eq.s32.totalorder %s25, 1
      %p190 = por %p188, %p189
      %p191 = scmp.ne.s32.totalorder %s182, %s183
      %p192 = scmp.eq.s32.totalorder %s25, 0
      %p193 = por %p191, %p192
      %p194 = scmp.ne.s32.totalorder %s182, %s183
      %p195 = scmp.eq.s32.totalorder %s26, 1
      %p196 = por %p194, %p195
      %p198 = scmp.ne.s32.totalorder %s183, %s197
      %p199 = scmp.eq.s32.totalorder %s26, 0
      %p200 = por %p198, %p199
      %s202 = sadd.s32 %s201, 1
      %p205 = scmp.eq.s32.totalorder %s20, 1
      %p206 = scmp.ne.s32.totalorder %s201, %s203
      %p207 = scmp.eq.s32.totalorder %s20, 0
      %p208 = por %p206, %p207
      %p209 = scmp.ne.s32.totalorder %s201, %s203
      %p210 = scmp.eq.s32.totalorder %s25, 1
      %p211 = por %p209, %p210
      %p212 = scmp.ne.s32.totalorder %s203, %s204
      %p213 = scmp.eq.s32.totalorder %s25, 0
      %p214 = por %p212, %p213
      %p215 = scmp.ne.s32.totalorder %s203, %s204
      %p216 = scmp.eq.s32.totalorder %s26, 1
      %p217 = por %p215, %p216
      %p219 = scmp.ne.s32.totalorder %s204, %s218
      %p220 = scmp.eq.s32.totalorder %s26, 0
      %p221 = por %p219, %p220
      %s223 = sadd.s32 %s222, 1
      %p226 = scmp.eq.s32.totalorder %s20, 1
      %p227 = scmp.ne.s32.totalorder %s222, %s224
      %p228 = scmp.eq.s32.totalorder %s20, 0
      %p229 = por %p227, %p228
      %p230 = scmp.ne.s32.totalorder %s222, %s224
      %p231 = scmp.eq.s32.totalorder %s25, 1
      %p232 = por %p230, %p231
      %p233 = scmp.ne.s32.totalorder %s224, %s225
      %p234 = scmp.eq.s32.totalorder %s25, 0
      %p235 = por %p233, %p234
      %p236 = scmp.ne.s32.totalorder %s224, %s225
      %p237 = scmp.eq.s32.totalorder %s26, 1
      %p238 = por %p236, %p237
      %p240 = scmp.ne.s32.totalorder %s225, %s239
      %p241 = scmp.eq.s32.totalorder %s26, 0
      %p242 = por %p240, %p241
      %s244 = sadd.s32 %s243, 1
      %p247 = scmp.eq.s32.totalorder %s20, 1
      %p248 = scmp.ne.s32.totalorder %s243, %s245
      %p249 = scmp.eq.s32.totalorder %s20, 0
      %p250 = por %p248, %p249
      %p251 = scmp.ne.s32.totalorder %s243, %s245
      %p252 = scmp.eq.s32.totalorder %s25, 1
      %p253 = por %p251, %p252
      %p254 = scmp.ne.s32.totalorder %s245, %s246
      %p255 = scmp.eq.s32.totalorder %s25, 0
      %p256 = por %p254, %p255
      %p257 = scmp.ne.s32.totalorder %s245, %s246
      %p258 = scmp.eq.s32.totalorder %s26, 1
      %p259 = por %p257, %p258
      %p261 = scmp.ne.s32.totalorder %s246, %s260
      %p262 = scmp.eq.s32.totalorder %s26, 0
      %p263 = por %p261, %p262
      %s264 = ssub.s32 %s20, %s27
      %p265 = scmp.eq.s32.totalorder %s264, 0
      %s267 = sadd.s32 %s266, 1
      %s268 = scalar_select %p265, %s266, %s267
      %p271 = pneg %p265
      %p272 = scmp.eq.s32.totalorder %s20, 1
      %p273 = por %p271, %p272
      %p274 = scmp.ne.s32.totalorder %s266, %s269
      %p275 = scmp.eq.s32.totalorder %s20, 0
      %p276 = por %p274, %p275
      %p277 = scmp.ne.s32.totalorder %s266, %s269
      %p278 = scmp.eq.s32.totalorder %s25, 1
      %p279 = por %p277, %p278
      %p280 = scmp.ne.s32.totalorder %s269, %s270
      %p281 = scmp.eq.s32.totalorder %s25, 0
      %p282 = por %p280, %p281
      %p283 = scmp.ne.s32.totalorder %s269, %s270
      %p284 = scmp.eq.s32.totalorder %s26, 1
      %p285 = por %p283, %p284
      %p287 = scmp.ne.s32.totalorder %s270, %s286
      %p288 = scmp.eq.s32.totalorder %s26, 0
      %p289 = por %p287, %p288
      %p290 = scmp.le.s32.totalorder 1, %s20
      %p291 = scmp.lt.s32.totalorder %s20, 3
      %p292 = pnand %p290, %p291
      %p293 = pneg %p292
      // Predicated region
      $region9: #{detect_cnn_forward.1} parent=5 // pred_check
        _
      $region10: #{detect_cnn_forward.1} parent=5 // pred_check_branch
        %295 = sbr.rel (%p292) target = $region12
      $region11: #{detect_cnn_forward.1} parent=5 // pred_region
        %s296 = ssub.s32 %s20, 1
        // Predicated region
        $region13: #{detect_cnn_forward.1} parent=11 // pred_check
          %p297 = pneg %p67
        $region14: #{detect_cnn_forward.1} parent=11 // pred_check_branch
          %299 = sbr.rel (%p297) target = $region16
        $region15: #{detect_cnn_forward.1} parent=11 // pred_region
          _
        $region16: #{detect_cnn_forward.1} parent=11 // pred_fallthru
          _
        // Predicated region
        $region17: #{detect_cnn_forward.1} parent=11 // pred_check
          %p300 = pneg %p88
        $region18: #{detect_cnn_forward.1} parent=11 // pred_check_branch
          %302 = sbr.rel (%p300) target = $region20
        $region19: #{detect_cnn_forward.1} parent=11 // pred_region
          _
        $region20: #{detect_cnn_forward.1} parent=11 // pred_fallthru
          _
        // Predicated region
        $region21: #{detect_cnn_forward.1} parent=11 // pred_check
          %p303 = pneg %p109
        $region22: #{detect_cnn_forward.1} parent=11 // pred_check_branch
          %305 = sbr.rel (%p303) target = $region24
        $region23: #{detect_cnn_forward.1} parent=11 // pred_region
          _
        $region24: #{detect_cnn_forward.1} parent=11 // pred_fallthru
          _
        // Predicated region
        $region25: #{detect_cnn_forward.1} parent=11 // pred_check
          %p306 = pneg %p130
        $region26: #{detect_cnn_forward.1} parent=11 // pred_check_branch
          %308 = sbr.rel (%p306) target = $region28
        $region27: #{detect_cnn_forward.1} parent=11 // pred_region
          _
        $region28: #{detect_cnn_forward.1} parent=11 // pred_fallthru
          _
        // Predicated region
        $region29: #{detect_cnn_forward.1} parent=11 // pred_check
          %p309 = pneg %p151
        $region30: #{detect_cnn_forward.1} parent=11 // pred_check_branch
          %311 = sbr.rel (%p309) target = $region32
        $region31: #{detect_cnn_forward.1} parent=11 // pred_region
          _
        $region32: #{detect_cnn_forward.1} parent=11 // pred_fallthru
          _
        // Predicated region
        $region33: #{detect_cnn_forward.1} parent=11 // pred_check
          %p312 = pneg %p172
        $region34: #{detect_cnn_forward.1} parent=11 // pred_check_branch
          %314 = sbr.rel (%p312) target = $region36
        $region35: #{detect_cnn_forward.1} parent=11 // pred_region
          _
        $region36: #{detect_cnn_forward.1} parent=11 // pred_fallthru
          _
        // Predicated region
        $region37: #{detect_cnn_forward.1} parent=11 // pred_check
          %p315 = pneg %p193
        $region38: #{detect_cnn_forward.1} parent=11 // pred_check_branch
          %317 = sbr.rel (%p315) target = $region40
        $region39: #{detect_cnn_forward.1} parent=11 // pred_region
          _
        $region40: #{detect_cnn_forward.1} parent=11 // pred_fallthru
          _
        // Predicated region
        $region41: #{detect_cnn_forward.1} parent=11 // pred_check
          %p318 = pneg %p214
        $region42: #{detect_cnn_forward.1} parent=11 // pred_check_branch
          %320 = sbr.rel (%p318) target = $region44
        $region43: #{detect_cnn_forward.1} parent=11 // pred_region
          _
        $region44: #{detect_cnn_forward.1} parent=11 // pred_fallthru
          _
        // Predicated region
        $region45: #{detect_cnn_forward.1} parent=11 // pred_check
          %p321 = pneg %p235
        $region46: #{detect_cnn_forward.1} parent=11 // pred_check_branch
          %323 = sbr.rel (%p321) target = $region48
        $region47: #{detect_cnn_forward.1} parent=11 // pred_region
          _
        $region48: #{detect_cnn_forward.1} parent=11 // pred_fallthru
          _
        // Predicated region
        $region49: #{detect_cnn_forward.1} parent=11 // pred_check
          %p324 = pneg %p256
        $region50: #{detect_cnn_forward.1} parent=11 // pred_check_branch
          %326 = sbr.rel (%p324) target = $region52
        $region51: #{detect_cnn_forward.1} parent=11 // pred_region
          _
        $region52: #{detect_cnn_forward.1} parent=11 // pred_fallthru
          _
      $region12: #{detect_cnn_forward.1} parent=5 // pred_fallthru
        _
      %p327 = scmp.lt.s32.totalorder %s20, 2
      // Predicated region
      $region53: #{detect_cnn_forward.1} parent=5 // pred_check
        %p328 = pneg %p327
      $region54: #{detect_cnn_forward.1} parent=5 // pred_check_branch
        %330 = sbr.rel (%p328) target = $region56
      $region55: #{detect_cnn_forward.1} parent=5 // pred_region
        // Predicated region
        $region57: #{detect_cnn_forward.1} parent=55 // pred_check
          %p331 = pneg %p40
        $region58: #{detect_cnn_forward.1} parent=55 // pred_check_branch
          %333 = sbr.rel (%p331) target = $region60
        $region59: #{detect_cnn_forward.1} parent=55 // pred_region
          %p334 = scmp.lt.s32.totalorder %s20, 1
          %s335 = scalar_select %p334, %s20, 1
          %s336 = smul.addr %s335, 60
          %s337 = smul.addr %s336, 8
          %s338 = scalar_lea.vmem %s0, %s337
        $region60: #{detect_cnn_forward.1} parent=55 // pred_fallthru
          _
      $region56: #{detect_cnn_forward.1} parent=5 // pred_fallthru
        _
      %p339 = scmp.le.s32.totalorder 1, %s20
      %p340 = scmp.lt.s32.totalorder %s20, 3
      %p341 = pnand %p339, %p340
      %p342 = pneg %p341
      // Predicated region
      $region61: #{detect_cnn_forward.1} parent=5 // pred_check
        _
      $region62: #{detect_cnn_forward.1} parent=5 // pred_check_branch
        %344 = sbr.rel (%p341) target = $region64
      $region63: #{detect_cnn_forward.1} parent=5 // pred_region
        %s345 = ssub.s32 %s20, 1
        %p346 = scmp.lt.s32.totalorder %s25, 1
        %s347 = scalar_select %p346, %s25, 1
        %s348 = smul.addr %s347, 60
        %s349 = smul.addr %s348, 8
        %s350 = scalar_lea.vmem %s0, %s349
        %p351 = pneg %p46
        %p352 = pneg %p43
        %p353 = pneg %p67
        %p354 = pneg %p64
        %p355 = pneg %p88
        %p356 = pneg %p85
        %p357 = pneg %p109
        %p358 = pneg %p106
        %p359 = pneg %p130
        %p360 = pneg %p127
        %p361 = pneg %p151
        %p362 = pneg %p148
        %p363 = pneg %p172
        %p364 = pneg %p169
        %p365 = pneg %p193
        %p366 = pneg %p190
        %p367 = pneg %p214
        %p368 = pneg %p211
        %p369 = pneg %p235
        %p370 = pneg %p232
        %p371 = pneg %p256
        %p372 = pneg %p253
        %p373 = pneg %p282
        %p374 = pneg %p279
        %s375 = sand.u32 %s269, 1
        %s376 = scalar_lea.sflag [#allocation10], %s375
        %s377 = sand.u32 %s269, 1
        %s378 = scalar_lea.vmem [#allocation9], %s377
        %p379 = scmp.lt.s32.totalorder %s25, 1
        %s380 = scalar_select %p379, %s25, 1
        %s381 = smul.addr %s380, 60
        %s382 = smul.addr %s381, 8
        %s383 = scalar_lea.vmem %s0, %s382
        %v385 = vld [vmem:[%s383] sm:$0xff]
        %v386 = vld [vmem:[%s383 + $0x8] sm:$0xff]
        %v387 = vld [vmem:[%s383 + $0x10] sm:$0xf]
        %v388 = vld [vmem:[%s383 + $0x18] sm:$0xff]
        %v389 = vld [vmem:[%s383 + $0x20] sm:$0xff]
        %v390 = vld [vmem:[%s383 + $0x28] sm:$0xf]
        %v391 = vld [vmem:[%s383 + $0x30] sm:$0xff]
        %v392 = vld [vmem:[%s383 + $0x38] sm:$0xff]
        %v393 = vld [vmem:[%s383 + $0x40] sm:$0xf]
        %v394 = vld [vmem:[%s383 + $0x48] sm:$0xff]
        %v395 = vld [vmem:[%s383 + $0x50] sm:$0xff]
        %v396 = vld [vmem:[%s383 + $0x58] sm:$0xf]
        %v397 = vld [vmem:[%s383 + $0x60] sm:$0xff]
        %v398 = vld [vmem:[%s383 + $0x68] sm:$0xff]
        %v399 = vld [vmem:[%s383 + $0x70] sm:$0xf]
        %v400 = vld [vmem:[%s383 + $0x78] sm:$0xff]
        %v401 = vld [vmem:[%s383 + $0x80] sm:$0xff]
        %v402 = vld [vmem:[%s383 + $0x88] sm:$0xf]
        %v403 = vld [vmem:[%s383 + $0x90] sm:$0xff]
        %v404 = vld [vmem:[%s383 + $0x98] sm:$0xff]
        %v405 = vld [vmem:[%s383 + $0xa0] sm:$0xf]
        %v406 = vld [vmem:[%s383 + $0xa8] sm:$0xff]
        %v407 = vld [vmem:[%s383 + $0xb0] sm:$0xff]
        %v408 = vld [vmem:[%s383 + $0xb8] sm:$0xf]
        %v409 = vld [vmem:[%s383 + $0xc0] sm:$0xff]
        %v410 = vld [vmem:[%s383 + $0xc8] sm:$0xff]
        %v411 = vld [vmem:[%s383 + $0xd0] sm:$0xf]
        %v412 = vld [vmem:[%s383 + $0xd8] sm:$0xff]
        %v413 = vld [vmem:[%s383 + $0xe0] sm:$0xff]
        %v414 = vld [vmem:[%s383 + $0xe8] sm:$0xf]
        %v415 = vld [vmem:[%s383 + $0xf0] sm:$0xff]
        %v416 = vld [vmem:[%s383 + $0xf8] sm:$0xff]
        %v417 = vld [vmem:[%s383 + $0x100] sm:$0xf]
        %v418 = vld [vmem:[%s383 + $0x108] sm:$0xff]
        %v419 = vld [vmem:[%s383 + $0x110] sm:$0xff]
        %v420 = vld [vmem:[%s383 + $0x118] sm:$0xf]
        %v421 = vld [vmem:[%s383 + $0x120] sm:$0xff]
        %v422 = vld [vmem:[%s383 + $0x128] sm:$0xff]
        %v423 = vld [vmem:[%s383 + $0x130] sm:$0xf]
        %v424 = vld [vmem:[%s383 + $0x138] sm:$0xff]
        %v425 = vld [vmem:[%s383 + $0x140] sm:$0xff]
        %v426 = vld [vmem:[%s383 + $0x148] sm:$0xf]
        %v427 = vld [vmem:[%s383 + $0x150] sm:$0xff]
        %v428 = vld [vmem:[%s383 + $0x158] sm:$0xff]
        %v429 = vld [vmem:[%s383 + $0x160] sm:$0xf]
        %v430 = vld [vmem:[%s383 + $0x168] sm:$0xff]
        %v431 = vld [vmem:[%s383 + $0x170] sm:$0xff]
        %v432 = vld [vmem:[%s383 + $0x178] sm:$0xf]
        %v433 = vld [vmem:[%s383 + $0x180] sm:$0xff]
        %v434 = vld [vmem:[%s383 + $0x188] sm:$0xff]
        %v435 = vld [vmem:[%s383 + $0x190] sm:$0xf]
        %v436 = vld [vmem:[%s383 + $0x198] sm:$0xff]
        %v437 = vld [vmem:[%s383 + $0x1a0] sm:$0xff]
        %v438 = vld [vmem:[%s383 + $0x1a8] sm:$0xf]
        %v439 = vld [vmem:[%s383 + $0x1b0] sm:$0xff]
        %v440 = vld [vmem:[%s383 + $0x1b8] sm:$0xff]
        %v441 = vld [vmem:[%s383 + $0x1c0] sm:$0xf]
        %v442 = vld [vmem:[%s383 + $0x1c8] sm:$0xff]
        %v443 = vld [vmem:[%s383 + $0x1d0] sm:$0xff]
        %v444 = vld [vmem:[%s383 + $0x1d8] sm:$0xf]
        %v445 = vld [vmem:[%s1] sm:$0xf]
        %v446 = vld [vmem:[%s1 + $0x4] sm:$0xf]
        %v447 = vld [vmem:[%s1 + $0x8] sm:$0xf]
        %v448 = vld [vmem:[%s1 + $0xc] sm:$0xf]
        %v449 = vld [vmem:[%s1 + $0x10] sm:$0xf]
        %v450 = vld [vmem:[%s1 + $0x14] sm:$0xf]
        %v451 = vld [vmem:[%s1 + $0x18] sm:$0xf]
        %v452 = vld [vmem:[%s1 + $0x1c] sm:$0xf]
        %v453 = vld [vmem:[%s1 + $0x20] sm:$0xf]
        %v454 = vld [vmem:[%s1 + $0x24] sm:$0xf]
        %v455 = vld [vmem:[%s3] sm:$0xf]
        %v456 = vld [vmem:[%s3 + $0x4] sm:$0xf]
        %v457 = vld [vmem:[%s3 + $0x8] sm:$0xf]
        %v458 = vld [vmem:[%s3 + $0xc] sm:$0xf]
        %v459 = vld [vmem:[%s3 + $0x10] sm:$0xf]
        %v460 = vld [vmem:[%s3 + $0x14] sm:$0xf]
        %v461 = vld [vmem:[%s3 + $0x18] sm:$0xf]
        %v462 = vld [vmem:[%s3 + $0x1c] sm:$0xf]
        %v463 = vld [vmem:[%s3 + $0x20] sm:$0xf]
        %v464 = vld [vmem:[%s3 + $0x24] sm:$0xf]
        %v465 = vld [vmem:[%s3 + $0x28] sm:$0xf]
        %v466 = vld [vmem:[%s3 + $0x2c] sm:$0xf]
        %v467 = vld [vmem:[%s3 + $0x30] sm:$0xf]
        %v468 = vld [vmem:[%s3 + $0x34] sm:$0xf]
        %v469 = vld [vmem:[%s3 + $0x38] sm:$0xf]
        %v470 = vld [vmem:[%s3 + $0x3c] sm:$0xf]
        %v471 = vld [vmem:[%s3 + $0x40] sm:$0xf]
        %v472 = vld [vmem:[%s3 + $0x44] sm:$0xf]
        %v473 = vld [vmem:[%s3 + $0x48] sm:$0xf]
        %v474 = vld [vmem:[%s3 + $0x4c] sm:$0xf]
        %v475 = vld [vmem:[%s3 + $0x50] sm:$0xf]
        %v476 = vld [vmem:[%s3 + $0x54] sm:$0xf]
        %v477 = vld [vmem:[%s3 + $0x58] sm:$0xf]
        %v478 = vld [vmem:[%s3 + $0x5c] sm:$0xf]
        %v479 = vld [vmem:[%s3 + $0x60] sm:$0xf]
        %v480 = vld [vmem:[%s3 + $0x64] sm:$0xf]
        %v481 = vld [vmem:[%s3 + $0x68] sm:$0xf]
        %v482 = vld [vmem:[%s3 + $0x6c] sm:$0xf]
        %v483 = vld [vmem:[%s3 + $0x70] sm:$0xf]
        %v484 = vld [vmem:[%s3 + $0x74] sm:$0xf]
        %v485 = vld [vmem:[%s3 + $0x78] sm:$0xf]
        %v486 = vld [vmem:[%s3 + $0x7c] sm:$0xf]
        %v487 = vld [vmem:[%s3 + $0x80] sm:$0xf]
        %v488 = vld [vmem:[%s3 + $0x84] sm:$0xf]
        %v489 = vld [vmem:[%s3 + $0x88] sm:$0xf]
        %v490 = vld [vmem:[%s3 + $0x8c] sm:$0xf]
        %v491 = vld [vmem:[%s5] sm:$0xf]
        %v492 = vld [vmem:[%s5 + $0x4] sm:$0xf]
        %v493 = vld [vmem:[%s5 + $0x8] sm:$0xf]
        %v494 = vld [vmem:[%s5 + $0xc] sm:$0xf]
        %v495 = vld [vmem:[%s5 + $0x10] sm:$0xf]
        %v496 = vld [vmem:[%s5 + $0x14] sm:$0xf]
        %v497 = vld [vmem:[%s5 + $0x18] sm:$0xf]
        %v498 = vld [vmem:[%s5 + $0x1c] sm:$0xf]
        %v499 = vld [vmem:[%s5 + $0x20] sm:$0xf]
        %v500 = vld [vmem:[%s5 + $0x24] sm:$0xf]
        %v501 = vld [vmem:[%s5 + $0x28] sm:$0xf]
        %v502 = vld [vmem:[%s5 + $0x2c] sm:$0xf]
        %v503 = vld [vmem:[%s5 + $0x30] sm:$0xf]
        %v504 = vld [vmem:[%s5 + $0x34] sm:$0xf]
        %v505 = vld [vmem:[%s5 + $0x38] sm:$0xf]
        %v506 = vld [vmem:[%s5 + $0x3c] sm:$0xf]
        %v507 = vld [vmem:[%s5 + $0x40] sm:$0xf]
        %v508 = vld [vmem:[%s5 + $0x44] sm:$0xf]
        %v509 = vld [vmem:[%s5 + $0x48] sm:$0xf]
        %v510 = vld [vmem:[%s5 + $0x4c] sm:$0xf]
        %v511 = vld [vmem:[%s5 + $0x50] sm:$0xf]
        %v512 = vld [vmem:[%s5 + $0x54] sm:$0xf]
        %v513 = vld [vmem:[%s5 + $0x58] sm:$0xf]
        %v514 = vld [vmem:[%s5 + $0x5c] sm:$0xf]
        %v515 = vld [vmem:[%s5 + $0x60] sm:$0xf]
        %v516 = vld [vmem:[%s5 + $0x64] sm:$0xf]
        %v517 = vld [vmem:[%s5 + $0x68] sm:$0xf]
        %v518 = vld [vmem:[%s5 + $0x6c] sm:$0xf]
        %v519 = vld [vmem:[%s5 + $0x70] sm:$0xf]
        %v520 = vld [vmem:[%s5 + $0x74] sm:$0xf]
        %v521 = vld [vmem:[%s5 + $0x78] sm:$0xf]
        %v522 = vld [vmem:[%s5 + $0x7c] sm:$0xf]
        %v523 = vld [vmem:[%s5 + $0x80] sm:$0xf]
        %v524 = vld [vmem:[%s5 + $0x84] sm:$0xf]
        %v525 = vld [vmem:[%s5 + $0x88] sm:$0xf]
        %v526 = vld [vmem:[%s5 + $0x8c] sm:$0xf]
        %v527 = vld [vmem:[%s5 + $0x90] sm:$0xf]
        %v528 = vld [vmem:[%s5 + $0x94] sm:$0xf]
        %v529 = vld [vmem:[%s5 + $0x98] sm:$0xf]
        %v530 = vld [vmem:[%s5 + $0x9c] sm:$0xf]
        %v531 = vld [vmem:[%s5 + $0xa0] sm:$0xf]
        %v532 = vld [vmem:[%s5 + $0xa4] sm:$0xf]
        %v533 = vld [vmem:[%s5 + $0xa8] sm:$0xf]
        %v534 = vld [vmem:[%s5 + $0xac] sm:$0xf]
        %v535 = vld [vmem:[%s5 + $0xb0] sm:$0xf]
        %v536 = vld [vmem:[%s5 + $0xb4] sm:$0xf]
        %v537 = vld [vmem:[%s5 + $0xb8] sm:$0xf]
        %v538 = vld [vmem:[%s5 + $0xbc] sm:$0xf]
        %v539 = vld [vmem:[%s5 + $0xc0] sm:$0xf]
        %v540 = vld [vmem:[%s5 + $0xc4] sm:$0xf]
        %v541 = vld [vmem:[%s5 + $0xc8] sm:$0xf]
        %v542 = vld [vmem:[%s5 + $0xcc] sm:$0xf]
        %v543 = vld [vmem:[%s5 + $0xd0] sm:$0xf]
        %v544 = vld [vmem:[%s5 + $0xd4] sm:$0xf]
        %v545 = vld [vmem:[%s5 + $0xd8] sm:$0xf]
        %v546 = vld [vmem:[%s5 + $0xdc] sm:$0xf]
        %v547 = vld [vmem:[%s5 + $0xe0] sm:$0xf]
        %v548 = vld [vmem:[%s5 + $0xe4] sm:$0xf]
        %v549 = vld [vmem:[%s5 + $0xe8] sm:$0xf]
        %v550 = vld [vmem:[%s5 + $0xec] sm:$0xf]
        %v551 = vld [vmem:[%s5 + $0xf0] sm:$0xf]
        %v552 = vld [vmem:[%s5 + $0xf4] sm:$0xf]
        %v553 = vld [vmem:[%s5 + $0xf8] sm:$0xf]
        %v554 = vld [vmem:[%s5 + $0xfc] sm:$0xf]
        %v555 = vld [vmem:[%s5 + $0x100] sm:$0xf]
        %v556 = vld [vmem:[%s5 + $0x104] sm:$0xf]
        %v557 = vld [vmem:[%s5 + $0x108] sm:$0xf]
        %v558 = vld [vmem:[%s5 + $0x10c] sm:$0xf]
        %v559 = vld [vmem:[%s5 + $0x110] sm:$0xf]
        %v560 = vld [vmem:[%s5 + $0x114] sm:$0xf]
        %v561 = vld [vmem:[%s5 + $0x118] sm:$0xf]
        %v562 = vld [vmem:[%s5 + $0x11c] sm:$0xf]
        %v563 = vld [vmem:[%s7] sm:$0xff]
        %v564 = vld [vmem:[%s7 + $0x8] sm:$0xff]
        %v565 = vld [vmem:[%s7 + $0x10] sm:$0xff]
        %v566 = vld [vmem:[%s7 + $0x18] sm:$0xff]
        %v567 = vld [vmem:[%s7 + $0x20] sm:$0xff]
        %v568 = vld [vmem:[%s7 + $0x28] sm:$0xff]
        %v569 = vld [vmem:[%s7 + $0x30] sm:$0xff]
        %v570 = vld [vmem:[%s7 + $0x38] sm:$0xff]
        %v571 = vld [vmem:[%s7 + $0x40] sm:$0xff]
        %v572 = vld [vmem:[%s7 + $0x48] sm:$0xff]
        %v573 = vld [vmem:[%s7 + $0x50] sm:$0xff]
        %v574 = vld [vmem:[%s7 + $0x58] sm:$0xff]
        %v575 = vld [vmem:[%s7 + $0x60] sm:$0xff]
        %v576 = vld [vmem:[%s7 + $0x68] sm:$0xff]
        %v577 = vld [vmem:[%s7 + $0x70] sm:$0xff]
        %v578 = vld [vmem:[%s7 + $0x78] sm:$0xff]
        %v579 = vld [vmem:[%s9] sm:$0xf]
        %v580 = vld [vmem:[%s9 + $0x4] sm:$0xf]
        %v581 = vld [vmem:[%s9 + $0x8] sm:$0xf]
        %v582 = vld [vmem:[%s9 + $0xc] sm:$0xf]
        %v583 = vld [vmem:[%s9 + $0x10] sm:$0xf]
        %v584 = vld [vmem:[%s9 + $0x14] sm:$0xf]
        %v585 = vld [vmem:[%s9 + $0x18] sm:$0xf]
        %v586 = vld [vmem:[%s9 + $0x1c] sm:$0xf]
        %v587 = vld [vmem:[%s9 + $0x20] sm:$0xf]
        %v588 = vld [vmem:[%s9 + $0x24] sm:$0xf]
        %v589 = vld [vmem:[%s9 + $0x28] sm:$0xf]
        %v590 = vld [vmem:[%s9 + $0x2c] sm:$0xf]
        %v591 = vld [vmem:[%s9 + $0x30] sm:$0xf]
        %v592 = vld [vmem:[%s9 + $0x34] sm:$0xf]
        %v593 = vld [vmem:[%s9 + $0x38] sm:$0xf]
        %v594 = vld [vmem:[%s9 + $0x3c] sm:$0xf]
        %v595 = vld [vmem:[%s9 + $0x40] sm:$0xf]
        %v596 = vld [vmem:[%s9 + $0x44] sm:$0xf]
        %v597 = vld [vmem:[%s9 + $0x48] sm:$0xf]
        %v598 = vld [vmem:[%s9 + $0x4c] sm:$0xf]
        %v599 = vld [vmem:[%s9 + $0x50] sm:$0xf]
        %v600 = vld [vmem:[%s9 + $0x54] sm:$0xf]
        %v601 = vld [vmem:[%s9 + $0x58] sm:$0xf]
        %v602 = vld [vmem:[%s9 + $0x5c] sm:$0xf]
        %v603 = vld [vmem:[%s9 + $0x60] sm:$0xf]
        %v604 = vld [vmem:[%s9 + $0x64] sm:$0xf]
        %v605 = vld [vmem:[%s9 + $0x68] sm:$0xf]
        %v606 = vld [vmem:[%s9 + $0x6c] sm:$0xf]
        %v607 = vld [vmem:[%s9 + $0x70] sm:$0xf]
        %v608 = vld [vmem:[%s9 + $0x74] sm:$0xf]
        %v609 = vld [vmem:[%s9 + $0x78] sm:$0xf]
        %v610 = vld [vmem:[%s9 + $0x7c] sm:$0xf]
        %v611 = vld [vmem:[%s9 + $0x80] sm:$0xf]
        %v612 = vld [vmem:[%s9 + $0x84] sm:$0xf]
        %v613 = vld [vmem:[%s9 + $0x88] sm:$0xf]
        %v614 = vld [vmem:[%s9 + $0x8c] sm:$0xf]
        %v615 = vld [vmem:[%s9 + $0x90] sm:$0xf]
        %v616 = vld [vmem:[%s9 + $0x94] sm:$0xf]
        %v617 = vld [vmem:[%s9 + $0x98] sm:$0xf]
        %v618 = vld [vmem:[%s9 + $0x9c] sm:$0xf]
        %v619 = vld [vmem:[%s9 + $0xa0] sm:$0xf]
        %v620 = vld [vmem:[%s9 + $0xa4] sm:$0xf]
        %v621 = vld [vmem:[%s9 + $0xa8] sm:$0xf]
        %v622 = vld [vmem:[%s9 + $0xac] sm:$0xf]
        %v623 = vld [vmem:[%s9 + $0xb0] sm:$0xf]
        %v624 = vld [vmem:[%s9 + $0xb4] sm:$0xf]
        %v625 = vld [vmem:[%s9 + $0xb8] sm:$0xf]
        %v626 = vld [vmem:[%s9 + $0xbc] sm:$0xf]
        %v627 = vld [vmem:[%s9 + $0xc0] sm:$0xf]
        %v628 = vld [vmem:[%s9 + $0xc4] sm:$0xf]
        %v629 = vld [vmem:[%s9 + $0xc8] sm:$0xf]
        %v630 = vld [vmem:[%s9 + $0xcc] sm:$0xf]
        %v631 = vld [vmem:[%s9 + $0xd0] sm:$0xf]
        %v632 = vld [vmem:[%s9 + $0xd4] sm:$0xf]
        %v633 = vld [vmem:[%s9 + $0xd8] sm:$0xf]
        %v634 = vld [vmem:[%s9 + $0xdc] sm:$0xf]
        %v635 = vld [vmem:[%s9 + $0xe0] sm:$0xf]
        %v636 = vld [vmem:[%s9 + $0xe4] sm:$0xf]
        %v637 = vld [vmem:[%s9 + $0xe8] sm:$0xf]
        %v638 = vld [vmem:[%s9 + $0xec] sm:$0xf]
        %v639 = vld [vmem:[%s9 + $0xf0] sm:$0xf]
        %v640 = vld [vmem:[%s9 + $0xf4] sm:$0xf]
        %v641 = vld [vmem:[%s9 + $0xf8] sm:$0xf]
        %v642 = vld [vmem:[%s9 + $0xfc] sm:$0xf]
        %v643 = vld [vmem:[%s2] sm:$0x1]
        %v644 = vld [vmem:[%s4] sm:$0x1]
        %v645 = vld [vmem:[%s6] sm:$0x1]
        %v646 = vld [vmem:[%s8] sm:$0xf]
        %v647 = vld [vmem:[%s10] sm:$0x1]
        %v648 = vlaneseq
        %v649 = vshrl.u32 %v648, 7
        %v650 = vlaneseq
        %v651 = vand.u32 %v650, 127
        %v652 = vmul.u32 %v649, 2
        %vm653 = vcmp.eq.s32.totalorder %v651, %v652
        %v654 = vsel %vm653, 1, 0
        %v655 = vcvt.s32.f32 %v654
        %v656 = vadd.s32 %v652, 1
        %vm657 = vcmp.eq.s32.totalorder %v651, %v656
        %v658 = vsel %vm657, 1, 0
        %v659 = vcvt.s32.f32 %v658
        %vm660 = vcmask 654336
        %661 = vst.msk [vmem:[#allocation2] sm:$0xff] %vm660, 0.0
        %662 = vst.msk [vmem:[#allocation2 + $0x8] sm:$0xff] %vm660, 0.0
        %663 = vst.msk [vmem:[#allocation2 + $0x10] sm:$0xff] %vm660, 0.0
        %664 = vst.msk [vmem:[#allocation2 + $0x18] sm:$0xff] %vm660, 0.0
        %665 = vst.msk [vmem:[#allocation2 + $0x20] sm:$0xff] %vm660, 0.0
        %666 = vst.msk [vmem:[#allocation2 + $0x28] sm:$0xff] %vm660, 0.0
        %667 = vst.msk [vmem:[#allocation2 + $0x30] sm:$0xff] %vm660, 0.0
        %668 = vst.msk [vmem:[#allocation2 + $0x38] sm:$0xff] %vm660, 0.0
        %669 = vst.msk [vmem:[#allocation2 + $0x40] sm:$0xff] %vm660, 0.0
        %670 = vst.msk [vmem:[#allocation2 + $0x48] sm:$0xff] %vm660, 0.0
        %671 = vst.msk [vmem:[#allocation2 + $0x50] sm:$0xff] %vm660, 0.0
        %672 = vst.msk [vmem:[#allocation2 + $0x58] sm:$0xff] %vm660, 0.0
        %673 = vst.msk [vmem:[#allocation2 + $0x60] sm:$0xff] %vm660, 0.0
        %674 = vst.msk [vmem:[#allocation2 + $0x68] sm:$0xff] %vm660, 0.0
        %675 = vst.msk [vmem:[#allocation2 + $0x70] sm:$0xff] %vm660, 0.0
        %676 = vst.msk [vmem:[#allocation2 + $0x78] sm:$0xff] %vm660, 0.0
        %677 = vst.msk [vmem:[#allocation2 + $0x80] sm:$0xff] %vm660, 0.0
        %678 = vst.msk [vmem:[#allocation2 + $0x88] sm:$0xff] %vm660, 0.0
        %679 = vst.msk [vmem:[#allocation2 + $0x90] sm:$0xff] %vm660, 0.0
        %680 = vst.msk [vmem:[#allocation2 + $0x98] sm:$0xff] %vm660, 0.0
        %681 = vst.msk [vmem:[#allocation2 + $0xa0] sm:$0xff] %vm660, 0.0
        %682 = vst.msk [vmem:[#allocation2 + $0xa8] sm:$0xff] %vm660, 0.0
        %683 = vst.msk [vmem:[#allocation2 + $0xb0] sm:$0xff] %vm660, 0.0
        %684 = vst.msk [vmem:[#allocation2 + $0xb8] sm:$0xff] %vm660, 0.0
        %685 = vst.msk [vmem:[#allocation2 + $0xc0] sm:$0xff] %vm660, 0.0
        %686 = vst.msk [vmem:[#allocation2 + $0xc8] sm:$0xff] %vm660, 0.0
        %687 = vst.msk [vmem:[#allocation2 + $0xd0] sm:$0xff] %vm660, 0.0
        %688 = vst.msk [vmem:[#allocation2 + $0xd8] sm:$0xff] %vm660, 0.0
        %689 = vst.msk [vmem:[#allocation2 + $0xe0] sm:$0xff] %vm660, 0.0
        %690 = vst.msk [vmem:[#allocation2 + $0xe8] sm:$0xff] %vm660, 0.0
        %691 = vst.msk [vmem:[#allocation2 + $0xf0] sm:$0xff] %vm660, 0.0
        %692 = vst.msk [vmem:[#allocation2 + $0xf8] sm:$0xff] %vm660, 0.0
        %vm693 = vcmask 23552
        %694 = vst.msk [vmem:[#allocation2] sm:$0xff] %vm693, %v385
        %695 = vst.msk [vmem:[#allocation2 + $0x8] sm:$0xff] %vm693, %v386
        %696 = vst.msk [vmem:[#allocation2 + $0x10] sm:$0xff] %vm693, %v388
        %697 = vst.msk [vmem:[#allocation2 + $0x18] sm:$0xff] %vm693, %v389
        %698 = vst.msk [vmem:[#allocation2 + $0x20] sm:$0xff] %vm693, %v391
        %699 = vst.msk [vmem:[#allocation2 + $0x28] sm:$0xff] %vm693, %v392
        %700 = vst.msk [vmem:[#allocation2 + $0x30] sm:$0xff] %vm693, %v394
        %701 = vst.msk [vmem:[#allocation2 + $0x38] sm:$0xff] %vm693, %v395
        %702 = vst.msk [vmem:[#allocation2 + $0x40] sm:$0xff] %vm693, %v397
        %703 = vst.msk [vmem:[#allocation2 + $0x48] sm:$0xff] %vm693, %v398
        %704 = vst.msk [vmem:[#allocation2 + $0x50] sm:$0xff] %vm693, %v400
        %705 = vst.msk [vmem:[#allocation2 + $0x58] sm:$0xff] %vm693, %v401
        %706 = vst.msk [vmem:[#allocation2 + $0x60] sm:$0xff] %vm693, %v403
        %707 = vst.msk [vmem:[#allocation2 + $0x68] sm:$0xff] %vm693, %v404
        %708 = vst.msk [vmem:[#allocation2 + $0x70] sm:$0xff] %vm693, %v406
        %709 = vst.msk [vmem:[#allocation2 + $0x78] sm:$0xff] %vm693, %v407
        %710 = vst.msk [vmem:[#allocation2 + $0x80] sm:$0xff] %vm693, %v409
        %711 = vst.msk [vmem:[#allocation2 + $0x88] sm:$0xff] %vm693, %v410
        %712 = vst.msk [vmem:[#allocation2 + $0x90] sm:$0xff] %vm693, %v412
        %713 = vst.msk [vmem:[#allocation2 + $0x98] sm:$0xff] %vm693, %v413
        %714 = vst.msk [vmem:[#allocation2 + $0xa0] sm:$0xff] %vm693, %v415
        %715 = vst.msk [vmem:[#allocation2 + $0xa8] sm:$0xff] %vm693, %v416
        %716 = vst.msk [vmem:[#allocation2 + $0xb0] sm:$0xff] %vm693, %v418
        %717 = vst.msk [vmem:[#allocation2 + $0xb8] sm:$0xff] %vm693, %v419
        %718 = vst.msk [vmem:[#allocation2 + $0xc0] sm:$0xff] %vm693, %v421
        %719 = vst.msk [vmem:[#allocation2 + $0xc8] sm:$0xff] %vm693, %v422
        %720 = vst.msk [vmem:[#allocation2 + $0xd0] sm:$0xff] %vm693, %v424
        %721 = vst.msk [vmem:[#allocation2 + $0xd8] sm:$0xff] %vm693, %v425
        %722 = vst.msk [vmem:[#allocation2 + $0xe0] sm:$0xff] %vm693, %v427
        %723 = vst.msk [vmem:[#allocation2 + $0xe8] sm:$0xff] %vm693, %v428
        %724 = vst.msk [vmem:[#allocation2 + $0xf0] sm:$0xff] %vm693, %v430
        %725 = vst.msk [vmem:[#allocation2 + $0xf8] sm:$0xff] %vm693, %v431
        %774 = vrot.lane.b32.xlu0 %v385, 3
        %v775 = vpop.permute.xlu0 %774
        %776 = vrot.lane.b32.xlu0 %v386, 3
        %v777 = vpop.permute.xlu0 %776
        %778 = vrot.lane.b32.xlu0 %v387, 3
        %v779 = vpop.permute.xlu0 %778
        %780 = vrot.lane.b32.xlu0 %v388, 3
        %v781 = vpop.permute.xlu0 %780
        %782 = vrot.lane.b32.xlu0 %v389, 3
        %v783 = vpop.permute.xlu0 %782
        %784 = vrot.lane.b32.xlu0 %v390, 3
        %v785 = vpop.permute.xlu0 %784
        %786 = vrot.lane.b32.xlu0 %v391, 3
        %v787 = vpop.permute.xlu0 %786
        %788 = vrot.lane.b32.xlu0 %v392, 3
        %v789 = vpop.permute.xlu0 %788
        %790 = vrot.lane.b32.xlu0 %v393, 3
        %v791 = vpop.permute.xlu0 %790
        %792 = vrot.lane.b32.xlu0 %v394, 3
        %v793 = vpop.permute.xlu0 %792
        %794 = vrot.lane.b32.xlu0 %v395, 3
        %v795 = vpop.permute.xlu0 %794
        %796 = vrot.lane.b32.xlu0 %v396, 3
        %v797 = vpop.permute.xlu0 %796
        %798 = vrot.lane.b32.xlu0 %v397, 3
        %v799 = vpop.permute.xlu0 %798
        %800 = vrot.lane.b32.xlu0 %v398, 3
        %v801 = vpop.permute.xlu0 %800
        %802 = vrot.lane.b32.xlu0 %v399, 3
        %v803 = vpop.permute.xlu0 %802
        %804 = vrot.lane.b32.xlu0 %v400, 3
        %v805 = vpop.permute.xlu0 %804
        %806 = vrot.lane.b32.xlu0 %v401, 3
        %v807 = vpop.permute.xlu0 %806
        %808 = vrot.lane.b32.xlu0 %v402, 3
        %v809 = vpop.permute.xlu0 %808
        %810 = vrot.lane.b32.xlu0 %v403, 3
        %v811 = vpop.permute.xlu0 %810
        %812 = vrot.lane.b32.xlu0 %v404, 3
        %v813 = vpop.permute.xlu0 %812
        %814 = vrot.lane.b32.xlu0 %v405, 3
        %v815 = vpop.permute.xlu0 %814
        %816 = vrot.lane.b32.xlu0 %v406, 3
        %v817 = vpop.permute.xlu0 %816
        %818 = vrot.lane.b32.xlu0 %v407, 3
        %v819 = vpop.permute.xlu0 %818
        %820 = vrot.lane.b32.xlu0 %v408, 3
        %v821 = vpop.permute.xlu0 %820
        %822 = vrot.lane.b32.xlu0 %v409, 3
        %v823 = vpop.permute.xlu0 %822
        %824 = vrot.lane.b32.xlu0 %v410, 3
        %v825 = vpop.permute.xlu0 %824
        %826 = vrot.lane.b32.xlu0 %v411, 3
        %v827 = vpop.permute.xlu0 %826
        %828 = vrot.lane.b32.xlu0 %v412, 3
        %v829 = vpop.permute.xlu0 %828
        %830 = vrot.lane.b32.xlu0 %v413, 3
        %v831 = vpop.permute.xlu0 %830
        %832 = vrot.lane.b32.xlu0 %v414, 3
        %v833 = vpop.permute.xlu0 %832
        %834 = vrot.lane.b32.xlu0 %v415, 3
        %v835 = vpop.permute.xlu0 %834
        %836 = vrot.lane.b32.xlu0 %v416, 3
        %v837 = vpop.permute.xlu0 %836
        %838 = vrot.lane.b32.xlu0 %v417, 3
        %v839 = vpop.permute.xlu0 %838
        %840 = vrot.lane.b32.xlu0 %v418, 3
        %v841 = vpop.permute.xlu0 %840
        %842 = vrot.lane.b32.xlu0 %v419, 3
        %v843 = vpop.permute.xlu0 %842
        %844 = vrot.lane.b32.xlu0 %v420, 3
        %v845 = vpop.permute.xlu0 %844
        %846 = vrot.lane.b32.xlu0 %v421, 3
        %v847 = vpop.permute.xlu0 %846
        %848 = vrot.lane.b32.xlu0 %v422, 3
        %v849 = vpop.permute.xlu0 %848
        %850 = vrot.lane.b32.xlu0 %v423, 3
        %v851 = vpop.permute.xlu0 %850
        %852 = vrot.lane.b32.xlu0 %v424, 3
        %v853 = vpop.permute.xlu0 %852
        %854 = vrot.lane.b32.xlu0 %v425, 3
        %v855 = vpop.permute.xlu0 %854
        %856 = vrot.lane.b32.xlu0 %v426, 3
        %v857 = vpop.permute.xlu0 %856
        %858 = vrot.lane.b32.xlu0 %v427, 3
        %v859 = vpop.permute.xlu0 %858
        %860 = vrot.lane.b32.xlu0 %v428, 3
        %v861 = vpop.permute.xlu0 %860
        %862 = vrot.lane.b32.xlu0 %v429, 3
        %v863 = vpop.permute.xlu0 %862
        %864 = vrot.lane.b32.xlu0 %v430, 3
        %v865 = vpop.permute.xlu0 %864
        %866 = vrot.lane.b32.xlu0 %v431, 3
        %v867 = vpop.permute.xlu0 %866
        %868 = vrot.lane.b32.xlu0 %v432, 3
        %v869 = vpop.permute.xlu0 %868
        %vm918 = vcmask 48153
        %919 = vst.msk [vmem:[#allocation2 - $0x1] sm:$0xfe] %vm918, %v775
        %vm920 = vcmask 48152
        %921 = vst.msk [vmem:[#allocation2 + $0x7] sm:$0xff] %vm920, %v777
        %vm922 = vcmask 40984
        %923 = vst.msk [vmem:[#allocation2 + $0xf] sm:$0x1] %vm922, %v779
        %924 = vst.msk [vmem:[#allocation2 + $0xf] sm:$0xfe] %vm918, %v781
        %925 = vst.msk [vmem:[#allocation2 + $0x17] sm:$0xff] %vm920, %v783
        %926 = vst.msk [vmem:[#allocation2 + $0x1f] sm:$0x1] %vm922, %v785
        %927 = vst.msk [vmem:[#allocation2 + $0x1f] sm:$0xfe] %vm918, %v787
        %928 = vst.msk [vmem:[#allocation2 + $0x27] sm:$0xff] %vm920, %v789
        %929 = vst.msk [vmem:[#allocation2 + $0x2f] sm:$0x1] %vm922, %v791
        %930 = vst.msk [vmem:[#allocation2 + $0x2f] sm:$0xfe] %vm918, %v793
        %931 = vst.msk [vmem:[#allocation2 + $0x37] sm:$0xff] %vm920, %v795
        %932 = vst.msk [vmem:[#allocation2 + $0x3f] sm:$0x1] %vm922, %v797
        %933 = vst.msk [vmem:[#allocation2 + $0x3f] sm:$0xfe] %vm918, %v799
        %934 = vst.msk [vmem:[#allocation2 + $0x47] sm:$0xff] %vm920, %v801
        %935 = vst.msk [vmem:[#allocation2 + $0x4f] sm:$0x1] %vm922, %v803
        %936 = vst.msk [vmem:[#allocation2 + $0x4f] sm:$0xfe] %vm918, %v805
        %937 = vst.msk [vmem:[#allocation2 + $0x57] sm:$0xff] %vm920, %v807
        %938 = vst.msk [vmem:[#allocation2 + $0x5f] sm:$0x1] %vm922, %v809
        %939 = vst.msk [vmem:[#allocation2 + $0x5f] sm:$0xfe] %vm918, %v811
        %940 = vst.msk [vmem:[#allocation2 + $0x67] sm:$0xff] %vm920, %v813
        %941 = vst.msk [vmem:[#allocation2 + $0x6f] sm:$0x1] %vm922, %v815
        %942 = vst.msk [vmem:[#allocation2 + $0x6f] sm:$0xfe] %vm918, %v817
        %943 = vst.msk [vmem:[#allocation2 + $0x77] sm:$0xff] %vm920, %v819
        %944 = vst.msk [vmem:[#allocation2 + $0x7f] sm:$0x1] %vm922, %v821
        %945 = vst.msk [vmem:[#allocation2 + $0x7f] sm:$0xfe] %vm918, %v823
        %946 = vst.msk [vmem:[#allocation2 + $0x87] sm:$0xff] %vm920, %v825
        %947 = vst.msk [vmem:[#allocation2 + $0x8f] sm:$0x1] %vm922, %v827
        %948 = vst.msk [vmem:[#allocation2 + $0x8f] sm:$0xfe] %vm918, %v829
        %949 = vst.msk [vmem:[#allocation2 + $0x97] sm:$0xff] %vm920, %v831
        %950 = vst.msk [vmem:[#allocation2 + $0x9f] sm:$0x1] %vm922, %v833
        %951 = vst.msk [vmem:[#allocation2 + $0x9f] sm:$0xfe] %vm918, %v835
        %952 = vst.msk [vmem:[#allocation2 + $0xa7] sm:$0xff] %vm920, %v837
        %953 = vst.msk [vmem:[#allocation2 + $0xaf] sm:$0x1] %vm922, %v839
        %954 = vst.msk [vmem:[#allocation2 + $0xaf] sm:$0xfe] %vm918, %v841
        %955 = vst.msk [vmem:[#allocation2 + $0xb7] sm:$0xff] %vm920, %v843
        %956 = vst.msk [vmem:[#allocation2 + $0xbf] sm:$0x1] %vm922, %v845
        %957 = vst.msk [vmem:[#allocation2 + $0xbf] sm:$0xfe] %vm918, %v847
        %958 = vst.msk [vmem:[#allocation2 + $0xc7] sm:$0xff] %vm920, %v849
        %959 = vst.msk [vmem:[#allocation2 + $0xcf] sm:$0x1] %vm922, %v851
        %960 = vst.msk [vmem:[#allocation2 + $0xcf] sm:$0xfe] %vm918, %v853
        %961 = vst.msk [vmem:[#allocation2 + $0xd7] sm:$0xff] %vm920, %v855
        %962 = vst.msk [vmem:[#allocation2 + $0xdf] sm:$0x1] %vm922, %v857
        %963 = vst.msk [vmem:[#allocation2 + $0xdf] sm:$0xfe] %vm918, %v859
        %964 = vst.msk [vmem:[#allocation2 + $0xe7] sm:$0xff] %vm920, %v861
        %965 = vst.msk [vmem:[#allocation2 + $0xef] sm:$0x1] %vm922, %v863
        %966 = vst.msk [vmem:[#allocation2 + $0xef] sm:$0xfe] %vm918, %v865
        %967 = vst.msk [vmem:[#allocation2 + $0xf7] sm:$0xff] %vm920, %v867
        %968 = vst.msk [vmem:[#allocation2 + $0xff] sm:$0x1] %vm922, %v869
        %969 = vrot.lane.b32.xlu0 %v385, 6
        %v970 = vpop.permute.xlu0 %969
        %971 = vrot.lane.b32.xlu0 %v386, 6
        %v972 = vpop.permute.xlu0 %971
        %973 = vrot.lane.b32.xlu0 %v387, 6
        %v974 = vpop.permute.xlu0 %973
        %975 = vrot.lane.b32.xlu0 %v388, 6
        %v976 = vpop.permute.xlu0 %975
        %977 = vrot.lane.b32.xlu0 %v389, 6
        %v978 = vpop.permute.xlu0 %977
        %979 = vrot.lane.b32.xlu0 %v390, 6
        %v980 = vpop.permute.xlu0 %979
        %981 = vrot.lane.b32.xlu0 %v391, 6
        %v982 = vpop.permute.xlu0 %981
        %983 = vrot.lane.b32.xlu0 %v392, 6
        %v984 = vpop.permute.xlu0 %983
        %985 = vrot.lane.b32.xlu0 %v393, 6
        %v986 = vpop.permute.xlu0 %985
        %987 = vrot.lane.b32.xlu0 %v394, 6
        %v988 = vpop.permute.xlu0 %987
        %989 = vrot.lane.b32.xlu0 %v395, 6
        %v990 = vpop.permute.xlu0 %989
        %991 = vrot.lane.b32.xlu0 %v396, 6
        %v992 = vpop.permute.xlu0 %991
        %993 = vrot.lane.b32.xlu0 %v397, 6
        %v994 = vpop.permute.xlu0 %993
        %995 = vrot.lane.b32.xlu0 %v398, 6
        %v996 = vpop.permute.xlu0 %995
        %997 = vrot.lane.b32.xlu0 %v399, 6
        %v998 = vpop.permute.xlu0 %997
        %999 = vrot.lane.b32.xlu0 %v400, 6
        %v1000 = vpop.permute.xlu0 %999
        %1001 = vrot.lane.b32.xlu0 %v401, 6
        %v1002 = vpop.permute.xlu0 %1001
        %1003 = vrot.lane.b32.xlu0 %v402, 6
        %v1004 = vpop.permute.xlu0 %1003
        %1005 = vrot.lane.b32.xlu0 %v403, 6
        %v1006 = vpop.permute.xlu0 %1005
        %1007 = vrot.lane.b32.xlu0 %v404, 6
        %v1008 = vpop.permute.xlu0 %1007
        %1009 = vrot.lane.b32.xlu0 %v405, 6
        %v1010 = vpop.permute.xlu0 %1009
        %1011 = vrot.lane.b32.xlu0 %v406, 6
        %v1012 = vpop.permute.xlu0 %1011
        %1013 = vrot.lane.b32.xlu0 %v407, 6
        %v1014 = vpop.permute.xlu0 %1013
        %1015 = vrot.lane.b32.xlu0 %v408, 6
        %v1016 = vpop.permute.xlu0 %1015
        %1017 = vrot.lane.b32.xlu0 %v409, 6
        %v1018 = vpop.permute.xlu0 %1017
        %1019 = vrot.lane.b32.xlu0 %v410, 6
        %v1020 = vpop.permute.xlu0 %1019
        %1021 = vrot.lane.b32.xlu0 %v411, 6
        %v1022 = vpop.permute.xlu0 %1021
        %1023 = vrot.lane.b32.xlu0 %v412, 6
        %v1024 = vpop.permute.xlu0 %1023
        %1025 = vrot.lane.b32.xlu0 %v413, 6
        %v1026 = vpop.permute.xlu0 %1025
        %1027 = vrot.lane.b32.xlu0 %v414, 6
        %v1028 = vpop.permute.xlu0 %1027
        %1029 = vrot.lane.b32.xlu0 %v415, 6
        %v1030 = vpop.permute.xlu0 %1029
        %1031 = vrot.lane.b32.xlu0 %v416, 6
        %v1032 = vpop.permute.xlu0 %1031
        %1033 = vrot.lane.b32.xlu0 %v417, 6
        %v1034 = vpop.permute.xlu0 %1033
        %1035 = vrot.lane.b32.xlu0 %v418, 6
        %v1036 = vpop.permute.xlu0 %1035
        %1037 = vrot.lane.b32.xlu0 %v419, 6
        %v1038 = vpop.permute.xlu0 %1037
        %1039 = vrot.lane.b32.xlu0 %v420, 6
        %v1040 = vpop.permute.xlu0 %1039
        %1041 = vrot.lane.b32.xlu0 %v421, 6
        %v1042 = vpop.permute.xlu0 %1041
        %1043 = vrot.lane.b32.xlu0 %v422, 6
        %v1044 = vpop.permute.xlu0 %1043
        %1045 = vrot.lane.b32.xlu0 %v423, 6
        %v1046 = vpop.permute.xlu0 %1045
        %1047 = vrot.lane.b32.xlu0 %v424, 6
        %v1048 = vpop.permute.xlu0 %1047
        %1049 = vrot.lane.b32.xlu0 %v425, 6
        %v1050 = vpop.permute.xlu0 %1049
        %1051 = vrot.lane.b32.xlu0 %v426, 6
        %v1052 = vpop.permute.xlu0 %1051
        %1053 = vrot.lane.b32.xlu0 %v427, 6
        %v1054 = vpop.permute.xlu0 %1053
        %1055 = vrot.lane.b32.xlu0 %v428, 6
        %v1056 = vpop.permute.xlu0 %1055
        %1057 = vrot.lane.b32.xlu0 %v429, 6
        %v1058 = vpop.permute.xlu0 %1057
        %1059 = vrot.lane.b32.xlu0 %v430, 6
        %v1060 = vpop.permute.xlu0 %1059
        %1061 = vrot.lane.b32.xlu0 %v431, 6
        %v1062 = vpop.permute.xlu0 %1061
        %1063 = vrot.lane.b32.xlu0 %v432, 6
        %v1064 = vpop.permute.xlu0 %1063
        %vm1113 = vcmask 72754
        %1114 = vst.msk [vmem:[#allocation2 - $0x2] sm:$0xfc] %vm1113, %v970
        %vm1115 = vcmask 72752
        %1116 = vst.msk [vmem:[#allocation2 + $0x6] sm:$0xff] %vm1115, %v972
        %vm1117 = vcmask 66608
        %1118 = vst.msk [vmem:[#allocation2 + $0xe] sm:$0x3] %vm1117, %v974
        %1119 = vst.msk [vmem:[#allocation2 + $0xe] sm:$0xfc] %vm1113, %v976
        %1120 = vst.msk [vmem:[#allocation2 + $0x16] sm:$0xff] %vm1115, %v978
        %1121 = vst.msk [vmem:[#allocation2 + $0x1e] sm:$0x3] %vm1117, %v980
        %1122 = vst.msk [vmem:[#allocation2 + $0x1e] sm:$0xfc] %vm1113, %v982
        %1123 = vst.msk [vmem:[#allocation2 + $0x26] sm:$0xff] %vm1115, %v984
        %1124 = vst.msk [vmem:[#allocation2 + $0x2e] sm:$0x3] %vm1117, %v986
        %1125 = vst.msk [vmem:[#allocation2 + $0x2e] sm:$0xfc] %vm1113, %v988
        %1126 = vst.msk [vmem:[#allocation2 + $0x36] sm:$0xff] %vm1115, %v990
        %1127 = vst.msk [vmem:[#allocation2 + $0x3e] sm:$0x3] %vm1117, %v992
        %1128 = vst.msk [vmem:[#allocation2 + $0x3e] sm:$0xfc] %vm1113, %v994
        %1129 = vst.msk [vmem:[#allocation2 + $0x46] sm:$0xff] %vm1115, %v996
        %1130 = vst.msk [vmem:[#allocation2 + $0x4e] sm:$0x3] %vm1117, %v998
        %1131 = vst.msk [vmem:[#allocation2 + $0x4e] sm:$0xfc] %vm1113, %v1000
        %1132 = vst.msk [vmem:[#allocation2 + $0x56] sm:$0xff] %vm1115, %v1002
        %1133 = vst.msk [vmem:[#allocation2 + $0x5e] sm:$0x3] %vm1117, %v1004
        %1134 = vst.msk [vmem:[#allocation2 + $0x5e] sm:$0xfc] %vm1113, %v1006
        %1135 = vst.msk [vmem:[#allocation2 + $0x66] sm:$0xff] %vm1115, %v1008
        %1136 = vst.msk [vmem:[#allocation2 + $0x6e] sm:$0x3] %vm1117, %v1010
        %1137 = vst.msk [vmem:[#allocation2 + $0x6e] sm:$0xfc] %vm1113, %v1012
        %1138 = vst.msk [vmem:[#allocation2 + $0x76] sm:$0xff] %vm1115, %v1014
        %1139 = vst.msk [vmem:[#allocation2 + $0x7e] sm:$0x3] %vm1117, %v1016
        %1140 = vst.msk [vmem:[#allocation2 + $0x7e] sm:$0xfc] %vm1113, %v1018
        %1141 = vst.msk [vmem:[#allocation2 + $0x86] sm:$0xff] %vm1115, %v1020
        %1142 = vst.msk [vmem:[#allocation2 + $0x8e] sm:$0x3] %vm1117, %v1022
        %1143 = vst.msk [vmem:[#allocation2 + $0x8e] sm:$0xfc] %vm1113, %v1024
        %1144 = vst.msk [vmem:[#allocation2 + $0x96] sm:$0xff] %vm1115, %v1026
        %1145 = vst.msk [vmem:[#allocation2 + $0x9e] sm:$0x3] %vm1117, %v1028
        %1146 = vst.msk [vmem:[#allocation2 + $0x9e] sm:$0xfc] %vm1113, %v1030
        %1147 = vst.msk [vmem:[#allocation2 + $0xa6] sm:$0xff] %vm1115, %v1032
        %1148 = vst.msk [vmem:[#allocation2 + $0xae] sm:$0x3] %vm1117, %v1034
        %1149 = vst.msk [vmem:[#allocation2 + $0xae] sm:$0xfc] %vm1113, %v1036
        %1150 = vst.msk [vmem:[#allocation2 + $0xb6] sm:$0xff] %vm1115, %v1038
        %1151 = vst.msk [vmem:[#allocation2 + $0xbe] sm:$0x3] %vm1117, %v1040
        %1152 = vst.msk [vmem:[#allocation2 + $0xbe] sm:$0xfc] %vm1113, %v1042
        %1153 = vst.msk [vmem:[#allocation2 + $0xc6] sm:$0xff] %vm1115, %v1044
        %1154 = vst.msk [vmem:[#allocation2 + $0xce] sm:$0x3] %vm1117, %v1046
        %1155 = vst.msk [vmem:[#allocation2 + $0xce] sm:$0xfc] %vm1113, %v1048
        %1156 = vst.msk [vmem:[#allocation2 + $0xd6] sm:$0xff] %vm1115, %v1050
        %1157 = vst.msk [vmem:[#allocation2 + $0xde] sm:$0x3] %vm1117, %v1052
        %1158 = vst.msk [vmem:[#allocation2 + $0xde] sm:$0xfc] %vm1113, %v1054
        %1159 = vst.msk [vmem:[#allocation2 + $0xe6] sm:$0xff] %vm1115, %v1056
        %1160 = vst.msk [vmem:[#allocation2 + $0xee] sm:$0x3] %vm1117, %v1058
        %1161 = vst.msk [vmem:[#allocation2 + $0xee] sm:$0xfc] %vm1113, %v1060
        %1162 = vst.msk [vmem:[#allocation2 + $0xf6] sm:$0xff] %vm1115, %v1062
        %1163 = vst.msk [vmem:[#allocation2 + $0xfe] sm:$0x3] %vm1117, %v1064
        %1164 = vrot.lane.b32.xlu0 %v385, 9
        %v1165 = vpop.permute.xlu0 %1164
        %1166 = vrot.lane.b32.xlu0 %v386, 9
        %v1167 = vpop.permute.xlu0 %1166
        %1168 = vrot.lane.b32.xlu0 %v387, 9
        %v1169 = vpop.permute.xlu0 %1168
        %1170 = vrot.lane.b32.xlu0 %v388, 9
        %v1171 = vpop.permute.xlu0 %1170
        %1172 = vrot.lane.b32.xlu0 %v389, 9
        %v1173 = vpop.permute.xlu0 %1172
        %1174 = vrot.lane.b32.xlu0 %v390, 9
        %v1175 = vpop.permute.xlu0 %1174
        %1176 = vrot.lane.b32.xlu0 %v391, 9
        %v1177 = vpop.permute.xlu0 %1176
        %1178 = vrot.lane.b32.xlu0 %v392, 9
        %v1179 = vpop.permute.xlu0 %1178
        %1180 = vrot.lane.b32.xlu0 %v393, 9
        %v1181 = vpop.permute.xlu0 %1180
        %1182 = vrot.lane.b32.xlu0 %v394, 9
        %v1183 = vpop.permute.xlu0 %1182
        %1184 = vrot.lane.b32.xlu0 %v395, 9
        %v1185 = vpop.permute.xlu0 %1184
        %1186 = vrot.lane.b32.xlu0 %v396, 9
        %v1187 = vpop.permute.xlu0 %1186
        %1188 = vrot.lane.b32.xlu0 %v397, 9
        %v1189 = vpop.permute.xlu0 %1188
        %1190 = vrot.lane.b32.xlu0 %v398, 9
        %v1191 = vpop.permute.xlu0 %1190
        %1192 = vrot.lane.b32.xlu0 %v399, 9
        %v1193 = vpop.permute.xlu0 %1192
        %1194 = vrot.lane.b32.xlu0 %v400, 9
        %v1195 = vpop.permute.xlu0 %1194
        %1196 = vrot.lane.b32.xlu0 %v401, 9
        %v1197 = vpop.permute.xlu0 %1196
        %1198 = vrot.lane.b32.xlu0 %v402, 9
        %v1199 = vpop.permute.xlu0 %1198
        %1200 = vrot.lane.b32.xlu0 %v403, 9
        %v1201 = vpop.permute.xlu0 %1200
        %1202 = vrot.lane.b32.xlu0 %v404, 9
        %v1203 = vpop.permute.xlu0 %1202
        %1204 = vrot.lane.b32.xlu0 %v405, 9
        %v1205 = vpop.permute.xlu0 %1204
        %1206 = vrot.lane.b32.xlu0 %v406, 9
        %v1207 = vpop.permute.xlu0 %1206
        %1208 = vrot.lane.b32.xlu0 %v407, 9
        %v1209 = vpop.permute.xlu0 %1208
        %1210 = vrot.lane.b32.xlu0 %v408, 9
        %v1211 = vpop.permute.xlu0 %1210
        %1212 = vrot.lane.b32.xlu0 %v409, 9
        %v1213 = vpop.permute.xlu0 %1212
        %1214 = vrot.lane.b32.xlu0 %v410, 9
        %v1215 = vpop.permute.xlu0 %1214
        %1216 = vrot.lane.b32.xlu0 %v411, 9
        %v1217 = vpop.permute.xlu0 %1216
        %1218 = vrot.lane.b32.xlu0 %v412, 9
        %v1219 = vpop.permute.xlu0 %1218
        %1220 = vrot.lane.b32.xlu0 %v413, 9
        %v1221 = vpop.permute.xlu0 %1220
        %1222 = vrot.lane.b32.xlu0 %v414, 9
        %v1223 = vpop.permute.xlu0 %1222
        %1224 = vrot.lane.b32.xlu0 %v415, 9
        %v1225 = vpop.permute.xlu0 %1224
        %1226 = vrot.lane.b32.xlu0 %v416, 9
        %v1227 = vpop.permute.xlu0 %1226
        %1228 = vrot.lane.b32.xlu0 %v417, 9
        %v1229 = vpop.permute.xlu0 %1228
        %1230 = vrot.lane.b32.xlu0 %v418, 9
        %v1231 = vpop.permute.xlu0 %1230
        %1232 = vrot.lane.b32.xlu0 %v419, 9
        %v1233 = vpop.permute.xlu0 %1232
        %1234 = vrot.lane.b32.xlu0 %v420, 9
        %v1235 = vpop.permute.xlu0 %1234
        %1236 = vrot.lane.b32.xlu0 %v421, 9
        %v1237 = vpop.permute.xlu0 %1236
        %1238 = vrot.lane.b32.xlu0 %v422, 9
        %v1239 = vpop.permute.xlu0 %1238
        %1240 = vrot.lane.b32.xlu0 %v423, 9
        %v1241 = vpop.permute.xlu0 %1240
        %1242 = vrot.lane.b32.xlu0 %v424, 9
        %v1243 = vpop.permute.xlu0 %1242
        %1244 = vrot.lane.b32.xlu0 %v425, 9
        %v1245 = vpop.permute.xlu0 %1244
        %1246 = vrot.lane.b32.xlu0 %v426, 9
        %v1247 = vpop.permute.xlu0 %1246
        %1248 = vrot.lane.b32.xlu0 %v427, 9
        %v1249 = vpop.permute.xlu0 %1248
        %1250 = vrot.lane.b32.xlu0 %v428, 9
        %v1251 = vpop.permute.xlu0 %1250
        %1252 = vrot.lane.b32.xlu0 %v429, 9
        %v1253 = vpop.permute.xlu0 %1252
        %1254 = vrot.lane.b32.xlu0 %v430, 9
        %v1255 = vpop.permute.xlu0 %1254
        %1256 = vrot.lane.b32.xlu0 %v431, 9
        %v1257 = vpop.permute.xlu0 %1256
        %1258 = vrot.lane.b32.xlu0 %v432, 9
        %v1259 = vpop.permute.xlu0 %1258
        %vm1308 = vcmask 97355
        %1309 = vst.msk [vmem:[#allocation2 - $0x3] sm:$0xf8] %vm1308, %v1165
        %vm1310 = vcmask 97352
        %1311 = vst.msk [vmem:[#allocation2 + $0x5] sm:$0xff] %vm1310, %v1167
        %vm1312 = vcmask 92232
        %1313 = vst.msk [vmem:[#allocation2 + $0xd] sm:$0x7] %vm1312, %v1169
        %1314 = vst.msk [vmem:[#allocation2 + $0xd] sm:$0xf8] %vm1308, %v1171
        %1315 = vst.msk [vmem:[#allocation2 + $0x15] sm:$0xff] %vm1310, %v1173
        %1316 = vst.msk [vmem:[#allocation2 + $0x1d] sm:$0x7] %vm1312, %v1175
        %1317 = vst.msk [vmem:[#allocation2 + $0x1d] sm:$0xf8] %vm1308, %v1177
        %1318 = vst.msk [vmem:[#allocation2 + $0x25] sm:$0xff] %vm1310, %v1179
        %1319 = vst.msk [vmem:[#allocation2 + $0x2d] sm:$0x7] %vm1312, %v1181
        %1320 = vst.msk [vmem:[#allocation2 + $0x2d] sm:$0xf8] %vm1308, %v1183
        %1321 = vst.msk [vmem:[#allocation2 + $0x35] sm:$0xff] %vm1310, %v1185
        %1322 = vst.msk [vmem:[#allocation2 + $0x3d] sm:$0x7] %vm1312, %v1187
        %1323 = vst.msk [vmem:[#allocation2 + $0x3d] sm:$0xf8] %vm1308, %v1189
        %1324 = vst.msk [vmem:[#allocation2 + $0x45] sm:$0xff] %vm1310, %v1191
        %1325 = vst.msk [vmem:[#allocation2 + $0x4d] sm:$0x7] %vm1312, %v1193
        %1326 = vst.msk [vmem:[#allocation2 + $0x4d] sm:$0xf8] %vm1308, %v1195
        %1327 = vst.msk [vmem:[#allocation2 + $0x55] sm:$0xff] %vm1310, %v1197
        %1328 = vst.msk [vmem:[#allocation2 + $0x5d] sm:$0x7] %vm1312, %v1199
        %1329 = vst.msk [vmem:[#allocation2 + $0x5d] sm:$0xf8] %vm1308, %v1201
        %1330 = vst.msk [vmem:[#allocation2 + $0x65] sm:$0xff] %vm1310, %v1203
        %1331 = vst.msk [vmem:[#allocation2 + $0x6d] sm:$0x7] %vm1312, %v1205
        %1332 = vst.msk [vmem:[#allocation2 + $0x6d] sm:$0xf8] %vm1308, %v1207
        %1333 = vst.msk [vmem:[#allocation2 + $0x75] sm:$0xff] %vm1310, %v1209
        %1334 = vst.msk [vmem:[#allocation2 + $0x7d] sm:$0x7] %vm1312, %v1211
        %1335 = vst.msk [vmem:[#allocation2 + $0x7d] sm:$0xf8] %vm1308, %v1213
        %1336 = vst.msk [vmem:[#allocation2 + $0x85] sm:$0xff] %vm1310, %v1215
        %1337 = vst.msk [vmem:[#allocation2 + $0x8d] sm:$0x7] %vm1312, %v1217
        %1338 = vst.msk [vmem:[#allocation2 + $0x8d] sm:$0xf8] %vm1308, %v1219
        %1339 = vst.msk [vmem:[#allocation2 + $0x95] sm:$0xff] %vm1310, %v1221
        %1340 = vst.msk [vmem:[#allocation2 + $0x9d] sm:$0x7] %vm1312, %v1223
        %1341 = vst.msk [vmem:[#allocation2 + $0x9d] sm:$0xf8] %vm1308, %v1225
        %1342 = vst.msk [vmem:[#allocation2 + $0xa5] sm:$0xff] %vm1310, %v1227
        %1343 = vst.msk [vmem:[#allocation2 + $0xad] sm:$0x7] %vm1312, %v1229
        %1344 = vst.msk [vmem:[#allocation2 + $0xad] sm:$0xf8] %vm1308, %v1231
        %1345 = vst.msk [vmem:[#allocation2 + $0xb5] sm:$0xff] %vm1310, %v1233
        %1346 = vst.msk [vmem:[#allocation2 + $0xbd] sm:$0x7] %vm1312, %v1235
        %1347 = vst.msk [vmem:[#allocation2 + $0xbd] sm:$0xf8] %vm1308, %v1237
        %1348 = vst.msk [vmem:[#allocation2 + $0xc5] sm:$0xff] %vm1310, %v1239
        %1349 = vst.msk [vmem:[#allocation2 + $0xcd] sm:$0x7] %vm1312, %v1241
        %1350 = vst.msk [vmem:[#allocation2 + $0xcd] sm:$0xf8] %vm1308, %v1243
        %1351 = vst.msk [vmem:[#allocation2 + $0xd5] sm:$0xff] %vm1310, %v1245
        %1352 = vst.msk [vmem:[#allocation2 + $0xdd] sm:$0x7] %vm1312, %v1247
        %1353 = vst.msk [vmem:[#allocation2 + $0xdd] sm:$0xf8] %vm1308, %v1249
        %1354 = vst.msk [vmem:[#allocation2 + $0xe5] sm:$0xff] %vm1310, %v1251
        %1355 = vst.msk [vmem:[#allocation2 + $0xed] sm:$0x7] %vm1312, %v1253
        %1356 = vst.msk [vmem:[#allocation2 + $0xed] sm:$0xf8] %vm1308, %v1255
        %1357 = vst.msk [vmem:[#allocation2 + $0xf5] sm:$0xff] %vm1310, %v1257
        %1358 = vst.msk [vmem:[#allocation2 + $0xfd] sm:$0x7] %vm1312, %v1259
        %1359 = vrot.lane.b32.xlu0 %v385, 12
        %v1360 = vpop.permute.xlu0 %1359
        %1361 = vrot.lane.b32.xlu0 %v386, 12
        %v1362 = vpop.permute.xlu0 %1361
        %1363 = vrot.lane.b32.xlu0 %v387, 12
        %v1364 = vpop.permute.xlu0 %1363
        %1365 = vrot.lane.b32.xlu0 %v388, 12
        %v1366 = vpop.permute.xlu0 %1365
        %1367 = vrot.lane.b32.xlu0 %v389, 12
        %v1368 = vpop.permute.xlu0 %1367
        %1369 = vrot.lane.b32.xlu0 %v390, 12
        %v1370 = vpop.permute.xlu0 %1369
        %1371 = vrot.lane.b32.xlu0 %v391, 12
        %v1372 = vpop.permute.xlu0 %1371
        %1373 = vrot.lane.b32.xlu0 %v392, 12
        %v1374 = vpop.permute.xlu0 %1373
        %1375 = vrot.lane.b32.xlu0 %v393, 12
        %v1376 = vpop.permute.xlu0 %1375
        %1377 = vrot.lane.b32.xlu0 %v394, 12
        %v1378 = vpop.permute.xlu0 %1377
        %1379 = vrot.lane.b32.xlu0 %v395, 12
        %v1380 = vpop.permute.xlu0 %1379
        %1381 = vrot.lane.b32.xlu0 %v396, 12
        %v1382 = vpop.permute.xlu0 %1381
        %1383 = vrot.lane.b32.xlu0 %v397, 12
        %v1384 = vpop.permute.xlu0 %1383
        %1385 = vrot.lane.b32.xlu0 %v398, 12
        %v1386 = vpop.permute.xlu0 %1385
        %1387 = vrot.lane.b32.xlu0 %v399, 12
        %v1388 = vpop.permute.xlu0 %1387
        %1389 = vrot.lane.b32.xlu0 %v400, 12
        %v1390 = vpop.permute.xlu0 %1389
        %1391 = vrot.lane.b32.xlu0 %v401, 12
        %v1392 = vpop.permute.xlu0 %1391
        %1393 = vrot.lane.b32.xlu0 %v402, 12
        %v1394 = vpop.permute.xlu0 %1393
        %1395 = vrot.lane.b32.xlu0 %v403, 12
        %v1396 = vpop.permute.xlu0 %1395
        %1397 = vrot.lane.b32.xlu0 %v404, 12
        %v1398 = vpop.permute.xlu0 %1397
        %1399 = vrot.lane.b32.xlu0 %v405, 12
        %v1400 = vpop.permute.xlu0 %1399
        %1401 = vrot.lane.b32.xlu0 %v406, 12
        %v1402 = vpop.permute.xlu0 %1401
        %1403 = vrot.lane.b32.xlu0 %v407, 12
        %v1404 = vpop.permute.xlu0 %1403
        %1405 = vrot.lane.b32.xlu0 %v408, 12
        %v1406 = vpop.permute.xlu0 %1405
        %1407 = vrot.lane.b32.xlu0 %v409, 12
        %v1408 = vpop.permute.xlu0 %1407
        %1409 = vrot.lane.b32.xlu0 %v410, 12
        %v1410 = vpop.permute.xlu0 %1409
        %1411 = vrot.lane.b32.xlu0 %v411, 12
        %v1412 = vpop.permute.xlu0 %1411
        %1413 = vrot.lane.b32.xlu0 %v412, 12
        %v1414 = vpop.permute.xlu0 %1413
        %1415 = vrot.lane.b32.xlu0 %v413, 12
        %v1416 = vpop.permute.xlu0 %1415
        %1417 = vrot.lane.b32.xlu0 %v414, 12
        %v1418 = vpop.permute.xlu0 %1417
        %1419 = vrot.lane.b32.xlu0 %v415, 12
        %v1420 = vpop.permute.xlu0 %1419
        %1421 = vrot.lane.b32.xlu0 %v416, 12
        %v1422 = vpop.permute.xlu0 %1421
        %1423 = vrot.lane.b32.xlu0 %v417, 12
        %v1424 = vpop.permute.xlu0 %1423
        %1425 = vrot.lane.b32.xlu0 %v418, 12
        %v1426 = vpop.permute.xlu0 %1425
        %1427 = vrot.lane.b32.xlu0 %v419, 12
        %v1428 = vpop.permute.xlu0 %1427
        %1429 = vrot.lane.b32.xlu0 %v420, 12
        %v1430 = vpop.permute.xlu0 %1429
        %1431 = vrot.lane.b32.xlu0 %v421, 12
        %v1432 = vpop.permute.xlu0 %1431
        %1433 = vrot.lane.b32.xlu0 %v422, 12
        %v1434 = vpop.permute.xlu0 %1433
        %1435 = vrot.lane.b32.xlu0 %v423, 12
        %v1436 = vpop.permute.xlu0 %1435
        %1437 = vrot.lane.b32.xlu0 %v424, 12
        %v1438 = vpop.permute.xlu0 %1437
        %1439 = vrot.lane.b32.xlu0 %v425, 12
        %v1440 = vpop.permute.xlu0 %1439
        %1441 = vrot.lane.b32.xlu0 %v426, 12
        %v1442 = vpop.permute.xlu0 %1441
        %1443 = vrot.lane.b32.xlu0 %v427, 12
        %v1444 = vpop.permute.xlu0 %1443
        %1445 = vrot.lane.b32.xlu0 %v428, 12
        %v1446 = vpop.permute.xlu0 %1445
        %1447 = vrot.lane.b32.xlu0 %v429, 12
        %v1448 = vpop.permute.xlu0 %1447
        %1449 = vrot.lane.b32.xlu0 %v430, 12
        %v1450 = vpop.permute.xlu0 %1449
        %1451 = vrot.lane.b32.xlu0 %v431, 12
        %v1452 = vpop.permute.xlu0 %1451
        %1453 = vrot.lane.b32.xlu0 %v432, 12
        %v1454 = vpop.permute.xlu0 %1453
        %vm1503 = vcmask 121956
        %1504 = vst.msk [vmem:[#allocation2 - $0x4] sm:$0xf0] %vm1503, %v1360
        %vm1505 = vcmask 121952
        %1506 = vst.msk [vmem:[#allocation2 + $0x4] sm:$0xff] %vm1505, %v1362
        %vm1507 = vcmask 117856
        %1508 = vst.msk [vmem:[#allocation2 + $0xc] sm:$0xf] %vm1507, %v1364
        %1509 = vst.msk [vmem:[#allocation2 + $0xc] sm:$0xf0] %vm1503, %v1366
        %1510 = vst.msk [vmem:[#allocation2 + $0x14] sm:$0xff] %vm1505, %v1368
        %1511 = vst.msk [vmem:[#allocation2 + $0x1c] sm:$0xf] %vm1507, %v1370
        %1512 = vst.msk [vmem:[#allocation2 + $0x1c] sm:$0xf0] %vm1503, %v1372
        %1513 = vst.msk [vmem:[#allocation2 + $0x24] sm:$0xff] %vm1505, %v1374
        %1514 = vst.msk [vmem:[#allocation2 + $0x2c] sm:$0xf] %vm1507, %v1376
        %1515 = vst.msk [vmem:[#allocation2 + $0x2c] sm:$0xf0] %vm1503, %v1378
        %1516 = vst.msk [vmem:[#allocation2 + $0x34] sm:$0xff] %vm1505, %v1380
        %1517 = vst.msk [vmem:[#allocation2 + $0x3c] sm:$0xf] %vm1507, %v1382
        %1518 = vst.msk [vmem:[#allocation2 + $0x3c] sm:$0xf0] %vm1503, %v1384
        %1519 = vst.msk [vmem:[#allocation2 + $0x44] sm:$0xff] %vm1505, %v1386
        %1520 = vst.msk [vmem:[#allocation2 + $0x4c] sm:$0xf] %vm1507, %v1388
        %1521 = vst.msk [vmem:[#allocation2 + $0x4c] sm:$0xf0] %vm1503, %v1390
        %1522 = vst.msk [vmem:[#allocation2 + $0x54] sm:$0xff] %vm1505, %v1392
        %1523 = vst.msk [vmem:[#allocation2 + $0x5c] sm:$0xf] %vm1507, %v1394
        %1524 = vst.msk [vmem:[#allocation2 + $0x5c] sm:$0xf0] %vm1503, %v1396
        %1525 = vst.msk [vmem:[#allocation2 + $0x64] sm:$0xff] %vm1505, %v1398
        %1526 = vst.msk [vmem:[#allocation2 + $0x6c] sm:$0xf] %vm1507, %v1400
        %1527 = vst.msk [vmem:[#allocation2 + $0x6c] sm:$0xf0] %vm1503, %v1402
        %1528 = vst.msk [vmem:[#allocation2 + $0x74] sm:$0xff] %vm1505, %v1404
        %1529 = vst.msk [vmem:[#allocation2 + $0x7c] sm:$0xf] %vm1507, %v1406
        %1530 = vst.msk [vmem:[#allocation2 + $0x7c] sm:$0xf0] %vm1503, %v1408
        %1531 = vst.msk [vmem:[#allocation2 + $0x84] sm:$0xff] %vm1505, %v1410
        %1532 = vst.msk [vmem:[#allocation2 + $0x8c] sm:$0xf] %vm1507, %v1412
        %1533 = vst.msk [vmem:[#allocation2 + $0x8c] sm:$0xf0] %vm1503, %v1414
        %1534 = vst.msk [vmem:[#allocation2 + $0x94] sm:$0xff] %vm1505, %v1416
        %1535 = vst.msk [vmem:[#allocation2 + $0x9c] sm:$0xf] %vm1507, %v1418
        %1536 = vst.msk [vmem:[#allocation2 + $0x9c] sm:$0xf0] %vm1503, %v1420
        %1537 = vst.msk [vmem:[#allocation2 + $0xa4] sm:$0xff] %vm1505, %v1422
        %1538 = vst.msk [vmem:[#allocation2 + $0xac] sm:$0xf] %vm1507, %v1424
        %1539 = vst.msk [vmem:[#allocation2 + $0xac] sm:$0xf0] %vm1503, %v1426
        %1540 = vst.msk [vmem:[#allocation2 + $0xb4] sm:$0xff] %vm1505, %v1428
        %1541 = vst.msk [vmem:[#allocation2 + $0xbc] sm:$0xf] %vm1507, %v1430
        %1542 = vst.msk [vmem:[#allocation2 + $0xbc] sm:$0xf0] %vm1503, %v1432
        %1543 = vst.msk [vmem:[#allocation2 + $0xc4] sm:$0xff] %vm1505, %v1434
        %1544 = vst.msk [vmem:[#allocation2 + $0xcc] sm:$0xf] %vm1507, %v1436
        %1545 = vst.msk [vmem:[#allocation2 + $0xcc] sm:$0xf0] %vm1503, %v1438
        %1546 = vst.msk [vmem:[#allocation2 + $0xd4] sm:$0xff] %vm1505, %v1440
        %1547 = vst.msk [vmem:[#allocation2 + $0xdc] sm:$0xf] %vm1507, %v1442
        %1548 = vst.msk [vmem:[#allocation2 + $0xdc] sm:$0xf0] %vm1503, %v1444
        %1549 = vst.msk [vmem:[#allocation2 + $0xe4] sm:$0xff] %vm1505, %v1446
        %1550 = vst.msk [vmem:[#allocation2 + $0xec] sm:$0xf] %vm1507, %v1448
        %1551 = vst.msk [vmem:[#allocation2 + $0xec] sm:$0xf0] %vm1503, %v1450
        %1552 = vst.msk [vmem:[#allocation2 + $0xf4] sm:$0xff] %vm1505, %v1452
        %1553 = vst.msk [vmem:[#allocation2 + $0xfc] sm:$0xf] %vm1507, %v1454
        %1556 = vrot.lane.b32.xlu0 %v388, 15
        %v1557 = vpop.permute.xlu0 %1556
        %1558 = vrot.lane.b32.xlu0 %v389, 15
        %v1559 = vpop.permute.xlu0 %1558
        %1560 = vrot.lane.b32.xlu0 %v391, 15
        %v1561 = vpop.permute.xlu0 %1560
        %1562 = vrot.lane.b32.xlu0 %v392, 15
        %v1563 = vpop.permute.xlu0 %1562
        %1564 = vrot.lane.b32.xlu0 %v394, 15
        %v1565 = vpop.permute.xlu0 %1564
        %1566 = vrot.lane.b32.xlu0 %v395, 15
        %v1567 = vpop.permute.xlu0 %1566
        %1568 = vrot.lane.b32.xlu0 %v397, 15
        %v1569 = vpop.permute.xlu0 %1568
        %1570 = vrot.lane.b32.xlu0 %v398, 15
        %v1571 = vpop.permute.xlu0 %1570
        %1572 = vrot.lane.b32.xlu0 %v400, 15
        %v1573 = vpop.permute.xlu0 %1572
        %1574 = vrot.lane.b32.xlu0 %v401, 15
        %v1575 = vpop.permute.xlu0 %1574
        %1576 = vrot.lane.b32.xlu0 %v403, 15
        %v1577 = vpop.permute.xlu0 %1576
        %1578 = vrot.lane.b32.xlu0 %v404, 15
        %v1579 = vpop.permute.xlu0 %1578
        %1580 = vrot.lane.b32.xlu0 %v406, 15
        %v1581 = vpop.permute.xlu0 %1580
        %1582 = vrot.lane.b32.xlu0 %v407, 15
        %v1583 = vpop.permute.xlu0 %1582
        %1584 = vrot.lane.b32.xlu0 %v409, 15
        %v1585 = vpop.permute.xlu0 %1584
        %1586 = vrot.lane.b32.xlu0 %v410, 15
        %v1587 = vpop.permute.xlu0 %1586
        %1588 = vrot.lane.b32.xlu0 %v412, 15
        %v1589 = vpop.permute.xlu0 %1588
        %1590 = vrot.lane.b32.xlu0 %v413, 15
        %v1591 = vpop.permute.xlu0 %1590
        %1592 = vrot.lane.b32.xlu0 %v415, 15
        %v1593 = vpop.permute.xlu0 %1592
        %1594 = vrot.lane.b32.xlu0 %v416, 15
        %v1595 = vpop.permute.xlu0 %1594
        %1596 = vrot.lane.b32.xlu0 %v418, 15
        %v1597 = vpop.permute.xlu0 %1596
        %1598 = vrot.lane.b32.xlu0 %v419, 15
        %v1599 = vpop.permute.xlu0 %1598
        %1600 = vrot.lane.b32.xlu0 %v421, 15
        %v1601 = vpop.permute.xlu0 %1600
        %1602 = vrot.lane.b32.xlu0 %v422, 15
        %v1603 = vpop.permute.xlu0 %1602
        %1604 = vrot.lane.b32.xlu0 %v424, 15
        %v1605 = vpop.permute.xlu0 %1604
        %1606 = vrot.lane.b32.xlu0 %v425, 15
        %v1607 = vpop.permute.xlu0 %1606
        %1608 = vrot.lane.b32.xlu0 %v427, 15
        %v1609 = vpop.permute.xlu0 %1608
        %1610 = vrot.lane.b32.xlu0 %v428, 15
        %v1611 = vpop.permute.xlu0 %1610
        %1612 = vrot.lane.b32.xlu0 %v430, 15
        %v1613 = vpop.permute.xlu0 %1612
        %1614 = vrot.lane.b32.xlu0 %v431, 15
        %v1615 = vpop.permute.xlu0 %1614
        %1616 = vrot.lane.b32.xlu0 %v433, 15
        %v1617 = vpop.permute.xlu0 %1616
        %1618 = vrot.lane.b32.xlu0 %v434, 15
        %v1619 = vpop.permute.xlu0 %1618
        %vm1652 = vcmask 146552
        %1653 = vst.msk [vmem:[#allocation2] sm:$0xff] %vm1652, %v1557
        %1654 = vst.msk [vmem:[#allocation2 + $0x8] sm:$0xff] %vm1652, %v1559
        %1655 = vst.msk [vmem:[#allocation2 + $0x10] sm:$0xff] %vm1652, %v1561
        %1656 = vst.msk [vmem:[#allocation2 + $0x18] sm:$0xff] %vm1652, %v1563
        %1657 = vst.msk [vmem:[#allocation2 + $0x20] sm:$0xff] %vm1652, %v1565
        %1658 = vst.msk [vmem:[#allocation2 + $0x28] sm:$0xff] %vm1652, %v1567
        %1659 = vst.msk [vmem:[#allocation2 + $0x30] sm:$0xff] %vm1652, %v1569
        %1660 = vst.msk [vmem:[#allocation2 + $0x38] sm:$0xff] %vm1652, %v1571
        %1661 = vst.msk [vmem:[#allocation2 + $0x40] sm:$0xff] %vm1652, %v1573
        %1662 = vst.msk [vmem:[#allocation2 + $0x48] sm:$0xff] %vm1652, %v1575
        %1663 = vst.msk [vmem:[#allocation2 + $0x50] sm:$0xff] %vm1652, %v1577
        %1664 = vst.msk [vmem:[#allocation2 + $0x58] sm:$0xff] %vm1652, %v1579
        %1665 = vst.msk [vmem:[#allocation2 + $0x60] sm:$0xff] %vm1652, %v1581
        %1666 = vst.msk [vmem:[#allocation2 + $0x68] sm:$0xff] %vm1652, %v1583
        %1667 = vst.msk [vmem:[#allocation2 + $0x70] sm:$0xff] %vm1652, %v1585
        %1668 = vst.msk [vmem:[#allocation2 + $0x78] sm:$0xff] %vm1652, %v1587
        %1669 = vst.msk [vmem:[#allocation2 + $0x80] sm:$0xff] %vm1652, %v1589
        %1670 = vst.msk [vmem:[#allocation2 + $0x88] sm:$0xff] %vm1652, %v1591
        %1671 = vst.msk [vmem:[#allocation2 + $0x90] sm:$0xff] %vm1652, %v1593
        %1672 = vst.msk [vmem:[#allocation2 + $0x98] sm:$0xff] %vm1652, %v1595
        %1673 = vst.msk [vmem:[#allocation2 + $0xa0] sm:$0xff] %vm1652, %v1597
        %1674 = vst.msk [vmem:[#allocation2 + $0xa8] sm:$0xff] %vm1652, %v1599
        %1675 = vst.msk [vmem:[#allocation2 + $0xb0] sm:$0xff] %vm1652, %v1601
        %1676 = vst.msk [vmem:[#allocation2 + $0xb8] sm:$0xff] %vm1652, %v1603
        %1677 = vst.msk [vmem:[#allocation2 + $0xc0] sm:$0xff] %vm1652, %v1605
        %1678 = vst.msk [vmem:[#allocation2 + $0xc8] sm:$0xff] %vm1652, %v1607
        %1679 = vst.msk [vmem:[#allocation2 + $0xd0] sm:$0xff] %vm1652, %v1609
        %1680 = vst.msk [vmem:[#allocation2 + $0xd8] sm:$0xff] %vm1652, %v1611
        %1681 = vst.msk [vmem:[#allocation2 + $0xe0] sm:$0xff] %vm1652, %v1613
        %1682 = vst.msk [vmem:[#allocation2 + $0xe8] sm:$0xff] %vm1652, %v1615
        %1683 = vst.msk [vmem:[#allocation2 + $0xf0] sm:$0xff] %vm1652, %v1617
        %1684 = vst.msk [vmem:[#allocation2 + $0xf8] sm:$0xff] %vm1652, %v1619
        %1686 = vrot.lane.b32.xlu0 %v388, 18
        %v1687 = vpop.permute.xlu0 %1686
        %1688 = vrot.lane.b32.xlu0 %v389, 18
        %v1689 = vpop.permute.xlu0 %1688
        %1690 = vrot.lane.b32.xlu0 %v390, 18
        %v1691 = vpop.permute.xlu0 %1690
        %1692 = vrot.lane.b32.xlu0 %v391, 18
        %v1693 = vpop.permute.xlu0 %1692
        %1694 = vrot.lane.b32.xlu0 %v392, 18
        %v1695 = vpop.permute.xlu0 %1694
        %1696 = vrot.lane.b32.xlu0 %v393, 18
        %v1697 = vpop.permute.xlu0 %1696
        %1698 = vrot.lane.b32.xlu0 %v394, 18
        %v1699 = vpop.permute.xlu0 %1698
        %1700 = vrot.lane.b32.xlu0 %v395, 18
        %v1701 = vpop.permute.xlu0 %1700
        %1702 = vrot.lane.b32.xlu0 %v396, 18
        %v1703 = vpop.permute.xlu0 %1702
        %1704 = vrot.lane.b32.xlu0 %v397, 18
        %v1705 = vpop.permute.xlu0 %1704
        %1706 = vrot.lane.b32.xlu0 %v398, 18
        %v1707 = vpop.permute.xlu0 %1706
        %1708 = vrot.lane.b32.xlu0 %v399, 18
        %v1709 = vpop.permute.xlu0 %1708
        %1710 = vrot.lane.b32.xlu0 %v400, 18
        %v1711 = vpop.permute.xlu0 %1710
        %1712 = vrot.lane.b32.xlu0 %v401, 18
        %v1713 = vpop.permute.xlu0 %1712
        %1714 = vrot.lane.b32.xlu0 %v402, 18
        %v1715 = vpop.permute.xlu0 %1714
        %1716 = vrot.lane.b32.xlu0 %v403, 18
        %v1717 = vpop.permute.xlu0 %1716
        %1718 = vrot.lane.b32.xlu0 %v404, 18
        %v1719 = vpop.permute.xlu0 %1718
        %1720 = vrot.lane.b32.xlu0 %v405, 18
        %v1721 = vpop.permute.xlu0 %1720
        %1722 = vrot.lane.b32.xlu0 %v406, 18
        %v1723 = vpop.permute.xlu0 %1722
        %1724 = vrot.lane.b32.xlu0 %v407, 18
        %v1725 = vpop.permute.xlu0 %1724
        %1726 = vrot.lane.b32.xlu0 %v408, 18
        %v1727 = vpop.permute.xlu0 %1726
        %1728 = vrot.lane.b32.xlu0 %v409, 18
        %v1729 = vpop.permute.xlu0 %1728
        %1730 = vrot.lane.b32.xlu0 %v410, 18
        %v1731 = vpop.permute.xlu0 %1730
        %1732 = vrot.lane.b32.xlu0 %v411, 18
        %v1733 = vpop.permute.xlu0 %1732
        %1734 = vrot.lane.b32.xlu0 %v412, 18
        %v1735 = vpop.permute.xlu0 %1734
        %1736 = vrot.lane.b32.xlu0 %v413, 18
        %v1737 = vpop.permute.xlu0 %1736
        %1738 = vrot.lane.b32.xlu0 %v414, 18
        %v1739 = vpop.permute.xlu0 %1738
        %1740 = vrot.lane.b32.xlu0 %v415, 18
        %v1741 = vpop.permute.xlu0 %1740
        %1742 = vrot.lane.b32.xlu0 %v416, 18
        %v1743 = vpop.permute.xlu0 %1742
        %1744 = vrot.lane.b32.xlu0 %v417, 18
        %v1745 = vpop.permute.xlu0 %1744
        %1746 = vrot.lane.b32.xlu0 %v418, 18
        %v1747 = vpop.permute.xlu0 %1746
        %1748 = vrot.lane.b32.xlu0 %v419, 18
        %v1749 = vpop.permute.xlu0 %1748
        %1750 = vrot.lane.b32.xlu0 %v420, 18
        %v1751 = vpop.permute.xlu0 %1750
        %1752 = vrot.lane.b32.xlu0 %v421, 18
        %v1753 = vpop.permute.xlu0 %1752
        %1754 = vrot.lane.b32.xlu0 %v422, 18
        %v1755 = vpop.permute.xlu0 %1754
        %1756 = vrot.lane.b32.xlu0 %v423, 18
        %v1757 = vpop.permute.xlu0 %1756
        %1758 = vrot.lane.b32.xlu0 %v424, 18
        %v1759 = vpop.permute.xlu0 %1758
        %1760 = vrot.lane.b32.xlu0 %v425, 18
        %v1761 = vpop.permute.xlu0 %1760
        %1762 = vrot.lane.b32.xlu0 %v426, 18
        %v1763 = vpop.permute.xlu0 %1762
        %1764 = vrot.lane.b32.xlu0 %v427, 18
        %v1765 = vpop.permute.xlu0 %1764
        %1766 = vrot.lane.b32.xlu0 %v428, 18
        %v1767 = vpop.permute.xlu0 %1766
        %1768 = vrot.lane.b32.xlu0 %v429, 18
        %v1769 = vpop.permute.xlu0 %1768
        %1770 = vrot.lane.b32.xlu0 %v430, 18
        %v1771 = vpop.permute.xlu0 %1770
        %1772 = vrot.lane.b32.xlu0 %v431, 18
        %v1773 = vpop.permute.xlu0 %1772
        %1774 = vrot.lane.b32.xlu0 %v432, 18
        %v1775 = vpop.permute.xlu0 %1774
        %1776 = vrot.lane.b32.xlu0 %v433, 18
        %v1777 = vpop.permute.xlu0 %1776
        %1778 = vrot.lane.b32.xlu0 %v434, 18
        %v1779 = vpop.permute.xlu0 %1778
        %1780 = vrot.lane.b32.xlu0 %v435, 18
        %v1781 = vpop.permute.xlu0 %1780
        %vm1830 = vcmask 171153
        %1831 = vst.msk [vmem:[#allocation2 - $0x1] sm:$0xfe] %vm1830, %v1687
        %vm1832 = vcmask 171152
        %1833 = vst.msk [vmem:[#allocation2 + $0x7] sm:$0xff] %vm1832, %v1689
        %vm1834 = vcmask 163984
        %1835 = vst.msk [vmem:[#allocation2 + $0xf] sm:$0x1] %vm1834, %v1691
        %1836 = vst.msk [vmem:[#allocation2 + $0xf] sm:$0xfe] %vm1830, %v1693
        %1837 = vst.msk [vmem:[#allocation2 + $0x17] sm:$0xff] %vm1832, %v1695
        %1838 = vst.msk [vmem:[#allocation2 + $0x1f] sm:$0x1] %vm1834, %v1697
        %1839 = vst.msk [vmem:[#allocation2 + $0x1f] sm:$0xfe] %vm1830, %v1699
        %1840 = vst.msk [vmem:[#allocation2 + $0x27] sm:$0xff] %vm1832, %v1701
        %1841 = vst.msk [vmem:[#allocation2 + $0x2f] sm:$0x1] %vm1834, %v1703
        %1842 = vst.msk [vmem:[#allocation2 + $0x2f] sm:$0xfe] %vm1830, %v1705
        %1843 = vst.msk [vmem:[#allocation2 + $0x37] sm:$0xff] %vm1832, %v1707
        %1844 = vst.msk [vmem:[#allocation2 + $0x3f] sm:$0x1] %vm1834, %v1709
        %1845 = vst.msk [vmem:[#allocation2 + $0x3f] sm:$0xfe] %vm1830, %v1711
        %1846 = vst.msk [vmem:[#allocation2 + $0x47] sm:$0xff] %vm1832, %v1713
        %1847 = vst.msk [vmem:[#allocation2 + $0x4f] sm:$0x1] %vm1834, %v1715
        %1848 = vst.msk [vmem:[#allocation2 + $0x4f] sm:$0xfe] %vm1830, %v1717
        %1849 = vst.msk [vmem:[#allocation2 + $0x57] sm:$0xff] %vm1832, %v1719
        %1850 = vst.msk [vmem:[#allocation2 + $0x5f] sm:$0x1] %vm1834, %v1721
        %1851 = vst.msk [vmem:[#allocation2 + $0x5f] sm:$0xfe] %vm1830, %v1723
        %1852 = vst.msk [vmem:[#allocation2 + $0x67] sm:$0xff] %vm1832, %v1725
        %1853 = vst.msk [vmem:[#allocation2 + $0x6f] sm:$0x1] %vm1834, %v1727
        %1854 = vst.msk [vmem:[#allocation2 + $0x6f] sm:$0xfe] %vm1830, %v1729
        %1855 = vst.msk [vmem:[#allocation2 + $0x77] sm:$0xff] %vm1832, %v1731
        %1856 = vst.msk [vmem:[#allocation2 + $0x7f] sm:$0x1] %vm1834, %v1733
        %1857 = vst.msk [vmem:[#allocation2 + $0x7f] sm:$0xfe] %vm1830, %v1735
        %1858 = vst.msk [vmem:[#allocation2 + $0x87] sm:$0xff] %vm1832, %v1737
        %1859 = vst.msk [vmem:[#allocation2 + $0x8f] sm:$0x1] %vm1834, %v1739
        %1860 = vst.msk [vmem:[#allocation2 + $0x8f] sm:$0xfe] %vm1830, %v1741
        %1861 = vst.msk [vmem:[#allocation2 + $0x97] sm:$0xff] %vm1832, %v1743
        %1862 = vst.msk [vmem:[#allocation2 + $0x9f] sm:$0x1] %vm1834, %v1745
        %1863 = vst.msk [vmem:[#allocation2 + $0x9f] sm:$0xfe] %vm1830, %v1747
        %1864 = vst.msk [vmem:[#allocation2 + $0xa7] sm:$0xff] %vm1832, %v1749
        %1865 = vst.msk [vmem:[#allocation2 + $0xaf] sm:$0x1] %vm1834, %v1751
        %1866 = vst.msk [vmem:[#allocation2 + $0xaf] sm:$0xfe] %vm1830, %v1753
        %1867 = vst.msk [vmem:[#allocation2 + $0xb7] sm:$0xff] %vm1832, %v1755
        %1868 = vst.msk [vmem:[#allocation2 + $0xbf] sm:$0x1] %vm1834, %v1757
        %1869 = vst.msk [vmem:[#allocation2 + $0xbf] sm:$0xfe] %vm1830, %v1759
        %1870 = vst.msk [vmem:[#allocation2 + $0xc7] sm:$0xff] %vm1832, %v1761
        %1871 = vst.msk [vmem:[#allocation2 + $0xcf] sm:$0x1] %vm1834, %v1763
        %1872 = vst.msk [vmem:[#allocation2 + $0xcf] sm:$0xfe] %vm1830, %v1765
        %1873 = vst.msk [vmem:[#allocation2 + $0xd7] sm:$0xff] %vm1832, %v1767
        %1874 = vst.msk [vmem:[#allocation2 + $0xdf] sm:$0x1] %vm1834, %v1769
        %1875 = vst.msk [vmem:[#allocation2 + $0xdf] sm:$0xfe] %vm1830, %v1771
        %1876 = vst.msk [vmem:[#allocation2 + $0xe7] sm:$0xff] %vm1832, %v1773
        %1877 = vst.msk [vmem:[#allocation2 + $0xef] sm:$0x1] %vm1834, %v1775
        %1878 = vst.msk [vmem:[#allocation2 + $0xef] sm:$0xfe] %vm1830, %v1777
        %1879 = vst.msk [vmem:[#allocation2 + $0xf7] sm:$0xff] %vm1832, %v1779
        %1880 = vst.msk [vmem:[#allocation2 + $0xff] sm:$0x1] %vm1834, %v1781
        %1881 = vrot.lane.b32.xlu0 %v388, 21
        %v1882 = vpop.permute.xlu0 %1881
        %1883 = vrot.lane.b32.xlu0 %v389, 21
        %v1884 = vpop.permute.xlu0 %1883
        %1885 = vrot.lane.b32.xlu0 %v390, 21
        %v1886 = vpop.permute.xlu0 %1885
        %1887 = vrot.lane.b32.xlu0 %v391, 21
        %v1888 = vpop.permute.xlu0 %1887
        %1889 = vrot.lane.b32.xlu0 %v392, 21
        %v1890 = vpop.permute.xlu0 %1889
        %1891 = vrot.lane.b32.xlu0 %v393, 21
        %v1892 = vpop.permute.xlu0 %1891
        %1893 = vrot.lane.b32.xlu0 %v394, 21
        %v1894 = vpop.permute.xlu0 %1893
        %1895 = vrot.lane.b32.xlu0 %v395, 21
        %v1896 = vpop.permute.xlu0 %1895
        %1897 = vrot.lane.b32.xlu0 %v396, 21
        %v1898 = vpop.permute.xlu0 %1897
        %1899 = vrot.lane.b32.xlu0 %v397, 21
        %v1900 = vpop.permute.xlu0 %1899
        %1901 = vrot.lane.b32.xlu0 %v398, 21
        %v1902 = vpop.permute.xlu0 %1901
        %1903 = vrot.lane.b32.xlu0 %v399, 21
        %v1904 = vpop.permute.xlu0 %1903
        %1905 = vrot.lane.b32.xlu0 %v400, 21
        %v1906 = vpop.permute.xlu0 %1905
        %1907 = vrot.lane.b32.xlu0 %v401, 21
        %v1908 = vpop.permute.xlu0 %1907
        %1909 = vrot.lane.b32.xlu0 %v402, 21
        %v1910 = vpop.permute.xlu0 %1909
        %1911 = vrot.lane.b32.xlu0 %v403, 21
        %v1912 = vpop.permute.xlu0 %1911
        %1913 = vrot.lane.b32.xlu0 %v404, 21
        %v1914 = vpop.permute.xlu0 %1913
        %1915 = vrot.lane.b32.xlu0 %v405, 21
        %v1916 = vpop.permute.xlu0 %1915
        %1917 = vrot.lane.b32.xlu0 %v406, 21
        %v1918 = vpop.permute.xlu0 %1917
        %1919 = vrot.lane.b32.xlu0 %v407, 21
        %v1920 = vpop.permute.xlu0 %1919
        %1921 = vrot.lane.b32.xlu0 %v408, 21
        %v1922 = vpop.permute.xlu0 %1921
        %1923 = vrot.lane.b32.xlu0 %v409, 21
        %v1924 = vpop.permute.xlu0 %1923
        %1925 = vrot.lane.b32.xlu0 %v410, 21
        %v1926 = vpop.permute.xlu0 %1925
        %1927 = vrot.lane.b32.xlu0 %v411, 21
        %v1928 = vpop.permute.xlu0 %1927
        %1929 = vrot.lane.b32.xlu0 %v412, 21
        %v1930 = vpop.permute.xlu0 %1929
        %1931 = vrot.lane.b32.xlu0 %v413, 21
        %v1932 = vpop.permute.xlu0 %1931
        %1933 = vrot.lane.b32.xlu0 %v414, 21
        %v1934 = vpop.permute.xlu0 %1933
        %1935 = vrot.lane.b32.xlu0 %v415, 21
        %v1936 = vpop.permute.xlu0 %1935
        %1937 = vrot.lane.b32.xlu0 %v416, 21
        %v1938 = vpop.permute.xlu0 %1937
        %1939 = vrot.lane.b32.xlu0 %v417, 21
        %v1940 = vpop.permute.xlu0 %1939
        %1941 = vrot.lane.b32.xlu0 %v418, 21
        %v1942 = vpop.permute.xlu0 %1941
        %1943 = vrot.lane.b32.xlu0 %v419, 21
        %v1944 = vpop.permute.xlu0 %1943
        %1945 = vrot.lane.b32.xlu0 %v420, 21
        %v1946 = vpop.permute.xlu0 %1945
        %1947 = vrot.lane.b32.xlu0 %v421, 21
        %v1948 = vpop.permute.xlu0 %1947
        %1949 = vrot.lane.b32.xlu0 %v422, 21
        %v1950 = vpop.permute.xlu0 %1949
        %1951 = vrot.lane.b32.xlu0 %v423, 21
        %v1952 = vpop.permute.xlu0 %1951
        %1953 = vrot.lane.b32.xlu0 %v424, 21
        %v1954 = vpop.permute.xlu0 %1953
        %1955 = vrot.lane.b32.xlu0 %v425, 21
        %v1956 = vpop.permute.xlu0 %1955
        %1957 = vrot.lane.b32.xlu0 %v426, 21
        %v1958 = vpop.permute.xlu0 %1957
        %1959 = vrot.lane.b32.xlu0 %v427, 21
        %v1960 = vpop.permute.xlu0 %1959
        %1961 = vrot.lane.b32.xlu0 %v428, 21
        %v1962 = vpop.permute.xlu0 %1961
        %1963 = vrot.lane.b32.xlu0 %v429, 21
        %v1964 = vpop.permute.xlu0 %1963
        %1965 = vrot.lane.b32.xlu0 %v430, 21
        %v1966 = vpop.permute.xlu0 %1965
        %1967 = vrot.lane.b32.xlu0 %v431, 21
        %v1968 = vpop.permute.xlu0 %1967
        %1969 = vrot.lane.b32.xlu0 %v432, 21
        %v1970 = vpop.permute.xlu0 %1969
        %1971 = vrot.lane.b32.xlu0 %v433, 21
        %v1972 = vpop.permute.xlu0 %1971
        %1973 = vrot.lane.b32.xlu0 %v434, 21
        %v1974 = vpop.permute.xlu0 %1973
        %1975 = vrot.lane.b32.xlu0 %v435, 21
        %v1976 = vpop.permute.xlu0 %1975
        %vm2025 = vcmask 195754
        %2026 = vst.msk [vmem:[#allocation2 - $0x2] sm:$0xfc] %vm2025, %v1882
        %vm2027 = vcmask 195752
        %2028 = vst.msk [vmem:[#allocation2 + $0x6] sm:$0xff] %vm2027, %v1884
        %vm2029 = vcmask 189608
        %2030 = vst.msk [vmem:[#allocation2 + $0xe] sm:$0x3] %vm2029, %v1886
        %2031 = vst.msk [vmem:[#allocation2 + $0xe] sm:$0xfc] %vm2025, %v1888
        %2032 = vst.msk [vmem:[#allocation2 + $0x16] sm:$0xff] %vm2027, %v1890
        %2033 = vst.msk [vmem:[#allocation2 + $0x1e] sm:$0x3] %vm2029, %v1892
        %2034 = vst.msk [vmem:[#allocation2 + $0x1e] sm:$0xfc] %vm2025, %v1894
        %2035 = vst.msk [vmem:[#allocation2 + $0x26] sm:$0xff] %vm2027, %v1896
        %2036 = vst.msk [vmem:[#allocation2 + $0x2e] sm:$0x3] %vm2029, %v1898
        %2037 = vst.msk [vmem:[#allocation2 + $0x2e] sm:$0xfc] %vm2025, %v1900
        %2038 = vst.msk [vmem:[#allocation2 + $0x36] sm:$0xff] %vm2027, %v1902
        %2039 = vst.msk [vmem:[#allocation2 + $0x3e] sm:$0x3] %vm2029, %v1904
        %2040 = vst.msk [vmem:[#allocation2 + $0x3e] sm:$0xfc] %vm2025, %v1906
        %2041 = vst.msk [vmem:[#allocation2 + $0x46] sm:$0xff] %vm2027, %v1908
        %2042 = vst.msk [vmem:[#allocation2 + $0x4e] sm:$0x3] %vm2029, %v1910
        %2043 = vst.msk [vmem:[#allocation2 + $0x4e] sm:$0xfc] %vm2025, %v1912
        %2044 = vst.msk [vmem:[#allocation2 + $0x56] sm:$0xff] %vm2027, %v1914
        %2045 = vst.msk [vmem:[#allocation2 + $0x5e] sm:$0x3] %vm2029, %v1916
        %2046 = vst.msk [vmem:[#allocation2 + $0x5e] sm:$0xfc] %vm2025, %v1918
        %2047 = vst.msk [vmem:[#allocation2 + $0x66] sm:$0xff] %vm2027, %v1920
        %2048 = vst.msk [vmem:[#allocation2 + $0x6e] sm:$0x3] %vm2029, %v1922
        %2049 = vst.msk [vmem:[#allocation2 + $0x6e] sm:$0xfc] %vm2025, %v1924
        %2050 = vst.msk [vmem:[#allocation2 + $0x76] sm:$0xff] %vm2027, %v1926
        %2051 = vst.msk [vmem:[#allocation2 + $0x7e] sm:$0x3] %vm2029, %v1928
        %2052 = vst.msk [vmem:[#allocation2 + $0x7e] sm:$0xfc] %vm2025, %v1930
        %2053 = vst.msk [vmem:[#allocation2 + $0x86] sm:$0xff] %vm2027, %v1932
        %2054 = vst.msk [vmem:[#allocation2 + $0x8e] sm:$0x3] %vm2029, %v1934
        %2055 = vst.msk [vmem:[#allocation2 + $0x8e] sm:$0xfc] %vm2025, %v1936
        %2056 = vst.msk [vmem:[#allocation2 + $0x96] sm:$0xff] %vm2027, %v1938
        %2057 = vst.msk [vmem:[#allocation2 + $0x9e] sm:$0x3] %vm2029, %v1940
        %2058 = vst.msk [vmem:[#allocation2 + $0x9e] sm:$0xfc] %vm2025, %v1942
        %2059 = vst.msk [vmem:[#allocation2 + $0xa6] sm:$0xff] %vm2027, %v1944
        %2060 = vst.msk [vmem:[#allocation2 + $0xae] sm:$0x3] %vm2029, %v1946
        %2061 = vst.msk [vmem:[#allocation2 + $0xae] sm:$0xfc] %vm2025, %v1948
        %2062 = vst.msk [vmem:[#allocation2 + $0xb6] sm:$0xff] %vm2027, %v1950
        %2063 = vst.msk [vmem:[#allocation2 + $0xbe] sm:$0x3] %vm2029, %v1952
        %2064 = vst.msk [vmem:[#allocation2 + $0xbe] sm:$0xfc] %vm2025, %v1954
        %2065 = vst.msk [vmem:[#allocation2 + $0xc6] sm:$0xff] %vm2027, %v1956
        %2066 = vst.msk [vmem:[#allocation2 + $0xce] sm:$0x3] %vm2029, %v1958
        %2067 = vst.msk [vmem:[#allocation2 + $0xce] sm:$0xfc] %vm2025, %v1960
        %2068 = vst.msk [vmem:[#allocation2 + $0xd6] sm:$0xff] %vm2027, %v1962
        %2069 = vst.msk [vmem:[#allocation2 + $0xde] sm:$0x3] %vm2029, %v1964
        %2070 = vst.msk [vmem:[#allocation2 + $0xde] sm:$0xfc] %vm2025, %v1966
        %2071 = vst.msk [vmem:[#allocation2 + $0xe6] sm:$0xff] %vm2027, %v1968
        %2072 = vst.msk [vmem:[#allocation2 + $0xee] sm:$0x3] %vm2029, %v1970
        %2073 = vst.msk [vmem:[#allocation2 + $0xee] sm:$0xfc] %vm2025, %v1972
        %2074 = vst.msk [vmem:[#allocation2 + $0xf6] sm:$0xff] %vm2027, %v1974
        %2075 = vst.msk [vmem:[#allocation2 + $0xfe] sm:$0x3] %vm2029, %v1976
        %2076 = vrot.lane.b32.xlu0 %v388, 24
        %v2077 = vpop.permute.xlu0 %2076
        %2078 = vrot.lane.b32.xlu0 %v389, 24
        %v2079 = vpop.permute.xlu0 %2078
        %2080 = vrot.lane.b32.xlu0 %v390, 24
        %v2081 = vpop.permute.xlu0 %2080
        %2082 = vrot.lane.b32.xlu0 %v391, 24
        %v2083 = vpop.permute.xlu0 %2082
        %2084 = vrot.lane.b32.xlu0 %v392, 24
        %v2085 = vpop.permute.xlu0 %2084
        %2086 = vrot.lane.b32.xlu0 %v393, 24
        %v2087 = vpop.permute.xlu0 %2086
        %2088 = vrot.lane.b32.xlu0 %v394, 24
        %v2089 = vpop.permute.xlu0 %2088
        %2090 = vrot.lane.b32.xlu0 %v395, 24
        %v2091 = vpop.permute.xlu0 %2090
        %2092 = vrot.lane.b32.xlu0 %v396, 24
        %v2093 = vpop.permute.xlu0 %2092
        %2094 = vrot.lane.b32.xlu0 %v397, 24
        %v2095 = vpop.permute.xlu0 %2094
        %2096 = vrot.lane.b32.xlu0 %v398, 24
        %v2097 = vpop.permute.xlu0 %2096
        %2098 = vrot.lane.b32.xlu0 %v399, 24
        %v2099 = vpop.permute.xlu0 %2098
        %2100 = vrot.lane.b32.xlu0 %v400, 24
        %v2101 = vpop.permute.xlu0 %2100
        %2102 = vrot.lane.b32.xlu0 %v401, 24
        %v2103 = vpop.permute.xlu0 %2102
        %2104 = vrot.lane.b32.xlu0 %v402, 24
        %v2105 = vpop.permute.xlu0 %2104
        %2106 = vrot.lane.b32.xlu0 %v403, 24
        %v2107 = vpop.permute.xlu0 %2106
        %2108 = vrot.lane.b32.xlu0 %v404, 24
        %v2109 = vpop.permute.xlu0 %2108
        %2110 = vrot.lane.b32.xlu0 %v405, 24
        %v2111 = vpop.permute.xlu0 %2110
        %2112 = vrot.lane.b32.xlu0 %v406, 24
        %v2113 = vpop.permute.xlu0 %2112
        %2114 = vrot.lane.b32.xlu0 %v407, 24
        %v2115 = vpop.permute.xlu0 %2114
        %2116 = vrot.lane.b32.xlu0 %v408, 24
        %v2117 = vpop.permute.xlu0 %2116
        %2118 = vrot.lane.b32.xlu0 %v409, 24
        %v2119 = vpop.permute.xlu0 %2118
        %2120 = vrot.lane.b32.xlu0 %v410, 24
        %v2121 = vpop.permute.xlu0 %2120
        %2122 = vrot.lane.b32.xlu0 %v411, 24
        %v2123 = vpop.permute.xlu0 %2122
        %2124 = vrot.lane.b32.xlu0 %v412, 24
        %v2125 = vpop.permute.xlu0 %2124
        %2126 = vrot.lane.b32.xlu0 %v413, 24
        %v2127 = vpop.permute.xlu0 %2126
        %2128 = vrot.lane.b32.xlu0 %v414, 24
        %v2129 = vpop.permute.xlu0 %2128
        %2130 = vrot.lane.b32.xlu0 %v415, 24
        %v2131 = vpop.permute.xlu0 %2130
        %2132 = vrot.lane.b32.xlu0 %v416, 24
        %v2133 = vpop.permute.xlu0 %2132
        %2134 = vrot.lane.b32.xlu0 %v417, 24
        %v2135 = vpop.permute.xlu0 %2134
        %2136 = vrot.lane.b32.xlu0 %v418, 24
        %v2137 = vpop.permute.xlu0 %2136
        %2138 = vrot.lane.b32.xlu0 %v419, 24
        %v2139 = vpop.permute.xlu0 %2138
        %2140 = vrot.lane.b32.xlu0 %v420, 24
        %v2141 = vpop.permute.xlu0 %2140
        %2142 = vrot.lane.b32.xlu0 %v421, 24
        %v2143 = vpop.permute.xlu0 %2142
        %2144 = vrot.lane.b32.xlu0 %v422, 24
        %v2145 = vpop.permute.xlu0 %2144
        %2146 = vrot.lane.b32.xlu0 %v423, 24
        %v2147 = vpop.permute.xlu0 %2146
        %2148 = vrot.lane.b32.xlu0 %v424, 24
        %v2149 = vpop.permute.xlu0 %2148
        %2150 = vrot.lane.b32.xlu0 %v425, 24
        %v2151 = vpop.permute.xlu0 %2150
        %2152 = vrot.lane.b32.xlu0 %v426, 24
        %v2153 = vpop.permute.xlu0 %2152
        %2154 = vrot.lane.b32.xlu0 %v427, 24
        %v2155 = vpop.permute.xlu0 %2154
        %2156 = vrot.lane.b32.xlu0 %v428, 24
        %v2157 = vpop.permute.xlu0 %2156
        %2158 = vrot.lane.b32.xlu0 %v429, 24
        %v2159 = vpop.permute.xlu0 %2158
        %2160 = vrot.lane.b32.xlu0 %v430, 24
        %v2161 = vpop.permute.xlu0 %2160
        %2162 = vrot.lane.b32.xlu0 %v431, 24
        %v2163 = vpop.permute.xlu0 %2162
        %2164 = vrot.lane.b32.xlu0 %v432, 24
        %v2165 = vpop.permute.xlu0 %2164
        %2166 = vrot.lane.b32.xlu0 %v433, 24
        %v2167 = vpop.permute.xlu0 %2166
        %2168 = vrot.lane.b32.xlu0 %v434, 24
        %v2169 = vpop.permute.xlu0 %2168
        %2170 = vrot.lane.b32.xlu0 %v435, 24
        %v2171 = vpop.permute.xlu0 %2170
        %vm2220 = vcmask 220355
        %2221 = vst.msk [vmem:[#allocation2 - $0x3] sm:$0xf8] %vm2220, %v2077
        %vm2222 = vcmask 220352
        %2223 = vst.msk [vmem:[#allocation2 + $0x5] sm:$0xff] %vm2222, %v2079
        %vm2224 = vcmask 215232
        %2225 = vst.msk [vmem:[#allocation2 + $0xd] sm:$0x7] %vm2224, %v2081
        %2226 = vst.msk [vmem:[#allocation2 + $0xd] sm:$0xf8] %vm2220, %v2083
        %2227 = vst.msk [vmem:[#allocation2 + $0x15] sm:$0xff] %vm2222, %v2085
        %2228 = vst.msk [vmem:[#allocation2 + $0x1d] sm:$0x7] %vm2224, %v2087
        %2229 = vst.msk [vmem:[#allocation2 + $0x1d] sm:$0xf8] %vm2220, %v2089
        %2230 = vst.msk [vmem:[#allocation2 + $0x25] sm:$0xff] %vm2222, %v2091
        %2231 = vst.msk [vmem:[#allocation2 + $0x2d] sm:$0x7] %vm2224, %v2093
        %2232 = vst.msk [vmem:[#allocation2 + $0x2d] sm:$0xf8] %vm2220, %v2095
        %2233 = vst.msk [vmem:[#allocation2 + $0x35] sm:$0xff] %vm2222, %v2097
        %2234 = vst.msk [vmem:[#allocation2 + $0x3d] sm:$0x7] %vm2224, %v2099
        %2235 = vst.msk [vmem:[#allocation2 + $0x3d] sm:$0xf8] %vm2220, %v2101
        %2236 = vst.msk [vmem:[#allocation2 + $0x45] sm:$0xff] %vm2222, %v2103
        %2237 = vst.msk [vmem:[#allocation2 + $0x4d] sm:$0x7] %vm2224, %v2105
        %2238 = vst.msk [vmem:[#allocation2 + $0x4d] sm:$0xf8] %vm2220, %v2107
        %2239 = vst.msk [vmem:[#allocation2 + $0x55] sm:$0xff] %vm2222, %v2109
        %2240 = vst.msk [vmem:[#allocation2 + $0x5d] sm:$0x7] %vm2224, %v2111
        %2241 = vst.msk [vmem:[#allocation2 + $0x5d] sm:$0xf8] %vm2220, %v2113
        %2242 = vst.msk [vmem:[#allocation2 + $0x65] sm:$0xff] %vm2222, %v2115
        %2243 = vst.msk [vmem:[#allocation2 + $0x6d] sm:$0x7] %vm2224, %v2117
        %2244 = vst.msk [vmem:[#allocation2 + $0x6d] sm:$0xf8] %vm2220, %v2119
        %2245 = vst.msk [vmem:[#allocation2 + $0x75] sm:$0xff] %vm2222, %v2121
        %2246 = vst.msk [vmem:[#allocation2 + $0x7d] sm:$0x7] %vm2224, %v2123
        %2247 = vst.msk [vmem:[#allocation2 + $0x7d] sm:$0xf8] %vm2220, %v2125
        %2248 = vst.msk [vmem:[#allocation2 + $0x85] sm:$0xff] %vm2222, %v2127
        %2249 = vst.msk [vmem:[#allocation2 + $0x8d] sm:$0x7] %vm2224, %v2129
        %2250 = vst.msk [vmem:[#allocation2 + $0x8d] sm:$0xf8] %vm2220, %v2131
        %2251 = vst.msk [vmem:[#allocation2 + $0x95] sm:$0xff] %vm2222, %v2133
        %2252 = vst.msk [vmem:[#allocation2 + $0x9d] sm:$0x7] %vm2224, %v2135
        %2253 = vst.msk [vmem:[#allocation2 + $0x9d] sm:$0xf8] %vm2220, %v2137
        %2254 = vst.msk [vmem:[#allocation2 + $0xa5] sm:$0xff] %vm2222, %v2139
        %2255 = vst.msk [vmem:[#allocation2 + $0xad] sm:$0x7] %vm2224, %v2141
        %2256 = vst.msk [vmem:[#allocation2 + $0xad] sm:$0xf8] %vm2220, %v2143
        %2257 = vst.msk [vmem:[#allocation2 + $0xb5] sm:$0xff] %vm2222, %v2145
        %2258 = vst.msk [vmem:[#allocation2 + $0xbd] sm:$0x7] %vm2224, %v2147
        %2259 = vst.msk [vmem:[#allocation2 + $0xbd] sm:$0xf8] %vm2220, %v2149
        %2260 = vst.msk [vmem:[#allocation2 + $0xc5] sm:$0xff] %vm2222, %v2151
        %2261 = vst.msk [vmem:[#allocation2 + $0xcd] sm:$0x7] %vm2224, %v2153
        %2262 = vst.msk [vmem:[#allocation2 + $0xcd] sm:$0xf8] %vm2220, %v2155
        %2263 = vst.msk [vmem:[#allocation2 + $0xd5] sm:$0xff] %vm2222, %v2157
        %2264 = vst.msk [vmem:[#allocation2 + $0xdd] sm:$0x7] %vm2224, %v2159
        %2265 = vst.msk [vmem:[#allocation2 + $0xdd] sm:$0xf8] %vm2220, %v2161
        %2266 = vst.msk [vmem:[#allocation2 + $0xe5] sm:$0xff] %vm2222, %v2163
        %2267 = vst.msk [vmem:[#allocation2 + $0xed] sm:$0x7] %vm2224, %v2165
        %2268 = vst.msk [vmem:[#allocation2 + $0xed] sm:$0xf8] %vm2220, %v2167
        %2269 = vst.msk [vmem:[#allocation2 + $0xf5] sm:$0xff] %vm2222, %v2169
        %2270 = vst.msk [vmem:[#allocation2 + $0xfd] sm:$0x7] %vm2224, %v2171
        %2271 = vrot.lane.b32.xlu0 %v388, 27
        %v2272 = vpop.permute.xlu0 %2271
        %2273 = vrot.lane.b32.xlu0 %v389, 27
        %v2274 = vpop.permute.xlu0 %2273
        %2275 = vrot.lane.b32.xlu0 %v390, 27
        %v2276 = vpop.permute.xlu0 %2275
        %2277 = vrot.lane.b32.xlu0 %v391, 27
        %v2278 = vpop.permute.xlu0 %2277
        %2279 = vrot.lane.b32.xlu0 %v392, 27
        %v2280 = vpop.permute.xlu0 %2279
        %2281 = vrot.lane.b32.xlu0 %v393, 27
        %v2282 = vpop.permute.xlu0 %2281
        %2283 = vrot.lane.b32.xlu0 %v394, 27
        %v2284 = vpop.permute.xlu0 %2283
        %2285 = vrot.lane.b32.xlu0 %v395, 27
        %v2286 = vpop.permute.xlu0 %2285
        %2287 = vrot.lane.b32.xlu0 %v396, 27
        %v2288 = vpop.permute.xlu0 %2287
        %2289 = vrot.lane.b32.xlu0 %v397, 27
        %v2290 = vpop.permute.xlu0 %2289
        %2291 = vrot.lane.b32.xlu0 %v398, 27
        %v2292 = vpop.permute.xlu0 %2291
        %2293 = vrot.lane.b32.xlu0 %v399, 27
        %v2294 = vpop.permute.xlu0 %2293
        %2295 = vrot.lane.b32.xlu0 %v400, 27
        %v2296 = vpop.permute.xlu0 %2295
        %2297 = vrot.lane.b32.xlu0 %v401, 27
        %v2298 = vpop.permute.xlu0 %2297
        %2299 = vrot.lane.b32.xlu0 %v402, 27
        %v2300 = vpop.permute.xlu0 %2299
        %2301 = vrot.lane.b32.xlu0 %v403, 27
        %v2302 = vpop.permute.xlu0 %2301
        %2303 = vrot.lane.b32.xlu0 %v404, 27
        %v2304 = vpop.permute.xlu0 %2303
        %2305 = vrot.lane.b32.xlu0 %v405, 27
        %v2306 = vpop.permute.xlu0 %2305
        %2307 = vrot.lane.b32.xlu0 %v406, 27
        %v2308 = vpop.permute.xlu0 %2307
        %2309 = vrot.lane.b32.xlu0 %v407, 27
        %v2310 = vpop.permute.xlu0 %2309
        %2311 = vrot.lane.b32.xlu0 %v408, 27
        %v2312 = vpop.permute.xlu0 %2311
        %2313 = vrot.lane.b32.xlu0 %v409, 27
        %v2314 = vpop.permute.xlu0 %2313
        %2315 = vrot.lane.b32.xlu0 %v410, 27
        %v2316 = vpop.permute.xlu0 %2315
        %2317 = vrot.lane.b32.xlu0 %v411, 27
        %v2318 = vpop.permute.xlu0 %2317
        %2319 = vrot.lane.b32.xlu0 %v412, 27
        %v2320 = vpop.permute.xlu0 %2319
        %2321 = vrot.lane.b32.xlu0 %v413, 27
        %v2322 = vpop.permute.xlu0 %2321
        %2323 = vrot.lane.b32.xlu0 %v414, 27
        %v2324 = vpop.permute.xlu0 %2323
        %2325 = vrot.lane.b32.xlu0 %v415, 27
        %v2326 = vpop.permute.xlu0 %2325
        %2327 = vrot.lane.b32.xlu0 %v416, 27
        %v2328 = vpop.permute.xlu0 %2327
        %2329 = vrot.lane.b32.xlu0 %v417, 27
        %v2330 = vpop.permute.xlu0 %2329
        %2331 = vrot.lane.b32.xlu0 %v418, 27
        %v2332 = vpop.permute.xlu0 %2331
        %2333 = vrot.lane.b32.xlu0 %v419, 27
        %v2334 = vpop.permute.xlu0 %2333
        %2335 = vrot.lane.b32.xlu0 %v420, 27
        %v2336 = vpop.permute.xlu0 %2335
        %2337 = vrot.lane.b32.xlu0 %v421, 27
        %v2338 = vpop.permute.xlu0 %2337
        %2339 = vrot.lane.b32.xlu0 %v422, 27
        %v2340 = vpop.permute.xlu0 %2339
        %2341 = vrot.lane.b32.xlu0 %v423, 27
        %v2342 = vpop.permute.xlu0 %2341
        %2343 = vrot.lane.b32.xlu0 %v424, 27
        %v2344 = vpop.permute.xlu0 %2343
        %2345 = vrot.lane.b32.xlu0 %v425, 27
        %v2346 = vpop.permute.xlu0 %2345
        %2347 = vrot.lane.b32.xlu0 %v426, 27
        %v2348 = vpop.permute.xlu0 %2347
        %2349 = vrot.lane.b32.xlu0 %v427, 27
        %v2350 = vpop.permute.xlu0 %2349
        %2351 = vrot.lane.b32.xlu0 %v428, 27
        %v2352 = vpop.permute.xlu0 %2351
        %2353 = vrot.lane.b32.xlu0 %v429, 27
        %v2354 = vpop.permute.xlu0 %2353
        %2355 = vrot.lane.b32.xlu0 %v430, 27
        %v2356 = vpop.permute.xlu0 %2355
        %2357 = vrot.lane.b32.xlu0 %v431, 27
        %v2358 = vpop.permute.xlu0 %2357
        %2359 = vrot.lane.b32.xlu0 %v432, 27
        %v2360 = vpop.permute.xlu0 %2359
        %2361 = vrot.lane.b32.xlu0 %v433, 27
        %v2362 = vpop.permute.xlu0 %2361
        %2363 = vrot.lane.b32.xlu0 %v434, 27
        %v2364 = vpop.permute.xlu0 %2363
        %2365 = vrot.lane.b32.xlu0 %v435, 27
        %v2366 = vpop.permute.xlu0 %2365
        %vm2415 = vcmask 244956
        %2416 = vst.msk [vmem:[#allocation2 - $0x4] sm:$0xf0] %vm2415, %v2272
        %vm2417 = vcmask 244952
        %2418 = vst.msk [vmem:[#allocation2 + $0x4] sm:$0xff] %vm2417, %v2274
        %vm2419 = vcmask 240856
        %2420 = vst.msk [vmem:[#allocation2 + $0xc] sm:$0xf] %vm2419, %v2276
        %2421 = vst.msk [vmem:[#allocation2 + $0xc] sm:$0xf0] %vm2415, %v2278
        %2422 = vst.msk [vmem:[#allocation2 + $0x14] sm:$0xff] %vm2417, %v2280
        %2423 = vst.msk [vmem:[#allocation2 + $0x1c] sm:$0xf] %vm2419, %v2282
        %2424 = vst.msk [vmem:[#allocation2 + $0x1c] sm:$0xf0] %vm2415, %v2284
        %2425 = vst.msk [vmem:[#allocation2 + $0x24] sm:$0xff] %vm2417, %v2286
        %2426 = vst.msk [vmem:[#allocation2 + $0x2c] sm:$0xf] %vm2419, %v2288
        %2427 = vst.msk [vmem:[#allocation2 + $0x2c] sm:$0xf0] %vm2415, %v2290
        %2428 = vst.msk [vmem:[#allocation2 + $0x34] sm:$0xff] %vm2417, %v2292
        %2429 = vst.msk [vmem:[#allocation2 + $0x3c] sm:$0xf] %vm2419, %v2294
        %2430 = vst.msk [vmem:[#allocation2 + $0x3c] sm:$0xf0] %vm2415, %v2296
        %2431 = vst.msk [vmem:[#allocation2 + $0x44] sm:$0xff] %vm2417, %v2298
        %2432 = vst.msk [vmem:[#allocation2 + $0x4c] sm:$0xf] %vm2419, %v2300
        %2433 = vst.msk [vmem:[#allocation2 + $0x4c] sm:$0xf0] %vm2415, %v2302
        %2434 = vst.msk [vmem:[#allocation2 + $0x54] sm:$0xff] %vm2417, %v2304
        %2435 = vst.msk [vmem:[#allocation2 + $0x5c] sm:$0xf] %vm2419, %v2306
        %2436 = vst.msk [vmem:[#allocation2 + $0x5c] sm:$0xf0] %vm2415, %v2308
        %2437 = vst.msk [vmem:[#allocation2 + $0x64] sm:$0xff] %vm2417, %v2310
        %2438 = vst.msk [vmem:[#allocation2 + $0x6c] sm:$0xf] %vm2419, %v2312
        %2439 = vst.msk [vmem:[#allocation2 + $0x6c] sm:$0xf0] %vm2415, %v2314
        %2440 = vst.msk [vmem:[#allocation2 + $0x74] sm:$0xff] %vm2417, %v2316
        %2441 = vst.msk [vmem:[#allocation2 + $0x7c] sm:$0xf] %vm2419, %v2318
        %2442 = vst.msk [vmem:[#allocation2 + $0x7c] sm:$0xf0] %vm2415, %v2320
        %2443 = vst.msk [vmem:[#allocation2 + $0x84] sm:$0xff] %vm2417, %v2322
        %2444 = vst.msk [vmem:[#allocation2 + $0x8c] sm:$0xf] %vm2419, %v2324
        %2445 = vst.msk [vmem:[#allocation2 + $0x8c] sm:$0xf0] %vm2415, %v2326
        %2446 = vst.msk [vmem:[#allocation2 + $0x94] sm:$0xff] %vm2417, %v2328
        %2447 = vst.msk [vmem:[#allocation2 + $0x9c] sm:$0xf] %vm2419, %v2330
        %2448 = vst.msk [vmem:[#allocation2 + $0x9c] sm:$0xf0] %vm2415, %v2332
        %2449 = vst.msk [vmem:[#allocation2 + $0xa4] sm:$0xff] %vm2417, %v2334
        %2450 = vst.msk [vmem:[#allocation2 + $0xac] sm:$0xf] %vm2419, %v2336
        %2451 = vst.msk [vmem:[#allocation2 + $0xac] sm:$0xf0] %vm2415, %v2338
        %2452 = vst.msk [vmem:[#allocation2 + $0xb4] sm:$0xff] %vm2417, %v2340
        %2453 = vst.msk [vmem:[#allocation2 + $0xbc] sm:$0xf] %vm2419, %v2342
        %2454 = vst.msk [vmem:[#allocation2 + $0xbc] sm:$0xf0] %vm2415, %v2344
        %2455 = vst.msk [vmem:[#allocation2 + $0xc4] sm:$0xff] %vm2417, %v2346
        %2456 = vst.msk [vmem:[#allocation2 + $0xcc] sm:$0xf] %vm2419, %v2348
        %2457 = vst.msk [vmem:[#allocation2 + $0xcc] sm:$0xf0] %vm2415, %v2350
        %2458 = vst.msk [vmem:[#allocation2 + $0xd4] sm:$0xff] %vm2417, %v2352
        %2459 = vst.msk [vmem:[#allocation2 + $0xdc] sm:$0xf] %vm2419, %v2354
        %2460 = vst.msk [vmem:[#allocation2 + $0xdc] sm:$0xf0] %vm2415, %v2356
        %2461 = vst.msk [vmem:[#allocation2 + $0xe4] sm:$0xff] %vm2417, %v2358
        %2462 = vst.msk [vmem:[#allocation2 + $0xec] sm:$0xf] %vm2419, %v2360
        %2463 = vst.msk [vmem:[#allocation2 + $0xec] sm:$0xf0] %vm2415, %v2362
        %2464 = vst.msk [vmem:[#allocation2 + $0xf4] sm:$0xff] %vm2417, %v2364
        %2465 = vst.msk [vmem:[#allocation2 + $0xfc] sm:$0xf] %vm2419, %v2366
        %2468 = vrot.lane.b32.xlu0 %v391, 30
        %v2469 = vpop.permute.xlu0 %2468
        %2470 = vrot.lane.b32.xlu0 %v392, 30
        %v2471 = vpop.permute.xlu0 %2470
        %2472 = vrot.lane.b32.xlu0 %v394, 30
        %v2473 = vpop.permute.xlu0 %2472
        %2474 = vrot.lane.b32.xlu0 %v395, 30
        %v2475 = vpop.permute.xlu0 %2474
        %2476 = vrot.lane.b32.xlu0 %v397, 30
        %v2477 = vpop.permute.xlu0 %2476
        %2478 = vrot.lane.b32.xlu0 %v398, 30
        %v2479 = vpop.permute.xlu0 %2478
        %2480 = vrot.lane.b32.xlu0 %v400, 30
        %v2481 = vpop.permute.xlu0 %2480
        %2482 = vrot.lane.b32.xlu0 %v401, 30
        %v2483 = vpop.permute.xlu0 %2482
        %2484 = vrot.lane.b32.xlu0 %v403, 30
        %v2485 = vpop.permute.xlu0 %2484
        %2486 = vrot.lane.b32.xlu0 %v404, 30
        %v2487 = vpop.permute.xlu0 %2486
        %2488 = vrot.lane.b32.xlu0 %v406, 30
        %v2489 = vpop.permute.xlu0 %2488
        %2490 = vrot.lane.b32.xlu0 %v407, 30
        %v2491 = vpop.permute.xlu0 %2490
        %2492 = vrot.lane.b32.xlu0 %v409, 30
        %v2493 = vpop.permute.xlu0 %2492
        %2494 = vrot.lane.b32.xlu0 %v410, 30
        %v2495 = vpop.permute.xlu0 %2494
        %2496 = vrot.lane.b32.xlu0 %v412, 30
        %v2497 = vpop.permute.xlu0 %2496
        %2498 = vrot.lane.b32.xlu0 %v413, 30
        %v2499 = vpop.permute.xlu0 %2498
        %2500 = vrot.lane.b32.xlu0 %v415, 30
        %v2501 = vpop.permute.xlu0 %2500
        %2502 = vrot.lane.b32.xlu0 %v416, 30
        %v2503 = vpop.permute.xlu0 %2502
        %2504 = vrot.lane.b32.xlu0 %v418, 30
        %v2505 = vpop.permute.xlu0 %2504
        %2506 = vrot.lane.b32.xlu0 %v419, 30
        %v2507 = vpop.permute.xlu0 %2506
        %2508 = vrot.lane.b32.xlu0 %v421, 30
        %v2509 = vpop.permute.xlu0 %2508
        %2510 = vrot.lane.b32.xlu0 %v422, 30
        %v2511 = vpop.permute.xlu0 %2510
        %2512 = vrot.lane.b32.xlu0 %v424, 30
        %v2513 = vpop.permute.xlu0 %2512
        %2514 = vrot.lane.b32.xlu0 %v425, 30
        %v2515 = vpop.permute.xlu0 %2514
        %2516 = vrot.lane.b32.xlu0 %v427, 30
        %v2517 = vpop.permute.xlu0 %2516
        %2518 = vrot.lane.b32.xlu0 %v428, 30
        %v2519 = vpop.permute.xlu0 %2518
        %2520 = vrot.lane.b32.xlu0 %v430, 30
        %v2521 = vpop.permute.xlu0 %2520
        %2522 = vrot.lane.b32.xlu0 %v431, 30
        %v2523 = vpop.permute.xlu0 %2522
        %2524 = vrot.lane.b32.xlu0 %v433, 30
        %v2525 = vpop.permute.xlu0 %2524
        %2526 = vrot.lane.b32.xlu0 %v434, 30
        %v2527 = vpop.permute.xlu0 %2526
        %2528 = vrot.lane.b32.xlu0 %v436, 30
        %v2529 = vpop.permute.xlu0 %2528
        %2530 = vrot.lane.b32.xlu0 %v437, 30
        %v2531 = vpop.permute.xlu0 %2530
        %vm2564 = vcmask 269552
        %2565 = vst.msk [vmem:[#allocation2] sm:$0xff] %vm2564, %v2469
        %2566 = vst.msk [vmem:[#allocation2 + $0x8] sm:$0xff] %vm2564, %v2471
        %2567 = vst.msk [vmem:[#allocation2 + $0x10] sm:$0xff] %vm2564, %v2473
        %2568 = vst.msk [vmem:[#allocation2 + $0x18] sm:$0xff] %vm2564, %v2475
        %2569 = vst.msk [vmem:[#allocation2 + $0x20] sm:$0xff] %vm2564, %v2477
        %2570 = vst.msk [vmem:[#allocation2 + $0x28] sm:$0xff] %vm2564, %v2479
        %2571 = vst.msk [vmem:[#allocation2 + $0x30] sm:$0xff] %vm2564, %v2481
        %2572 = vst.msk [vmem:[#allocation2 + $0x38] sm:$0xff] %vm2564, %v2483
        %2573 = vst.msk [vmem:[#allocation2 + $0x40] sm:$0xff] %vm2564, %v2485
        %2574 = vst.msk [vmem:[#allocation2 + $0x48] sm:$0xff] %vm2564, %v2487
        %2575 = vst.msk [vmem:[#allocation2 + $0x50] sm:$0xff] %vm2564, %v2489
        %2576 = vst.msk [vmem:[#allocation2 + $0x58] sm:$0xff] %vm2564, %v2491
        %2577 = vst.msk [vmem:[#allocation2 + $0x60] sm:$0xff] %vm2564, %v2493
        %2578 = vst.msk [vmem:[#allocation2 + $0x68] sm:$0xff] %vm2564, %v2495
        %2579 = vst.msk [vmem:[#allocation2 + $0x70] sm:$0xff] %vm2564, %v2497
        %2580 = vst.msk [vmem:[#allocation2 + $0x78] sm:$0xff] %vm2564, %v2499
        %2581 = vst.msk [vmem:[#allocation2 + $0x80] sm:$0xff] %vm2564, %v2501
        %2582 = vst.msk [vmem:[#allocation2 + $0x88] sm:$0xff] %vm2564, %v2503
        %2583 = vst.msk [vmem:[#allocation2 + $0x90] sm:$0xff] %vm2564, %v2505
        %2584 = vst.msk [vmem:[#allocation2 + $0x98] sm:$0xff] %vm2564, %v2507
        %2585 = vst.msk [vmem:[#allocation2 + $0xa0] sm:$0xff] %vm2564, %v2509
        %2586 = vst.msk [vmem:[#allocation2 + $0xa8] sm:$0xff] %vm2564, %v2511
        %2587 = vst.msk [vmem:[#allocation2 + $0xb0] sm:$0xff] %vm2564, %v2513
        %2588 = vst.msk [vmem:[#allocation2 + $0xb8] sm:$0xff] %vm2564, %v2515
        %2589 = vst.msk [vmem:[#allocation2 + $0xc0] sm:$0xff] %vm2564, %v2517
        %2590 = vst.msk [vmem:[#allocation2 + $0xc8] sm:$0xff] %vm2564, %v2519
        %2591 = vst.msk [vmem:[#allocation2 + $0xd0] sm:$0xff] %vm2564, %v2521
        %2592 = vst.msk [vmem:[#allocation2 + $0xd8] sm:$0xff] %vm2564, %v2523
        %2593 = vst.msk [vmem:[#allocation2 + $0xe0] sm:$0xff] %vm2564, %v2525
        %2594 = vst.msk [vmem:[#allocation2 + $0xe8] sm:$0xff] %vm2564, %v2527
        %2595 = vst.msk [vmem:[#allocation2 + $0xf0] sm:$0xff] %vm2564, %v2529
        %2596 = vst.msk [vmem:[#allocation2 + $0xf8] sm:$0xff] %vm2564, %v2531
        %2598 = vrot.lane.b32.xlu0 %v391, 33
        %v2599 = vpop.permute.xlu0 %2598
        %2600 = vrot.lane.b32.xlu0 %v392, 33
        %v2601 = vpop.permute.xlu0 %2600
        %2602 = vrot.lane.b32.xlu0 %v393, 33
        %v2603 = vpop.permute.xlu0 %2602
        %2604 = vrot.lane.b32.xlu0 %v394, 33
        %v2605 = vpop.permute.xlu0 %2604
        %2606 = vrot.lane.b32.xlu0 %v395, 33
        %v2607 = vpop.permute.xlu0 %2606
        %2608 = vrot.lane.b32.xlu0 %v396, 33
        %v2609 = vpop.permute.xlu0 %2608
        %2610 = vrot.lane.b32.xlu0 %v397, 33
        %v2611 = vpop.permute.xlu0 %2610
        %2612 = vrot.lane.b32.xlu0 %v398, 33
        %v2613 = vpop.permute.xlu0 %2612
        %2614 = vrot.lane.b32.xlu0 %v399, 33
        %v2615 = vpop.permute.xlu0 %2614
        %2616 = vrot.lane.b32.xlu0 %v400, 33
        %v2617 = vpop.permute.xlu0 %2616
        %2618 = vrot.lane.b32.xlu0 %v401, 33
        %v2619 = vpop.permute.xlu0 %2618
        %2620 = vrot.lane.b32.xlu0 %v402, 33
        %v2621 = vpop.permute.xlu0 %2620
        %2622 = vrot.lane.b32.xlu0 %v403, 33
        %v2623 = vpop.permute.xlu0 %2622
        %2624 = vrot.lane.b32.xlu0 %v404, 33
        %v2625 = vpop.permute.xlu0 %2624
        %2626 = vrot.lane.b32.xlu0 %v405, 33
        %v2627 = vpop.permute.xlu0 %2626
        %2628 = vrot.lane.b32.xlu0 %v406, 33
        %v2629 = vpop.permute.xlu0 %2628
        %2630 = vrot.lane.b32.xlu0 %v407, 33
        %v2631 = vpop.permute.xlu0 %2630
        %2632 = vrot.lane.b32.xlu0 %v408, 33
        %v2633 = vpop.permute.xlu0 %2632
        %2634 = vrot.lane.b32.xlu0 %v409, 33
        %v2635 = vpop.permute.xlu0 %2634
        %2636 = vrot.lane.b32.xlu0 %v410, 33
        %v2637 = vpop.permute.xlu0 %2636
        %2638 = vrot.lane.b32.xlu0 %v411, 33
        %v2639 = vpop.permute.xlu0 %2638
        %2640 = vrot.lane.b32.xlu0 %v412, 33
        %v2641 = vpop.permute.xlu0 %2640
        %2642 = vrot.lane.b32.xlu0 %v413, 33
        %v2643 = vpop.permute.xlu0 %2642
        %2644 = vrot.lane.b32.xlu0 %v414, 33
        %v2645 = vpop.permute.xlu0 %2644
        %2646 = vrot.lane.b32.xlu0 %v415, 33
        %v2647 = vpop.permute.xlu0 %2646
        %2648 = vrot.lane.b32.xlu0 %v416, 33
        %v2649 = vpop.permute.xlu0 %2648
        %2650 = vrot.lane.b32.xlu0 %v417, 33
        %v2651 = vpop.permute.xlu0 %2650
        %2652 = vrot.lane.b32.xlu0 %v418, 33
        %v2653 = vpop.permute.xlu0 %2652
        %2654 = vrot.lane.b32.xlu0 %v419, 33
        %v2655 = vpop.permute.xlu0 %2654
        %2656 = vrot.lane.b32.xlu0 %v420, 33
        %v2657 = vpop.permute.xlu0 %2656
        %2658 = vrot.lane.b32.xlu0 %v421, 33
        %v2659 = vpop.permute.xlu0 %2658
        %2660 = vrot.lane.b32.xlu0 %v422, 33
        %v2661 = vpop.permute.xlu0 %2660
        %2662 = vrot.lane.b32.xlu0 %v423, 33
        %v2663 = vpop.permute.xlu0 %2662
        %2664 = vrot.lane.b32.xlu0 %v424, 33
        %v2665 = vpop.permute.xlu0 %2664
        %2666 = vrot.lane.b32.xlu0 %v425, 33
        %v2667 = vpop.permute.xlu0 %2666
        %2668 = vrot.lane.b32.xlu0 %v426, 33
        %v2669 = vpop.permute.xlu0 %2668
        %2670 = vrot.lane.b32.xlu0 %v427, 33
        %v2671 = vpop.permute.xlu0 %2670
        %2672 = vrot.lane.b32.xlu0 %v428, 33
        %v2673 = vpop.permute.xlu0 %2672
        %2674 = vrot.lane.b32.xlu0 %v429, 33
        %v2675 = vpop.permute.xlu0 %2674
        %2676 = vrot.lane.b32.xlu0 %v430, 33
        %v2677 = vpop.permute.xlu0 %2676
        %2678 = vrot.lane.b32.xlu0 %v431, 33
        %v2679 = vpop.permute.xlu0 %2678
        %2680 = vrot.lane.b32.xlu0 %v432, 33
        %v2681 = vpop.permute.xlu0 %2680
        %2682 = vrot.lane.b32.xlu0 %v433, 33
        %v2683 = vpop.permute.xlu0 %2682
        %2684 = vrot.lane.b32.xlu0 %v434, 33
        %v2685 = vpop.permute.xlu0 %2684
        %2686 = vrot.lane.b32.xlu0 %v435, 33
        %v2687 = vpop.permute.xlu0 %2686
        %2688 = vrot.lane.b32.xlu0 %v436, 33
        %v2689 = vpop.permute.xlu0 %2688
        %2690 = vrot.lane.b32.xlu0 %v437, 33
        %v2691 = vpop.permute.xlu0 %2690
        %2692 = vrot.lane.b32.xlu0 %v438, 33
        %v2693 = vpop.permute.xlu0 %2692
        %vm2742 = vcmask 294153
        %2743 = vst.msk [vmem:[#allocation2 - $0x1] sm:$0xfe] %vm2742, %v2599
        %vm2744 = vcmask 294152
        %2745 = vst.msk [vmem:[#allocation2 + $0x7] sm:$0xff] %vm2744, %v2601
        %vm2746 = vcmask 286984
        %2747 = vst.msk [vmem:[#allocation2 + $0xf] sm:$0x1] %vm2746, %v2603
        %2748 = vst.msk [vmem:[#allocation2 + $0xf] sm:$0xfe] %vm2742, %v2605
        %2749 = vst.msk [vmem:[#allocation2 + $0x17] sm:$0xff] %vm2744, %v2607
        %2750 = vst.msk [vmem:[#allocation2 + $0x1f] sm:$0x1] %vm2746, %v2609
        %2751 = vst.msk [vmem:[#allocation2 + $0x1f] sm:$0xfe] %vm2742, %v2611
        %2752 = vst.msk [vmem:[#allocation2 + $0x27] sm:$0xff] %vm2744, %v2613
        %2753 = vst.msk [vmem:[#allocation2 + $0x2f] sm:$0x1] %vm2746, %v2615
        %2754 = vst.msk [vmem:[#allocation2 + $0x2f] sm:$0xfe] %vm2742, %v2617
        %2755 = vst.msk [vmem:[#allocation2 + $0x37] sm:$0xff] %vm2744, %v2619
        %2756 = vst.msk [vmem:[#allocation2 + $0x3f] sm:$0x1] %vm2746, %v2621
        %2757 = vst.msk [vmem:[#allocation2 + $0x3f] sm:$0xfe] %vm2742, %v2623
        %2758 = vst.msk [vmem:[#allocation2 + $0x47] sm:$0xff] %vm2744, %v2625
        %2759 = vst.msk [vmem:[#allocation2 + $0x4f] sm:$0x1] %vm2746, %v2627
        %2760 = vst.msk [vmem:[#allocation2 + $0x4f] sm:$0xfe] %vm2742, %v2629
        %2761 = vst.msk [vmem:[#allocation2 + $0x57] sm:$0xff] %vm2744, %v2631
        %2762 = vst.msk [vmem:[#allocation2 + $0x5f] sm:$0x1] %vm2746, %v2633
        %2763 = vst.msk [vmem:[#allocation2 + $0x5f] sm:$0xfe] %vm2742, %v2635
        %2764 = vst.msk [vmem:[#allocation2 + $0x67] sm:$0xff] %vm2744, %v2637
        %2765 = vst.msk [vmem:[#allocation2 + $0x6f] sm:$0x1] %vm2746, %v2639
        %2766 = vst.msk [vmem:[#allocation2 + $0x6f] sm:$0xfe] %vm2742, %v2641
        %2767 = vst.msk [vmem:[#allocation2 + $0x77] sm:$0xff] %vm2744, %v2643
        %2768 = vst.msk [vmem:[#allocation2 + $0x7f] sm:$0x1] %vm2746, %v2645
        %2769 = vst.msk [vmem:[#allocation2 + $0x7f] sm:$0xfe] %vm2742, %v2647
        %2770 = vst.msk [vmem:[#allocation2 + $0x87] sm:$0xff] %vm2744, %v2649
        %2771 = vst.msk [vmem:[#allocation2 + $0x8f] sm:$0x1] %vm2746, %v2651
        %2772 = vst.msk [vmem:[#allocation2 + $0x8f] sm:$0xfe] %vm2742, %v2653
        %2773 = vst.msk [vmem:[#allocation2 + $0x97] sm:$0xff] %vm2744, %v2655
        %2774 = vst.msk [vmem:[#allocation2 + $0x9f] sm:$0x1] %vm2746, %v2657
        %2775 = vst.msk [vmem:[#allocation2 + $0x9f] sm:$0xfe] %vm2742, %v2659
        %2776 = vst.msk [vmem:[#allocation2 + $0xa7] sm:$0xff] %vm2744, %v2661
        %2777 = vst.msk [vmem:[#allocation2 + $0xaf] sm:$0x1] %vm2746, %v2663
        %2778 = vst.msk [vmem:[#allocation2 + $0xaf] sm:$0xfe] %vm2742, %v2665
        %2779 = vst.msk [vmem:[#allocation2 + $0xb7] sm:$0xff] %vm2744, %v2667
        %2780 = vst.msk [vmem:[#allocation2 + $0xbf] sm:$0x1] %vm2746, %v2669
        %2781 = vst.msk [vmem:[#allocation2 + $0xbf] sm:$0xfe] %vm2742, %v2671
        %2782 = vst.msk [vmem:[#allocation2 + $0xc7] sm:$0xff] %vm2744, %v2673
        %2783 = vst.msk [vmem:[#allocation2 + $0xcf] sm:$0x1] %vm2746, %v2675
        %2784 = vst.msk [vmem:[#allocation2 + $0xcf] sm:$0xfe] %vm2742, %v2677
        %2785 = vst.msk [vmem:[#allocation2 + $0xd7] sm:$0xff] %vm2744, %v2679
        %2786 = vst.msk [vmem:[#allocation2 + $0xdf] sm:$0x1] %vm2746, %v2681
        %2787 = vst.msk [vmem:[#allocation2 + $0xdf] sm:$0xfe] %vm2742, %v2683
        %2788 = vst.msk [vmem:[#allocation2 + $0xe7] sm:$0xff] %vm2744, %v2685
        %2789 = vst.msk [vmem:[#allocation2 + $0xef] sm:$0x1] %vm2746, %v2687
        %2790 = vst.msk [vmem:[#allocation2 + $0xef] sm:$0xfe] %vm2742, %v2689
        %2791 = vst.msk [vmem:[#allocation2 + $0xf7] sm:$0xff] %vm2744, %v2691
        %2792 = vst.msk [vmem:[#allocation2 + $0xff] sm:$0x1] %vm2746, %v2693
        %2793 = vrot.lane.b32.xlu0 %v391, 36
        %v2794 = vpop.permute.xlu0 %2793
        %2795 = vrot.lane.b32.xlu0 %v392, 36
        %v2796 = vpop.permute.xlu0 %2795
        %2797 = vrot.lane.b32.xlu0 %v393, 36
        %v2798 = vpop.permute.xlu0 %2797
        %2799 = vrot.lane.b32.xlu0 %v394, 36
        %v2800 = vpop.permute.xlu0 %2799
        %2801 = vrot.lane.b32.xlu0 %v395, 36
        %v2802 = vpop.permute.xlu0 %2801
        %2803 = vrot.lane.b32.xlu0 %v396, 36
        %v2804 = vpop.permute.xlu0 %2803
        %2805 = vrot.lane.b32.xlu0 %v397, 36
        %v2806 = vpop.permute.xlu0 %2805
        %2807 = vrot.lane.b32.xlu0 %v398, 36
        %v2808 = vpop.permute.xlu0 %2807
        %2809 = vrot.lane.b32.xlu0 %v399, 36
        %v2810 = vpop.permute.xlu0 %2809
        %2811 = vrot.lane.b32.xlu0 %v400, 36
        %v2812 = vpop.permute.xlu0 %2811
        %2813 = vrot.lane.b32.xlu0 %v401, 36
        %v2814 = vpop.permute.xlu0 %2813
        %2815 = vrot.lane.b32.xlu0 %v402, 36
        %v2816 = vpop.permute.xlu0 %2815
        %2817 = vrot.lane.b32.xlu0 %v403, 36
        %v2818 = vpop.permute.xlu0 %2817
        %2819 = vrot.lane.b32.xlu0 %v404, 36
        %v2820 = vpop.permute.xlu0 %2819
        %2821 = vrot.lane.b32.xlu0 %v405, 36
        %v2822 = vpop.permute.xlu0 %2821
        %2823 = vrot.lane.b32.xlu0 %v406, 36
        %v2824 = vpop.permute.xlu0 %2823
        %2825 = vrot.lane.b32.xlu0 %v407, 36
        %v2826 = vpop.permute.xlu0 %2825
        %2827 = vrot.lane.b32.xlu0 %v408, 36
        %v2828 = vpop.permute.xlu0 %2827
        %2829 = vrot.lane.b32.xlu0 %v409, 36
        %v2830 = vpop.permute.xlu0 %2829
        %2831 = vrot.lane.b32.xlu0 %v410, 36
        %v2832 = vpop.permute.xlu0 %2831
        %2833 = vrot.lane.b32.xlu0 %v411, 36
        %v2834 = vpop.permute.xlu0 %2833
        %2835 = vrot.lane.b32.xlu0 %v412, 36
        %v2836 = vpop.permute.xlu0 %2835
        %2837 = vrot.lane.b32.xlu0 %v413, 36
        %v2838 = vpop.permute.xlu0 %2837
        %2839 = vrot.lane.b32.xlu0 %v414, 36
        %v2840 = vpop.permute.xlu0 %2839
        %2841 = vrot.lane.b32.xlu0 %v415, 36
        %v2842 = vpop.permute.xlu0 %2841
        %2843 = vrot.lane.b32.xlu0 %v416, 36
        %v2844 = vpop.permute.xlu0 %2843
        %2845 = vrot.lane.b32.xlu0 %v417, 36
        %v2846 = vpop.permute.xlu0 %2845
        %2847 = vrot.lane.b32.xlu0 %v418, 36
        %v2848 = vpop.permute.xlu0 %2847
        %2849 = vrot.lane.b32.xlu0 %v419, 36
        %v2850 = vpop.permute.xlu0 %2849
        %2851 = vrot.lane.b32.xlu0 %v420, 36
        %v2852 = vpop.permute.xlu0 %2851
        %2853 = vrot.lane.b32.xlu0 %v421, 36
        %v2854 = vpop.permute.xlu0 %2853
        %2855 = vrot.lane.b32.xlu0 %v422, 36
        %v2856 = vpop.permute.xlu0 %2855
        %2857 = vrot.lane.b32.xlu0 %v423, 36
        %v2858 = vpop.permute.xlu0 %2857
        %2859 = vrot.lane.b32.xlu0 %v424, 36
        %v2860 = vpop.permute.xlu0 %2859
        %2861 = vrot.lane.b32.xlu0 %v425, 36
        %v2862 = vpop.permute.xlu0 %2861
        %2863 = vrot.lane.b32.xlu0 %v426, 36
        %v2864 = vpop.permute.xlu0 %2863
        %2865 = vrot.lane.b32.xlu0 %v427, 36
        %v2866 = vpop.permute.xlu0 %2865
        %2867 = vrot.lane.b32.xlu0 %v428, 36
        %v2868 = vpop.permute.xlu0 %2867
        %2869 = vrot.lane.b32.xlu0 %v429, 36
        %v2870 = vpop.permute.xlu0 %2869
        %2871 = vrot.lane.b32.xlu0 %v430, 36
        %v2872 = vpop.permute.xlu0 %2871
        %2873 = vrot.lane.b32.xlu0 %v431, 36
        %v2874 = vpop.permute.xlu0 %2873
        %2875 = vrot.lane.b32.xlu0 %v432, 36
        %v2876 = vpop.permute.xlu0 %2875
        %2877 = vrot.lane.b32.xlu0 %v433, 36
        %v2878 = vpop.permute.xlu0 %2877
        %2879 = vrot.lane.b32.xlu0 %v434, 36
        %v2880 = vpop.permute.xlu0 %2879
        %2881 = vrot.lane.b32.xlu0 %v435, 36
        %v2882 = vpop.permute.xlu0 %2881
        %2883 = vrot.lane.b32.xlu0 %v436, 36
        %v2884 = vpop.permute.xlu0 %2883
        %2885 = vrot.lane.b32.xlu0 %v437, 36
        %v2886 = vpop.permute.xlu0 %2885
        %2887 = vrot.lane.b32.xlu0 %v438, 36
        %v2888 = vpop.permute.xlu0 %2887
        %vm2937 = vcmask 318754
        %2938 = vst.msk [vmem:[#allocation2 - $0x2] sm:$0xfc] %vm2937, %v2794
        %vm2939 = vcmask 318752
        %2940 = vst.msk [vmem:[#allocation2 + $0x6] sm:$0xff] %vm2939, %v2796
        %vm2941 = vcmask 312608
        %2942 = vst.msk [vmem:[#allocation2 + $0xe] sm:$0x3] %vm2941, %v2798
        %2943 = vst.msk [vmem:[#allocation2 + $0xe] sm:$0xfc] %vm2937, %v2800
        %2944 = vst.msk [vmem:[#allocation2 + $0x16] sm:$0xff] %vm2939, %v2802
        %2945 = vst.msk [vmem:[#allocation2 + $0x1e] sm:$0x3] %vm2941, %v2804
        %2946 = vst.msk [vmem:[#allocation2 + $0x1e] sm:$0xfc] %vm2937, %v2806
        %2947 = vst.msk [vmem:[#allocation2 + $0x26] sm:$0xff] %vm2939, %v2808
        %2948 = vst.msk [vmem:[#allocation2 + $0x2e] sm:$0x3] %vm2941, %v2810
        %2949 = vst.msk [vmem:[#allocation2 + $0x2e] sm:$0xfc] %vm2937, %v2812
        %2950 = vst.msk [vmem:[#allocation2 + $0x36] sm:$0xff] %vm2939, %v2814
        %2951 = vst.msk [vmem:[#allocation2 + $0x3e] sm:$0x3] %vm2941, %v2816
        %2952 = vst.msk [vmem:[#allocation2 + $0x3e] sm:$0xfc] %vm2937, %v2818
        %2953 = vst.msk [vmem:[#allocation2 + $0x46] sm:$0xff] %vm2939, %v2820
        %2954 = vst.msk [vmem:[#allocation2 + $0x4e] sm:$0x3] %vm2941, %v2822
        %2955 = vst.msk [vmem:[#allocation2 + $0x4e] sm:$0xfc] %vm2937, %v2824
        %2956 = vst.msk [vmem:[#allocation2 + $0x56] sm:$0xff] %vm2939, %v2826
        %2957 = vst.msk [vmem:[#allocation2 + $0x5e] sm:$0x3] %vm2941, %v2828
        %2958 = vst.msk [vmem:[#allocation2 + $0x5e] sm:$0xfc] %vm2937, %v2830
        %2959 = vst.msk [vmem:[#allocation2 + $0x66] sm:$0xff] %vm2939, %v2832
        %2960 = vst.msk [vmem:[#allocation2 + $0x6e] sm:$0x3] %vm2941, %v2834
        %2961 = vst.msk [vmem:[#allocation2 + $0x6e] sm:$0xfc] %vm2937, %v2836
        %2962 = vst.msk [vmem:[#allocation2 + $0x76] sm:$0xff] %vm2939, %v2838
        %2963 = vst.msk [vmem:[#allocation2 + $0x7e] sm:$0x3] %vm2941, %v2840
        %2964 = vst.msk [vmem:[#allocation2 + $0x7e] sm:$0xfc] %vm2937, %v2842
        %2965 = vst.msk [vmem:[#allocation2 + $0x86] sm:$0xff] %vm2939, %v2844
        %2966 = vst.msk [vmem:[#allocation2 + $0x8e] sm:$0x3] %vm2941, %v2846
        %2967 = vst.msk [vmem:[#allocation2 + $0x8e] sm:$0xfc] %vm2937, %v2848
        %2968 = vst.msk [vmem:[#allocation2 + $0x96] sm:$0xff] %vm2939, %v2850
        %2969 = vst.msk [vmem:[#allocation2 + $0x9e] sm:$0x3] %vm2941, %v2852
        %2970 = vst.msk [vmem:[#allocation2 + $0x9e] sm:$0xfc] %vm2937, %v2854
        %2971 = vst.msk [vmem:[#allocation2 + $0xa6] sm:$0xff] %vm2939, %v2856
        %2972 = vst.msk [vmem:[#allocation2 + $0xae] sm:$0x3] %vm2941, %v2858
        %2973 = vst.msk [vmem:[#allocation2 + $0xae] sm:$0xfc] %vm2937, %v2860
        %2974 = vst.msk [vmem:[#allocation2 + $0xb6] sm:$0xff] %vm2939, %v2862
        %2975 = vst.msk [vmem:[#allocation2 + $0xbe] sm:$0x3] %vm2941, %v2864
        %2976 = vst.msk [vmem:[#allocation2 + $0xbe] sm:$0xfc] %vm2937, %v2866
        %2977 = vst.msk [vmem:[#allocation2 + $0xc6] sm:$0xff] %vm2939, %v2868
        %2978 = vst.msk [vmem:[#allocation2 + $0xce] sm:$0x3] %vm2941, %v2870
        %2979 = vst.msk [vmem:[#allocation2 + $0xce] sm:$0xfc] %vm2937, %v2872
        %2980 = vst.msk [vmem:[#allocation2 + $0xd6] sm:$0xff] %vm2939, %v2874
        %2981 = vst.msk [vmem:[#allocation2 + $0xde] sm:$0x3] %vm2941, %v2876
        %2982 = vst.msk [vmem:[#allocation2 + $0xde] sm:$0xfc] %vm2937, %v2878
        %2983 = vst.msk [vmem:[#allocation2 + $0xe6] sm:$0xff] %vm2939, %v2880
        %2984 = vst.msk [vmem:[#allocation2 + $0xee] sm:$0x3] %vm2941, %v2882
        %2985 = vst.msk [vmem:[#allocation2 + $0xee] sm:$0xfc] %vm2937, %v2884
        %2986 = vst.msk [vmem:[#allocation2 + $0xf6] sm:$0xff] %vm2939, %v2886
        %2987 = vst.msk [vmem:[#allocation2 + $0xfe] sm:$0x3] %vm2941, %v2888
        %2988 = vrot.lane.b32.xlu0 %v391, 39
        %v2989 = vpop.permute.xlu0 %2988
        %2990 = vrot.lane.b32.xlu0 %v392, 39
        %v2991 = vpop.permute.xlu0 %2990
        %2992 = vrot.lane.b32.xlu0 %v393, 39
        %v2993 = vpop.permute.xlu0 %2992
        %2994 = vrot.lane.b32.xlu0 %v394, 39
        %v2995 = vpop.permute.xlu0 %2994
        %2996 = vrot.lane.b32.xlu0 %v395, 39
        %v2997 = vpop.permute.xlu0 %2996
        %2998 = vrot.lane.b32.xlu0 %v396, 39
        %v2999 = vpop.permute.xlu0 %2998
        %3000 = vrot.lane.b32.xlu0 %v397, 39
        %v3001 = vpop.permute.xlu0 %3000
        %3002 = vrot.lane.b32.xlu0 %v398, 39
        %v3003 = vpop.permute.xlu0 %3002
        %3004 = vrot.lane.b32.xlu0 %v399, 39
        %v3005 = vpop.permute.xlu0 %3004
        %3006 = vrot.lane.b32.xlu0 %v400, 39
        %v3007 = vpop.permute.xlu0 %3006
        %3008 = vrot.lane.b32.xlu0 %v401, 39
        %v3009 = vpop.permute.xlu0 %3008
        %3010 = vrot.lane.b32.xlu0 %v402, 39
        %v3011 = vpop.permute.xlu0 %3010
        %3012 = vrot.lane.b32.xlu0 %v403, 39
        %v3013 = vpop.permute.xlu0 %3012
        %3014 = vrot.lane.b32.xlu0 %v404, 39
        %v3015 = vpop.permute.xlu0 %3014
        %3016 = vrot.lane.b32.xlu0 %v405, 39
        %v3017 = vpop.permute.xlu0 %3016
        %3018 = vrot.lane.b32.xlu0 %v406, 39
        %v3019 = vpop.permute.xlu0 %3018
        %3020 = vrot.lane.b32.xlu0 %v407, 39
        %v3021 = vpop.permute.xlu0 %3020
        %3022 = vrot.lane.b32.xlu0 %v408, 39
        %v3023 = vpop.permute.xlu0 %3022
        %3024 = vrot.lane.b32.xlu0 %v409, 39
        %v3025 = vpop.permute.xlu0 %3024
        %3026 = vrot.lane.b32.xlu0 %v410, 39
        %v3027 = vpop.permute.xlu0 %3026
        %3028 = vrot.lane.b32.xlu0 %v411, 39
        %v3029 = vpop.permute.xlu0 %3028
        %3030 = vrot.lane.b32.xlu0 %v412, 39
        %v3031 = vpop.permute.xlu0 %3030
        %3032 = vrot.lane.b32.xlu0 %v413, 39
        %v3033 = vpop.permute.xlu0 %3032
        %3034 = vrot.lane.b32.xlu0 %v414, 39
        %v3035 = vpop.permute.xlu0 %3034
        %3036 = vrot.lane.b32.xlu0 %v415, 39
        %v3037 = vpop.permute.xlu0 %3036
        %3038 = vrot.lane.b32.xlu0 %v416, 39
        %v3039 = vpop.permute.xlu0 %3038
        %3040 = vrot.lane.b32.xlu0 %v417, 39
        %v3041 = vpop.permute.xlu0 %3040
        %3042 = vrot.lane.b32.xlu0 %v418, 39
        %v3043 = vpop.permute.xlu0 %3042
        %3044 = vrot.lane.b32.xlu0 %v419, 39
        %v3045 = vpop.permute.xlu0 %3044
        %3046 = vrot.lane.b32.xlu0 %v420, 39
        %v3047 = vpop.permute.xlu0 %3046
        %3048 = vrot.lane.b32.xlu0 %v421, 39
        %v3049 = vpop.permute.xlu0 %3048
        %3050 = vrot.lane.b32.xlu0 %v422, 39
        %v3051 = vpop.permute.xlu0 %3050
        %3052 = vrot.lane.b32.xlu0 %v423, 39
        %v3053 = vpop.permute.xlu0 %3052
        %3054 = vrot.lane.b32.xlu0 %v424, 39
        %v3055 = vpop.permute.xlu0 %3054
        %3056 = vrot.lane.b32.xlu0 %v425, 39
        %v3057 = vpop.permute.xlu0 %3056
        %3058 = vrot.lane.b32.xlu0 %v426, 39
        %v3059 = vpop.permute.xlu0 %3058
        %3060 = vrot.lane.b32.xlu0 %v427, 39
        %v3061 = vpop.permute.xlu0 %3060
        %3062 = vrot.lane.b32.xlu0 %v428, 39
        %v3063 = vpop.permute.xlu0 %3062
        %3064 = vrot.lane.b32.xlu0 %v429, 39
        %v3065 = vpop.permute.xlu0 %3064
        %3066 = vrot.lane.b32.xlu0 %v430, 39
        %v3067 = vpop.permute.xlu0 %3066
        %3068 = vrot.lane.b32.xlu0 %v431, 39
        %v3069 = vpop.permute.xlu0 %3068
        %3070 = vrot.lane.b32.xlu0 %v432, 39
        %v3071 = vpop.permute.xlu0 %3070
        %3072 = vrot.lane.b32.xlu0 %v433, 39
        %v3073 = vpop.permute.xlu0 %3072
        %3074 = vrot.lane.b32.xlu0 %v434, 39
        %v3075 = vpop.permute.xlu0 %3074
        %3076 = vrot.lane.b32.xlu0 %v435, 39
        %v3077 = vpop.permute.xlu0 %3076
        %3078 = vrot.lane.b32.xlu0 %v436, 39
        %v3079 = vpop.permute.xlu0 %3078
        %3080 = vrot.lane.b32.xlu0 %v437, 39
        %v3081 = vpop.permute.xlu0 %3080
        %3082 = vrot.lane.b32.xlu0 %v438, 39
        %v3083 = vpop.permute.xlu0 %3082
        %vm3132 = vcmask 343355
        %3133 = vst.msk [vmem:[#allocation2 - $0x3] sm:$0xf8] %vm3132, %v2989
        %vm3134 = vcmask 343352
        %3135 = vst.msk [vmem:[#allocation2 + $0x5] sm:$0xff] %vm3134, %v2991
        %vm3136 = vcmask 338232
        %3137 = vst.msk [vmem:[#allocation2 + $0xd] sm:$0x7] %vm3136, %v2993
        %3138 = vst.msk [vmem:[#allocation2 + $0xd] sm:$0xf8] %vm3132, %v2995
        %3139 = vst.msk [vmem:[#allocation2 + $0x15] sm:$0xff] %vm3134, %v2997
        %3140 = vst.msk [vmem:[#allocation2 + $0x1d] sm:$0x7] %vm3136, %v2999
        %3141 = vst.msk [vmem:[#allocation2 + $0x1d] sm:$0xf8] %vm3132, %v3001
        %3142 = vst.msk [vmem:[#allocation2 + $0x25] sm:$0xff] %vm3134, %v3003
        %3143 = vst.msk [vmem:[#allocation2 + $0x2d] sm:$0x7] %vm3136, %v3005
        %3144 = vst.msk [vmem:[#allocation2 + $0x2d] sm:$0xf8] %vm3132, %v3007
        %3145 = vst.msk [vmem:[#allocation2 + $0x35] sm:$0xff] %vm3134, %v3009
        %3146 = vst.msk [vmem:[#allocation2 + $0x3d] sm:$0x7] %vm3136, %v3011
        %3147 = vst.msk [vmem:[#allocation2 + $0x3d] sm:$0xf8] %vm3132, %v3013
        %3148 = vst.msk [vmem:[#allocation2 + $0x45] sm:$0xff] %vm3134, %v3015
        %3149 = vst.msk [vmem:[#allocation2 + $0x4d] sm:$0x7] %vm3136, %v3017
        %3150 = vst.msk [vmem:[#allocation2 + $0x4d] sm:$0xf8] %vm3132, %v3019
        %3151 = vst.msk [vmem:[#allocation2 + $0x55] sm:$0xff] %vm3134, %v3021
        %3152 = vst.msk [vmem:[#allocation2 + $0x5d] sm:$0x7] %vm3136, %v3023
        %3153 = vst.msk [vmem:[#allocation2 + $0x5d] sm:$0xf8] %vm3132, %v3025
        %3154 = vst.msk [vmem:[#allocation2 + $0x65] sm:$0xff] %vm3134, %v3027
        %3155 = vst.msk [vmem:[#allocation2 + $0x6d] sm:$0x7] %vm3136, %v3029
        %3156 = vst.msk [vmem:[#allocation2 + $0x6d] sm:$0xf8] %vm3132, %v3031
        %3157 = vst.msk [vmem:[#allocation2 + $0x75] sm:$0xff] %vm3134, %v3033
        %3158 = vst.msk [vmem:[#allocation2 + $0x7d] sm:$0x7] %vm3136, %v3035
        %3159 = vst.msk [vmem:[#allocation2 + $0x7d] sm:$0xf8] %vm3132, %v3037
        %3160 = vst.msk [vmem:[#allocation2 + $0x85] sm:$0xff] %vm3134, %v3039
        %3161 = vst.msk [vmem:[#allocation2 + $0x8d] sm:$0x7] %vm3136, %v3041
        %3162 = vst.msk [vmem:[#allocation2 + $0x8d] sm:$0xf8] %vm3132, %v3043
        %3163 = vst.msk [vmem:[#allocation2 + $0x95] sm:$0xff] %vm3134, %v3045
        %3164 = vst.msk [vmem:[#allocation2 + $0x9d] sm:$0x7] %vm3136, %v3047
        %3165 = vst.msk [vmem:[#allocation2 + $0x9d] sm:$0xf8] %vm3132, %v3049
        %3166 = vst.msk [vmem:[#allocation2 + $0xa5] sm:$0xff] %vm3134, %v3051
        %3167 = vst.msk [vmem:[#allocation2 + $0xad] sm:$0x7] %vm3136, %v3053
        %3168 = vst.msk [vmem:[#allocation2 + $0xad] sm:$0xf8] %vm3132, %v3055
        %3169 = vst.msk [vmem:[#allocation2 + $0xb5] sm:$0xff] %vm3134, %v3057
        %3170 = vst.msk [vmem:[#allocation2 + $0xbd] sm:$0x7] %vm3136, %v3059
        %3171 = vst.msk [vmem:[#allocation2 + $0xbd] sm:$0xf8] %vm3132, %v3061
        %3172 = vst.msk [vmem:[#allocation2 + $0xc5] sm:$0xff] %vm3134, %v3063
        %3173 = vst.msk [vmem:[#allocation2 + $0xcd] sm:$0x7] %vm3136, %v3065
        %3174 = vst.msk [vmem:[#allocation2 + $0xcd] sm:$0xf8] %vm3132, %v3067
        %3175 = vst.msk [vmem:[#allocation2 + $0xd5] sm:$0xff] %vm3134, %v3069
        %3176 = vst.msk [vmem:[#allocation2 + $0xdd] sm:$0x7] %vm3136, %v3071
        %3177 = vst.msk [vmem:[#allocation2 + $0xdd] sm:$0xf8] %vm3132, %v3073
        %3178 = vst.msk [vmem:[#allocation2 + $0xe5] sm:$0xff] %vm3134, %v3075
        %3179 = vst.msk [vmem:[#allocation2 + $0xed] sm:$0x7] %vm3136, %v3077
        %3180 = vst.msk [vmem:[#allocation2 + $0xed] sm:$0xf8] %vm3132, %v3079
        %3181 = vst.msk [vmem:[#allocation2 + $0xf5] sm:$0xff] %vm3134, %v3081
        %3182 = vst.msk [vmem:[#allocation2 + $0xfd] sm:$0x7] %vm3136, %v3083
        %3183 = vrot.lane.b32.xlu0 %v391, 42
        %v3184 = vpop.permute.xlu0 %3183
        %3185 = vrot.lane.b32.xlu0 %v392, 42
        %v3186 = vpop.permute.xlu0 %3185
        %3187 = vrot.lane.b32.xlu0 %v393, 42
        %v3188 = vpop.permute.xlu0 %3187
        %3189 = vrot.lane.b32.xlu0 %v394, 42
        %v3190 = vpop.permute.xlu0 %3189
        %3191 = vrot.lane.b32.xlu0 %v395, 42
        %v3192 = vpop.permute.xlu0 %3191
        %3193 = vrot.lane.b32.xlu0 %v396, 42
        %v3194 = vpop.permute.xlu0 %3193
        %3195 = vrot.lane.b32.xlu0 %v397, 42
        %v3196 = vpop.permute.xlu0 %3195
        %3197 = vrot.lane.b32.xlu0 %v398, 42
        %v3198 = vpop.permute.xlu0 %3197
        %3199 = vrot.lane.b32.xlu0 %v399, 42
        %v3200 = vpop.permute.xlu0 %3199
        %3201 = vrot.lane.b32.xlu0 %v400, 42
        %v3202 = vpop.permute.xlu0 %3201
        %3203 = vrot.lane.b32.xlu0 %v401, 42
        %v3204 = vpop.permute.xlu0 %3203
        %3205 = vrot.lane.b32.xlu0 %v402, 42
        %v3206 = vpop.permute.xlu0 %3205
        %3207 = vrot.lane.b32.xlu0 %v403, 42
        %v3208 = vpop.permute.xlu0 %3207
        %3209 = vrot.lane.b32.xlu0 %v404, 42
        %v3210 = vpop.permute.xlu0 %3209
        %3211 = vrot.lane.b32.xlu0 %v405, 42
        %v3212 = vpop.permute.xlu0 %3211
        %3213 = vrot.lane.b32.xlu0 %v406, 42
        %v3214 = vpop.permute.xlu0 %3213
        %3215 = vrot.lane.b32.xlu0 %v407, 42
        %v3216 = vpop.permute.xlu0 %3215
        %3217 = vrot.lane.b32.xlu0 %v408, 42
        %v3218 = vpop.permute.xlu0 %3217
        %3219 = vrot.lane.b32.xlu0 %v409, 42
        %v3220 = vpop.permute.xlu0 %3219
        %3221 = vrot.lane.b32.xlu0 %v410, 42
        %v3222 = vpop.permute.xlu0 %3221
        %3223 = vrot.lane.b32.xlu0 %v411, 42
        %v3224 = vpop.permute.xlu0 %3223
        %3225 = vrot.lane.b32.xlu0 %v412, 42
        %v3226 = vpop.permute.xlu0 %3225
        %3227 = vrot.lane.b32.xlu0 %v413, 42
        %v3228 = vpop.permute.xlu0 %3227
        %3229 = vrot.lane.b32.xlu0 %v414, 42
        %v3230 = vpop.permute.xlu0 %3229
        %3231 = vrot.lane.b32.xlu0 %v415, 42
        %v3232 = vpop.permute.xlu0 %3231
        %3233 = vrot.lane.b32.xlu0 %v416, 42
        %v3234 = vpop.permute.xlu0 %3233
        %3235 = vrot.lane.b32.xlu0 %v417, 42
        %v3236 = vpop.permute.xlu0 %3235
        %3237 = vrot.lane.b32.xlu0 %v418, 42
        %v3238 = vpop.permute.xlu0 %3237
        %3239 = vrot.lane.b32.xlu0 %v419, 42
        %v3240 = vpop.permute.xlu0 %3239
        %3241 = vrot.lane.b32.xlu0 %v420, 42
        %v3242 = vpop.permute.xlu0 %3241
        %3243 = vrot.lane.b32.xlu0 %v421, 42
        %v3244 = vpop.permute.xlu0 %3243
        %3245 = vrot.lane.b32.xlu0 %v422, 42
        %v3246 = vpop.permute.xlu0 %3245
        %3247 = vrot.lane.b32.xlu0 %v423, 42
        %v3248 = vpop.permute.xlu0 %3247
        %3249 = vrot.lane.b32.xlu0 %v424, 42
        %v3250 = vpop.permute.xlu0 %3249
        %3251 = vrot.lane.b32.xlu0 %v425, 42
        %v3252 = vpop.permute.xlu0 %3251
        %3253 = vrot.lane.b32.xlu0 %v426, 42
        %v3254 = vpop.permute.xlu0 %3253
        %3255 = vrot.lane.b32.xlu0 %v427, 42
        %v3256 = vpop.permute.xlu0 %3255
        %3257 = vrot.lane.b32.xlu0 %v428, 42
        %v3258 = vpop.permute.xlu0 %3257
        %3259 = vrot.lane.b32.xlu0 %v429, 42
        %v3260 = vpop.permute.xlu0 %3259
        %3261 = vrot.lane.b32.xlu0 %v430, 42
        %v3262 = vpop.permute.xlu0 %3261
        %3263 = vrot.lane.b32.xlu0 %v431, 42
        %v3264 = vpop.permute.xlu0 %3263
        %3265 = vrot.lane.b32.xlu0 %v432, 42
        %v3266 = vpop.permute.xlu0 %3265
        %3267 = vrot.lane.b32.xlu0 %v433, 42
        %v3268 = vpop.permute.xlu0 %3267
        %3269 = vrot.lane.b32.xlu0 %v434, 42
        %v3270 = vpop.permute.xlu0 %3269
        %3271 = vrot.lane.b32.xlu0 %v435, 42
        %v3272 = vpop.permute.xlu0 %3271
        %3273 = vrot.lane.b32.xlu0 %v436, 42
        %v3274 = vpop.permute.xlu0 %3273
        %3275 = vrot.lane.b32.xlu0 %v437, 42
        %v3276 = vpop.permute.xlu0 %3275
        %3277 = vrot.lane.b32.xlu0 %v438, 42
        %v3278 = vpop.permute.xlu0 %3277
        %vm3327 = vcmask 367956
        %3328 = vst.msk [vmem:[#allocation2 - $0x4] sm:$0xf0] %vm3327, %v3184
        %vm3329 = vcmask 367952
        %3330 = vst.msk [vmem:[#allocation2 + $0x4] sm:$0xff] %vm3329, %v3186
        %vm3331 = vcmask 363856
        %3332 = vst.msk [vmem:[#allocation2 + $0xc] sm:$0xf] %vm3331, %v3188
        %3333 = vst.msk [vmem:[#allocation2 + $0xc] sm:$0xf0] %vm3327, %v3190
        %3334 = vst.msk [vmem:[#allocation2 + $0x14] sm:$0xff] %vm3329, %v3192
        %3335 = vst.msk [vmem:[#allocation2 + $0x1c] sm:$0xf] %vm3331, %v3194
        %3336 = vst.msk [vmem:[#allocation2 + $0x1c] sm:$0xf0] %vm3327, %v3196
        %3337 = vst.msk [vmem:[#allocation2 + $0x24] sm:$0xff] %vm3329, %v3198
        %3338 = vst.msk [vmem:[#allocation2 + $0x2c] sm:$0xf] %vm3331, %v3200
        %3339 = vst.msk [vmem:[#allocation2 + $0x2c] sm:$0xf0] %vm3327, %v3202
        %3340 = vst.msk [vmem:[#allocation2 + $0x34] sm:$0xff] %vm3329, %v3204
        %3341 = vst.msk [vmem:[#allocation2 + $0x3c] sm:$0xf] %vm3331, %v3206
        %3342 = vst.msk [vmem:[#allocation2 + $0x3c] sm:$0xf0] %vm3327, %v3208
        %3343 = vst.msk [vmem:[#allocation2 + $0x44] sm:$0xff] %vm3329, %v3210
        %3344 = vst.msk [vmem:[#allocation2 + $0x4c] sm:$0xf] %vm3331, %v3212
        %3345 = vst.msk [vmem:[#allocation2 + $0x4c] sm:$0xf0] %vm3327, %v3214
        %3346 = vst.msk [vmem:[#allocation2 + $0x54] sm:$0xff] %vm3329, %v3216
        %3347 = vst.msk [vmem:[#allocation2 + $0x5c] sm:$0xf] %vm3331, %v3218
        %3348 = vst.msk [vmem:[#allocation2 + $0x5c] sm:$0xf0] %vm3327, %v3220
        %3349 = vst.msk [vmem:[#allocation2 + $0x64] sm:$0xff] %vm3329, %v3222
        %3350 = vst.msk [vmem:[#allocation2 + $0x6c] sm:$0xf] %vm3331, %v3224
        %3351 = vst.msk [vmem:[#allocation2 + $0x6c] sm:$0xf0] %vm3327, %v3226
        %3352 = vst.msk [vmem:[#allocation2 + $0x74] sm:$0xff] %vm3329, %v3228
        %3353 = vst.msk [vmem:[#allocation2 + $0x7c] sm:$0xf] %vm3331, %v3230
        %3354 = vst.msk [vmem:[#allocation2 + $0x7c] sm:$0xf0] %vm3327, %v3232
        %3355 = vst.msk [vmem:[#allocation2 + $0x84] sm:$0xff] %vm3329, %v3234
        %3356 = vst.msk [vmem:[#allocation2 + $0x8c] sm:$0xf] %vm3331, %v3236
        %3357 = vst.msk [vmem:[#allocation2 + $0x8c] sm:$0xf0] %vm3327, %v3238
        %3358 = vst.msk [vmem:[#allocation2 + $0x94] sm:$0xff] %vm3329, %v3240
        %3359 = vst.msk [vmem:[#allocation2 + $0x9c] sm:$0xf] %vm3331, %v3242
        %3360 = vst.msk [vmem:[#allocation2 + $0x9c] sm:$0xf0] %vm3327, %v3244
        %3361 = vst.msk [vmem:[#allocation2 + $0xa4] sm:$0xff] %vm3329, %v3246
        %3362 = vst.msk [vmem:[#allocation2 + $0xac] sm:$0xf] %vm3331, %v3248
        %3363 = vst.msk [vmem:[#allocation2 + $0xac] sm:$0xf0] %vm3327, %v3250
        %3364 = vst.msk [vmem:[#allocation2 + $0xb4] sm:$0xff] %vm3329, %v3252
        %3365 = vst.msk [vmem:[#allocation2 + $0xbc] sm:$0xf] %vm3331, %v3254
        %3366 = vst.msk [vmem:[#allocation2 + $0xbc] sm:$0xf0] %vm3327, %v3256
        %3367 = vst.msk [vmem:[#allocation2 + $0xc4] sm:$0xff] %vm3329, %v3258
        %3368 = vst.msk [vmem:[#allocation2 + $0xcc] sm:$0xf] %vm3331, %v3260
        %3369 = vst.msk [vmem:[#allocation2 + $0xcc] sm:$0xf0] %vm3327, %v3262
        %3370 = vst.msk [vmem:[#allocation2 + $0xd4] sm:$0xff] %vm3329, %v3264
        %3371 = vst.msk [vmem:[#allocation2 + $0xdc] sm:$0xf] %vm3331, %v3266
        %3372 = vst.msk [vmem:[#allocation2 + $0xdc] sm:$0xf0] %vm3327, %v3268
        %3373 = vst.msk [vmem:[#allocation2 + $0xe4] sm:$0xff] %vm3329, %v3270
        %3374 = vst.msk [vmem:[#allocation2 + $0xec] sm:$0xf] %vm3331, %v3272
        %3375 = vst.msk [vmem:[#allocation2 + $0xec] sm:$0xf0] %vm3327, %v3274
        %3376 = vst.msk [vmem:[#allocation2 + $0xf4] sm:$0xff] %vm3329, %v3276
        %3377 = vst.msk [vmem:[#allocation2 + $0xfc] sm:$0xf] %vm3331, %v3278
        %3380 = vrot.lane.b32.xlu0 %v394, 45
        %v3381 = vpop.permute.xlu0 %3380
        %3382 = vrot.lane.b32.xlu0 %v395, 45
        %v3383 = vpop.permute.xlu0 %3382
        %3384 = vrot.lane.b32.xlu0 %v397, 45
        %v3385 = vpop.permute.xlu0 %3384
        %3386 = vrot.lane.b32.xlu0 %v398, 45
        %v3387 = vpop.permute.xlu0 %3386
        %3388 = vrot.lane.b32.xlu0 %v400, 45
        %v3389 = vpop.permute.xlu0 %3388
        %3390 = vrot.lane.b32.xlu0 %v401, 45
        %v3391 = vpop.permute.xlu0 %3390
        %3392 = vrot.lane.b32.xlu0 %v403, 45
        %v3393 = vpop.permute.xlu0 %3392
        %3394 = vrot.lane.b32.xlu0 %v404, 45
        %v3395 = vpop.permute.xlu0 %3394
        %3396 = vrot.lane.b32.xlu0 %v406, 45
        %v3397 = vpop.permute.xlu0 %3396
        %3398 = vrot.lane.b32.xlu0 %v407, 45
        %v3399 = vpop.permute.xlu0 %3398
        %3400 = vrot.lane.b32.xlu0 %v409, 45
        %v3401 = vpop.permute.xlu0 %3400
        %3402 = vrot.lane.b32.xlu0 %v410, 45
        %v3403 = vpop.permute.xlu0 %3402
        %3404 = vrot.lane.b32.xlu0 %v412, 45
        %v3405 = vpop.permute.xlu0 %3404
        %3406 = vrot.lane.b32.xlu0 %v413, 45
        %v3407 = vpop.permute.xlu0 %3406
        %3408 = vrot.lane.b32.xlu0 %v415, 45
        %v3409 = vpop.permute.xlu0 %3408
        %3410 = vrot.lane.b32.xlu0 %v416, 45
        %v3411 = vpop.permute.xlu0 %3410
        %3412 = vrot.lane.b32.xlu0 %v418, 45
        %v3413 = vpop.permute.xlu0 %3412
        %3414 = vrot.lane.b32.xlu0 %v419, 45
        %v3415 = vpop.permute.xlu0 %3414
        %3416 = vrot.lane.b32.xlu0 %v421, 45
        %v3417 = vpop.permute.xlu0 %3416
        %3418 = vrot.lane.b32.xlu0 %v422, 45
        %v3419 = vpop.permute.xlu0 %3418
        %3420 = vrot.lane.b32.xlu0 %v424, 45
        %v3421 = vpop.permute.xlu0 %3420
        %3422 = vrot.lane.b32.xlu0 %v425, 45
        %v3423 = vpop.permute.xlu0 %3422
        %3424 = vrot.lane.b32.xlu0 %v427, 45
        %v3425 = vpop.permute.xlu0 %3424
        %3426 = vrot.lane.b32.xlu0 %v428, 45
        %v3427 = vpop.permute.xlu0 %3426
        %3428 = vrot.lane.b32.xlu0 %v430, 45
        %v3429 = vpop.permute.xlu0 %3428
        %3430 = vrot.lane.b32.xlu0 %v431, 45
        %v3431 = vpop.permute.xlu0 %3430
        %3432 = vrot.lane.b32.xlu0 %v433, 45
        %v3433 = vpop.permute.xlu0 %3432
        %3434 = vrot.lane.b32.xlu0 %v434, 45
        %v3435 = vpop.permute.xlu0 %3434
        %3436 = vrot.lane.b32.xlu0 %v436, 45
        %v3437 = vpop.permute.xlu0 %3436
        %3438 = vrot.lane.b32.xlu0 %v437, 45
        %v3439 = vpop.permute.xlu0 %3438
        %3440 = vrot.lane.b32.xlu0 %v439, 45
        %v3441 = vpop.permute.xlu0 %3440
        %3442 = vrot.lane.b32.xlu0 %v440, 45
        %v3443 = vpop.permute.xlu0 %3442
        %vm3476 = vcmask 392552
        %3477 = vst.msk [vmem:[#allocation2] sm:$0xff] %vm3476, %v3381
        %3478 = vst.msk [vmem:[#allocation2 + $0x8] sm:$0xff] %vm3476, %v3383
        %3479 = vst.msk [vmem:[#allocation2 + $0x10] sm:$0xff] %vm3476, %v3385
        %3480 = vst.msk [vmem:[#allocation2 + $0x18] sm:$0xff] %vm3476, %v3387
        %3481 = vst.msk [vmem:[#allocation2 + $0x20] sm:$0xff] %vm3476, %v3389
        %3482 = vst.msk [vmem:[#allocation2 + $0x28] sm:$0xff] %vm3476, %v3391
        %3483 = vst.msk [vmem:[#allocation2 + $0x30] sm:$0xff] %vm3476, %v3393
        %3484 = vst.msk [vmem:[#allocation2 + $0x38] sm:$0xff] %vm3476, %v3395
        %3485 = vst.msk [vmem:[#allocation2 + $0x40] sm:$0xff] %vm3476, %v3397
        %3486 = vst.msk [vmem:[#allocation2 + $0x48] sm:$0xff] %vm3476, %v3399
        %3487 = vst.msk [vmem:[#allocation2 + $0x50] sm:$0xff] %vm3476, %v3401
        %3488 = vst.msk [vmem:[#allocation2 + $0x58] sm:$0xff] %vm3476, %v3403
        %3489 = vst.msk [vmem:[#allocation2 + $0x60] sm:$0xff] %vm3476, %v3405
        %3490 = vst.msk [vmem:[#allocation2 + $0x68] sm:$0xff] %vm3476, %v3407
        %3491 = vst.msk [vmem:[#allocation2 + $0x70] sm:$0xff] %vm3476, %v3409
        %3492 = vst.msk [vmem:[#allocation2 + $0x78] sm:$0xff] %vm3476, %v3411
        %3493 = vst.msk [vmem:[#allocation2 + $0x80] sm:$0xff] %vm3476, %v3413
        %3494 = vst.msk [vmem:[#allocation2 + $0x88] sm:$0xff] %vm3476, %v3415
        %3495 = vst.msk [vmem:[#allocation2 + $0x90] sm:$0xff] %vm3476, %v3417
        %3496 = vst.msk [vmem:[#allocation2 + $0x98] sm:$0xff] %vm3476, %v3419
        %3497 = vst.msk [vmem:[#allocation2 + $0xa0] sm:$0xff] %vm3476, %v3421
        %3498 = vst.msk [vmem:[#allocation2 + $0xa8] sm:$0xff] %vm3476, %v3423
        %3499 = vst.msk [vmem:[#allocation2 + $0xb0] sm:$0xff] %vm3476, %v3425
        %3500 = vst.msk [vmem:[#allocation2 + $0xb8] sm:$0xff] %vm3476, %v3427
        %3501 = vst.msk [vmem:[#allocation2 + $0xc0] sm:$0xff] %vm3476, %v3429
        %3502 = vst.msk [vmem:[#allocation2 + $0xc8] sm:$0xff] %vm3476, %v3431
        %3503 = vst.msk [vmem:[#allocation2 + $0xd0] sm:$0xff] %vm3476, %v3433
        %3504 = vst.msk [vmem:[#allocation2 + $0xd8] sm:$0xff] %vm3476, %v3435
        %3505 = vst.msk [vmem:[#allocation2 + $0xe0] sm:$0xff] %vm3476, %v3437
        %3506 = vst.msk [vmem:[#allocation2 + $0xe8] sm:$0xff] %vm3476, %v3439
        %3507 = vst.msk [vmem:[#allocation2 + $0xf0] sm:$0xff] %vm3476, %v3441
        %3508 = vst.msk [vmem:[#allocation2 + $0xf8] sm:$0xff] %vm3476, %v3443
        %3510 = vrot.lane.b32.xlu0 %v394, 48
        %v3511 = vpop.permute.xlu0 %3510
        %3512 = vrot.lane.b32.xlu0 %v395, 48
        %v3513 = vpop.permute.xlu0 %3512
        %3514 = vrot.lane.b32.xlu0 %v396, 48
        %v3515 = vpop.permute.xlu0 %3514
        %3516 = vrot.lane.b32.xlu0 %v397, 48
        %v3517 = vpop.permute.xlu0 %3516
        %3518 = vrot.lane.b32.xlu0 %v398, 48
        %v3519 = vpop.permute.xlu0 %3518
        %3520 = vrot.lane.b32.xlu0 %v399, 48
        %v3521 = vpop.permute.xlu0 %3520
        %3522 = vrot.lane.b32.xlu0 %v400, 48
        %v3523 = vpop.permute.xlu0 %3522
        %3524 = vrot.lane.b32.xlu0 %v401, 48
        %v3525 = vpop.permute.xlu0 %3524
        %3526 = vrot.lane.b32.xlu0 %v402, 48
        %v3527 = vpop.permute.xlu0 %3526
        %3528 = vrot.lane.b32.xlu0 %v403, 48
        %v3529 = vpop.permute.xlu0 %3528
        %3530 = vrot.lane.b32.xlu0 %v404, 48
        %v3531 = vpop.permute.xlu0 %3530
        %3532 = vrot.lane.b32.xlu0 %v405, 48
        %v3533 = vpop.permute.xlu0 %3532
        %3534 = vrot.lane.b32.xlu0 %v406, 48
        %v3535 = vpop.permute.xlu0 %3534
        %3536 = vrot.lane.b32.xlu0 %v407, 48
        %v3537 = vpop.permute.xlu0 %3536
        %3538 = vrot.lane.b32.xlu0 %v408, 48
        %v3539 = vpop.permute.xlu0 %3538
        %3540 = vrot.lane.b32.xlu0 %v409, 48
        %v3541 = vpop.permute.xlu0 %3540
        %3542 = vrot.lane.b32.xlu0 %v410, 48
        %v3543 = vpop.permute.xlu0 %3542
        %3544 = vrot.lane.b32.xlu0 %v411, 48
        %v3545 = vpop.permute.xlu0 %3544
        %3546 = vrot.lane.b32.xlu0 %v412, 48
        %v3547 = vpop.permute.xlu0 %3546
        %3548 = vrot.lane.b32.xlu0 %v413, 48
        %v3549 = vpop.permute.xlu0 %3548
        %3550 = vrot.lane.b32.xlu0 %v414, 48
        %v3551 = vpop.permute.xlu0 %3550
        %3552 = vrot.lane.b32.xlu0 %v415, 48
        %v3553 = vpop.permute.xlu0 %3552
        %3554 = vrot.lane.b32.xlu0 %v416, 48
        %v3555 = vpop.permute.xlu0 %3554
        %3556 = vrot.lane.b32.xlu0 %v417, 48
        %v3557 = vpop.permute.xlu0 %3556
        %3558 = vrot.lane.b32.xlu0 %v418, 48
        %v3559 = vpop.permute.xlu0 %3558
        %3560 = vrot.lane.b32.xlu0 %v419, 48
        %v3561 = vpop.permute.xlu0 %3560
        %3562 = vrot.lane.b32.xlu0 %v420, 48
        %v3563 = vpop.permute.xlu0 %3562
        %3564 = vrot.lane.b32.xlu0 %v421, 48
        %v3565 = vpop.permute.xlu0 %3564
        %3566 = vrot.lane.b32.xlu0 %v422, 48
        %v3567 = vpop.permute.xlu0 %3566
        %3568 = vrot.lane.b32.xlu0 %v423, 48
        %v3569 = vpop.permute.xlu0 %3568
        %3570 = vrot.lane.b32.xlu0 %v424, 48
        %v3571 = vpop.permute.xlu0 %3570
        %3572 = vrot.lane.b32.xlu0 %v425, 48
        %v3573 = vpop.permute.xlu0 %3572
        %3574 = vrot.lane.b32.xlu0 %v426, 48
        %v3575 = vpop.permute.xlu0 %3574
        %3576 = vrot.lane.b32.xlu0 %v427, 48
        %v3577 = vpop.permute.xlu0 %3576
        %3578 = vrot.lane.b32.xlu0 %v428, 48
        %v3579 = vpop.permute.xlu0 %3578
        %3580 = vrot.lane.b32.xlu0 %v429, 48
        %v3581 = vpop.permute.xlu0 %3580
        %3582 = vrot.lane.b32.xlu0 %v430, 48
        %v3583 = vpop.permute.xlu0 %3582
        %3584 = vrot.lane.b32.xlu0 %v431, 48
        %v3585 = vpop.permute.xlu0 %3584
        %3586 = vrot.lane.b32.xlu0 %v432, 48
        %v3587 = vpop.permute.xlu0 %3586
        %3588 = vrot.lane.b32.xlu0 %v433, 48
        %v3589 = vpop.permute.xlu0 %3588
        %3590 = vrot.lane.b32.xlu0 %v434, 48
        %v3591 = vpop.permute.xlu0 %3590
        %3592 = vrot.lane.b32.xlu0 %v435, 48
        %v3593 = vpop.permute.xlu0 %3592
        %3594 = vrot.lane.b32.xlu0 %v436, 48
        %v3595 = vpop.permute.xlu0 %3594
        %3596 = vrot.lane.b32.xlu0 %v437, 48
        %v3597 = vpop.permute.xlu0 %3596
        %3598 = vrot.lane.b32.xlu0 %v438, 48
        %v3599 = vpop.permute.xlu0 %3598
        %3600 = vrot.lane.b32.xlu0 %v439, 48
        %v3601 = vpop.permute.xlu0 %3600
        %3602 = vrot.lane.b32.xlu0 %v440, 48
        %v3603 = vpop.permute.xlu0 %3602
        %3604 = vrot.lane.b32.xlu0 %v441, 48
        %v3605 = vpop.permute.xlu0 %3604
        %vm3654 = vcmask 417153
        %3655 = vst.msk [vmem:[#allocation2 - $0x1] sm:$0xfe] %vm3654, %v3511
        %vm3656 = vcmask 417152
        %3657 = vst.msk [vmem:[#allocation2 + $0x7] sm:$0xff] %vm3656, %v3513
        %vm3658 = vcmask 409984
        %3659 = vst.msk [vmem:[#allocation2 + $0xf] sm:$0x1] %vm3658, %v3515
        %3660 = vst.msk [vmem:[#allocation2 + $0xf] sm:$0xfe] %vm3654, %v3517
        %3661 = vst.msk [vmem:[#allocation2 + $0x17] sm:$0xff] %vm3656, %v3519
        %3662 = vst.msk [vmem:[#allocation2 + $0x1f] sm:$0x1] %vm3658, %v3521
        %3663 = vst.msk [vmem:[#allocation2 + $0x1f] sm:$0xfe] %vm3654, %v3523
        %3664 = vst.msk [vmem:[#allocation2 + $0x27] sm:$0xff] %vm3656, %v3525
        %3665 = vst.msk [vmem:[#allocation2 + $0x2f] sm:$0x1] %vm3658, %v3527
        %3666 = vst.msk [vmem:[#allocation2 + $0x2f] sm:$0xfe] %vm3654, %v3529
        %3667 = vst.msk [vmem:[#allocation2 + $0x37] sm:$0xff] %vm3656, %v3531
        %3668 = vst.msk [vmem:[#allocation2 + $0x3f] sm:$0x1] %vm3658, %v3533
        %3669 = vst.msk [vmem:[#allocation2 + $0x3f] sm:$0xfe] %vm3654, %v3535
        %3670 = vst.msk [vmem:[#allocation2 + $0x47] sm:$0xff] %vm3656, %v3537
        %3671 = vst.msk [vmem:[#allocation2 + $0x4f] sm:$0x1] %vm3658, %v3539
        %3672 = vst.msk [vmem:[#allocation2 + $0x4f] sm:$0xfe] %vm3654, %v3541
        %3673 = vst.msk [vmem:[#allocation2 + $0x57] sm:$0xff] %vm3656, %v3543
        %3674 = vst.msk [vmem:[#allocation2 + $0x5f] sm:$0x1] %vm3658, %v3545
        %3675 = vst.msk [vmem:[#allocation2 + $0x5f] sm:$0xfe] %vm3654, %v3547
        %3676 = vst.msk [vmem:[#allocation2 + $0x67] sm:$0xff] %vm3656, %v3549
        %3677 = vst.msk [vmem:[#allocation2 + $0x6f] sm:$0x1] %vm3658, %v3551
        %3678 = vst.msk [vmem:[#allocation2 + $0x6f] sm:$0xfe] %vm3654, %v3553
        %3679 = vst.msk [vmem:[#allocation2 + $0x77] sm:$0xff] %vm3656, %v3555
        %3680 = vst.msk [vmem:[#allocation2 + $0x7f] sm:$0x1] %vm3658, %v3557
        %3681 = vst.msk [vmem:[#allocation2 + $0x7f] sm:$0xfe] %vm3654, %v3559
        %3682 = vst.msk [vmem:[#allocation2 + $0x87] sm:$0xff] %vm3656, %v3561
        %3683 = vst.msk [vmem:[#allocation2 + $0x8f] sm:$0x1] %vm3658, %v3563
        %3684 = vst.msk [vmem:[#allocation2 + $0x8f] sm:$0xfe] %vm3654, %v3565
        %3685 = vst.msk [vmem:[#allocation2 + $0x97] sm:$0xff] %vm3656, %v3567
        %3686 = vst.msk [vmem:[#allocation2 + $0x9f] sm:$0x1] %vm3658, %v3569
        %3687 = vst.msk [vmem:[#allocation2 + $0x9f] sm:$0xfe] %vm3654, %v3571
        %3688 = vst.msk [vmem:[#allocation2 + $0xa7] sm:$0xff] %vm3656, %v3573
        %3689 = vst.msk [vmem:[#allocation2 + $0xaf] sm:$0x1] %vm3658, %v3575
        %3690 = vst.msk [vmem:[#allocation2 + $0xaf] sm:$0xfe] %vm3654, %v3577
        %3691 = vst.msk [vmem:[#allocation2 + $0xb7] sm:$0xff] %vm3656, %v3579
        %3692 = vst.msk [vmem:[#allocation2 + $0xbf] sm:$0x1] %vm3658, %v3581
        %3693 = vst.msk [vmem:[#allocation2 + $0xbf] sm:$0xfe] %vm3654, %v3583
        %3694 = vst.msk [vmem:[#allocation2 + $0xc7] sm:$0xff] %vm3656, %v3585
        %3695 = vst.msk [vmem:[#allocation2 + $0xcf] sm:$0x1] %vm3658, %v3587
        %3696 = vst.msk [vmem:[#allocation2 + $0xcf] sm:$0xfe] %vm3654, %v3589
        %3697 = vst.msk [vmem:[#allocation2 + $0xd7] sm:$0xff] %vm3656, %v3591
        %3698 = vst.msk [vmem:[#allocation2 + $0xdf] sm:$0x1] %vm3658, %v3593
        %3699 = vst.msk [vmem:[#allocation2 + $0xdf] sm:$0xfe] %vm3654, %v3595
        %3700 = vst.msk [vmem:[#allocation2 + $0xe7] sm:$0xff] %vm3656, %v3597
        %3701 = vst.msk [vmem:[#allocation2 + $0xef] sm:$0x1] %vm3658, %v3599
        %3702 = vst.msk [vmem:[#allocation2 + $0xef] sm:$0xfe] %vm3654, %v3601
        %3703 = vst.msk [vmem:[#allocation2 + $0xf7] sm:$0xff] %vm3656, %v3603
        %3704 = vst.msk [vmem:[#allocation2 + $0xff] sm:$0x1] %vm3658, %v3605
        %3705 = vrot.lane.b32.xlu0 %v394, 51
        %v3706 = vpop.permute.xlu0 %3705
        %3707 = vrot.lane.b32.xlu0 %v395, 51
        %v3708 = vpop.permute.xlu0 %3707
        %3709 = vrot.lane.b32.xlu0 %v396, 51
        %v3710 = vpop.permute.xlu0 %3709
        %3711 = vrot.lane.b32.xlu0 %v397, 51
        %v3712 = vpop.permute.xlu0 %3711
        %3713 = vrot.lane.b32.xlu0 %v398, 51
        %v3714 = vpop.permute.xlu0 %3713
        %3715 = vrot.lane.b32.xlu0 %v399, 51
        %v3716 = vpop.permute.xlu0 %3715
        %3717 = vrot.lane.b32.xlu0 %v400, 51
        %v3718 = vpop.permute.xlu0 %3717
        %3719 = vrot.lane.b32.xlu0 %v401, 51
        %v3720 = vpop.permute.xlu0 %3719
        %3721 = vrot.lane.b32.xlu0 %v402, 51
        %v3722 = vpop.permute.xlu0 %3721
        %3723 = vrot.lane.b32.xlu0 %v403, 51
        %v3724 = vpop.permute.xlu0 %3723
        %3725 = vrot.lane.b32.xlu0 %v404, 51
        %v3726 = vpop.permute.xlu0 %3725
        %3727 = vrot.lane.b32.xlu0 %v405, 51
        %v3728 = vpop.permute.xlu0 %3727
        %3729 = vrot.lane.b32.xlu0 %v406, 51
        %v3730 = vpop.permute.xlu0 %3729
        %3731 = vrot.lane.b32.xlu0 %v407, 51
        %v3732 = vpop.permute.xlu0 %3731
        %3733 = vrot.lane.b32.xlu0 %v408, 51
        %v3734 = vpop.permute.xlu0 %3733
        %3735 = vrot.lane.b32.xlu0 %v409, 51
        %v3736 = vpop.permute.xlu0 %3735
        %3737 = vrot.lane.b32.xlu0 %v410, 51
        %v3738 = vpop.permute.xlu0 %3737
        %3739 = vrot.lane.b32.xlu0 %v411, 51
        %v3740 = vpop.permute.xlu0 %3739
        %3741 = vrot.lane.b32.xlu0 %v412, 51
        %v3742 = vpop.permute.xlu0 %3741
        %3743 = vrot.lane.b32.xlu0 %v413, 51
        %v3744 = vpop.permute.xlu0 %3743
        %3745 = vrot.lane.b32.xlu0 %v414, 51
        %v3746 = vpop.permute.xlu0 %3745
        %3747 = vrot.lane.b32.xlu0 %v415, 51
        %v3748 = vpop.permute.xlu0 %3747
        %3749 = vrot.lane.b32.xlu0 %v416, 51
        %v3750 = vpop.permute.xlu0 %3749
        %3751 = vrot.lane.b32.xlu0 %v417, 51
        %v3752 = vpop.permute.xlu0 %3751
        %3753 = vrot.lane.b32.xlu0 %v418, 51
        %v3754 = vpop.permute.xlu0 %3753
        %3755 = vrot.lane.b32.xlu0 %v419, 51
        %v3756 = vpop.permute.xlu0 %3755
        %3757 = vrot.lane.b32.xlu0 %v420, 51
        %v3758 = vpop.permute.xlu0 %3757
        %3759 = vrot.lane.b32.xlu0 %v421, 51
        %v3760 = vpop.permute.xlu0 %3759
        %3761 = vrot.lane.b32.xlu0 %v422, 51
        %v3762 = vpop.permute.xlu0 %3761
        %3763 = vrot.lane.b32.xlu0 %v423, 51
        %v3764 = vpop.permute.xlu0 %3763
        %3765 = vrot.lane.b32.xlu0 %v424, 51
        %v3766 = vpop.permute.xlu0 %3765
        %3767 = vrot.lane.b32.xlu0 %v425, 51
        %v3768 = vpop.permute.xlu0 %3767
        %3769 = vrot.lane.b32.xlu0 %v426, 51
        %v3770 = vpop.permute.xlu0 %3769
        %3771 = vrot.lane.b32.xlu0 %v427, 51
        %v3772 = vpop.permute.xlu0 %3771
        %3773 = vrot.lane.b32.xlu0 %v428, 51
        %v3774 = vpop.permute.xlu0 %3773
        %3775 = vrot.lane.b32.xlu0 %v429, 51
        %v3776 = vpop.permute.xlu0 %3775
        %3777 = vrot.lane.b32.xlu0 %v430, 51
        %v3778 = vpop.permute.xlu0 %3777
        %3779 = vrot.lane.b32.xlu0 %v431, 51
        %v3780 = vpop.permute.xlu0 %3779
        %3781 = vrot.lane.b32.xlu0 %v432, 51
        %v3782 = vpop.permute.xlu0 %3781
        %3783 = vrot.lane.b32.xlu0 %v433, 51
        %v3784 = vpop.permute.xlu0 %3783
        %3785 = vrot.lane.b32.xlu0 %v434, 51
        %v3786 = vpop.permute.xlu0 %3785
        %3787 = vrot.lane.b32.xlu0 %v435, 51
        %v3788 = vpop.permute.xlu0 %3787
        %3789 = vrot.lane.b32.xlu0 %v436, 51
        %v3790 = vpop.permute.xlu0 %3789
        %3791 = vrot.lane.b32.xlu0 %v437, 51
        %v3792 = vpop.permute.xlu0 %3791
        %3793 = vrot.lane.b32.xlu0 %v438, 51
        %v3794 = vpop.permute.xlu0 %3793
        %3795 = vrot.lane.b32.xlu0 %v439, 51
        %v3796 = vpop.permute.xlu0 %3795
        %3797 = vrot.lane.b32.xlu0 %v440, 51
        %v3798 = vpop.permute.xlu0 %3797
        %3799 = vrot.lane.b32.xlu0 %v441, 51
        %v3800 = vpop.permute.xlu0 %3799
        %vm3849 = vcmask 441754
        %3850 = vst.msk [vmem:[#allocation2 - $0x2] sm:$0xfc] %vm3849, %v3706
        %vm3851 = vcmask 441752
        %3852 = vst.msk [vmem:[#allocation2 + $0x6] sm:$0xff] %vm3851, %v3708
        %vm3853 = vcmask 435608
        %3854 = vst.msk [vmem:[#allocation2 + $0xe] sm:$0x3] %vm3853, %v3710
        %3855 = vst.msk [vmem:[#allocation2 + $0xe] sm:$0xfc] %vm3849, %v3712
        %3856 = vst.msk [vmem:[#allocation2 + $0x16] sm:$0xff] %vm3851, %v3714
        %3857 = vst.msk [vmem:[#allocation2 + $0x1e] sm:$0x3] %vm3853, %v3716
        %3858 = vst.msk [vmem:[#allocation2 + $0x1e] sm:$0xfc] %vm3849, %v3718
        %3859 = vst.msk [vmem:[#allocation2 + $0x26] sm:$0xff] %vm3851, %v3720
        %3860 = vst.msk [vmem:[#allocation2 + $0x2e] sm:$0x3] %vm3853, %v3722
        %3861 = vst.msk [vmem:[#allocation2 + $0x2e] sm:$0xfc] %vm3849, %v3724
        %3862 = vst.msk [vmem:[#allocation2 + $0x36] sm:$0xff] %vm3851, %v3726
        %3863 = vst.msk [vmem:[#allocation2 + $0x3e] sm:$0x3] %vm3853, %v3728
        %3864 = vst.msk [vmem:[#allocation2 + $0x3e] sm:$0xfc] %vm3849, %v3730
        %3865 = vst.msk [vmem:[#allocation2 + $0x46] sm:$0xff] %vm3851, %v3732
        %3866 = vst.msk [vmem:[#allocation2 + $0x4e] sm:$0x3] %vm3853, %v3734
        %3867 = vst.msk [vmem:[#allocation2 + $0x4e] sm:$0xfc] %vm3849, %v3736
        %3868 = vst.msk [vmem:[#allocation2 + $0x56] sm:$0xff] %vm3851, %v3738
        %3869 = vst.msk [vmem:[#allocation2 + $0x5e] sm:$0x3] %vm3853, %v3740
        %3870 = vst.msk [vmem:[#allocation2 + $0x5e] sm:$0xfc] %vm3849, %v3742
        %3871 = vst.msk [vmem:[#allocation2 + $0x66] sm:$0xff] %vm3851, %v3744
        %3872 = vst.msk [vmem:[#allocation2 + $0x6e] sm:$0x3] %vm3853, %v3746
        %3873 = vst.msk [vmem:[#allocation2 + $0x6e] sm:$0xfc] %vm3849, %v3748
        %3874 = vst.msk [vmem:[#allocation2 + $0x76] sm:$0xff] %vm3851, %v3750
        %3875 = vst.msk [vmem:[#allocation2 + $0x7e] sm:$0x3] %vm3853, %v3752
        %3876 = vst.msk [vmem:[#allocation2 + $0x7e] sm:$0xfc] %vm3849, %v3754
        %3877 = vst.msk [vmem:[#allocation2 + $0x86] sm:$0xff] %vm3851, %v3756
        %3878 = vst.msk [vmem:[#allocation2 + $0x8e] sm:$0x3] %vm3853, %v3758
        %3879 = vst.msk [vmem:[#allocation2 + $0x8e] sm:$0xfc] %vm3849, %v3760
        %3880 = vst.msk [vmem:[#allocation2 + $0x96] sm:$0xff] %vm3851, %v3762
        %3881 = vst.msk [vmem:[#allocation2 + $0x9e] sm:$0x3] %vm3853, %v3764
        %3882 = vst.msk [vmem:[#allocation2 + $0x9e] sm:$0xfc] %vm3849, %v3766
        %3883 = vst.msk [vmem:[#allocation2 + $0xa6] sm:$0xff] %vm3851, %v3768
        %3884 = vst.msk [vmem:[#allocation2 + $0xae] sm:$0x3] %vm3853, %v3770
        %3885 = vst.msk [vmem:[#allocation2 + $0xae] sm:$0xfc] %vm3849, %v3772
        %3886 = vst.msk [vmem:[#allocation2 + $0xb6] sm:$0xff] %vm3851, %v3774
        %3887 = vst.msk [vmem:[#allocation2 + $0xbe] sm:$0x3] %vm3853, %v3776
        %3888 = vst.msk [vmem:[#allocation2 + $0xbe] sm:$0xfc] %vm3849, %v3778
        %3889 = vst.msk [vmem:[#allocation2 + $0xc6] sm:$0xff] %vm3851, %v3780
        %3890 = vst.msk [vmem:[#allocation2 + $0xce] sm:$0x3] %vm3853, %v3782
        %3891 = vst.msk [vmem:[#allocation2 + $0xce] sm:$0xfc] %vm3849, %v3784
        %3892 = vst.msk [vmem:[#allocation2 + $0xd6] sm:$0xff] %vm3851, %v3786
        %3893 = vst.msk [vmem:[#allocation2 + $0xde] sm:$0x3] %vm3853, %v3788
        %3894 = vst.msk [vmem:[#allocation2 + $0xde] sm:$0xfc] %vm3849, %v3790
        %3895 = vst.msk [vmem:[#allocation2 + $0xe6] sm:$0xff] %vm3851, %v3792
        %3896 = vst.msk [vmem:[#allocation2 + $0xee] sm:$0x3] %vm3853, %v3794
        %3897 = vst.msk [vmem:[#allocation2 + $0xee] sm:$0xfc] %vm3849, %v3796
        %3898 = vst.msk [vmem:[#allocation2 + $0xf6] sm:$0xff] %vm3851, %v3798
        %3899 = vst.msk [vmem:[#allocation2 + $0xfe] sm:$0x3] %vm3853, %v3800
        %3900 = vrot.lane.b32.xlu0 %v394, 54
        %v3901 = vpop.permute.xlu0 %3900
        %3902 = vrot.lane.b32.xlu0 %v395, 54
        %v3903 = vpop.permute.xlu0 %3902
        %3904 = vrot.lane.b32.xlu0 %v396, 54
        %v3905 = vpop.permute.xlu0 %3904
        %3906 = vrot.lane.b32.xlu0 %v397, 54
        %v3907 = vpop.permute.xlu0 %3906
        %3908 = vrot.lane.b32.xlu0 %v398, 54
        %v3909 = vpop.permute.xlu0 %3908
        %3910 = vrot.lane.b32.xlu0 %v399, 54
        %v3911 = vpop.permute.xlu0 %3910
        %3912 = vrot.lane.b32.xlu0 %v400, 54
        %v3913 = vpop.permute.xlu0 %3912
        %3914 = vrot.lane.b32.xlu0 %v401, 54
        %v3915 = vpop.permute.xlu0 %3914
        %3916 = vrot.lane.b32.xlu0 %v402, 54
        %v3917 = vpop.permute.xlu0 %3916
        %3918 = vrot.lane.b32.xlu0 %v403, 54
        %v3919 = vpop.permute.xlu0 %3918
        %3920 = vrot.lane.b32.xlu0 %v404, 54
        %v3921 = vpop.permute.xlu0 %3920
        %3922 = vrot.lane.b32.xlu0 %v405, 54
        %v3923 = vpop.permute.xlu0 %3922
        %3924 = vrot.lane.b32.xlu0 %v406, 54
        %v3925 = vpop.permute.xlu0 %3924
        %3926 = vrot.lane.b32.xlu0 %v407, 54
        %v3927 = vpop.permute.xlu0 %3926
        %3928 = vrot.lane.b32.xlu0 %v408, 54
        %v3929 = vpop.permute.xlu0 %3928
        %3930 = vrot.lane.b32.xlu0 %v409, 54
        %v3931 = vpop.permute.xlu0 %3930
        %3932 = vrot.lane.b32.xlu0 %v410, 54
        %v3933 = vpop.permute.xlu0 %3932
        %3934 = vrot.lane.b32.xlu0 %v411, 54
        %v3935 = vpop.permute.xlu0 %3934
        %3936 = vrot.lane.b32.xlu0 %v412, 54
        %v3937 = vpop.permute.xlu0 %3936
        %3938 = vrot.lane.b32.xlu0 %v413, 54
        %v3939 = vpop.permute.xlu0 %3938
        %3940 = vrot.lane.b32.xlu0 %v414, 54
        %v3941 = vpop.permute.xlu0 %3940
        %3942 = vrot.lane.b32.xlu0 %v415, 54
        %v3943 = vpop.permute.xlu0 %3942
        %3944 = vrot.lane.b32.xlu0 %v416, 54
        %v3945 = vpop.permute.xlu0 %3944
        %3946 = vrot.lane.b32.xlu0 %v417, 54
        %v3947 = vpop.permute.xlu0 %3946
        %3948 = vrot.lane.b32.xlu0 %v418, 54
        %v3949 = vpop.permute.xlu0 %3948
        %3950 = vrot.lane.b32.xlu0 %v419, 54
        %v3951 = vpop.permute.xlu0 %3950
        %3952 = vrot.lane.b32.xlu0 %v420, 54
        %v3953 = vpop.permute.xlu0 %3952
        %3954 = vrot.lane.b32.xlu0 %v421, 54
        %v3955 = vpop.permute.xlu0 %3954
        %3956 = vrot.lane.b32.xlu0 %v422, 54
        %v3957 = vpop.permute.xlu0 %3956
        %3958 = vrot.lane.b32.xlu0 %v423, 54
        %v3959 = vpop.permute.xlu0 %3958
        %3960 = vrot.lane.b32.xlu0 %v424, 54
        %v3961 = vpop.permute.xlu0 %3960
        %3962 = vrot.lane.b32.xlu0 %v425, 54
        %v3963 = vpop.permute.xlu0 %3962
        %3964 = vrot.lane.b32.xlu0 %v426, 54
        %v3965 = vpop.permute.xlu0 %3964
        %3966 = vrot.lane.b32.xlu0 %v427, 54
        %v3967 = vpop.permute.xlu0 %3966
        %3968 = vrot.lane.b32.xlu0 %v428, 54
        %v3969 = vpop.permute.xlu0 %3968
        %3970 = vrot.lane.b32.xlu0 %v429, 54
        %v3971 = vpop.permute.xlu0 %3970
        %3972 = vrot.lane.b32.xlu0 %v430, 54
        %v3973 = vpop.permute.xlu0 %3972
        %3974 = vrot.lane.b32.xlu0 %v431, 54
        %v3975 = vpop.permute.xlu0 %3974
        %3976 = vrot.lane.b32.xlu0 %v432, 54
        %v3977 = vpop.permute.xlu0 %3976
        %3978 = vrot.lane.b32.xlu0 %v433, 54
        %v3979 = vpop.permute.xlu0 %3978
        %3980 = vrot.lane.b32.xlu0 %v434, 54
        %v3981 = vpop.permute.xlu0 %3980
        %3982 = vrot.lane.b32.xlu0 %v435, 54
        %v3983 = vpop.permute.xlu0 %3982
        %3984 = vrot.lane.b32.xlu0 %v436, 54
        %v3985 = vpop.permute.xlu0 %3984
        %3986 = vrot.lane.b32.xlu0 %v437, 54
        %v3987 = vpop.permute.xlu0 %3986
        %3988 = vrot.lane.b32.xlu0 %v438, 54
        %v3989 = vpop.permute.xlu0 %3988
        %3990 = vrot.lane.b32.xlu0 %v439, 54
        %v3991 = vpop.permute.xlu0 %3990
        %3992 = vrot.lane.b32.xlu0 %v440, 54
        %v3993 = vpop.permute.xlu0 %3992
        %3994 = vrot.lane.b32.xlu0 %v441, 54
        %v3995 = vpop.permute.xlu0 %3994
        %vm4044 = vcmask 466355
        %4045 = vst.msk [vmem:[#allocation2 - $0x3] sm:$0xf8] %vm4044, %v3901
        %vm4046 = vcmask 466352
        %4047 = vst.msk [vmem:[#allocation2 + $0x5] sm:$0xff] %vm4046, %v3903
        %vm4048 = vcmask 461232
        %4049 = vst.msk [vmem:[#allocation2 + $0xd] sm:$0x7] %vm4048, %v3905
        %4050 = vst.msk [vmem:[#allocation2 + $0xd] sm:$0xf8] %vm4044, %v3907
        %4051 = vst.msk [vmem:[#allocation2 + $0x15] sm:$0xff] %vm4046, %v3909
        %4052 = vst.msk [vmem:[#allocation2 + $0x1d] sm:$0x7] %vm4048, %v3911
        %4053 = vst.msk [vmem:[#allocation2 + $0x1d] sm:$0xf8] %vm4044, %v3913
        %4054 = vst.msk [vmem:[#allocation2 + $0x25] sm:$0xff] %vm4046, %v3915
        %4055 = vst.msk [vmem:[#allocation2 + $0x2d] sm:$0x7] %vm4048, %v3917
        %4056 = vst.msk [vmem:[#allocation2 + $0x2d] sm:$0xf8] %vm4044, %v3919
        %4057 = vst.msk [vmem:[#allocation2 + $0x35] sm:$0xff] %vm4046, %v3921
        %4058 = vst.msk [vmem:[#allocation2 + $0x3d] sm:$0x7] %vm4048, %v3923
        %4059 = vst.msk [vmem:[#allocation2 + $0x3d] sm:$0xf8] %vm4044, %v3925
        %4060 = vst.msk [vmem:[#allocation2 + $0x45] sm:$0xff] %vm4046, %v3927
        %4061 = vst.msk [vmem:[#allocation2 + $0x4d] sm:$0x7] %vm4048, %v3929
        %4062 = vst.msk [vmem:[#allocation2 + $0x4d] sm:$0xf8] %vm4044, %v3931
        %4063 = vst.msk [vmem:[#allocation2 + $0x55] sm:$0xff] %vm4046, %v3933
        %4064 = vst.msk [vmem:[#allocation2 + $0x5d] sm:$0x7] %vm4048, %v3935
        %4065 = vst.msk [vmem:[#allocation2 + $0x5d] sm:$0xf8] %vm4044, %v3937
        %4066 = vst.msk [vmem:[#allocation2 + $0x65] sm:$0xff] %vm4046, %v3939
        %4067 = vst.msk [vmem:[#allocation2 + $0x6d] sm:$0x7] %vm4048, %v3941
        %4068 = vst.msk [vmem:[#allocation2 + $0x6d] sm:$0xf8] %vm4044, %v3943
        %4069 = vst.msk [vmem:[#allocation2 + $0x75] sm:$0xff] %vm4046, %v3945
        %4070 = vst.msk [vmem:[#allocation2 + $0x7d] sm:$0x7] %vm4048, %v3947
        %4071 = vst.msk [vmem:[#allocation2 + $0x7d] sm:$0xf8] %vm4044, %v3949
        %4072 = vst.msk [vmem:[#allocation2 + $0x85] sm:$0xff] %vm4046, %v3951
        %4073 = vst.msk [vmem:[#allocation2 + $0x8d] sm:$0x7] %vm4048, %v3953
        %4074 = vst.msk [vmem:[#allocation2 + $0x8d] sm:$0xf8] %vm4044, %v3955
        %4075 = vst.msk [vmem:[#allocation2 + $0x95] sm:$0xff] %vm4046, %v3957
        %4076 = vst.msk [vmem:[#allocation2 + $0x9d] sm:$0x7] %vm4048, %v3959
        %4077 = vst.msk [vmem:[#allocation2 + $0x9d] sm:$0xf8] %vm4044, %v3961
        %4078 = vst.msk [vmem:[#allocation2 + $0xa5] sm:$0xff] %vm4046, %v3963
        %4079 = vst.msk [vmem:[#allocation2 + $0xad] sm:$0x7] %vm4048, %v3965
        %4080 = vst.msk [vmem:[#allocation2 + $0xad] sm:$0xf8] %vm4044, %v3967
        %4081 = vst.msk [vmem:[#allocation2 + $0xb5] sm:$0xff] %vm4046, %v3969
        %4082 = vst.msk [vmem:[#allocation2 + $0xbd] sm:$0x7] %vm4048, %v3971
        %4083 = vst.msk [vmem:[#allocation2 + $0xbd] sm:$0xf8] %vm4044, %v3973
        %4084 = vst.msk [vmem:[#allocation2 + $0xc5] sm:$0xff] %vm4046, %v3975
        %4085 = vst.msk [vmem:[#allocation2 + $0xcd] sm:$0x7] %vm4048, %v3977
        %4086 = vst.msk [vmem:[#allocation2 + $0xcd] sm:$0xf8] %vm4044, %v3979
        %4087 = vst.msk [vmem:[#allocation2 + $0xd5] sm:$0xff] %vm4046, %v3981
        %4088 = vst.msk [vmem:[#allocation2 + $0xdd] sm:$0x7] %vm4048, %v3983
        %4089 = vst.msk [vmem:[#allocation2 + $0xdd] sm:$0xf8] %vm4044, %v3985
        %4090 = vst.msk [vmem:[#allocation2 + $0xe5] sm:$0xff] %vm4046, %v3987
        %4091 = vst.msk [vmem:[#allocation2 + $0xed] sm:$0x7] %vm4048, %v3989
        %4092 = vst.msk [vmem:[#allocation2 + $0xed] sm:$0xf8] %vm4044, %v3991
        %4093 = vst.msk [vmem:[#allocation2 + $0xf5] sm:$0xff] %vm4046, %v3993
        %4094 = vst.msk [vmem:[#allocation2 + $0xfd] sm:$0x7] %vm4048, %v3995
        %4095 = vrot.lane.b32.xlu0 %v394, 57
        %v4096 = vpop.permute.xlu0 %4095
        %4097 = vrot.lane.b32.xlu0 %v395, 57
        %v4098 = vpop.permute.xlu0 %4097
        %4099 = vrot.lane.b32.xlu0 %v396, 57
        %v4100 = vpop.permute.xlu0 %4099
        %4101 = vrot.lane.b32.xlu0 %v397, 57
        %v4102 = vpop.permute.xlu0 %4101
        %4103 = vrot.lane.b32.xlu0 %v398, 57
        %v4104 = vpop.permute.xlu0 %4103
        %4105 = vrot.lane.b32.xlu0 %v399, 57
        %v4106 = vpop.permute.xlu0 %4105
        %4107 = vrot.lane.b32.xlu0 %v400, 57
        %v4108 = vpop.permute.xlu0 %4107
        %4109 = vrot.lane.b32.xlu0 %v401, 57
        %v4110 = vpop.permute.xlu0 %4109
        %4111 = vrot.lane.b32.xlu0 %v402, 57
        %v4112 = vpop.permute.xlu0 %4111
        %4113 = vrot.lane.b32.xlu0 %v403, 57
        %v4114 = vpop.permute.xlu0 %4113
        %4115 = vrot.lane.b32.xlu0 %v404, 57
        %v4116 = vpop.permute.xlu0 %4115
        %4117 = vrot.lane.b32.xlu0 %v405, 57
        %v4118 = vpop.permute.xlu0 %4117
        %4119 = vrot.lane.b32.xlu0 %v406, 57
        %v4120 = vpop.permute.xlu0 %4119
        %4121 = vrot.lane.b32.xlu0 %v407, 57
        %v4122 = vpop.permute.xlu0 %4121
        %4123 = vrot.lane.b32.xlu0 %v408, 57
        %v4124 = vpop.permute.xlu0 %4123
        %4125 = vrot.lane.b32.xlu0 %v409, 57
        %v4126 = vpop.permute.xlu0 %4125
        %4127 = vrot.lane.b32.xlu0 %v410, 57
        %v4128 = vpop.permute.xlu0 %4127
        %4129 = vrot.lane.b32.xlu0 %v411, 57
        %v4130 = vpop.permute.xlu0 %4129
        %4131 = vrot.lane.b32.xlu0 %v412, 57
        %v4132 = vpop.permute.xlu0 %4131
        %4133 = vrot.lane.b32.xlu0 %v413, 57
        %v4134 = vpop.permute.xlu0 %4133
        %4135 = vrot.lane.b32.xlu0 %v414, 57
        %v4136 = vpop.permute.xlu0 %4135
        %4137 = vrot.lane.b32.xlu0 %v415, 57
        %v4138 = vpop.permute.xlu0 %4137
        %4139 = vrot.lane.b32.xlu0 %v416, 57
        %v4140 = vpop.permute.xlu0 %4139
        %4141 = vrot.lane.b32.xlu0 %v417, 57
        %v4142 = vpop.permute.xlu0 %4141
        %4143 = vrot.lane.b32.xlu0 %v418, 57
        %v4144 = vpop.permute.xlu0 %4143
        %4145 = vrot.lane.b32.xlu0 %v419, 57
        %v4146 = vpop.permute.xlu0 %4145
        %4147 = vrot.lane.b32.xlu0 %v420, 57
        %v4148 = vpop.permute.xlu0 %4147
        %4149 = vrot.lane.b32.xlu0 %v421, 57
        %v4150 = vpop.permute.xlu0 %4149
        %4151 = vrot.lane.b32.xlu0 %v422, 57
        %v4152 = vpop.permute.xlu0 %4151
        %4153 = vrot.lane.b32.xlu0 %v423, 57
        %v4154 = vpop.permute.xlu0 %4153
        %4155 = vrot.lane.b32.xlu0 %v424, 57
        %v4156 = vpop.permute.xlu0 %4155
        %4157 = vrot.lane.b32.xlu0 %v425, 57
        %v4158 = vpop.permute.xlu0 %4157
        %4159 = vrot.lane.b32.xlu0 %v426, 57
        %v4160 = vpop.permute.xlu0 %4159
        %4161 = vrot.lane.b32.xlu0 %v427, 57
        %v4162 = vpop.permute.xlu0 %4161
        %4163 = vrot.lane.b32.xlu0 %v428, 57
        %v4164 = vpop.permute.xlu0 %4163
        %4165 = vrot.lane.b32.xlu0 %v429, 57
        %v4166 = vpop.permute.xlu0 %4165
        %4167 = vrot.lane.b32.xlu0 %v430, 57
        %v4168 = vpop.permute.xlu0 %4167
        %4169 = vrot.lane.b32.xlu0 %v431, 57
        %v4170 = vpop.permute.xlu0 %4169
        %4171 = vrot.lane.b32.xlu0 %v432, 57
        %v4172 = vpop.permute.xlu0 %4171
        %4173 = vrot.lane.b32.xlu0 %v433, 57
        %v4174 = vpop.permute.xlu0 %4173
        %4175 = vrot.lane.b32.xlu0 %v434, 57
        %v4176 = vpop.permute.xlu0 %4175
        %4177 = vrot.lane.b32.xlu0 %v435, 57
        %v4178 = vpop.permute.xlu0 %4177
        %4179 = vrot.lane.b32.xlu0 %v436, 57
        %v4180 = vpop.permute.xlu0 %4179
        %4181 = vrot.lane.b32.xlu0 %v437, 57
        %v4182 = vpop.permute.xlu0 %4181
        %4183 = vrot.lane.b32.xlu0 %v438, 57
        %v4184 = vpop.permute.xlu0 %4183
        %4185 = vrot.lane.b32.xlu0 %v439, 57
        %v4186 = vpop.permute.xlu0 %4185
        %4187 = vrot.lane.b32.xlu0 %v440, 57
        %v4188 = vpop.permute.xlu0 %4187
        %4189 = vrot.lane.b32.xlu0 %v441, 57
        %v4190 = vpop.permute.xlu0 %4189
        %vm4239 = vcmask 490956
        %4240 = vst.msk [vmem:[#allocation2 - $0x4] sm:$0xf0] %vm4239, %v4096
        %vm4241 = vcmask 490952
        %4242 = vst.msk [vmem:[#allocation2 + $0x4] sm:$0xff] %vm4241, %v4098
        %vm4243 = vcmask 486856
        %4244 = vst.msk [vmem:[#allocation2 + $0xc] sm:$0xf] %vm4243, %v4100
        %4245 = vst.msk [vmem:[#allocation2 + $0xc] sm:$0xf0] %vm4239, %v4102
        %4246 = vst.msk [vmem:[#allocation2 + $0x14] sm:$0xff] %vm4241, %v4104
        %4247 = vst.msk [vmem:[#allocation2 + $0x1c] sm:$0xf] %vm4243, %v4106
        %4248 = vst.msk [vmem:[#allocation2 + $0x1c] sm:$0xf0] %vm4239, %v4108
        %4249 = vst.msk [vmem:[#allocation2 + $0x24] sm:$0xff] %vm4241, %v4110
        %4250 = vst.msk [vmem:[#allocation2 + $0x2c] sm:$0xf] %vm4243, %v4112
        %4251 = vst.msk [vmem:[#allocation2 + $0x2c] sm:$0xf0] %vm4239, %v4114
        %4252 = vst.msk [vmem:[#allocation2 + $0x34] sm:$0xff] %vm4241, %v4116
        %4253 = vst.msk [vmem:[#allocation2 + $0x3c] sm:$0xf] %vm4243, %v4118
        %4254 = vst.msk [vmem:[#allocation2 + $0x3c] sm:$0xf0] %vm4239, %v4120
        %4255 = vst.msk [vmem:[#allocation2 + $0x44] sm:$0xff] %vm4241, %v4122
        %4256 = vst.msk [vmem:[#allocation2 + $0x4c] sm:$0xf] %vm4243, %v4124
        %4257 = vst.msk [vmem:[#allocation2 + $0x4c] sm:$0xf0] %vm4239, %v4126
        %4258 = vst.msk [vmem:[#allocation2 + $0x54] sm:$0xff] %vm4241, %v4128
        %4259 = vst.msk [vmem:[#allocation2 + $0x5c] sm:$0xf] %vm4243, %v4130
        %4260 = vst.msk [vmem:[#allocation2 + $0x5c] sm:$0xf0] %vm4239, %v4132
        %4261 = vst.msk [vmem:[#allocation2 + $0x64] sm:$0xff] %vm4241, %v4134
        %4262 = vst.msk [vmem:[#allocation2 + $0x6c] sm:$0xf] %vm4243, %v4136
        %4263 = vst.msk [vmem:[#allocation2 + $0x6c] sm:$0xf0] %vm4239, %v4138
        %4264 = vst.msk [vmem:[#allocation2 + $0x74] sm:$0xff] %vm4241, %v4140
        %4265 = vst.msk [vmem:[#allocation2 + $0x7c] sm:$0xf] %vm4243, %v4142
        %4266 = vst.msk [vmem:[#allocation2 + $0x7c] sm:$0xf0] %vm4239, %v4144
        %4267 = vst.msk [vmem:[#allocation2 + $0x84] sm:$0xff] %vm4241, %v4146
        %4268 = vst.msk [vmem:[#allocation2 + $0x8c] sm:$0xf] %vm4243, %v4148
        %4269 = vst.msk [vmem:[#allocation2 + $0x8c] sm:$0xf0] %vm4239, %v4150
        %4270 = vst.msk [vmem:[#allocation2 + $0x94] sm:$0xff] %vm4241, %v4152
        %4271 = vst.msk [vmem:[#allocation2 + $0x9c] sm:$0xf] %vm4243, %v4154
        %4272 = vst.msk [vmem:[#allocation2 + $0x9c] sm:$0xf0] %vm4239, %v4156
        %4273 = vst.msk [vmem:[#allocation2 + $0xa4] sm:$0xff] %vm4241, %v4158
        %4274 = vst.msk [vmem:[#allocation2 + $0xac] sm:$0xf] %vm4243, %v4160
        %4275 = vst.msk [vmem:[#allocation2 + $0xac] sm:$0xf0] %vm4239, %v4162
        %4276 = vst.msk [vmem:[#allocation2 + $0xb4] sm:$0xff] %vm4241, %v4164
        %4277 = vst.msk [vmem:[#allocation2 + $0xbc] sm:$0xf] %vm4243, %v4166
        %4278 = vst.msk [vmem:[#allocation2 + $0xbc] sm:$0xf0] %vm4239, %v4168
        %4279 = vst.msk [vmem:[#allocation2 + $0xc4] sm:$0xff] %vm4241, %v4170
        %4280 = vst.msk [vmem:[#allocation2 + $0xcc] sm:$0xf] %vm4243, %v4172
        %4281 = vst.msk [vmem:[#allocation2 + $0xcc] sm:$0xf0] %vm4239, %v4174
        %4282 = vst.msk [vmem:[#allocation2 + $0xd4] sm:$0xff] %vm4241, %v4176
        %4283 = vst.msk [vmem:[#allocation2 + $0xdc] sm:$0xf] %vm4243, %v4178
        %4284 = vst.msk [vmem:[#allocation2 + $0xdc] sm:$0xf0] %vm4239, %v4180
        %4285 = vst.msk [vmem:[#allocation2 + $0xe4] sm:$0xff] %vm4241, %v4182
        %4286 = vst.msk [vmem:[#allocation2 + $0xec] sm:$0xf] %vm4243, %v4184
        %4287 = vst.msk [vmem:[#allocation2 + $0xec] sm:$0xf0] %vm4239, %v4186
        %4288 = vst.msk [vmem:[#allocation2 + $0xf4] sm:$0xff] %vm4241, %v4188
        %4289 = vst.msk [vmem:[#allocation2 + $0xfc] sm:$0xf] %vm4243, %v4190
        %4292 = vrot.lane.b32.xlu0 %v397, 60
        %v4293 = vpop.permute.xlu0 %4292
        %4294 = vrot.lane.b32.xlu0 %v398, 60
        %v4295 = vpop.permute.xlu0 %4294
        %4296 = vrot.lane.b32.xlu0 %v400, 60
        %v4297 = vpop.permute.xlu0 %4296
        %4298 = vrot.lane.b32.xlu0 %v401, 60
        %v4299 = vpop.permute.xlu0 %4298
        %4300 = vrot.lane.b32.xlu0 %v403, 60
        %v4301 = vpop.permute.xlu0 %4300
        %4302 = vrot.lane.b32.xlu0 %v404, 60
        %v4303 = vpop.permute.xlu0 %4302
        %4304 = vrot.lane.b32.xlu0 %v406, 60
        %v4305 = vpop.permute.xlu0 %4304
        %4306 = vrot.lane.b32.xlu0 %v407, 60
        %v4307 = vpop.permute.xlu0 %4306
        %4308 = vrot.lane.b32.xlu0 %v409, 60
        %v4309 = vpop.permute.xlu0 %4308
        %4310 = vrot.lane.b32.xlu0 %v410, 60
        %v4311 = vpop.permute.xlu0 %4310
        %4312 = vrot.lane.b32.xlu0 %v412, 60
        %v4313 = vpop.permute.xlu0 %4312
        %4314 = vrot.lane.b32.xlu0 %v413, 60
        %v4315 = vpop.permute.xlu0 %4314
        %4316 = vrot.lane.b32.xlu0 %v415, 60
        %v4317 = vpop.permute.xlu0 %4316
        %4318 = vrot.lane.b32.xlu0 %v416, 60
        %v4319 = vpop.permute.xlu0 %4318
        %4320 = vrot.lane.b32.xlu0 %v418, 60
        %v4321 = vpop.permute.xlu0 %4320
        %4322 = vrot.lane.b32.xlu0 %v419, 60
        %v4323 = vpop.permute.xlu0 %4322
        %4324 = vrot.lane.b32.xlu0 %v421, 60
        %v4325 = vpop.permute.xlu0 %4324
        %4326 = vrot.lane.b32.xlu0 %v422, 60
        %v4327 = vpop.permute.xlu0 %4326
        %4328 = vrot.lane.b32.xlu0 %v424, 60
        %v4329 = vpop.permute.xlu0 %4328
        %4330 = vrot.lane.b32.xlu0 %v425, 60
        %v4331 = vpop.permute.xlu0 %4330
        %4332 = vrot.lane.b32.xlu0 %v427, 60
        %v4333 = vpop.permute.xlu0 %4332
        %4334 = vrot.lane.b32.xlu0 %v428, 60
        %v4335 = vpop.permute.xlu0 %4334
        %4336 = vrot.lane.b32.xlu0 %v430, 60
        %v4337 = vpop.permute.xlu0 %4336
        %4338 = vrot.lane.b32.xlu0 %v431, 60
        %v4339 = vpop.permute.xlu0 %4338
        %4340 = vrot.lane.b32.xlu0 %v433, 60
        %v4341 = vpop.permute.xlu0 %4340
        %4342 = vrot.lane.b32.xlu0 %v434, 60
        %v4343 = vpop.permute.xlu0 %4342
        %4344 = vrot.lane.b32.xlu0 %v436, 60
        %v4345 = vpop.permute.xlu0 %4344
        %4346 = vrot.lane.b32.xlu0 %v437, 60
        %v4347 = vpop.permute.xlu0 %4346
        %4348 = vrot.lane.b32.xlu0 %v439, 60
        %v4349 = vpop.permute.xlu0 %4348
        %4350 = vrot.lane.b32.xlu0 %v440, 60
        %v4351 = vpop.permute.xlu0 %4350
        %4352 = vrot.lane.b32.xlu0 %v442, 60
        %v4353 = vpop.permute.xlu0 %4352
        %4354 = vrot.lane.b32.xlu0 %v443, 60
        %v4355 = vpop.permute.xlu0 %4354
        %vm4388 = vcmask 515552
        %4389 = vst.msk [vmem:[#allocation2] sm:$0xff] %vm4388, %v4293
        %4390 = vst.msk [vmem:[#allocation2 + $0x8] sm:$0xff] %vm4388, %v4295
        %4391 = vst.msk [vmem:[#allocation2 + $0x10] sm:$0xff] %vm4388, %v4297
        %4392 = vst.msk [vmem:[#allocation2 + $0x18] sm:$0xff] %vm4388, %v4299
        %4393 = vst.msk [vmem:[#allocation2 + $0x20] sm:$0xff] %vm4388, %v4301
        %4394 = vst.msk [vmem:[#allocation2 + $0x28] sm:$0xff] %vm4388, %v4303
        %4395 = vst.msk [vmem:[#allocation2 + $0x30] sm:$0xff] %vm4388, %v4305
        %4396 = vst.msk [vmem:[#allocation2 + $0x38] sm:$0xff] %vm4388, %v4307
        %4397 = vst.msk [vmem:[#allocation2 + $0x40] sm:$0xff] %vm4388, %v4309
        %4398 = vst.msk [vmem:[#allocation2 + $0x48] sm:$0xff] %vm4388, %v4311
        %4399 = vst.msk [vmem:[#allocation2 + $0x50] sm:$0xff] %vm4388, %v4313
        %4400 = vst.msk [vmem:[#allocation2 + $0x58] sm:$0xff] %vm4388, %v4315
        %4401 = vst.msk [vmem:[#allocation2 + $0x60] sm:$0xff] %vm4388, %v4317
        %4402 = vst.msk [vmem:[#allocation2 + $0x68] sm:$0xff] %vm4388, %v4319
        %4403 = vst.msk [vmem:[#allocation2 + $0x70] sm:$0xff] %vm4388, %v4321
        %4404 = vst.msk [vmem:[#allocation2 + $0x78] sm:$0xff] %vm4388, %v4323
        %4405 = vst.msk [vmem:[#allocation2 + $0x80] sm:$0xff] %vm4388, %v4325
        %4406 = vst.msk [vmem:[#allocation2 + $0x88] sm:$0xff] %vm4388, %v4327
        %4407 = vst.msk [vmem:[#allocation2 + $0x90] sm:$0xff] %vm4388, %v4329
        %4408 = vst.msk [vmem:[#allocation2 + $0x98] sm:$0xff] %vm4388, %v4331
        %4409 = vst.msk [vmem:[#allocation2 + $0xa0] sm:$0xff] %vm4388, %v4333
        %4410 = vst.msk [vmem:[#allocation2 + $0xa8] sm:$0xff] %vm4388, %v4335
        %4411 = vst.msk [vmem:[#allocation2 + $0xb0] sm:$0xff] %vm4388, %v4337
        %4412 = vst.msk [vmem:[#allocation2 + $0xb8] sm:$0xff] %vm4388, %v4339
        %4413 = vst.msk [vmem:[#allocation2 + $0xc0] sm:$0xff] %vm4388, %v4341
        %4414 = vst.msk [vmem:[#allocation2 + $0xc8] sm:$0xff] %vm4388, %v4343
        %4415 = vst.msk [vmem:[#allocation2 + $0xd0] sm:$0xff] %vm4388, %v4345
        %4416 = vst.msk [vmem:[#allocation2 + $0xd8] sm:$0xff] %vm4388, %v4347
        %4417 = vst.msk [vmem:[#allocation2 + $0xe0] sm:$0xff] %vm4388, %v4349
        %4418 = vst.msk [vmem:[#allocation2 + $0xe8] sm:$0xff] %vm4388, %v4351
        %4419 = vst.msk [vmem:[#allocation2 + $0xf0] sm:$0xff] %vm4388, %v4353
        %4420 = vst.msk [vmem:[#allocation2 + $0xf8] sm:$0xff] %vm4388, %v4355
        %4422 = vrot.lane.b32.xlu0 %v397, 63
        %v4423 = vpop.permute.xlu0 %4422
        %4424 = vrot.lane.b32.xlu0 %v398, 63
        %v4425 = vpop.permute.xlu0 %4424
        %4426 = vrot.lane.b32.xlu0 %v399, 63
        %v4427 = vpop.permute.xlu0 %4426
        %4428 = vrot.lane.b32.xlu0 %v400, 63
        %v4429 = vpop.permute.xlu0 %4428
        %4430 = vrot.lane.b32.xlu0 %v401, 63
        %v4431 = vpop.permute.xlu0 %4430
        %4432 = vrot.lane.b32.xlu0 %v402, 63
        %v4433 = vpop.permute.xlu0 %4432
        %4434 = vrot.lane.b32.xlu0 %v403, 63
        %v4435 = vpop.permute.xlu0 %4434
        %4436 = vrot.lane.b32.xlu0 %v404, 63
        %v4437 = vpop.permute.xlu0 %4436
        %4438 = vrot.lane.b32.xlu0 %v405, 63
        %v4439 = vpop.permute.xlu0 %4438
        %4440 = vrot.lane.b32.xlu0 %v406, 63
        %v4441 = vpop.permute.xlu0 %4440
        %4442 = vrot.lane.b32.xlu0 %v407, 63
        %v4443 = vpop.permute.xlu0 %4442
        %4444 = vrot.lane.b32.xlu0 %v408, 63
        %v4445 = vpop.permute.xlu0 %4444
        %4446 = vrot.lane.b32.xlu0 %v409, 63
        %v4447 = vpop.permute.xlu0 %4446
        %4448 = vrot.lane.b32.xlu0 %v410, 63
        %v4449 = vpop.permute.xlu0 %4448
        %4450 = vrot.lane.b32.xlu0 %v411, 63
        %v4451 = vpop.permute.xlu0 %4450
        %4452 = vrot.lane.b32.xlu0 %v412, 63
        %v4453 = vpop.permute.xlu0 %4452
        %4454 = vrot.lane.b32.xlu0 %v413, 63
        %v4455 = vpop.permute.xlu0 %4454
        %4456 = vrot.lane.b32.xlu0 %v414, 63
        %v4457 = vpop.permute.xlu0 %4456
        %4458 = vrot.lane.b32.xlu0 %v415, 63
        %v4459 = vpop.permute.xlu0 %4458
        %4460 = vrot.lane.b32.xlu0 %v416, 63
        %v4461 = vpop.permute.xlu0 %4460
        %4462 = vrot.lane.b32.xlu0 %v417, 63
        %v4463 = vpop.permute.xlu0 %4462
        %4464 = vrot.lane.b32.xlu0 %v418, 63
        %v4465 = vpop.permute.xlu0 %4464
        %4466 = vrot.lane.b32.xlu0 %v419, 63
        %v4467 = vpop.permute.xlu0 %4466
        %4468 = vrot.lane.b32.xlu0 %v420, 63
        %v4469 = vpop.permute.xlu0 %4468
        %4470 = vrot.lane.b32.xlu0 %v421, 63
        %v4471 = vpop.permute.xlu0 %4470
        %4472 = vrot.lane.b32.xlu0 %v422, 63
        %v4473 = vpop.permute.xlu0 %4472
        %4474 = vrot.lane.b32.xlu0 %v423, 63
        %v4475 = vpop.permute.xlu0 %4474
        %4476 = vrot.lane.b32.xlu0 %v424, 63
        %v4477 = vpop.permute.xlu0 %4476
        %4478 = vrot.lane.b32.xlu0 %v425, 63
        %v4479 = vpop.permute.xlu0 %4478
        %4480 = vrot.lane.b32.xlu0 %v426, 63
        %v4481 = vpop.permute.xlu0 %4480
        %4482 = vrot.lane.b32.xlu0 %v427, 63
        %v4483 = vpop.permute.xlu0 %4482
        %4484 = vrot.lane.b32.xlu0 %v428, 63
        %v4485 = vpop.permute.xlu0 %4484
        %4486 = vrot.lane.b32.xlu0 %v429, 63
        %v4487 = vpop.permute.xlu0 %4486
        %4488 = vrot.lane.b32.xlu0 %v430, 63
        %v4489 = vpop.permute.xlu0 %4488
        %4490 = vrot.lane.b32.xlu0 %v431, 63
        %v4491 = vpop.permute.xlu0 %4490
        %4492 = vrot.lane.b32.xlu0 %v432, 63
        %v4493 = vpop.permute.xlu0 %4492
        %4494 = vrot.lane.b32.xlu0 %v433, 63
        %v4495 = vpop.permute.xlu0 %4494
        %4496 = vrot.lane.b32.xlu0 %v434, 63
        %v4497 = vpop.permute.xlu0 %4496
        %4498 = vrot.lane.b32.xlu0 %v435, 63
        %v4499 = vpop.permute.xlu0 %4498
        %4500 = vrot.lane.b32.xlu0 %v436, 63
        %v4501 = vpop.permute.xlu0 %4500
        %4502 = vrot.lane.b32.xlu0 %v437, 63
        %v4503 = vpop.permute.xlu0 %4502
        %4504 = vrot.lane.b32.xlu0 %v438, 63
        %v4505 = vpop.permute.xlu0 %4504
        %4506 = vrot.lane.b32.xlu0 %v439, 63
        %v4507 = vpop.permute.xlu0 %4506
        %4508 = vrot.lane.b32.xlu0 %v440, 63
        %v4509 = vpop.permute.xlu0 %4508
        %4510 = vrot.lane.b32.xlu0 %v441, 63
        %v4511 = vpop.permute.xlu0 %4510
        %4512 = vrot.lane.b32.xlu0 %v442, 63
        %v4513 = vpop.permute.xlu0 %4512
        %4514 = vrot.lane.b32.xlu0 %v443, 63
        %v4515 = vpop.permute.xlu0 %4514
        %4516 = vrot.lane.b32.xlu0 %v444, 63
        %v4517 = vpop.permute.xlu0 %4516
        %vm4566 = vcmask 540153
        %4567 = vst.msk [vmem:[#allocation2 - $0x1] sm:$0xfe] %vm4566, %v4423
        %vm4568 = vcmask 540152
        %4569 = vst.msk [vmem:[#allocation2 + $0x7] sm:$0xff] %vm4568, %v4425
        %vm4570 = vcmask 532984
        %4571 = vst.msk [vmem:[#allocation2 + $0xf] sm:$0x1] %vm4570, %v4427
        %4572 = vst.msk [vmem:[#allocation2 + $0xf] sm:$0xfe] %vm4566, %v4429
        %4573 = vst.msk [vmem:[#allocation2 + $0x17] sm:$0xff] %vm4568, %v4431
        %4574 = vst.msk [vmem:[#allocation2 + $0x1f] sm:$0x1] %vm4570, %v4433
        %4575 = vst.msk [vmem:[#allocation2 + $0x1f] sm:$0xfe] %vm4566, %v4435
        %4576 = vst.msk [vmem:[#allocation2 + $0x27] sm:$0xff] %vm4568, %v4437
        %4577 = vst.msk [vmem:[#allocation2 + $0x2f] sm:$0x1] %vm4570, %v4439
        %4578 = vst.msk [vmem:[#allocation2 + $0x2f] sm:$0xfe] %vm4566, %v4441
        %4579 = vst.msk [vmem:[#allocation2 + $0x37] sm:$0xff] %vm4568, %v4443
        %4580 = vst.msk [vmem:[#allocation2 + $0x3f] sm:$0x1] %vm4570, %v4445
        %4581 = vst.msk [vmem:[#allocation2 + $0x3f] sm:$0xfe] %vm4566, %v4447
        %4582 = vst.msk [vmem:[#allocation2 + $0x47] sm:$0xff] %vm4568, %v4449
        %4583 = vst.msk [vmem:[#allocation2 + $0x4f] sm:$0x1] %vm4570, %v4451
        %4584 = vst.msk [vmem:[#allocation2 + $0x4f] sm:$0xfe] %vm4566, %v4453
        %4585 = vst.msk [vmem:[#allocation2 + $0x57] sm:$0xff] %vm4568, %v4455
        %4586 = vst.msk [vmem:[#allocation2 + $0x5f] sm:$0x1] %vm4570, %v4457
        %4587 = vst.msk [vmem:[#allocation2 + $0x5f] sm:$0xfe] %vm4566, %v4459
        %4588 = vst.msk [vmem:[#allocation2 + $0x67] sm:$0xff] %vm4568, %v4461
        %4589 = vst.msk [vmem:[#allocation2 + $0x6f] sm:$0x1] %vm4570, %v4463
        %4590 = vst.msk [vmem:[#allocation2 + $0x6f] sm:$0xfe] %vm4566, %v4465
        %4591 = vst.msk [vmem:[#allocation2 + $0x77] sm:$0xff] %vm4568, %v4467
        %4592 = vst.msk [vmem:[#allocation2 + $0x7f] sm:$0x1] %vm4570, %v4469
        %4593 = vst.msk [vmem:[#allocation2 + $0x7f] sm:$0xfe] %vm4566, %v4471
        %4594 = vst.msk [vmem:[#allocation2 + $0x87] sm:$0xff] %vm4568, %v4473
        %4595 = vst.msk [vmem:[#allocation2 + $0x8f] sm:$0x1] %vm4570, %v4475
        %4596 = vst.msk [vmem:[#allocation2 + $0x8f] sm:$0xfe] %vm4566, %v4477
        %4597 = vst.msk [vmem:[#allocation2 + $0x97] sm:$0xff] %vm4568, %v4479
        %4598 = vst.msk [vmem:[#allocation2 + $0x9f] sm:$0x1] %vm4570, %v4481
        %4599 = vst.msk [vmem:[#allocation2 + $0x9f] sm:$0xfe] %vm4566, %v4483
        %4600 = vst.msk [vmem:[#allocation2 + $0xa7] sm:$0xff] %vm4568, %v4485
        %4601 = vst.msk [vmem:[#allocation2 + $0xaf] sm:$0x1] %vm4570, %v4487
        %4602 = vst.msk [vmem:[#allocation2 + $0xaf] sm:$0xfe] %vm4566, %v4489
        %4603 = vst.msk [vmem:[#allocation2 + $0xb7] sm:$0xff] %vm4568, %v4491
        %4604 = vst.msk [vmem:[#allocation2 + $0xbf] sm:$0x1] %vm4570, %v4493
        %4605 = vst.msk [vmem:[#allocation2 + $0xbf] sm:$0xfe] %vm4566, %v4495
        %4606 = vst.msk [vmem:[#allocation2 + $0xc7] sm:$0xff] %vm4568, %v4497
        %4607 = vst.msk [vmem:[#allocation2 + $0xcf] sm:$0x1] %vm4570, %v4499
        %4608 = vst.msk [vmem:[#allocation2 + $0xcf] sm:$0xfe] %vm4566, %v4501
        %4609 = vst.msk [vmem:[#allocation2 + $0xd7] sm:$0xff] %vm4568, %v4503
        %4610 = vst.msk [vmem:[#allocation2 + $0xdf] sm:$0x1] %vm4570, %v4505
        %4611 = vst.msk [vmem:[#allocation2 + $0xdf] sm:$0xfe] %vm4566, %v4507
        %4612 = vst.msk [vmem:[#allocation2 + $0xe7] sm:$0xff] %vm4568, %v4509
        %4613 = vst.msk [vmem:[#allocation2 + $0xef] sm:$0x1] %vm4570, %v4511
        %4614 = vst.msk [vmem:[#allocation2 + $0xef] sm:$0xfe] %vm4566, %v4513
        %4615 = vst.msk [vmem:[#allocation2 + $0xf7] sm:$0xff] %vm4568, %v4515
        %4616 = vst.msk [vmem:[#allocation2 + $0xff] sm:$0x1] %vm4570, %v4517
        %4617 = vrot.lane.b32.xlu0 %v397, 66
        %v4618 = vpop.permute.xlu0 %4617
        %4619 = vrot.lane.b32.xlu0 %v398, 66
        %v4620 = vpop.permute.xlu0 %4619
        %4621 = vrot.lane.b32.xlu0 %v399, 66
        %v4622 = vpop.permute.xlu0 %4621
        %4623 = vrot.lane.b32.xlu0 %v400, 66
        %v4624 = vpop.permute.xlu0 %4623
        %4625 = vrot.lane.b32.xlu0 %v401, 66
        %v4626 = vpop.permute.xlu0 %4625
        %4627 = vrot.lane.b32.xlu0 %v402, 66
        %v4628 = vpop.permute.xlu0 %4627
        %4629 = vrot.lane.b32.xlu0 %v403, 66
        %v4630 = vpop.permute.xlu0 %4629
        %4631 = vrot.lane.b32.xlu0 %v404, 66
        %v4632 = vpop.permute.xlu0 %4631
        %4633 = vrot.lane.b32.xlu0 %v405, 66
        %v4634 = vpop.permute.xlu0 %4633
        %4635 = vrot.lane.b32.xlu0 %v406, 66
        %v4636 = vpop.permute.xlu0 %4635
        %4637 = vrot.lane.b32.xlu0 %v407, 66
        %v4638 = vpop.permute.xlu0 %4637
        %4639 = vrot.lane.b32.xlu0 %v408, 66
        %v4640 = vpop.permute.xlu0 %4639
        %4641 = vrot.lane.b32.xlu0 %v409, 66
        %v4642 = vpop.permute.xlu0 %4641
        %4643 = vrot.lane.b32.xlu0 %v410, 66
        %v4644 = vpop.permute.xlu0 %4643
        %4645 = vrot.lane.b32.xlu0 %v411, 66
        %v4646 = vpop.permute.xlu0 %4645
        %4647 = vrot.lane.b32.xlu0 %v412, 66
        %v4648 = vpop.permute.xlu0 %4647
        %4649 = vrot.lane.b32.xlu0 %v413, 66
        %v4650 = vpop.permute.xlu0 %4649
        %4651 = vrot.lane.b32.xlu0 %v414, 66
        %v4652 = vpop.permute.xlu0 %4651
        %4653 = vrot.lane.b32.xlu0 %v415, 66
        %v4654 = vpop.permute.xlu0 %4653
        %4655 = vrot.lane.b32.xlu0 %v416, 66
        %v4656 = vpop.permute.xlu0 %4655
        %4657 = vrot.lane.b32.xlu0 %v417, 66
        %v4658 = vpop.permute.xlu0 %4657
        %4659 = vrot.lane.b32.xlu0 %v418, 66
        %v4660 = vpop.permute.xlu0 %4659
        %4661 = vrot.lane.b32.xlu0 %v419, 66
        %v4662 = vpop.permute.xlu0 %4661
        %4663 = vrot.lane.b32.xlu0 %v420, 66
        %v4664 = vpop.permute.xlu0 %4663
        %4665 = vrot.lane.b32.xlu0 %v421, 66
        %v4666 = vpop.permute.xlu0 %4665
        %4667 = vrot.lane.b32.xlu0 %v422, 66
        %v4668 = vpop.permute.xlu0 %4667
        %4669 = vrot.lane.b32.xlu0 %v423, 66
        %v4670 = vpop.permute.xlu0 %4669
        %4671 = vrot.lane.b32.xlu0 %v424, 66
        %v4672 = vpop.permute.xlu0 %4671
        %4673 = vrot.lane.b32.xlu0 %v425, 66
        %v4674 = vpop.permute.xlu0 %4673
        %4675 = vrot.lane.b32.xlu0 %v426, 66
        %v4676 = vpop.permute.xlu0 %4675
        %4677 = vrot.lane.b32.xlu0 %v427, 66
        %v4678 = vpop.permute.xlu0 %4677
        %4679 = vrot.lane.b32.xlu0 %v428, 66
        %v4680 = vpop.permute.xlu0 %4679
        %4681 = vrot.lane.b32.xlu0 %v429, 66
        %v4682 = vpop.permute.xlu0 %4681
        %4683 = vrot.lane.b32.xlu0 %v430, 66
        %v4684 = vpop.permute.xlu0 %4683
        %4685 = vrot.lane.b32.xlu0 %v431, 66
        %v4686 = vpop.permute.xlu0 %4685
        %4687 = vrot.lane.b32.xlu0 %v432, 66
        %v4688 = vpop.permute.xlu0 %4687
        %4689 = vrot.lane.b32.xlu0 %v433, 66
        %v4690 = vpop.permute.xlu0 %4689
        %4691 = vrot.lane.b32.xlu0 %v434, 66
        %v4692 = vpop.permute.xlu0 %4691
        %4693 = vrot.lane.b32.xlu0 %v435, 66
        %v4694 = vpop.permute.xlu0 %4693
        %4695 = vrot.lane.b32.xlu0 %v436, 66
        %v4696 = vpop.permute.xlu0 %4695
        %4697 = vrot.lane.b32.xlu0 %v437, 66
        %v4698 = vpop.permute.xlu0 %4697
        %4699 = vrot.lane.b32.xlu0 %v438, 66
        %v4700 = vpop.permute.xlu0 %4699
        %4701 = vrot.lane.b32.xlu0 %v439, 66
        %v4702 = vpop.permute.xlu0 %4701
        %4703 = vrot.lane.b32.xlu0 %v440, 66
        %v4704 = vpop.permute.xlu0 %4703
        %4705 = vrot.lane.b32.xlu0 %v441, 66
        %v4706 = vpop.permute.xlu0 %4705
        %4707 = vrot.lane.b32.xlu0 %v442, 66
        %v4708 = vpop.permute.xlu0 %4707
        %4709 = vrot.lane.b32.xlu0 %v443, 66
        %v4710 = vpop.permute.xlu0 %4709
        %4711 = vrot.lane.b32.xlu0 %v444, 66
        %v4712 = vpop.permute.xlu0 %4711
        %vm4761 = vcmask 564754
        %4762 = vst.msk [vmem:[#allocation2 - $0x2] sm:$0xfc] %vm4761, %v4618
        %vm4763 = vcmask 564752
        %4764 = vst.msk [vmem:[#allocation2 + $0x6] sm:$0xff] %vm4763, %v4620
        %vm4765 = vcmask 558608
        %4766 = vst.msk [vmem:[#allocation2 + $0xe] sm:$0x3] %vm4765, %v4622
        %4767 = vst.msk [vmem:[#allocation2 + $0xe] sm:$0xfc] %vm4761, %v4624
        %4768 = vst.msk [vmem:[#allocation2 + $0x16] sm:$0xff] %vm4763, %v4626
        %4769 = vst.msk [vmem:[#allocation2 + $0x1e] sm:$0x3] %vm4765, %v4628
        %4770 = vst.msk [vmem:[#allocation2 + $0x1e] sm:$0xfc] %vm4761, %v4630
        %4771 = vst.msk [vmem:[#allocation2 + $0x26] sm:$0xff] %vm4763, %v4632
        %4772 = vst.msk [vmem:[#allocation2 + $0x2e] sm:$0x3] %vm4765, %v4634
        %4773 = vst.msk [vmem:[#allocation2 + $0x2e] sm:$0xfc] %vm4761, %v4636
        %4774 = vst.msk [vmem:[#allocation2 + $0x36] sm:$0xff] %vm4763, %v4638
        %4775 = vst.msk [vmem:[#allocation2 + $0x3e] sm:$0x3] %vm4765, %v4640
        %4776 = vst.msk [vmem:[#allocation2 + $0x3e] sm:$0xfc] %vm4761, %v4642
        %4777 = vst.msk [vmem:[#allocation2 + $0x46] sm:$0xff] %vm4763, %v4644
        %4778 = vst.msk [vmem:[#allocation2 + $0x4e] sm:$0x3] %vm4765, %v4646
        %4779 = vst.msk [vmem:[#allocation2 + $0x4e] sm:$0xfc] %vm4761, %v4648
        %4780 = vst.msk [vmem:[#allocation2 + $0x56] sm:$0xff] %vm4763, %v4650
        %4781 = vst.msk [vmem:[#allocation2 + $0x5e] sm:$0x3] %vm4765, %v4652
        %4782 = vst.msk [vmem:[#allocation2 + $0x5e] sm:$0xfc] %vm4761, %v4654
        %4783 = vst.msk [vmem:[#allocation2 + $0x66] sm:$0xff] %vm4763, %v4656
        %4784 = vst.msk [vmem:[#allocation2 + $0x6e] sm:$0x3] %vm4765, %v4658
        %4785 = vst.msk [vmem:[#allocation2 + $0x6e] sm:$0xfc] %vm4761, %v4660
        %4786 = vst.msk [vmem:[#allocation2 + $0x76] sm:$0xff] %vm4763, %v4662
        %4787 = vst.msk [vmem:[#allocation2 + $0x7e] sm:$0x3] %vm4765, %v4664
        %4788 = vst.msk [vmem:[#allocation2 + $0x7e] sm:$0xfc] %vm4761, %v4666
        %4789 = vst.msk [vmem:[#allocation2 + $0x86] sm:$0xff] %vm4763, %v4668
        %4790 = vst.msk [vmem:[#allocation2 + $0x8e] sm:$0x3] %vm4765, %v4670
        %4791 = vst.msk [vmem:[#allocation2 + $0x8e] sm:$0xfc] %vm4761, %v4672
        %4792 = vst.msk [vmem:[#allocation2 + $0x96] sm:$0xff] %vm4763, %v4674
        %4793 = vst.msk [vmem:[#allocation2 + $0x9e] sm:$0x3] %vm4765, %v4676
        %4794 = vst.msk [vmem:[#allocation2 + $0x9e] sm:$0xfc] %vm4761, %v4678
        %4795 = vst.msk [vmem:[#allocation2 + $0xa6] sm:$0xff] %vm4763, %v4680
        %4796 = vst.msk [vmem:[#allocation2 + $0xae] sm:$0x3] %vm4765, %v4682
        %4797 = vst.msk [vmem:[#allocation2 + $0xae] sm:$0xfc] %vm4761, %v4684
        %4798 = vst.msk [vmem:[#allocation2 + $0xb6] sm:$0xff] %vm4763, %v4686
        %4799 = vst.msk [vmem:[#allocation2 + $0xbe] sm:$0x3] %vm4765, %v4688
        %4800 = vst.msk [vmem:[#allocation2 + $0xbe] sm:$0xfc] %vm4761, %v4690
        %4801 = vst.msk [vmem:[#allocation2 + $0xc6] sm:$0xff] %vm4763, %v4692
        %4802 = vst.msk [vmem:[#allocation2 + $0xce] sm:$0x3] %vm4765, %v4694
        %4803 = vst.msk [vmem:[#allocation2 + $0xce] sm:$0xfc] %vm4761, %v4696
        %4804 = vst.msk [vmem:[#allocation2 + $0xd6] sm:$0xff] %vm4763, %v4698
        %4805 = vst.msk [vmem:[#allocation2 + $0xde] sm:$0x3] %vm4765, %v4700
        %4806 = vst.msk [vmem:[#allocation2 + $0xde] sm:$0xfc] %vm4761, %v4702
        %4807 = vst.msk [vmem:[#allocation2 + $0xe6] sm:$0xff] %vm4763, %v4704
        %4808 = vst.msk [vmem:[#allocation2 + $0xee] sm:$0x3] %vm4765, %v4706
        %4809 = vst.msk [vmem:[#allocation2 + $0xee] sm:$0xfc] %vm4761, %v4708
        %4810 = vst.msk [vmem:[#allocation2 + $0xf6] sm:$0xff] %vm4763, %v4710
        %4811 = vst.msk [vmem:[#allocation2 + $0xfe] sm:$0x3] %vm4765, %v4712
        %4812 = vrot.lane.b32.xlu0 %v397, 69
        %v4813 = vpop.permute.xlu0 %4812
        %4814 = vrot.lane.b32.xlu0 %v398, 69
        %v4815 = vpop.permute.xlu0 %4814
        %4816 = vrot.lane.b32.xlu0 %v399, 69
        %v4817 = vpop.permute.xlu0 %4816
        %4818 = vrot.lane.b32.xlu0 %v400, 69
        %v4819 = vpop.permute.xlu0 %4818
        %4820 = vrot.lane.b32.xlu0 %v401, 69
        %v4821 = vpop.permute.xlu0 %4820
        %4822 = vrot.lane.b32.xlu0 %v402, 69
        %v4823 = vpop.permute.xlu0 %4822
        %4824 = vrot.lane.b32.xlu0 %v403, 69
        %v4825 = vpop.permute.xlu0 %4824
        %4826 = vrot.lane.b32.xlu0 %v404, 69
        %v4827 = vpop.permute.xlu0 %4826
        %4828 = vrot.lane.b32.xlu0 %v405, 69
        %v4829 = vpop.permute.xlu0 %4828
        %4830 = vrot.lane.b32.xlu0 %v406, 69
        %v4831 = vpop.permute.xlu0 %4830
        %4832 = vrot.lane.b32.xlu0 %v407, 69
        %v4833 = vpop.permute.xlu0 %4832
        %4834 = vrot.lane.b32.xlu0 %v408, 69
        %v4835 = vpop.permute.xlu0 %4834
        %4836 = vrot.lane.b32.xlu0 %v409, 69
        %v4837 = vpop.permute.xlu0 %4836
        %4838 = vrot.lane.b32.xlu0 %v410, 69
        %v4839 = vpop.permute.xlu0 %4838
        %4840 = vrot.lane.b32.xlu0 %v411, 69
        %v4841 = vpop.permute.xlu0 %4840
        %4842 = vrot.lane.b32.xlu0 %v412, 69
        %v4843 = vpop.permute.xlu0 %4842
        %4844 = vrot.lane.b32.xlu0 %v413, 69
        %v4845 = vpop.permute.xlu0 %4844
        %4846 = vrot.lane.b32.xlu0 %v414, 69
        %v4847 = vpop.permute.xlu0 %4846
        %4848 = vrot.lane.b32.xlu0 %v415, 69
        %v4849 = vpop.permute.xlu0 %4848
        %4850 = vrot.lane.b32.xlu0 %v416, 69
        %v4851 = vpop.permute.xlu0 %4850
        %4852 = vrot.lane.b32.xlu0 %v417, 69
        %v4853 = vpop.permute.xlu0 %4852
        %4854 = vrot.lane.b32.xlu0 %v418, 69
        %v4855 = vpop.permute.xlu0 %4854
        %4856 = vrot.lane.b32.xlu0 %v419, 69
        %v4857 = vpop.permute.xlu0 %4856
        %4858 = vrot.lane.b32.xlu0 %v420, 69
        %v4859 = vpop.permute.xlu0 %4858
        %4860 = vrot.lane.b32.xlu0 %v421, 69
        %v4861 = vpop.permute.xlu0 %4860
        %4862 = vrot.lane.b32.xlu0 %v422, 69
        %v4863 = vpop.permute.xlu0 %4862
        %4864 = vrot.lane.b32.xlu0 %v423, 69
        %v4865 = vpop.permute.xlu0 %4864
        %4866 = vrot.lane.b32.xlu0 %v424, 69
        %v4867 = vpop.permute.xlu0 %4866
        %4868 = vrot.lane.b32.xlu0 %v425, 69
        %v4869 = vpop.permute.xlu0 %4868
        %4870 = vrot.lane.b32.xlu0 %v426, 69
        %v4871 = vpop.permute.xlu0 %4870
        %4872 = vrot.lane.b32.xlu0 %v427, 69
        %v4873 = vpop.permute.xlu0 %4872
        %4874 = vrot.lane.b32.xlu0 %v428, 69
        %v4875 = vpop.permute.xlu0 %4874
        %4876 = vrot.lane.b32.xlu0 %v429, 69
        %v4877 = vpop.permute.xlu0 %4876
        %4878 = vrot.lane.b32.xlu0 %v430, 69
        %v4879 = vpop.permute.xlu0 %4878
        %4880 = vrot.lane.b32.xlu0 %v431, 69
        %v4881 = vpop.permute.xlu0 %4880
        %4882 = vrot.lane.b32.xlu0 %v432, 69
        %v4883 = vpop.permute.xlu0 %4882
        %4884 = vrot.lane.b32.xlu0 %v433, 69
        %v4885 = vpop.permute.xlu0 %4884
        %4886 = vrot.lane.b32.xlu0 %v434, 69
        %v4887 = vpop.permute.xlu0 %4886
        %4888 = vrot.lane.b32.xlu0 %v435, 69
        %v4889 = vpop.permute.xlu0 %4888
        %4890 = vrot.lane.b32.xlu0 %v436, 69
        %v4891 = vpop.permute.xlu0 %4890
        %4892 = vrot.lane.b32.xlu0 %v437, 69
        %v4893 = vpop.permute.xlu0 %4892
        %4894 = vrot.lane.b32.xlu0 %v438, 69
        %v4895 = vpop.permute.xlu0 %4894
        %4896 = vrot.lane.b32.xlu0 %v439, 69
        %v4897 = vpop.permute.xlu0 %4896
        %4898 = vrot.lane.b32.xlu0 %v440, 69
        %v4899 = vpop.permute.xlu0 %4898
        %4900 = vrot.lane.b32.xlu0 %v441, 69
        %v4901 = vpop.permute.xlu0 %4900
        %4902 = vrot.lane.b32.xlu0 %v442, 69
        %v4903 = vpop.permute.xlu0 %4902
        %4904 = vrot.lane.b32.xlu0 %v443, 69
        %v4905 = vpop.permute.xlu0 %4904
        %4906 = vrot.lane.b32.xlu0 %v444, 69
        %v4907 = vpop.permute.xlu0 %4906
        %vm4956 = vcmask 589355
        %4957 = vst.msk [vmem:[#allocation2 - $0x3] sm:$0xf8] %vm4956, %v4813
        %vm4958 = vcmask 589352
        %4959 = vst.msk [vmem:[#allocation2 + $0x5] sm:$0xff] %vm4958, %v4815
        %vm4960 = vcmask 584232
        %4961 = vst.msk [vmem:[#allocation2 + $0xd] sm:$0x7] %vm4960, %v4817
        %4962 = vst.msk [vmem:[#allocation2 + $0xd] sm:$0xf8] %vm4956, %v4819
        %4963 = vst.msk [vmem:[#allocation2 + $0x15] sm:$0xff] %vm4958, %v4821
        %4964 = vst.msk [vmem:[#allocation2 + $0x1d] sm:$0x7] %vm4960, %v4823
        %4965 = vst.msk [vmem:[#allocation2 + $0x1d] sm:$0xf8] %vm4956, %v4825
        %4966 = vst.msk [vmem:[#allocation2 + $0x25] sm:$0xff] %vm4958, %v4827
        %4967 = vst.msk [vmem:[#allocation2 + $0x2d] sm:$0x7] %vm4960, %v4829
        %4968 = vst.msk [vmem:[#allocation2 + $0x2d] sm:$0xf8] %vm4956, %v4831
        %4969 = vst.msk [vmem:[#allocation2 + $0x35] sm:$0xff] %vm4958, %v4833
        %4970 = vst.msk [vmem:[#allocation2 + $0x3d] sm:$0x7] %vm4960, %v4835
        %4971 = vst.msk [vmem:[#allocation2 + $0x3d] sm:$0xf8] %vm4956, %v4837
        %4972 = vst.msk [vmem:[#allocation2 + $0x45] sm:$0xff] %vm4958, %v4839
        %4973 = vst.msk [vmem:[#allocation2 + $0x4d] sm:$0x7] %vm4960, %v4841
        %4974 = vst.msk [vmem:[#allocation2 + $0x4d] sm:$0xf8] %vm4956, %v4843
        %4975 = vst.msk [vmem:[#allocation2 + $0x55] sm:$0xff] %vm4958, %v4845
        %4976 = vst.msk [vmem:[#allocation2 + $0x5d] sm:$0x7] %vm4960, %v4847
        %4977 = vst.msk [vmem:[#allocation2 + $0x5d] sm:$0xf8] %vm4956, %v4849
        %4978 = vst.msk [vmem:[#allocation2 + $0x65] sm:$0xff] %vm4958, %v4851
        %4979 = vst.msk [vmem:[#allocation2 + $0x6d] sm:$0x7] %vm4960, %v4853
        %4980 = vst.msk [vmem:[#allocation2 + $0x6d] sm:$0xf8] %vm4956, %v4855
        %4981 = vst.msk [vmem:[#allocation2 + $0x75] sm:$0xff] %vm4958, %v4857
        %4982 = vst.msk [vmem:[#allocation2 + $0x7d] sm:$0x7] %vm4960, %v4859
        %4983 = vst.msk [vmem:[#allocation2 + $0x7d] sm:$0xf8] %vm4956, %v4861
        %4984 = vst.msk [vmem:[#allocation2 + $0x85] sm:$0xff] %vm4958, %v4863
        %4985 = vst.msk [vmem:[#allocation2 + $0x8d] sm:$0x7] %vm4960, %v4865
        %4986 = vst.msk [vmem:[#allocation2 + $0x8d] sm:$0xf8] %vm4956, %v4867
        %4987 = vst.msk [vmem:[#allocation2 + $0x95] sm:$0xff] %vm4958, %v4869
        %4988 = vst.msk [vmem:[#allocation2 + $0x9d] sm:$0x7] %vm4960, %v4871
        %4989 = vst.msk [vmem:[#allocation2 + $0x9d] sm:$0xf8] %vm4956, %v4873
        %4990 = vst.msk [vmem:[#allocation2 + $0xa5] sm:$0xff] %vm4958, %v4875
        %4991 = vst.msk [vmem:[#allocation2 + $0xad] sm:$0x7] %vm4960, %v4877
        %4992 = vst.msk [vmem:[#allocation2 + $0xad] sm:$0xf8] %vm4956, %v4879
        %4993 = vst.msk [vmem:[#allocation2 + $0xb5] sm:$0xff] %vm4958, %v4881
        %4994 = vst.msk [vmem:[#allocation2 + $0xbd] sm:$0x7] %vm4960, %v4883
        %4995 = vst.msk [vmem:[#allocation2 + $0xbd] sm:$0xf8] %vm4956, %v4885
        %4996 = vst.msk [vmem:[#allocation2 + $0xc5] sm:$0xff] %vm4958, %v4887
        %4997 = vst.msk [vmem:[#allocation2 + $0xcd] sm:$0x7] %vm4960, %v4889
        %4998 = vst.msk [vmem:[#allocation2 + $0xcd] sm:$0xf8] %vm4956, %v4891
        %4999 = vst.msk [vmem:[#allocation2 + $0xd5] sm:$0xff] %vm4958, %v4893
        %5000 = vst.msk [vmem:[#allocation2 + $0xdd] sm:$0x7] %vm4960, %v4895
        %5001 = vst.msk [vmem:[#allocation2 + $0xdd] sm:$0xf8] %vm4956, %v4897
        %5002 = vst.msk [vmem:[#allocation2 + $0xe5] sm:$0xff] %vm4958, %v4899
        %5003 = vst.msk [vmem:[#allocation2 + $0xed] sm:$0x7] %vm4960, %v4901
        %5004 = vst.msk [vmem:[#allocation2 + $0xed] sm:$0xf8] %vm4956, %v4903
        %5005 = vst.msk [vmem:[#allocation2 + $0xf5] sm:$0xff] %vm4958, %v4905
        %5006 = vst.msk [vmem:[#allocation2 + $0xfd] sm:$0x7] %vm4960, %v4907
        %5007 = vrot.lane.b32.xlu0 %v397, 72
        %v5008 = vpop.permute.xlu0 %5007
        %5009 = vrot.lane.b32.xlu0 %v398, 72
        %v5010 = vpop.permute.xlu0 %5009
        %5011 = vrot.lane.b32.xlu0 %v399, 72
        %v5012 = vpop.permute.xlu0 %5011
        %5013 = vrot.lane.b32.xlu0 %v400, 72
        %v5014 = vpop.permute.xlu0 %5013
        %5015 = vrot.lane.b32.xlu0 %v401, 72
        %v5016 = vpop.permute.xlu0 %5015
        %5017 = vrot.lane.b32.xlu0 %v402, 72
        %v5018 = vpop.permute.xlu0 %5017
        %5019 = vrot.lane.b32.xlu0 %v403, 72
        %v5020 = vpop.permute.xlu0 %5019
        %5021 = vrot.lane.b32.xlu0 %v404, 72
        %v5022 = vpop.permute.xlu0 %5021
        %5023 = vrot.lane.b32.xlu0 %v405, 72
        %v5024 = vpop.permute.xlu0 %5023
        %5025 = vrot.lane.b32.xlu0 %v406, 72
        %v5026 = vpop.permute.xlu0 %5025
        %5027 = vrot.lane.b32.xlu0 %v407, 72
        %v5028 = vpop.permute.xlu0 %5027
        %5029 = vrot.lane.b32.xlu0 %v408, 72
        %v5030 = vpop.permute.xlu0 %5029
        %5031 = vrot.lane.b32.xlu0 %v409, 72
        %v5032 = vpop.permute.xlu0 %5031
        %5033 = vrot.lane.b32.xlu0 %v410, 72
        %v5034 = vpop.permute.xlu0 %5033
        %5035 = vrot.lane.b32.xlu0 %v411, 72
        %v5036 = vpop.permute.xlu0 %5035
        %5037 = vrot.lane.b32.xlu0 %v412, 72
        %v5038 = vpop.permute.xlu0 %5037
        %5039 = vrot.lane.b32.xlu0 %v413, 72
        %v5040 = vpop.permute.xlu0 %5039
        %5041 = vrot.lane.b32.xlu0 %v414, 72
        %v5042 = vpop.permute.xlu0 %5041
        %5043 = vrot.lane.b32.xlu0 %v415, 72
        %v5044 = vpop.permute.xlu0 %5043
        %5045 = vrot.lane.b32.xlu0 %v416, 72
        %v5046 = vpop.permute.xlu0 %5045
        %5047 = vrot.lane.b32.xlu0 %v417, 72
        %v5048 = vpop.permute.xlu0 %5047
        %5049 = vrot.lane.b32.xlu0 %v418, 72
        %v5050 = vpop.permute.xlu0 %5049
        %5051 = vrot.lane.b32.xlu0 %v419, 72
        %v5052 = vpop.permute.xlu0 %5051
        %5053 = vrot.lane.b32.xlu0 %v420, 72
        %v5054 = vpop.permute.xlu0 %5053
        %5055 = vrot.lane.b32.xlu0 %v421, 72
        %v5056 = vpop.permute.xlu0 %5055
        %5057 = vrot.lane.b32.xlu0 %v422, 72
        %v5058 = vpop.permute.xlu0 %5057
        %5059 = vrot.lane.b32.xlu0 %v423, 72
        %v5060 = vpop.permute.xlu0 %5059
        %5061 = vrot.lane.b32.xlu0 %v424, 72
        %v5062 = vpop.permute.xlu0 %5061
        %5063 = vrot.lane.b32.xlu0 %v425, 72
        %v5064 = vpop.permute.xlu0 %5063
        %5065 = vrot.lane.b32.xlu0 %v426, 72
        %v5066 = vpop.permute.xlu0 %5065
        %5067 = vrot.lane.b32.xlu0 %v427, 72
        %v5068 = vpop.permute.xlu0 %5067
        %5069 = vrot.lane.b32.xlu0 %v428, 72
        %v5070 = vpop.permute.xlu0 %5069
        %5071 = vrot.lane.b32.xlu0 %v429, 72
        %v5072 = vpop.permute.xlu0 %5071
        %5073 = vrot.lane.b32.xlu0 %v430, 72
        %v5074 = vpop.permute.xlu0 %5073
        %5075 = vrot.lane.b32.xlu0 %v431, 72
        %v5076 = vpop.permute.xlu0 %5075
        %5077 = vrot.lane.b32.xlu0 %v432, 72
        %v5078 = vpop.permute.xlu0 %5077
        %5079 = vrot.lane.b32.xlu0 %v433, 72
        %v5080 = vpop.permute.xlu0 %5079
        %5081 = vrot.lane.b32.xlu0 %v434, 72
        %v5082 = vpop.permute.xlu0 %5081
        %5083 = vrot.lane.b32.xlu0 %v435, 72
        %v5084 = vpop.permute.xlu0 %5083
        %5085 = vrot.lane.b32.xlu0 %v436, 72
        %v5086 = vpop.permute.xlu0 %5085
        %5087 = vrot.lane.b32.xlu0 %v437, 72
        %v5088 = vpop.permute.xlu0 %5087
        %5089 = vrot.lane.b32.xlu0 %v438, 72
        %v5090 = vpop.permute.xlu0 %5089
        %5091 = vrot.lane.b32.xlu0 %v439, 72
        %v5092 = vpop.permute.xlu0 %5091
        %5093 = vrot.lane.b32.xlu0 %v440, 72
        %v5094 = vpop.permute.xlu0 %5093
        %5095 = vrot.lane.b32.xlu0 %v441, 72
        %v5096 = vpop.permute.xlu0 %5095
        %5097 = vrot.lane.b32.xlu0 %v442, 72
        %v5098 = vpop.permute.xlu0 %5097
        %5099 = vrot.lane.b32.xlu0 %v443, 72
        %v5100 = vpop.permute.xlu0 %5099
        %5101 = vrot.lane.b32.xlu0 %v444, 72
        %v5102 = vpop.permute.xlu0 %5101
        %vm5151 = vcmask 613956
        %5152 = vst.msk [vmem:[#allocation2 - $0x4] sm:$0xf0] %vm5151, %v5008
        %vm5153 = vcmask 613952
        %5154 = vst.msk [vmem:[#allocation2 + $0x4] sm:$0xff] %vm5153, %v5010
        %vm5155 = vcmask 609856
        %5156 = vst.msk [vmem:[#allocation2 + $0xc] sm:$0xf] %vm5155, %v5012
        %5157 = vst.msk [vmem:[#allocation2 + $0xc] sm:$0xf0] %vm5151, %v5014
        %5158 = vst.msk [vmem:[#allocation2 + $0x14] sm:$0xff] %vm5153, %v5016
        %5159 = vst.msk [vmem:[#allocation2 + $0x1c] sm:$0xf] %vm5155, %v5018
        %5160 = vst.msk [vmem:[#allocation2 + $0x1c] sm:$0xf0] %vm5151, %v5020
        %5161 = vst.msk [vmem:[#allocation2 + $0x24] sm:$0xff] %vm5153, %v5022
        %5162 = vst.msk [vmem:[#allocation2 + $0x2c] sm:$0xf] %vm5155, %v5024
        %5163 = vst.msk [vmem:[#allocation2 + $0x2c] sm:$0xf0] %vm5151, %v5026
        %5164 = vst.msk [vmem:[#allocation2 + $0x34] sm:$0xff] %vm5153, %v5028
        %5165 = vst.msk [vmem:[#allocation2 + $0x3c] sm:$0xf] %vm5155, %v5030
        %5166 = vst.msk [vmem:[#allocation2 + $0x3c] sm:$0xf0] %vm5151, %v5032
        %5167 = vst.msk [vmem:[#allocation2 + $0x44] sm:$0xff] %vm5153, %v5034
        %5168 = vst.msk [vmem:[#allocation2 + $0x4c] sm:$0xf] %vm5155, %v5036
        %5169 = vst.msk [vmem:[#allocation2 + $0x4c] sm:$0xf0] %vm5151, %v5038
        %5170 = vst.msk [vmem:[#allocation2 + $0x54] sm:$0xff] %vm5153, %v5040
        %5171 = vst.msk [vmem:[#allocation2 + $0x5c] sm:$0xf] %vm5155, %v5042
        %5172 = vst.msk [vmem:[#allocation2 + $0x5c] sm:$0xf0] %vm5151, %v5044
        %5173 = vst.msk [vmem:[#allocation2 + $0x64] sm:$0xff] %vm5153, %v5046
        %5174 = vst.msk [vmem:[#allocation2 + $0x6c] sm:$0xf] %vm5155, %v5048
        %5175 = vst.msk [vmem:[#allocation2 + $0x6c] sm:$0xf0] %vm5151, %v5050
        %5176 = vst.msk [vmem:[#allocation2 + $0x74] sm:$0xff] %vm5153, %v5052
        %5177 = vst.msk [vmem:[#allocation2 + $0x7c] sm:$0xf] %vm5155, %v5054
        %5178 = vst.msk [vmem:[#allocation2 + $0x7c] sm:$0xf0] %vm5151, %v5056
        %5179 = vst.msk [vmem:[#allocation2 + $0x84] sm:$0xff] %vm5153, %v5058
        %5180 = vst.msk [vmem:[#allocation2 + $0x8c] sm:$0xf] %vm5155, %v5060
        %5181 = vst.msk [vmem:[#allocation2 + $0x8c] sm:$0xf0] %vm5151, %v5062
        %5182 = vst.msk [vmem:[#allocation2 + $0x94] sm:$0xff] %vm5153, %v5064
        %5183 = vst.msk [vmem:[#allocation2 + $0x9c] sm:$0xf] %vm5155, %v5066
        %5184 = vst.msk [vmem:[#allocation2 + $0x9c] sm:$0xf0] %vm5151, %v5068
        %5185 = vst.msk [vmem:[#allocation2 + $0xa4] sm:$0xff] %vm5153, %v5070
        %5186 = vst.msk [vmem:[#allocation2 + $0xac] sm:$0xf] %vm5155, %v5072
        %5187 = vst.msk [vmem:[#allocation2 + $0xac] sm:$0xf0] %vm5151, %v5074
        %5188 = vst.msk [vmem:[#allocation2 + $0xb4] sm:$0xff] %vm5153, %v5076
        %5189 = vst.msk [vmem:[#allocation2 + $0xbc] sm:$0xf] %vm5155, %v5078
        %5190 = vst.msk [vmem:[#allocation2 + $0xbc] sm:$0xf0] %vm5151, %v5080
        %5191 = vst.msk [vmem:[#allocation2 + $0xc4] sm:$0xff] %vm5153, %v5082
        %5192 = vst.msk [vmem:[#allocation2 + $0xcc] sm:$0xf] %vm5155, %v5084
        %5193 = vst.msk [vmem:[#allocation2 + $0xcc] sm:$0xf0] %vm5151, %v5086
        %5194 = vst.msk [vmem:[#allocation2 + $0xd4] sm:$0xff] %vm5153, %v5088
        %5195 = vst.msk [vmem:[#allocation2 + $0xdc] sm:$0xf] %vm5155, %v5090
        %5196 = vst.msk [vmem:[#allocation2 + $0xdc] sm:$0xf0] %vm5151, %v5092
        %5197 = vst.msk [vmem:[#allocation2 + $0xe4] sm:$0xff] %vm5153, %v5094
        %5198 = vst.msk [vmem:[#allocation2 + $0xec] sm:$0xf] %vm5155, %v5096
        %5199 = vst.msk [vmem:[#allocation2 + $0xec] sm:$0xf0] %vm5151, %v5098
        %5200 = vst.msk [vmem:[#allocation2 + $0xf4] sm:$0xff] %vm5153, %v5100
        %5201 = vst.msk [vmem:[#allocation2 + $0xfc] sm:$0xf] %vm5155, %v5102
        %v5202 = vld [vmem:[#allocation2] sm:$0xff]
        %v5203 = vld [vmem:[#allocation2 + $0x8] sm:$0xff]
        %v5204 = vpack.c.bf16 %v5203, %v5202
        %v5206 = vperm.slane %v643, 0
        %v5218 = vunpack.c.l.b16 %v445
        %v5219 = vunpack.c.l.b16 %v446
        %v5220 = vunpack.c.l.b16 %v447
        %v5221 = vunpack.c.l.b16 %v448
        %v5222 = vunpack.c.l.b16 %v449
        %v5223 = vunpack.c.l.b16 %v450
        %v5224 = vunpack.c.l.b16 %v451
        %v5225 = vunpack.c.l.b16 %v452
        %v5226 = vunpack.c.l.b16 %v453
        %v5227 = vunpack.c.l.b16 %v454
        %v5228 = vpack.c.b16 %v5219, %v5218
        %v5229 = vpack.c.b16 %v5221, %v5220
        %v5230 = vpack.c.b16 %v5223, %v5222
        %v5231 = vpack.c.b16 %v5225, %v5224
        %v5232 = vpack.c.b16 %v5227, %v5226
        %v5239 = vsel %vm660, %v5204, 0
        %5241 = vmatpush.bf16.msra.mxu0 0
        %5242 = vmatpush.bf16.msra.mxu0 0
        %5243 = vmatpush.bf16.msra.mxu0 0
        %5244 = vmatpush.bf16.msra.mxu0 %v5232
        %5245 = vmatpush.bf16.msra.mxu0 %v5231
        %5246 = vmatpush.bf16.msra.mxu0 %v5230
        %5247 = vmatpush.bf16.msra.mxu0 %v5229
        %5248 = vmatpush.bf16.msra.mxu0 %v5228
        %5249 = vmatmul.bf16.gmra.mxu0 %v5239
        %v5250 = vpop.f32.mrf.mxu0
        %v5251 = vadd.f32 %v5206, %v5250
        %v5252 = vpop.f32.mrf.mxu0
        %v5253 = vadd.f32 %v5206, %v5252
        %5254 = vdwg.mxu0
        %v5255 = vmax.f32 %v5251, 0.0
        %v5256 = vmax.f32 %v5253, 0.0
        %vm5257 = vcmask 261120
        %5258 = vst.msk [vmem:[#allocation3] sm:$0xff] %vm5257, %v5255
        %5259 = vst.msk [vmem:[#allocation3 + $0x8] sm:$0xff] %vm5257, %v5256
        %s5260 = scalar_lea.vmem [#allocation2], 16
        %v5261 = vld [vmem:[%s5260] sm:$0xff]
        %v5262 = vld [vmem:[%s5260 + $0x8] sm:$0xff]
        %v5263 = vpack.c.bf16 %v5262, %v5261
        %v5265 = vsel %vm660, %v5263, 0
        %5267 = vmatpush.bf16.msra.mxu0 0
        %5268 = vmatpush.bf16.msra.mxu0 0
        %5269 = vmatpush.bf16.msra.mxu0 0
        %5270 = vmatpush.bf16.msra.mxu0 %v5232
        %5271 = vmatpush.bf16.msra.mxu0 %v5231
        %5272 = vmatpush.bf16.msra.mxu0 %v5230
        %5273 = vmatpush.bf16.msra.mxu0 %v5229
        %5274 = vmatpush.bf16.msra.mxu0 %v5228
        %5275 = vmatmul.bf16.gmra.mxu0 %v5265
        %v5276 = vpop.f32.mrf.mxu0
        %v5277 = vadd.f32 %v5206, %v5276
        %v5278 = vpop.f32.mrf.mxu0
        %v5279 = vadd.f32 %v5206, %v5278
        %5280 = vdwg.mxu0
        %v5281 = vmax.f32 %v5277, 0.0
        %v5282 = vmax.f32 %v5279, 0.0
        %s5283 = scalar_lea.vmem [#allocation3], 16
        %5284 = vst.msk [vmem:[%s5283] sm:$0xff] %vm5257, %v5281
        %5285 = vst.msk [vmem:[%s5283 + $0x8] sm:$0xff] %vm5257, %v5282
        %s5286 = scalar_lea.vmem [#allocation2], 32
        %v5287 = vld [vmem:[%s5286] sm:$0xff]
        %v5288 = vld [vmem:[%s5286 + $0x8] sm:$0xff]
        %v5289 = vpack.c.bf16 %v5288, %v5287
        %v5291 = vsel %vm660, %v5289, 0
        %5293 = vmatpush.bf16.msra.mxu0 0
        %5294 = vmatpush.bf16.msra.mxu0 0
        %5295 = vmatpush.bf16.msra.mxu0 0
        %5296 = vmatpush.bf16.msra.mxu0 %v5232
        %5297 = vmatpush.bf16.msra.mxu0 %v5231
        %5298 = vmatpush.bf16.msra.mxu0 %v5230
        %5299 = vmatpush.bf16.msra.mxu0 %v5229
        %5300 = vmatpush.bf16.msra.mxu0 %v5228
        %5301 = vmatmul.bf16.gmra.mxu0 %v5291
        %v5302 = vpop.f32.mrf.mxu0
        %v5303 = vadd.f32 %v5206, %v5302
        %v5304 = vpop.f32.mrf.mxu0
        %v5305 = vadd.f32 %v5206, %v5304
        %5306 = vdwg.mxu0
        %v5307 = vmax.f32 %v5303, 0.0
        %v5308 = vmax.f32 %v5305, 0.0
        %s5309 = scalar_lea.vmem [#allocation3], 32
        %5310 = vst.msk [vmem:[%s5309] sm:$0xff] %vm5257, %v5307
        %5311 = vst.msk [vmem:[%s5309 + $0x8] sm:$0xff] %vm5257, %v5308
        %s5312 = scalar_lea.vmem [#allocation2], 48
        %v5313 = vld [vmem:[%s5312] sm:$0xff]
        %v5314 = vld [vmem:[%s5312 + $0x8] sm:$0xff]
        %v5315 = vpack.c.bf16 %v5314, %v5313
        %v5317 = vsel %vm660, %v5315, 0
        %5319 = vmatpush.bf16.msra.mxu0 0
        %5320 = vmatpush.bf16.msra.mxu0 0
        %5321 = vmatpush.bf16.msra.mxu0 0
        %5322 = vmatpush.bf16.msra.mxu0 %v5232
        %5323 = vmatpush.bf16.msra.mxu0 %v5231
        %5324 = vmatpush.bf16.msra.mxu0 %v5230
        %5325 = vmatpush.bf16.msra.mxu0 %v5229
        %5326 = vmatpush.bf16.msra.mxu0 %v5228
        %5327 = vmatmul.bf16.gmra.mxu0 %v5317
        %v5328 = vpop.f32.mrf.mxu0
        %v5329 = vadd.f32 %v5206, %v5328
        %v5330 = vpop.f32.mrf.mxu0
        %v5331 = vadd.f32 %v5206, %v5330
        %5332 = vdwg.mxu0
        %v5333 = vmax.f32 %v5329, 0.0
        %v5334 = vmax.f32 %v5331, 0.0
        %s5335 = scalar_lea.vmem [#allocation3], 48
        %5336 = vst.msk [vmem:[%s5335] sm:$0xff] %vm5257, %v5333
        %5337 = vst.msk [vmem:[%s5335 + $0x8] sm:$0xff] %vm5257, %v5334
        %s5338 = scalar_lea.vmem [#allocation2], 64
        %v5339 = vld [vmem:[%s5338] sm:$0xff]
        %v5340 = vld [vmem:[%s5338 + $0x8] sm:$0xff]
        %v5341 = vpack.c.bf16 %v5340, %v5339
        %v5343 = vsel %vm660, %v5341, 0
        %5345 = vmatpush.bf16.msra.mxu0 0
        %5346 = vmatpush.bf16.msra.mxu0 0
        %5347 = vmatpush.bf16.msra.mxu0 0
        %5348 = vmatpush.bf16.msra.mxu0 %v5232
        %5349 = vmatpush.bf16.msra.mxu0 %v5231
        %5350 = vmatpush.bf16.msra.mxu0 %v5230
        %5351 = vmatpush.bf16.msra.mxu0 %v5229
        %5352 = vmatpush.bf16.msra.mxu0 %v5228
        %5353 = vmatmul.bf16.gmra.mxu0 %v5343
        %v5354 = vpop.f32.mrf.mxu0
        %v5355 = vadd.f32 %v5206, %v5354
        %v5356 = vpop.f32.mrf.mxu0
        %v5357 = vadd.f32 %v5206, %v5356
        %5358 = vdwg.mxu0
        %v5359 = vmax.f32 %v5355, 0.0
        %v5360 = vmax.f32 %v5357, 0.0
        %s5361 = scalar_lea.vmem [#allocation3], 64
        %5362 = vst.msk [vmem:[%s5361] sm:$0xff] %vm5257, %v5359
        %5363 = vst.msk [vmem:[%s5361 + $0x8] sm:$0xff] %vm5257, %v5360
        %s5364 = scalar_lea.vmem [#allocation2], 80
        %v5365 = vld [vmem:[%s5364] sm:$0xff]
        %v5366 = vld [vmem:[%s5364 + $0x8] sm:$0xff]
        %v5367 = vpack.c.bf16 %v5366, %v5365
        %v5369 = vsel %vm660, %v5367, 0
        %5371 = vmatpush.bf16.msra.mxu0 0
        %5372 = vmatpush.bf16.msra.mxu0 0
        %5373 = vmatpush.bf16.msra.mxu0 0
        %5374 = vmatpush.bf16.msra.mxu0 %v5232
        %5375 = vmatpush.bf16.msra.mxu0 %v5231
        %5376 = vmatpush.bf16.msra.mxu0 %v5230
        %5377 = vmatpush.bf16.msra.mxu0 %v5229
        %5378 = vmatpush.bf16.msra.mxu0 %v5228
        %5379 = vmatmul.bf16.gmra.mxu0 %v5369
        %v5380 = vpop.f32.mrf.mxu0
        %v5381 = vadd.f32 %v5206, %v5380
        %v5382 = vpop.f32.mrf.mxu0
        %v5383 = vadd.f32 %v5206, %v5382
        %5384 = vdwg.mxu0
        %v5385 = vmax.f32 %v5381, 0.0
        %v5386 = vmax.f32 %v5383, 0.0
        %s5387 = scalar_lea.vmem [#allocation3], 80
        %5388 = vst.msk [vmem:[%s5387] sm:$0xff] %vm5257, %v5385
        %5389 = vst.msk [vmem:[%s5387 + $0x8] sm:$0xff] %vm5257, %v5386
        %s5390 = scalar_lea.vmem [#allocation2], 96
        %v5391 = vld [vmem:[%s5390] sm:$0xff]
        %v5392 = vld [vmem:[%s5390 + $0x8] sm:$0xff]
        %v5393 = vpack.c.bf16 %v5392, %v5391
        %v5395 = vsel %vm660, %v5393, 0
        %5397 = vmatpush.bf16.msra.mxu0 0
        %5398 = vmatpush.bf16.msra.mxu0 0
        %5399 = vmatpush.bf16.msra.mxu0 0
        %5400 = vmatpush.bf16.msra.mxu0 %v5232
        %5401 = vmatpush.bf16.msra.mxu0 %v5231
        %5402 = vmatpush.bf16.msra.mxu0 %v5230
        %5403 = vmatpush.bf16.msra.mxu0 %v5229
        %5404 = vmatpush.bf16.msra.mxu0 %v5228
        %5405 = vmatmul.bf16.gmra.mxu0 %v5395
        %v5406 = vpop.f32.mrf.mxu0
        %v5407 = vadd.f32 %v5206, %v5406
        %v5408 = vpop.f32.mrf.mxu0
        %v5409 = vadd.f32 %v5206, %v5408
        %5410 = vdwg.mxu0
        %v5411 = vmax.f32 %v5407, 0.0
        %v5412 = vmax.f32 %v5409, 0.0
        %s5413 = scalar_lea.vmem [#allocation3], 96
        %5414 = vst.msk [vmem:[%s5413] sm:$0xff] %vm5257, %v5411
        %5415 = vst.msk [vmem:[%s5413 + $0x8] sm:$0xff] %vm5257, %v5412
        %s5416 = scalar_lea.vmem [#allocation2], 112
        %v5417 = vld [vmem:[%s5416] sm:$0xff]
        %v5418 = vld [vmem:[%s5416 + $0x8] sm:$0xff]
        %v5419 = vpack.c.bf16 %v5418, %v5417
        %v5421 = vsel %vm660, %v5419, 0
        %5423 = vmatpush.bf16.msra.mxu0 0
        %5424 = vmatpush.bf16.msra.mxu0 0
        %5425 = vmatpush.bf16.msra.mxu0 0
        %5426 = vmatpush.bf16.msra.mxu0 %v5232
        %5427 = vmatpush.bf16.msra.mxu0 %v5231
        %5428 = vmatpush.bf16.msra.mxu0 %v5230
        %5429 = vmatpush.bf16.msra.mxu0 %v5229
        %5430 = vmatpush.bf16.msra.mxu0 %v5228
        %5431 = vmatmul.bf16.gmra.mxu0 %v5421
        %v5432 = vpop.f32.mrf.mxu0
        %v5433 = vadd.f32 %v5206, %v5432
        %v5434 = vpop.f32.mrf.mxu0
        %v5435 = vadd.f32 %v5206, %v5434
        %5436 = vdwg.mxu0
        %v5437 = vmax.f32 %v5433, 0.0
        %v5438 = vmax.f32 %v5435, 0.0
        %s5439 = scalar_lea.vmem [#allocation3], 112
        %5440 = vst.msk [vmem:[%s5439] sm:$0xff] %vm5257, %v5437
        %5441 = vst.msk [vmem:[%s5439 + $0x8] sm:$0xff] %vm5257, %v5438
        %s5442 = scalar_lea.vmem [#allocation2], 128
        %v5443 = vld [vmem:[%s5442] sm:$0xff]
        %v5444 = vld [vmem:[%s5442 + $0x8] sm:$0xff]
        %v5445 = vpack.c.bf16 %v5444, %v5443
        %v5447 = vsel %vm660, %v5445, 0
        %5449 = vmatpush.bf16.msra.mxu0 0
        %5450 = vmatpush.bf16.msra.mxu0 0
        %5451 = vmatpush.bf16.msra.mxu0 0
        %5452 = vmatpush.bf16.msra.mxu0 %v5232
        %5453 = vmatpush.bf16.msra.mxu0 %v5231
        %5454 = vmatpush.bf16.msra.mxu0 %v5230
        %5455 = vmatpush.bf16.msra.mxu0 %v5229
        %5456 = vmatpush.bf16.msra.mxu0 %v5228
        %5457 = vmatmul.bf16.gmra.mxu0 %v5447
        %v5458 = vpop.f32.mrf.mxu0
        %v5459 = vadd.f32 %v5206, %v5458
        %v5460 = vpop.f32.mrf.mxu0
        %v5461 = vadd.f32 %v5206, %v5460
        %5462 = vdwg.mxu0
        %v5463 = vmax.f32 %v5459, 0.0
        %v5464 = vmax.f32 %v5461, 0.0
        %s5465 = scalar_lea.vmem [#allocation3], 128
        %5466 = vst.msk [vmem:[%s5465] sm:$0xff] %vm5257, %v5463
        %5467 = vst.msk [vmem:[%s5465 + $0x8] sm:$0xff] %vm5257, %v5464
        %s5468 = scalar_lea.vmem [#allocation2], 144
        %v5469 = vld [vmem:[%s5468] sm:$0xff]
        %v5470 = vld [vmem:[%s5468 + $0x8] sm:$0xff]
        %v5471 = vpack.c.bf16 %v5470, %v5469
        %v5473 = vsel %vm660, %v5471, 0
        %5475 = vmatpush.bf16.msra.mxu0 0
        %5476 = vmatpush.bf16.msra.mxu0 0
        %5477 = vmatpush.bf16.msra.mxu0 0
        %5478 = vmatpush.bf16.msra.mxu0 %v5232
        %5479 = vmatpush.bf16.msra.mxu0 %v5231
        %5480 = vmatpush.bf16.msra.mxu0 %v5230
        %5481 = vmatpush.bf16.msra.mxu0 %v5229
        %5482 = vmatpush.bf16.msra.mxu0 %v5228
        %5483 = vmatmul.bf16.gmra.mxu0 %v5473
        %v5484 = vpop.f32.mrf.mxu0
        %v5485 = vadd.f32 %v5206, %v5484
        %v5486 = vpop.f32.mrf.mxu0
        %v5487 = vadd.f32 %v5206, %v5486
        %5488 = vdwg.mxu0
        %v5489 = vmax.f32 %v5485, 0.0
        %v5490 = vmax.f32 %v5487, 0.0
        %s5491 = scalar_lea.vmem [#allocation3], 144
        %5492 = vst.msk [vmem:[%s5491] sm:$0xff] %vm5257, %v5489
        %5493 = vst.msk [vmem:[%s5491 + $0x8] sm:$0xff] %vm5257, %v5490
        %s5494 = scalar_lea.vmem [#allocation2], 160
        %v5495 = vld [vmem:[%s5494] sm:$0xff]
        %v5496 = vld [vmem:[%s5494 + $0x8] sm:$0xff]
        %v5497 = vpack.c.bf16 %v5496, %v5495
        %v5499 = vsel %vm660, %v5497, 0
        %5501 = vmatpush.bf16.msra.mxu0 0
        %5502 = vmatpush.bf16.msra.mxu0 0
        %5503 = vmatpush.bf16.msra.mxu0 0
        %5504 = vmatpush.bf16.msra.mxu0 %v5232
        %5505 = vmatpush.bf16.msra.mxu0 %v5231
        %5506 = vmatpush.bf16.msra.mxu0 %v5230
        %5507 = vmatpush.bf16.msra.mxu0 %v5229
        %5508 = vmatpush.bf16.msra.mxu0 %v5228
        %5509 = vmatmul.bf16.gmra.mxu0 %v5499
        %v5510 = vpop.f32.mrf.mxu0
        %v5511 = vadd.f32 %v5206, %v5510
        %v5512 = vpop.f32.mrf.mxu0
        %v5513 = vadd.f32 %v5206, %v5512
        %5514 = vdwg.mxu0
        %v5515 = vmax.f32 %v5511, 0.0
        %v5516 = vmax.f32 %v5513, 0.0
        %s5517 = scalar_lea.vmem [#allocation3], 160
        %5518 = vst.msk [vmem:[%s5517] sm:$0xff] %vm5257, %v5515
        %5519 = vst.msk [vmem:[%s5517 + $0x8] sm:$0xff] %vm5257, %v5516
        %s5520 = scalar_lea.vmem [#allocation2], 176
        %v5521 = vld [vmem:[%s5520] sm:$0xff]
        %v5522 = vld [vmem:[%s5520 + $0x8] sm:$0xff]
        %v5523 = vpack.c.bf16 %v5522, %v5521
        %v5525 = vsel %vm660, %v5523, 0
        %5527 = vmatpush.bf16.msra.mxu0 0
        %5528 = vmatpush.bf16.msra.mxu0 0
        %5529 = vmatpush.bf16.msra.mxu0 0
        %5530 = vmatpush.bf16.msra.mxu0 %v5232
        %5531 = vmatpush.bf16.msra.mxu0 %v5231
        %5532 = vmatpush.bf16.msra.mxu0 %v5230
        %5533 = vmatpush.bf16.msra.mxu0 %v5229
        %5534 = vmatpush.bf16.msra.mxu0 %v5228
        %5535 = vmatmul.bf16.gmra.mxu0 %v5525
        %v5536 = vpop.f32.mrf.mxu0
        %v5537 = vadd.f32 %v5206, %v5536
        %v5538 = vpop.f32.mrf.mxu0
        %v5539 = vadd.f32 %v5206, %v5538
        %5540 = vdwg.mxu0
        %v5541 = vmax.f32 %v5537, 0.0
        %v5542 = vmax.f32 %v5539, 0.0
        %s5543 = scalar_lea.vmem [#allocation3], 176
        %5544 = vst.msk [vmem:[%s5543] sm:$0xff] %vm5257, %v5541
        %5545 = vst.msk [vmem:[%s5543 + $0x8] sm:$0xff] %vm5257, %v5542
        %s5546 = scalar_lea.vmem [#allocation2], 192
        %v5547 = vld [vmem:[%s5546] sm:$0xff]
        %v5548 = vld [vmem:[%s5546 + $0x8] sm:$0xff]
        %v5549 = vpack.c.bf16 %v5548, %v5547
        %v5551 = vsel %vm660, %v5549, 0
        %5553 = vmatpush.bf16.msra.mxu0 0
        %5554 = vmatpush.bf16.msra.mxu0 0
        %5555 = vmatpush.bf16.msra.mxu0 0
        %5556 = vmatpush.bf16.msra.mxu0 %v5232
        %5557 = vmatpush.bf16.msra.mxu0 %v5231
        %5558 = vmatpush.bf16.msra.mxu0 %v5230
        %5559 = vmatpush.bf16.msra.mxu0 %v5229
        %5560 = vmatpush.bf16.msra.mxu0 %v5228
        %5561 = vmatmul.bf16.gmra.mxu0 %v5551
        %v5562 = vpop.f32.mrf.mxu0
        %v5563 = vadd.f32 %v5206, %v5562
        %v5564 = vpop.f32.mrf.mxu0
        %v5565 = vadd.f32 %v5206, %v5564
        %5566 = vdwg.mxu0
        %v5567 = vmax.f32 %v5563, 0.0
        %v5568 = vmax.f32 %v5565, 0.0
        %s5569 = scalar_lea.vmem [#allocation3], 192
        %5570 = vst.msk [vmem:[%s5569] sm:$0xff] %vm5257, %v5567
        %5571 = vst.msk [vmem:[%s5569 + $0x8] sm:$0xff] %vm5257, %v5568
        %s5572 = scalar_lea.vmem [#allocation2], 208
        %v5573 = vld [vmem:[%s5572] sm:$0xff]
        %v5574 = vld [vmem:[%s5572 + $0x8] sm:$0xff]
        %v5575 = vpack.c.bf16 %v5574, %v5573
        %v5577 = vsel %vm660, %v5575, 0
        %5579 = vmatpush.bf16.msra.mxu0 0
        %5580 = vmatpush.bf16.msra.mxu0 0
        %5581 = vmatpush.bf16.msra.mxu0 0
        %5582 = vmatpush.bf16.msra.mxu0 %v5232
        %5583 = vmatpush.bf16.msra.mxu0 %v5231
        %5584 = vmatpush.bf16.msra.mxu0 %v5230
        %5585 = vmatpush.bf16.msra.mxu0 %v5229
        %5586 = vmatpush.bf16.msra.mxu0 %v5228
        %5587 = vmatmul.bf16.gmra.mxu0 %v5577
        %v5588 = vpop.f32.mrf.mxu0
        %v5589 = vadd.f32 %v5206, %v5588
        %v5590 = vpop.f32.mrf.mxu0
        %v5591 = vadd.f32 %v5206, %v5590
        %5592 = vdwg.mxu0
        %v5593 = vmax.f32 %v5589, 0.0
        %v5594 = vmax.f32 %v5591, 0.0
        %s5595 = scalar_lea.vmem [#allocation3], 208
        %5596 = vst.msk [vmem:[%s5595] sm:$0xff] %vm5257, %v5593
        %5597 = vst.msk [vmem:[%s5595 + $0x8] sm:$0xff] %vm5257, %v5594
        %s5598 = scalar_lea.vmem [#allocation2], 224
        %v5599 = vld [vmem:[%s5598] sm:$0xff]
        %v5600 = vld [vmem:[%s5598 + $0x8] sm:$0xff]
        %v5601 = vpack.c.bf16 %v5600, %v5599
        %v5603 = vsel %vm660, %v5601, 0
        %5605 = vmatpush.bf16.msra.mxu0 0
        %5606 = vmatpush.bf16.msra.mxu0 0
        %5607 = vmatpush.bf16.msra.mxu0 0
        %5608 = vmatpush.bf16.msra.mxu0 %v5232
        %5609 = vmatpush.bf16.msra.mxu0 %v5231
        %5610 = vmatpush.bf16.msra.mxu0 %v5230
        %5611 = vmatpush.bf16.msra.mxu0 %v5229
        %5612 = vmatpush.bf16.msra.mxu0 %v5228
        %5613 = vmatmul.bf16.gmra.mxu0 %v5603
        %v5614 = vpop.f32.mrf.mxu0
        %v5615 = vadd.f32 %v5206, %v5614
        %v5616 = vpop.f32.mrf.mxu0
        %v5617 = vadd.f32 %v5206, %v5616
        %5618 = vdwg.mxu0
        %v5619 = vmax.f32 %v5615, 0.0
        %v5620 = vmax.f32 %v5617, 0.0
        %s5621 = scalar_lea.vmem [#allocation3], 224
        %5622 = vst.msk [vmem:[%s5621] sm:$0xff] %vm5257, %v5619
        %5623 = vst.msk [vmem:[%s5621 + $0x8] sm:$0xff] %vm5257, %v5620
        %s5624 = scalar_lea.vmem [#allocation2], 240
        %v5625 = vld [vmem:[%s5624] sm:$0xff]
        %v5626 = vld [vmem:[%s5624 + $0x8] sm:$0xff]
        %v5627 = vpack.c.bf16 %v5626, %v5625
        %v5629 = vsel %vm660, %v5627, 0
        %5631 = vmatpush.bf16.msra.mxu0 0
        %5632 = vmatpush.bf16.msra.mxu0 0
        %5633 = vmatpush.bf16.msra.mxu0 0
        %5634 = vmatpush.bf16.msra.mxu0 %v5232
        %5635 = vmatpush.bf16.msra.mxu0 %v5231
        %5636 = vmatpush.bf16.msra.mxu0 %v5230
        %5637 = vmatpush.bf16.msra.mxu0 %v5229
        %5638 = vmatpush.bf16.msra.mxu0 %v5228
        %5639 = vmatmul.bf16.gmra.mxu0 %v5629
        %v5640 = vpop.f32.mrf.mxu0
        %v5641 = vadd.f32 %v5206, %v5640
        %v5642 = vpop.f32.mrf.mxu0
        %v5643 = vadd.f32 %v5206, %v5642
        %5644 = vdwg.mxu0
        %v5645 = vmax.f32 %v5641, 0.0
        %v5646 = vmax.f32 %v5643, 0.0
        %s5647 = scalar_lea.vmem [#allocation3], 240
        %5648 = vst.msk [vmem:[%s5647] sm:$0xff] %vm5257, %v5645
        %5649 = vst.msk [vmem:[%s5647 + $0x8] sm:$0xff] %vm5257, %v5646
        %v5650 = vld [vmem:[#allocation3] sm:$0xff]
        %v5651 = vld [vmem:[#allocation3 + $0x8] sm:$0xff]
        %v5652 = vld [vmem:[%s5283] sm:$0xff]
        %v5653 = vld [vmem:[%s5283 + $0x8] sm:$0xff]
        %v5654 = vmax.f32 %v5650, %v5652
        %v5655 = vmax.f32 %v5651, %v5653
        %vm5656 = vcmask 130048
        %v5658 = vsel %vm5656, %v655, 0
        %5660 = vmatpush.msra.mxu0 0.0
        %5661 = vmatpush.msra.mxu0 0.0
        %5662 = vmatpush.msra.mxu0 0.0
        %5663 = vmatpush.msra.mxu0 0.0
        %5664 = vmatpush.msra.mxu0 0.0
        %5665 = vmatpush.msra.mxu0 0.0
        %5666 = vmatpush.msra.mxu0 0.0
        %5667 = vmatpush.msra.mxu0 0.0
        %5668 = vmatpush.msra.mxu0 0.0
        %5669 = vmatpush.msra.mxu0 0.0
        %5670 = vmatpush.msra.mxu0 0.0
        %5671 = vmatpush.msra.mxu0 0.0
        %5672 = vmatpush.msra.mxu0 0.0
        %5673 = vmatpush.msra.mxu0 0.0
        %5674 = vmatpush.msra.mxu0 %v5655
        %5675 = vmatpush.msra.mxu0 %v5654
        %5676 = vmatmul.f32.gmra.mxu0 %v5658
        %v5677 = vpop.f32.mrf.mxu0
        %v5678 = vadd.f32 0.0, %v5677
        %5679 = vdwg.mxu0
        %v5681 = vsel %vm5656, %v659, 0
        %5683 = vmatpush.msra.mxu0 0.0
        %5684 = vmatpush.msra.mxu0 0.0
        %5685 = vmatpush.msra.mxu0 0.0
        %5686 = vmatpush.msra.mxu0 0.0
        %5687 = vmatpush.msra.mxu0 0.0
        %5688 = vmatpush.msra.mxu0 0.0
        %5689 = vmatpush.msra.mxu0 0.0
        %5690 = vmatpush.msra.mxu0 0.0
        %5691 = vmatpush.msra.mxu0 0.0
        %5692 = vmatpush.msra.mxu0 0.0
        %5693 = vmatpush.msra.mxu0 0.0
        %5694 = vmatpush.msra.mxu0 0.0
        %5695 = vmatpush.msra.mxu0 0.0
        %5696 = vmatpush.msra.mxu0 0.0
        %5697 = vmatpush.msra.mxu0 %v5655
        %5698 = vmatpush.msra.mxu0 %v5654
        %5699 = vmatmul.f32.gmra.mxu0 %v5681
        %v5700 = vpop.f32.mrf.mxu0
        %v5701 = vadd.f32 0.0, %v5700
        %5702 = vdwg.mxu0
        %v5703 = vmax.f32 %v5678, %v5701
        %5704 = vst.msk [vmem:[#allocation4] sm:$0xff] %vm5257, %v5703
        %v5705 = vld [vmem:[%s5309] sm:$0xff]
        %v5706 = vld [vmem:[%s5309 + $0x8] sm:$0xff]
        %v5707 = vld [vmem:[%s5335] sm:$0xff]
        %v5708 = vld [vmem:[%s5335 + $0x8] sm:$0xff]
        %v5709 = vmax.f32 %v5705, %v5707
        %v5710 = vmax.f32 %v5706, %v5708
        %5711 = vmatpush.msra.mxu0 0.0
        %5712 = vmatpush.msra.mxu0 0.0
        %5713 = vmatpush.msra.mxu0 0.0
        %5714 = vmatpush.msra.mxu0 0.0
        %5715 = vmatpush.msra.mxu0 0.0
        %5716 = vmatpush.msra.mxu0 0.0
        %5717 = vmatpush.msra.mxu0 0.0
        %5718 = vmatpush.msra.mxu0 0.0
        %5719 = vmatpush.msra.mxu0 0.0
        %5720 = vmatpush.msra.mxu0 0.0
        %5721 = vmatpush.msra.mxu0 0.0
        %5722 = vmatpush.msra.mxu0 0.0
        %5723 = vmatpush.msra.mxu0 0.0
        %5724 = vmatpush.msra.mxu0 0.0
        %5725 = vmatpush.msra.mxu0 %v5710
        %5726 = vmatpush.msra.mxu0 %v5709
        %5727 = vmatmul.f32.gmra.mxu0 %v5658
        %v5728 = vpop.f32.mrf.mxu0
        %v5729 = vadd.f32 0.0, %v5728
        %5730 = vdwg.mxu0
        %5731 = vmatpush.msra.mxu0 0.0
        %5732 = vmatpush.msra.mxu0 0.0
        %5733 = vmatpush.msra.mxu0 0.0
        %5734 = vmatpush.msra.mxu0 0.0
        %5735 = vmatpush.msra.mxu0 0.0
        %5736 = vmatpush.msra.mxu0 0.0
        %5737 = vmatpush.msra.mxu0 0.0
        %5738 = vmatpush.msra.mxu0 0.0
        %5739 = vmatpush.msra.mxu0 0.0
        %5740 = vmatpush.msra.mxu0 0.0
        %5741 = vmatpush.msra.mxu0 0.0
        %5742 = vmatpush.msra.mxu0 0.0
        %5743 = vmatpush.msra.mxu0 0.0
        %5744 = vmatpush.msra.mxu0 0.0
        %5745 = vmatpush.msra.mxu0 %v5710
        %5746 = vmatpush.msra.mxu0 %v5709
        %5747 = vmatmul.f32.gmra.mxu0 %v5681
        %v5748 = vpop.f32.mrf.mxu0
        %v5749 = vadd.f32 0.0, %v5748
        %5750 = vdwg.mxu0
        %v5751 = vmax.f32 %v5729, %v5749
        %s5752 = scalar_lea.vmem [#allocation4], 8
        %5753 = vst.msk [vmem:[%s5752] sm:$0xff] %vm5257, %v5751
        %v5754 = vld [vmem:[%s5361] sm:$0xff]
        %v5755 = vld [vmem:[%s5361 + $0x8] sm:$0xff]
        %v5756 = vld [vmem:[%s5387] sm:$0xff]
        %v5757 = vld [vmem:[%s5387 + $0x8] sm:$0xff]
        %v5758 = vmax.f32 %v5754, %v5756
        %v5759 = vmax.f32 %v5755, %v5757
        %5760 = vmatpush.msra.mxu0 0.0
        %5761 = vmatpush.msra.mxu0 0.0
        %5762 = vmatpush.msra.mxu0 0.0
        %5763 = vmatpush.msra.mxu0 0.0
        %5764 = vmatpush.msra.mxu0 0.0
        %5765 = vmatpush.msra.mxu0 0.0
        %5766 = vmatpush.msra.mxu0 0.0
        %5767 = vmatpush.msra.mxu0 0.0
        %5768 = vmatpush.msra.mxu0 0.0
        %5769 = vmatpush.msra.mxu0 0.0
        %5770 = vmatpush.msra.mxu0 0.0
        %5771 = vmatpush.msra.mxu0 0.0
        %5772 = vmatpush.msra.mxu0 0.0
        %5773 = vmatpush.msra.mxu0 0.0
        %5774 = vmatpush.msra.mxu0 %v5759
        %5775 = vmatpush.msra.mxu0 %v5758
        %5776 = vmatmul.f32.gmra.mxu0 %v5658
        %v5777 = vpop.f32.mrf.mxu0
        %v5778 = vadd.f32 0.0, %v5777
        %5779 = vdwg.mxu0
        %5780 = vmatpush.msra.mxu0 0.0
        %5781 = vmatpush.msra.mxu0 0.0
        %5782 = vmatpush.msra.mxu0 0.0
        %5783 = vmatpush.msra.mxu0 0.0
        %5784 = vmatpush.msra.mxu0 0.0
        %5785 = vmatpush.msra.mxu0 0.0
        %5786 = vmatpush.msra.mxu0 0.0
        %5787 = vmatpush.msra.mxu0 0.0
        %5788 = vmatpush.msra.mxu0 0.0
        %5789 = vmatpush.msra.mxu0 0.0
        %5790 = vmatpush.msra.mxu0 0.0
        %5791 = vmatpush.msra.mxu0 0.0
        %5792 = vmatpush.msra.mxu0 0.0
        %5793 = vmatpush.msra.mxu0 0.0
        %5794 = vmatpush.msra.mxu0 %v5759
        %5795 = vmatpush.msra.mxu0 %v5758
        %5796 = vmatmul.f32.gmra.mxu0 %v5681
        %v5797 = vpop.f32.mrf.mxu0
        %v5798 = vadd.f32 0.0, %v5797
        %5799 = vdwg.mxu0
        %v5800 = vmax.f32 %v5778, %v5798
        %s5801 = scalar_lea.vmem [#allocation4], 16
        %5802 = vst.msk [vmem:[%s5801] sm:$0xff] %vm5257, %v5800
        %v5803 = vld [vmem:[%s5413] sm:$0xff]
        %v5804 = vld [vmem:[%s5413 + $0x8] sm:$0xff]
        %v5805 = vld [vmem:[%s5439] sm:$0xff]
        %v5806 = vld [vmem:[%s5439 + $0x8] sm:$0xff]
        %v5807 = vmax.f32 %v5803, %v5805
        %v5808 = vmax.f32 %v5804, %v5806
        %5809 = vmatpush.msra.mxu0 0.0
        %5810 = vmatpush.msra.mxu0 0.0
        %5811 = vmatpush.msra.mxu0 0.0
        %5812 = vmatpush.msra.mxu0 0.0
        %5813 = vmatpush.msra.mxu0 0.0
        %5814 = vmatpush.msra.mxu0 0.0
        %5815 = vmatpush.msra.mxu0 0.0
        %5816 = vmatpush.msra.mxu0 0.0
        %5817 = vmatpush.msra.mxu0 0.0
        %5818 = vmatpush.msra.mxu0 0.0
        %5819 = vmatpush.msra.mxu0 0.0
        %5820 = vmatpush.msra.mxu0 0.0
        %5821 = vmatpush.msra.mxu0 0.0
        %5822 = vmatpush.msra.mxu0 0.0
        %5823 = vmatpush.msra.mxu0 %v5808
        %5824 = vmatpush.msra.mxu0 %v5807
        %5825 = vmatmul.f32.gmra.mxu0 %v5658
        %v5826 = vpop.f32.mrf.mxu0
        %v5827 = vadd.f32 0.0, %v5826
        %5828 = vdwg.mxu0
        %5829 = vmatpush.msra.mxu0 0.0
        %5830 = vmatpush.msra.mxu0 0.0
        %5831 = vmatpush.msra.mxu0 0.0
        %5832 = vmatpush.msra.mxu0 0.0
        %5833 = vmatpush.msra.mxu0 0.0
        %5834 = vmatpush.msra.mxu0 0.0
        %5835 = vmatpush.msra.mxu0 0.0
        %5836 = vmatpush.msra.mxu0 0.0
        %5837 = vmatpush.msra.mxu0 0.0
        %5838 = vmatpush.msra.mxu0 0.0
        %5839 = vmatpush.msra.mxu0 0.0
        %5840 = vmatpush.msra.mxu0 0.0
        %5841 = vmatpush.msra.mxu0 0.0
        %5842 = vmatpush.msra.mxu0 0.0
        %5843 = vmatpush.msra.mxu0 %v5808
        %5844 = vmatpush.msra.mxu0 %v5807
        %5845 = vmatmul.f32.gmra.mxu0 %v5681
        %v5846 = vpop.f32.mrf.mxu0
        %v5847 = vadd.f32 0.0, %v5846
        %5848 = vdwg.mxu0
        %v5849 = vmax.f32 %v5827, %v5847
        %s5850 = scalar_lea.vmem [#allocation4], 24
        %5851 = vst.msk [vmem:[%s5850] sm:$0xff] %vm5257, %v5849
        %v5852 = vld [vmem:[%s5465] sm:$0xff]
        %v5853 = vld [vmem:[%s5465 + $0x8] sm:$0xff]
        %v5854 = vld [vmem:[%s5491] sm:$0xff]
        %v5855 = vld [vmem:[%s5491 + $0x8] sm:$0xff]
        %v5856 = vmax.f32 %v5852, %v5854
        %v5857 = vmax.f32 %v5853, %v5855
        %5858 = vmatpush.msra.mxu0 0.0
        %5859 = vmatpush.msra.mxu0 0.0
        %5860 = vmatpush.msra.mxu0 0.0
        %5861 = vmatpush.msra.mxu0 0.0
        %5862 = vmatpush.msra.mxu0 0.0
        %5863 = vmatpush.msra.mxu0 0.0
        %5864 = vmatpush.msra.mxu0 0.0
        %5865 = vmatpush.msra.mxu0 0.0
        %5866 = vmatpush.msra.mxu0 0.0
        %5867 = vmatpush.msra.mxu0 0.0
        %5868 = vmatpush.msra.mxu0 0.0
        %5869 = vmatpush.msra.mxu0 0.0
        %5870 = vmatpush.msra.mxu0 0.0
        %5871 = vmatpush.msra.mxu0 0.0
        %5872 = vmatpush.msra.mxu0 %v5857
        %5873 = vmatpush.msra.mxu0 %v5856
        %5874 = vmatmul.f32.gmra.mxu0 %v5658
        %v5875 = vpop.f32.mrf.mxu0
        %v5876 = vadd.f32 0.0, %v5875
        %5877 = vdwg.mxu0
        %5878 = vmatpush.msra.mxu0 0.0
        %5879 = vmatpush.msra.mxu0 0.0
        %5880 = vmatpush.msra.mxu0 0.0
        %5881 = vmatpush.msra.mxu0 0.0
        %5882 = vmatpush.msra.mxu0 0.0
        %5883 = vmatpush.msra.mxu0 0.0
        %5884 = vmatpush.msra.mxu0 0.0
        %5885 = vmatpush.msra.mxu0 0.0
        %5886 = vmatpush.msra.mxu0 0.0
        %5887 = vmatpush.msra.mxu0 0.0
        %5888 = vmatpush.msra.mxu0 0.0
        %5889 = vmatpush.msra.mxu0 0.0
        %5890 = vmatpush.msra.mxu0 0.0
        %5891 = vmatpush.msra.mxu0 0.0
        %5892 = vmatpush.msra.mxu0 %v5857
        %5893 = vmatpush.msra.mxu0 %v5856
        %5894 = vmatmul.f32.gmra.mxu0 %v5681
        %v5895 = vpop.f32.mrf.mxu0
        %v5896 = vadd.f32 0.0, %v5895
        %5897 = vdwg.mxu0
        %v5898 = vmax.f32 %v5876, %v5896
        %s5899 = scalar_lea.vmem [#allocation4], 32
        %5900 = vst.msk [vmem:[%s5899] sm:$0xff] %vm5257, %v5898
        %v5901 = vld [vmem:[%s5517] sm:$0xff]
        %v5902 = vld [vmem:[%s5517 + $0x8] sm:$0xff]
        %v5903 = vld [vmem:[%s5543] sm:$0xff]
        %v5904 = vld [vmem:[%s5543 + $0x8] sm:$0xff]
        %v5905 = vmax.f32 %v5901, %v5903
        %v5906 = vmax.f32 %v5902, %v5904
        %5907 = vmatpush.msra.mxu0 0.0
        %5908 = vmatpush.msra.mxu0 0.0
        %5909 = vmatpush.msra.mxu0 0.0
        %5910 = vmatpush.msra.mxu0 0.0
        %5911 = vmatpush.msra.mxu0 0.0
        %5912 = vmatpush.msra.mxu0 0.0
        %5913 = vmatpush.msra.mxu0 0.0
        %5914 = vmatpush.msra.mxu0 0.0
        %5915 = vmatpush.msra.mxu0 0.0
        %5916 = vmatpush.msra.mxu0 0.0
        %5917 = vmatpush.msra.mxu0 0.0
        %5918 = vmatpush.msra.mxu0 0.0
        %5919 = vmatpush.msra.mxu0 0.0
        %5920 = vmatpush.msra.mxu0 0.0
        %5921 = vmatpush.msra.mxu0 %v5906
        %5922 = vmatpush.msra.mxu0 %v5905
        %5923 = vmatmul.f32.gmra.mxu0 %v5658
        %v5924 = vpop.f32.mrf.mxu0
        %v5925 = vadd.f32 0.0, %v5924
        %5926 = vdwg.mxu0
        %5927 = vmatpush.msra.mxu0 0.0
        %5928 = vmatpush.msra.mxu0 0.0
        %5929 = vmatpush.msra.mxu0 0.0
        %5930 = vmatpush.msra.mxu0 0.0
        %5931 = vmatpush.msra.mxu0 0.0
        %5932 = vmatpush.msra.mxu0 0.0
        %5933 = vmatpush.msra.mxu0 0.0
        %5934 = vmatpush.msra.mxu0 0.0
        %5935 = vmatpush.msra.mxu0 0.0
        %5936 = vmatpush.msra.mxu0 0.0
        %5937 = vmatpush.msra.mxu0 0.0
        %5938 = vmatpush.msra.mxu0 0.0
        %5939 = vmatpush.msra.mxu0 0.0
        %5940 = vmatpush.msra.mxu0 0.0
        %5941 = vmatpush.msra.mxu0 %v5906
        %5942 = vmatpush.msra.mxu0 %v5905
        %5943 = vmatmul.f32.gmra.mxu0 %v5681
        %v5944 = vpop.f32.mrf.mxu0
        %v5945 = vadd.f32 0.0, %v5944
        %5946 = vdwg.mxu0
        %v5947 = vmax.f32 %v5925, %v5945
        %s5948 = scalar_lea.vmem [#allocation4], 40
        %5949 = vst.msk [vmem:[%s5948] sm:$0xff] %vm5257, %v5947
        %v5950 = vld [vmem:[%s5569] sm:$0xff]
        %v5951 = vld [vmem:[%s5569 + $0x8] sm:$0xff]
        %v5952 = vld [vmem:[%s5595] sm:$0xff]
        %v5953 = vld [vmem:[%s5595 + $0x8] sm:$0xff]
        %v5954 = vmax.f32 %v5950, %v5952
        %v5955 = vmax.f32 %v5951, %v5953
        %5956 = vmatpush.msra.mxu0 0.0
        %5957 = vmatpush.msra.mxu0 0.0
        %5958 = vmatpush.msra.mxu0 0.0
        %5959 = vmatpush.msra.mxu0 0.0
        %5960 = vmatpush.msra.mxu0 0.0
        %5961 = vmatpush.msra.mxu0 0.0
        %5962 = vmatpush.msra.mxu0 0.0
        %5963 = vmatpush.msra.mxu0 0.0
        %5964 = vmatpush.msra.mxu0 0.0
        %5965 = vmatpush.msra.mxu0 0.0
        %5966 = vmatpush.msra.mxu0 0.0
        %5967 = vmatpush.msra.mxu0 0.0
        %5968 = vmatpush.msra.mxu0 0.0
        %5969 = vmatpush.msra.mxu0 0.0
        %5970 = vmatpush.msra.mxu0 %v5955
        %5971 = vmatpush.msra.mxu0 %v5954
        %5972 = vmatmul.f32.gmra.mxu0 %v5658
        %v5973 = vpop.f32.mrf.mxu0
        %v5974 = vadd.f32 0.0, %v5973
        %5975 = vdwg.mxu0
        %5976 = vmatpush.msra.mxu0 0.0
        %5977 = vmatpush.msra.mxu0 0.0
        %5978 = vmatpush.msra.mxu0 0.0
        %5979 = vmatpush.msra.mxu0 0.0
        %5980 = vmatpush.msra.mxu0 0.0
        %5981 = vmatpush.msra.mxu0 0.0
        %5982 = vmatpush.msra.mxu0 0.0
        %5983 = vmatpush.msra.mxu0 0.0
        %5984 = vmatpush.msra.mxu0 0.0
        %5985 = vmatpush.msra.mxu0 0.0
        %5986 = vmatpush.msra.mxu0 0.0
        %5987 = vmatpush.msra.mxu0 0.0
        %5988 = vmatpush.msra.mxu0 0.0
        %5989 = vmatpush.msra.mxu0 0.0
        %5990 = vmatpush.msra.mxu0 %v5955
        %5991 = vmatpush.msra.mxu0 %v5954
        %5992 = vmatmul.f32.gmra.mxu0 %v5681
        %v5993 = vpop.f32.mrf.mxu0
        %v5994 = vadd.f32 0.0, %v5993
        %5995 = vdwg.mxu0
        %v5996 = vmax.f32 %v5974, %v5994
        %s5997 = scalar_lea.vmem [#allocation4], 48
        %5998 = vst.msk [vmem:[%s5997] sm:$0xff] %vm5257, %v5996
        %v5999 = vld [vmem:[%s5621] sm:$0xff]
        %v6000 = vld [vmem:[%s5621 + $0x8] sm:$0xff]
        %v6001 = vld [vmem:[%s5647] sm:$0xff]
        %v6002 = vld [vmem:[%s5647 + $0x8] sm:$0xff]
        %v6003 = vmax.f32 %v5999, %v6001
        %v6004 = vmax.f32 %v6000, %v6002
        %6005 = vmatpush.msra.mxu0 0.0
        %6006 = vmatpush.msra.mxu0 0.0
        %6007 = vmatpush.msra.mxu0 0.0
        %6008 = vmatpush.msra.mxu0 0.0
        %6009 = vmatpush.msra.mxu0 0.0
        %6010 = vmatpush.msra.mxu0 0.0
        %6011 = vmatpush.msra.mxu0 0.0
        %6012 = vmatpush.msra.mxu0 0.0
        %6013 = vmatpush.msra.mxu0 0.0
        %6014 = vmatpush.msra.mxu0 0.0
        %6015 = vmatpush.msra.mxu0 0.0
        %6016 = vmatpush.msra.mxu0 0.0
        %6017 = vmatpush.msra.mxu0 0.0
        %6018 = vmatpush.msra.mxu0 0.0
        %6019 = vmatpush.msra.mxu0 %v6004
        %6020 = vmatpush.msra.mxu0 %v6003
        %6021 = vmatmul.f32.gmra.mxu0 %v5658
        %v6022 = vpop.f32.mrf.mxu0
        %v6023 = vadd.f32 0.0, %v6022
        %6024 = vdwg.mxu0
        %6025 = vmatpush.msra.mxu0 0.0
        %6026 = vmatpush.msra.mxu0 0.0
        %6027 = vmatpush.msra.mxu0 0.0
        %6028 = vmatpush.msra.mxu0 0.0
        %6029 = vmatpush.msra.mxu0 0.0
        %6030 = vmatpush.msra.mxu0 0.0
        %6031 = vmatpush.msra.mxu0 0.0
        %6032 = vmatpush.msra.mxu0 0.0
        %6033 = vmatpush.msra.mxu0 0.0
        %6034 = vmatpush.msra.mxu0 0.0
        %6035 = vmatpush.msra.mxu0 0.0
        %6036 = vmatpush.msra.mxu0 0.0
        %6037 = vmatpush.msra.mxu0 0.0
        %6038 = vmatpush.msra.mxu0 0.0
        %6039 = vmatpush.msra.mxu0 %v6004
        %6040 = vmatpush.msra.mxu0 %v6003
        %6041 = vmatmul.f32.gmra.mxu0 %v5681
        %v6042 = vpop.f32.mrf.mxu0
        %v6043 = vadd.f32 0.0, %v6042
        %6044 = vdwg.mxu0
        %v6045 = vmax.f32 %v6023, %v6043
        %s6046 = scalar_lea.vmem [#allocation4], 56
        %6047 = vst.msk [vmem:[%s6046] sm:$0xff] %vm5257, %v6045
        %v6048 = vld [vmem:[#allocation4] sm:$0x3f]
        %v6049 = vld [vmem:[#allocation4 + $0x8] sm:$0x3f]
        %v6050 = vld [vmem:[#allocation4 + $0x10] sm:$0x3f]
        %v6051 = vld [vmem:[#allocation4 + $0x18] sm:$0x3f]
        %v6052 = vld [vmem:[#allocation4 + $0x20] sm:$0x3f]
        %v6053 = vld [vmem:[#allocation4 + $0x28] sm:$0x3f]
        %vm6054 = vcmask 259072
        %6055 = vst.msk [vmem:[#allocation5] sm:$0x3f] %vm6054, %v6048
        %6056 = vst.msk [vmem:[#allocation5 + $0x18] sm:$0x3f] %vm6054, %v6049
        %6057 = vst.msk [vmem:[#allocation5 + $0x30] sm:$0x3f] %vm6054, %v6050
        %6058 = vst.msk [vmem:[#allocation5 + $0x48] sm:$0x3f] %vm6054, %v6051
        %6059 = vst.msk [vmem:[#allocation5 + $0x60] sm:$0x3f] %vm6054, %v6052
        %6060 = vst.msk [vmem:[#allocation5 + $0x78] sm:$0x3f] %vm6054, %v6053
        %v6061 = vld [vmem:[#allocation4 + $0x1] sm:$0x3f]
        %v6062 = vld [vmem:[#allocation4 + $0x9] sm:$0x3f]
        %v6063 = vld [vmem:[#allocation4 + $0x11] sm:$0x3f]
        %v6064 = vld [vmem:[#allocation4 + $0x19] sm:$0x3f]
        %v6065 = vld [vmem:[#allocation4 + $0x21] sm:$0x3f]
        %v6066 = vld [vmem:[#allocation4 + $0x29] sm:$0x3f]
        %6073 = vrot.lane.b32.xlu0 %v6061, 32
        %v6074 = vpop.permute.xlu0 %6073
        %6075 = vrot.lane.b32.xlu0 %v6062, 32
        %v6076 = vpop.permute.xlu0 %6075
        %6077 = vrot.lane.b32.xlu0 %v6063, 32
        %v6078 = vpop.permute.xlu0 %6077
        %6079 = vrot.lane.b32.xlu0 %v6064, 32
        %v6080 = vpop.permute.xlu0 %6079
        %6081 = vrot.lane.b32.xlu0 %v6065, 32
        %v6082 = vpop.permute.xlu0 %6081
        %6083 = vrot.lane.b32.xlu0 %v6066, 32
        %v6084 = vpop.permute.xlu0 %6083
        %vm6091 = vcmask 521472
        %6092 = vst.msk [vmem:[#allocation5] sm:$0x3f] %vm6091, %v6074
        %6093 = vst.msk [vmem:[#allocation5 + $0x18] sm:$0x3f] %vm6091, %v6076
        %6094 = vst.msk [vmem:[#allocation5 + $0x30] sm:$0x3f] %vm6091, %v6078
        %6095 = vst.msk [vmem:[#allocation5 + $0x48] sm:$0x3f] %vm6091, %v6080
        %6096 = vst.msk [vmem:[#allocation5 + $0x60] sm:$0x3f] %vm6091, %v6082
        %6097 = vst.msk [vmem:[#allocation5 + $0x78] sm:$0x3f] %vm6091, %v6084
        %v6098 = vld [vmem:[#allocation4 + $0x2] sm:$0x3f]
        %v6099 = vld [vmem:[#allocation4 + $0xa] sm:$0x3f]
        %v6100 = vld [vmem:[#allocation4 + $0x12] sm:$0x3f]
        %v6101 = vld [vmem:[#allocation4 + $0x1a] sm:$0x3f]
        %v6102 = vld [vmem:[#allocation4 + $0x22] sm:$0x3f]
        %v6103 = vld [vmem:[#allocation4 + $0x2a] sm:$0x3f]
        %6110 = vrot.lane.b32.xlu0 %v6098, 64
        %v6111 = vpop.permute.xlu0 %6110
        %6112 = vrot.lane.b32.xlu0 %v6099, 64
        %v6113 = vpop.permute.xlu0 %6112
        %6114 = vrot.lane.b32.xlu0 %v6100, 64
        %v6115 = vpop.permute.xlu0 %6114
        %6116 = vrot.lane.b32.xlu0 %v6101, 64
        %v6117 = vpop.permute.xlu0 %6116
        %6118 = vrot.lane.b32.xlu0 %v6102, 64
        %v6119 = vpop.permute.xlu0 %6118
        %6120 = vrot.lane.b32.xlu0 %v6103, 64
        %v6121 = vpop.permute.xlu0 %6120
        %vm6128 = vcmask 783872
        %6129 = vst.msk [vmem:[#allocation5] sm:$0x3f] %vm6128, %v6111
        %6130 = vst.msk [vmem:[#allocation5 + $0x18] sm:$0x3f] %vm6128, %v6113
        %6131 = vst.msk [vmem:[#allocation5 + $0x30] sm:$0x3f] %vm6128, %v6115
        %6132 = vst.msk [vmem:[#allocation5 + $0x48] sm:$0x3f] %vm6128, %v6117
        %6133 = vst.msk [vmem:[#allocation5 + $0x60] sm:$0x3f] %vm6128, %v6119
        %6134 = vst.msk [vmem:[#allocation5 + $0x78] sm:$0x3f] %vm6128, %v6121
        %v6135 = vld [vmem:[%s5752] sm:$0x3f]
        %v6136 = vld [vmem:[%s5752 + $0x8] sm:$0x3f]
        %v6137 = vld [vmem:[%s5752 + $0x10] sm:$0x3f]
        %v6138 = vld [vmem:[%s5752 + $0x18] sm:$0x3f]
        %v6139 = vld [vmem:[%s5752 + $0x20] sm:$0x3f]
        %v6140 = vld [vmem:[%s5752 + $0x28] sm:$0x3f]
        %6147 = vrot.lane.b32.xlu0 %v6135, 96
        %v6148 = vpop.permute.xlu0 %6147
        %6149 = vrot.lane.b32.xlu0 %v6136, 96
        %v6150 = vpop.permute.xlu0 %6149
        %6151 = vrot.lane.b32.xlu0 %v6137, 96
        %v6152 = vpop.permute.xlu0 %6151
        %6153 = vrot.lane.b32.xlu0 %v6138, 96
        %v6154 = vpop.permute.xlu0 %6153
        %6155 = vrot.lane.b32.xlu0 %v6139, 96
        %v6156 = vpop.permute.xlu0 %6155
        %6157 = vrot.lane.b32.xlu0 %v6140, 96
        %v6158 = vpop.permute.xlu0 %6157
        %vm6165 = vcmask 1046272
        %6166 = vst.msk [vmem:[#allocation5] sm:$0x3f] %vm6165, %v6148
        %6167 = vst.msk [vmem:[#allocation5 + $0x18] sm:$0x3f] %vm6165, %v6150
        %6168 = vst.msk [vmem:[#allocation5 + $0x30] sm:$0x3f] %vm6165, %v6152
        %6169 = vst.msk [vmem:[#allocation5 + $0x48] sm:$0x3f] %vm6165, %v6154
        %6170 = vst.msk [vmem:[#allocation5 + $0x60] sm:$0x3f] %vm6165, %v6156
        %6171 = vst.msk [vmem:[#allocation5 + $0x78] sm:$0x3f] %vm6165, %v6158
        %v6172 = vld [vmem:[%s5752 + $0x1] sm:$0x3f]
        %v6173 = vld [vmem:[%s5752 + $0x9] sm:$0x3f]
        %v6174 = vld [vmem:[%s5752 + $0x11] sm:$0x3f]
        %v6175 = vld [vmem:[%s5752 + $0x19] sm:$0x3f]
        %v6176 = vld [vmem:[%s5752 + $0x21] sm:$0x3f]
        %v6177 = vld [vmem:[%s5752 + $0x29] sm:$0x3f]
        %6178 = vst.msk [vmem:[#allocation5 + $0x8] sm:$0x3f] %vm6054, %v6172
        %6179 = vst.msk [vmem:[#allocation5 + $0x20] sm:$0x3f] %vm6054, %v6173
        %6180 = vst.msk [vmem:[#allocation5 + $0x38] sm:$0x3f] %vm6054, %v6174
        %6181 = vst.msk [vmem:[#allocation5 + $0x50] sm:$0x3f] %vm6054, %v6175
        %6182 = vst.msk [vmem:[#allocation5 + $0x68] sm:$0x3f] %vm6054, %v6176
        %6183 = vst.msk [vmem:[#allocation5 + $0x80] sm:$0x3f] %vm6054, %v6177
        %v6184 = vld [vmem:[%s5752 + $0x2] sm:$0x3f]
        %v6185 = vld [vmem:[%s5752 + $0xa] sm:$0x3f]
        %v6186 = vld [vmem:[%s5752 + $0x12] sm:$0x3f]
        %v6187 = vld [vmem:[%s5752 + $0x1a] sm:$0x3f]
        %v6188 = vld [vmem:[%s5752 + $0x22] sm:$0x3f]
        %v6189 = vld [vmem:[%s5752 + $0x2a] sm:$0x3f]
        %6196 = vrot.lane.b32.xlu0 %v6184, 32
        %v6197 = vpop.permute.xlu0 %6196
        %6198 = vrot.lane.b32.xlu0 %v6185, 32
        %v6199 = vpop.permute.xlu0 %6198
        %6200 = vrot.lane.b32.xlu0 %v6186, 32
        %v6201 = vpop.permute.xlu0 %6200
        %6202 = vrot.lane.b32.xlu0 %v6187, 32
        %v6203 = vpop.permute.xlu0 %6202
        %6204 = vrot.lane.b32.xlu0 %v6188, 32
        %v6205 = vpop.permute.xlu0 %6204
        %6206 = vrot.lane.b32.xlu0 %v6189, 32
        %v6207 = vpop.permute.xlu0 %6206
        %6214 = vst.msk [vmem:[#allocation5 + $0x8] sm:$0x3f] %vm6091, %v6197
        %6215 = vst.msk [vmem:[#allocation5 + $0x20] sm:$0x3f] %vm6091, %v6199
        %6216 = vst.msk [vmem:[#allocation5 + $0x38] sm:$0x3f] %vm6091, %v6201
        %6217 = vst.msk [vmem:[#allocation5 + $0x50] sm:$0x3f] %vm6091, %v6203
        %6218 = vst.msk [vmem:[#allocation5 + $0x68] sm:$0x3f] %vm6091, %v6205
        %6219 = vst.msk [vmem:[#allocation5 + $0x80] sm:$0x3f] %vm6091, %v6207
        %v6220 = vld [vmem:[%s5801] sm:$0x3f]
        %v6221 = vld [vmem:[%s5801 + $0x8] sm:$0x3f]
        %v6222 = vld [vmem:[%s5801 + $0x10] sm:$0x3f]
        %v6223 = vld [vmem:[%s5801 + $0x18] sm:$0x3f]
        %v6224 = vld [vmem:[%s5801 + $0x20] sm:$0x3f]
        %v6225 = vld [vmem:[%s5801 + $0x28] sm:$0x3f]
        %6232 = vrot.lane.b32.xlu0 %v6220, 64
        %v6233 = vpop.permute.xlu0 %6232
        %6234 = vrot.lane.b32.xlu0 %v6221, 64
        %v6235 = vpop.permute.xlu0 %6234
        %6236 = vrot.lane.b32.xlu0 %v6222, 64
        %v6237 = vpop.permute.xlu0 %6236
        %6238 = vrot.lane.b32.xlu0 %v6223, 64
        %v6239 = vpop.permute.xlu0 %6238
        %6240 = vrot.lane.b32.xlu0 %v6224, 64
        %v6241 = vpop.permute.xlu0 %6240
        %6242 = vrot.lane.b32.xlu0 %v6225, 64
        %v6243 = vpop.permute.xlu0 %6242
        %6250 = vst.msk [vmem:[#allocation5 + $0x8] sm:$0x3f] %vm6128, %v6233
        %6251 = vst.msk [vmem:[#allocation5 + $0x20] sm:$0x3f] %vm6128, %v6235
        %6252 = vst.msk [vmem:[#allocation5 + $0x38] sm:$0x3f] %vm6128, %v6237
        %6253 = vst.msk [vmem:[#allocation5 + $0x50] sm:$0x3f] %vm6128, %v6239
        %6254 = vst.msk [vmem:[#allocation5 + $0x68] sm:$0x3f] %vm6128, %v6241
        %6255 = vst.msk [vmem:[#allocation5 + $0x80] sm:$0x3f] %vm6128, %v6243
        %v6256 = vld [vmem:[%s5801 + $0x1] sm:$0x3f]
        %v6257 = vld [vmem:[%s5801 + $0x9] sm:$0x3f]
        %v6258 = vld [vmem:[%s5801 + $0x11] sm:$0x3f]
        %v6259 = vld [vmem:[%s5801 + $0x19] sm:$0x3f]
        %v6260 = vld [vmem:[%s5801 + $0x21] sm:$0x3f]
        %v6261 = vld [vmem:[%s5801 + $0x29] sm:$0x3f]
        %6268 = vrot.lane.b32.xlu0 %v6256, 96
        %v6269 = vpop.permute.xlu0 %6268
        %6270 = vrot.lane.b32.xlu0 %v6257, 96
        %v6271 = vpop.permute.xlu0 %6270
        %6272 = vrot.lane.b32.xlu0 %v6258, 96
        %v6273 = vpop.permute.xlu0 %6272
        %6274 = vrot.lane.b32.xlu0 %v6259, 96
        %v6275 = vpop.permute.xlu0 %6274
        %6276 = vrot.lane.b32.xlu0 %v6260, 96
        %v6277 = vpop.permute.xlu0 %6276
        %6278 = vrot.lane.b32.xlu0 %v6261, 96
        %v6279 = vpop.permute.xlu0 %6278
        %6286 = vst.msk [vmem:[#allocation5 + $0x8] sm:$0x3f] %vm6165, %v6269
        %6287 = vst.msk [vmem:[#allocation5 + $0x20] sm:$0x3f] %vm6165, %v6271
        %6288 = vst.msk [vmem:[#allocation5 + $0x38] sm:$0x3f] %vm6165, %v6273
        %6289 = vst.msk [vmem:[#allocation5 + $0x50] sm:$0x3f] %vm6165, %v6275
        %6290 = vst.msk [vmem:[#allocation5 + $0x68] sm:$0x3f] %vm6165, %v6277
        %6291 = vst.msk [vmem:[#allocation5 + $0x80] sm:$0x3f] %vm6165, %v6279
        %v6292 = vld [vmem:[%s5801 + $0x2] sm:$0x3f]
        %v6293 = vld [vmem:[%s5801 + $0xa] sm:$0x3f]
        %v6294 = vld [vmem:[%s5801 + $0x12] sm:$0x3f]
        %v6295 = vld [vmem:[%s5801 + $0x1a] sm:$0x3f]
        %v6296 = vld [vmem:[%s5801 + $0x22] sm:$0x3f]
        %v6297 = vld [vmem:[%s5801 + $0x2a] sm:$0x3f]
        %6298 = vst.msk [vmem:[#allocation5 + $0x10] sm:$0x3f] %vm6054, %v6292
        %6299 = vst.msk [vmem:[#allocation5 + $0x28] sm:$0x3f] %vm6054, %v6293
        %6300 = vst.msk [vmem:[#allocation5 + $0x40] sm:$0x3f] %vm6054, %v6294
        %6301 = vst.msk [vmem:[#allocation5 + $0x58] sm:$0x3f] %vm6054, %v6295
        %6302 = vst.msk [vmem:[#allocation5 + $0x70] sm:$0x3f] %vm6054, %v6296
        %6303 = vst.msk [vmem:[#allocation5 + $0x88] sm:$0x3f] %vm6054, %v6297
        %v6304 = vld [vmem:[#allocation5] sm:$0x3f]
        %v6305 = vld [vmem:[#allocation5 + $0x8] sm:$0x3f]
        %v6306 = vld [vmem:[#allocation5 + $0x10] sm:$0x3f]
        %v6307 = vpack.c.bf16 %v6304, %v6304
        %v6308 = vpack.c.bf16 %v6305, %v6305
        %v6309 = vpack.c.bf16 %v6306, %v6306
        %v6311 = vperm.slane %v644, 0
        %v6349 = vunpack.c.l.b16 %v455
        %v6350 = vunpack.c.l.b16 %v456
        %v6351 = vunpack.c.l.b16 %v457
        %v6352 = vunpack.c.l.b16 %v458
        %v6353 = vunpack.c.l.b16 %v459
        %v6354 = vunpack.c.l.b16 %v460
        %v6355 = vunpack.c.l.b16 %v461
        %v6356 = vunpack.c.l.b16 %v462
        %v6357 = vunpack.c.l.b16 %v463
        %v6358 = vunpack.c.l.b16 %v464
        %v6359 = vunpack.c.l.b16 %v465
        %v6360 = vunpack.c.l.b16 %v466
        %v6361 = vunpack.c.l.b16 %v467
        %v6362 = vunpack.c.l.b16 %v468
        %v6363 = vunpack.c.l.b16 %v469
        %v6364 = vunpack.c.l.b16 %v470
        %v6365 = vunpack.c.l.b16 %v471
        %v6366 = vunpack.c.l.b16 %v472
        %v6367 = vunpack.c.l.b16 %v473
        %v6368 = vunpack.c.l.b16 %v474
        %v6369 = vunpack.c.l.b16 %v475
        %v6370 = vunpack.c.l.b16 %v476
        %v6371 = vunpack.c.l.b16 %v477
        %v6372 = vunpack.c.l.b16 %v478
        %v6373 = vunpack.c.l.b16 %v479
        %v6374 = vunpack.c.l.b16 %v480
        %v6375 = vunpack.c.l.b16 %v481
        %v6376 = vunpack.c.l.b16 %v482
        %v6377 = vunpack.c.l.b16 %v483
        %v6378 = vunpack.c.l.b16 %v484
        %v6379 = vunpack.c.l.b16 %v485
        %v6380 = vunpack.c.l.b16 %v486
        %v6381 = vunpack.c.l.b16 %v487
        %v6382 = vunpack.c.l.b16 %v488
        %v6383 = vunpack.c.l.b16 %v489
        %v6384 = vunpack.c.l.b16 %v490
        %v6385 = vpack.c.b16 %v6350, %v6349
        %v6386 = vpack.c.b16 %v6352, %v6351
        %v6387 = vpack.c.b16 %v6354, %v6353
        %v6388 = vpack.c.b16 %v6356, %v6355
        %v6389 = vpack.c.b16 %v6358, %v6357
        %v6390 = vpack.c.b16 %v6360, %v6359
        %v6391 = vpack.c.b16 %v6362, %v6361
        %v6392 = vpack.c.b16 %v6364, %v6363
        %v6393 = vpack.c.b16 %v6366, %v6365
        %v6394 = vpack.c.b16 %v6368, %v6367
        %v6395 = vpack.c.b16 %v6370, %v6369
        %v6396 = vpack.c.b16 %v6372, %v6371
        %v6397 = vpack.c.b16 %v6374, %v6373
        %v6398 = vpack.c.b16 %v6376, %v6375
        %v6399 = vpack.c.b16 %v6378, %v6377
        %v6400 = vpack.c.b16 %v6380, %v6379
        %v6401 = vpack.c.b16 %v6382, %v6381
        %v6402 = vpack.c.b16 %v6384, %v6383
        %v6422 = vsel %vm5257, %v6309, 0
        %6424 = vmatpush.bf16.msra.mxu0 %v6392
        %6425 = vmatpush.bf16.msra.mxu0 %v6391
        %6426 = vmatpush.bf16.msra.mxu0 %v6390
        %6427 = vmatpush.bf16.msra.mxu0 %v6389
        %6428 = vmatpush.bf16.msra.mxu0 %v6388
        %6429 = vmatpush.bf16.msra.mxu0 %v6387
        %6430 = vmatpush.bf16.msra.mxu0 %v6386
        %6431 = vmatpush.bf16.msra.mxu0 %v6385
        %6432 = vmatmul.bf16.gmra.mxu0 %v6307
        %v6433 = vpop.f32.mrf.mxu0
        %v6434 = vadd.f32 %v6311, %v6433
        %v6435 = vpop.f32.mrf.mxu0
        %6436 = vdwg.mxu0
        %6437 = vmatpush.bf16.msra.mxu0 %v6400
        %6438 = vmatpush.bf16.msra.mxu0 %v6399
        %6439 = vmatpush.bf16.msra.mxu0 %v6398
        %6440 = vmatpush.bf16.msra.mxu0 %v6397
        %6441 = vmatpush.bf16.msra.mxu0 %v6396
        %6442 = vmatpush.bf16.msra.mxu0 %v6395
        %6443 = vmatpush.bf16.msra.mxu0 %v6394
        %6444 = vmatpush.bf16.msra.mxu0 %v6393
        %6445 = vmatmul.bf16.gmra.mxu0 %v6308
        %v6446 = vpop.f32.mrf.mxu0
        %v6447 = vadd.f32 %v6434, %v6446
        %v6448 = vpop.f32.mrf.mxu0
        %6449 = vdwg.mxu0
        %6450 = vmatpush.bf16.msra.mxu0 0
        %6451 = vmatpush.bf16.msra.mxu0 0
        %6452 = vmatpush.bf16.msra.mxu0 0
        %6453 = vmatpush.bf16.msra.mxu0 0
        %6454 = vmatpush.bf16.msra.mxu0 0
        %6455 = vmatpush.bf16.msra.mxu0 0
        %6456 = vmatpush.bf16.msra.mxu0 %v6402
        %6457 = vmatpush.bf16.msra.mxu0 %v6401
        %6458 = vmatmul.bf16.gmra.mxu0 %v6422
        %v6459 = vpop.f32.mrf.mxu0
        %v6460 = vadd.f32 %v6447, %v6459
        %v6461 = vpop.f32.mrf.mxu0
        %6462 = vdwg.mxu0
        %v6463 = vmax.f32 %v6460, 0.0
        %vm6464 = vcmask 521216
        %6465 = vst.msk [vmem:[#allocation6] sm:$0x3f] %vm6464, %v6463
        %s6466 = scalar_lea.vmem [#allocation5], 24
        %v6467 = vld [vmem:[%s6466] sm:$0x3f]
        %v6468 = vld [vmem:[%s6466 + $0x8] sm:$0x3f]
        %v6469 = vld [vmem:[%s6466 + $0x10] sm:$0x3f]
        %v6470 = vpack.c.bf16 %v6467, %v6467
        %v6471 = vpack.c.bf16 %v6468, %v6468
        %v6472 = vpack.c.bf16 %v6469, %v6469
        %v6474 = vsel %vm5257, %v6472, 0
        %6476 = vmatpush.bf16.msra.mxu0 %v6392
        %6477 = vmatpush.bf16.msra.mxu0 %v6391
        %6478 = vmatpush.bf16.msra.mxu0 %v6390
        %6479 = vmatpush.bf16.msra.mxu0 %v6389
        %6480 = vmatpush.bf16.msra.mxu0 %v6388
        %6481 = vmatpush.bf16.msra.mxu0 %v6387
        %6482 = vmatpush.bf16.msra.mxu0 %v6386
        %6483 = vmatpush.bf16.msra.mxu0 %v6385
        %6484 = vmatmul.bf16.gmra.mxu0 %v6470
        %v6485 = vpop.f32.mrf.mxu0
        %v6486 = vadd.f32 %v6311, %v6485
        %v6487 = vpop.f32.mrf.mxu0
        %6488 = vdwg.mxu0
        %6489 = vmatpush.bf16.msra.mxu0 %v6400
        %6490 = vmatpush.bf16.msra.mxu0 %v6399
        %6491 = vmatpush.bf16.msra.mxu0 %v6398
        %6492 = vmatpush.bf16.msra.mxu0 %v6397
        %6493 = vmatpush.bf16.msra.mxu0 %v6396
        %6494 = vmatpush.bf16.msra.mxu0 %v6395
        %6495 = vmatpush.bf16.msra.mxu0 %v6394
        %6496 = vmatpush.bf16.msra.mxu0 %v6393
        %6497 = vmatmul.bf16.gmra.mxu0 %v6471
        %v6498 = vpop.f32.mrf.mxu0
        %v6499 = vadd.f32 %v6486, %v6498
        %v6500 = vpop.f32.mrf.mxu0
        %6501 = vdwg.mxu0
        %6502 = vmatpush.bf16.msra.mxu0 0
        %6503 = vmatpush.bf16.msra.mxu0 0
        %6504 = vmatpush.bf16.msra.mxu0 0
        %6505 = vmatpush.bf16.msra.mxu0 0
        %6506 = vmatpush.bf16.msra.mxu0 0
        %6507 = vmatpush.bf16.msra.mxu0 0
        %6508 = vmatpush.bf16.msra.mxu0 %v6402
        %6509 = vmatpush.bf16.msra.mxu0 %v6401
        %6510 = vmatmul.bf16.gmra.mxu0 %v6474
        %v6511 = vpop.f32.mrf.mxu0
        %v6512 = vadd.f32 %v6499, %v6511
        %v6513 = vpop.f32.mrf.mxu0
        %6514 = vdwg.mxu0
        %v6515 = vmax.f32 %v6512, 0.0
        %s6516 = scalar_lea.vmem [#allocation6], 8
        %6517 = vst.msk [vmem:[%s6516] sm:$0x3f] %vm6464, %v6515
        %s6518 = scalar_lea.vmem [#allocation5], 48
        %v6519 = vld [vmem:[%s6518] sm:$0x3f]
        %v6520 = vld [vmem:[%s6518 + $0x8] sm:$0x3f]
        %v6521 = vld [vmem:[%s6518 + $0x10] sm:$0x3f]
        %v6522 = vpack.c.bf16 %v6519, %v6519
        %v6523 = vpack.c.bf16 %v6520, %v6520
        %v6524 = vpack.c.bf16 %v6521, %v6521
        %v6526 = vsel %vm5257, %v6524, 0
        %6528 = vmatpush.bf16.msra.mxu0 %v6392
        %6529 = vmatpush.bf16.msra.mxu0 %v6391
        %6530 = vmatpush.bf16.msra.mxu0 %v6390
        %6531 = vmatpush.bf16.msra.mxu0 %v6389
        %6532 = vmatpush.bf16.msra.mxu0 %v6388
        %6533 = vmatpush.bf16.msra.mxu0 %v6387
        %6534 = vmatpush.bf16.msra.mxu0 %v6386
        %6535 = vmatpush.bf16.msra.mxu0 %v6385
        %6536 = vmatmul.bf16.gmra.mxu0 %v6522
        %v6537 = vpop.f32.mrf.mxu0
        %v6538 = vadd.f32 %v6311, %v6537
        %v6539 = vpop.f32.mrf.mxu0
        %6540 = vdwg.mxu0
        %6541 = vmatpush.bf16.msra.mxu0 %v6400
        %6542 = vmatpush.bf16.msra.mxu0 %v6399
        %6543 = vmatpush.bf16.msra.mxu0 %v6398
        %6544 = vmatpush.bf16.msra.mxu0 %v6397
        %6545 = vmatpush.bf16.msra.mxu0 %v6396
        %6546 = vmatpush.bf16.msra.mxu0 %v6395
        %6547 = vmatpush.bf16.msra.mxu0 %v6394
        %6548 = vmatpush.bf16.msra.mxu0 %v6393
        %6549 = vmatmul.bf16.gmra.mxu0 %v6523
        %v6550 = vpop.f32.mrf.mxu0
        %v6551 = vadd.f32 %v6538, %v6550
        %v6552 = vpop.f32.mrf.mxu0
        %6553 = vdwg.mxu0
        %6554 = vmatpush.bf16.msra.mxu0 0
        %6555 = vmatpush.bf16.msra.mxu0 0
        %6556 = vmatpush.bf16.msra.mxu0 0
        %6557 = vmatpush.bf16.msra.mxu0 0
        %6558 = vmatpush.bf16.msra.mxu0 0
        %6559 = vmatpush.bf16.msra.mxu0 0
        %6560 = vmatpush.bf16.msra.mxu0 %v6402
        %6561 = vmatpush.bf16.msra.mxu0 %v6401
        %6562 = vmatmul.bf16.gmra.mxu0 %v6526
        %v6563 = vpop.f32.mrf.mxu0
        %v6564 = vadd.f32 %v6551, %v6563
        %v6565 = vpop.f32.mrf.mxu0
        %6566 = vdwg.mxu0
        %v6567 = vmax.f32 %v6564, 0.0
        %s6568 = scalar_lea.vmem [#allocation6], 16
        %6569 = vst.msk [vmem:[%s6568] sm:$0x3f] %vm6464, %v6567
        %s6570 = scalar_lea.vmem [#allocation5], 72
        %v6571 = vld [vmem:[%s6570] sm:$0x3f]
        %v6572 = vld [vmem:[%s6570 + $0x8] sm:$0x3f]
        %v6573 = vld [vmem:[%s6570 + $0x10] sm:$0x3f]
        %v6574 = vpack.c.bf16 %v6571, %v6571
        %v6575 = vpack.c.bf16 %v6572, %v6572
        %v6576 = vpack.c.bf16 %v6573, %v6573
        %v6578 = vsel %vm5257, %v6576, 0
        %6580 = vmatpush.bf16.msra.mxu0 %v6392
        %6581 = vmatpush.bf16.msra.mxu0 %v6391
        %6582 = vmatpush.bf16.msra.mxu0 %v6390
        %6583 = vmatpush.bf16.msra.mxu0 %v6389
        %6584 = vmatpush.bf16.msra.mxu0 %v6388
        %6585 = vmatpush.bf16.msra.mxu0 %v6387
        %6586 = vmatpush.bf16.msra.mxu0 %v6386
        %6587 = vmatpush.bf16.msra.mxu0 %v6385
        %6588 = vmatmul.bf16.gmra.mxu0 %v6574
        %v6589 = vpop.f32.mrf.mxu0
        %v6590 = vadd.f32 %v6311, %v6589
        %v6591 = vpop.f32.mrf.mxu0
        %6592 = vdwg.mxu0
        %6593 = vmatpush.bf16.msra.mxu0 %v6400
        %6594 = vmatpush.bf16.msra.mxu0 %v6399
        %6595 = vmatpush.bf16.msra.mxu0 %v6398
        %6596 = vmatpush.bf16.msra.mxu0 %v6397
        %6597 = vmatpush.bf16.msra.mxu0 %v6396
        %6598 = vmatpush.bf16.msra.mxu0 %v6395
        %6599 = vmatpush.bf16.msra.mxu0 %v6394
        %6600 = vmatpush.bf16.msra.mxu0 %v6393
        %6601 = vmatmul.bf16.gmra.mxu0 %v6575
        %v6602 = vpop.f32.mrf.mxu0
        %v6603 = vadd.f32 %v6590, %v6602
        %v6604 = vpop.f32.mrf.mxu0
        %6605 = vdwg.mxu0
        %6606 = vmatpush.bf16.msra.mxu0 0
        %6607 = vmatpush.bf16.msra.mxu0 0
        %6608 = vmatpush.bf16.msra.mxu0 0
        %6609 = vmatpush.bf16.msra.mxu0 0
        %6610 = vmatpush.bf16.msra.mxu0 0
        %6611 = vmatpush.bf16.msra.mxu0 0
        %6612 = vmatpush.bf16.msra.mxu0 %v6402
        %6613 = vmatpush.bf16.msra.mxu0 %v6401
        %6614 = vmatmul.bf16.gmra.mxu0 %v6578
        %v6615 = vpop.f32.mrf.mxu0
        %v6616 = vadd.f32 %v6603, %v6615
        %v6617 = vpop.f32.mrf.mxu0
        %6618 = vdwg.mxu0
        %v6619 = vmax.f32 %v6616, 0.0
        %s6620 = scalar_lea.vmem [#allocation6], 24
        %6621 = vst.msk [vmem:[%s6620] sm:$0x3f] %vm6464, %v6619
        %s6622 = scalar_lea.vmem [#allocation5], 96
        %v6623 = vld [vmem:[%s6622] sm:$0x3f]
        %v6624 = vld [vmem:[%s6622 + $0x8] sm:$0x3f]
        %v6625 = vld [vmem:[%s6622 + $0x10] sm:$0x3f]
        %v6626 = vpack.c.bf16 %v6623, %v6623
        %v6627 = vpack.c.bf16 %v6624, %v6624
        %v6628 = vpack.c.bf16 %v6625, %v6625
        %v6630 = vsel %vm5257, %v6628, 0
        %6632 = vmatpush.bf16.msra.mxu0 %v6392
        %6633 = vmatpush.bf16.msra.mxu0 %v6391
        %6634 = vmatpush.bf16.msra.mxu0 %v6390
        %6635 = vmatpush.bf16.msra.mxu0 %v6389
        %6636 = vmatpush.bf16.msra.mxu0 %v6388
        %6637 = vmatpush.bf16.msra.mxu0 %v6387
        %6638 = vmatpush.bf16.msra.mxu0 %v6386
        %6639 = vmatpush.bf16.msra.mxu0 %v6385
        %6640 = vmatmul.bf16.gmra.mxu0 %v6626
        %v6641 = vpop.f32.mrf.mxu0
        %v6642 = vadd.f32 %v6311, %v6641
        %v6643 = vpop.f32.mrf.mxu0
        %6644 = vdwg.mxu0
        %6645 = vmatpush.bf16.msra.mxu0 %v6400
        %6646 = vmatpush.bf16.msra.mxu0 %v6399
        %6647 = vmatpush.bf16.msra.mxu0 %v6398
        %6648 = vmatpush.bf16.msra.mxu0 %v6397
        %6649 = vmatpush.bf16.msra.mxu0 %v6396
        %6650 = vmatpush.bf16.msra.mxu0 %v6395
        %6651 = vmatpush.bf16.msra.mxu0 %v6394
        %6652 = vmatpush.bf16.msra.mxu0 %v6393
        %6653 = vmatmul.bf16.gmra.mxu0 %v6627
        %v6654 = vpop.f32.mrf.mxu0
        %v6655 = vadd.f32 %v6642, %v6654
        %v6656 = vpop.f32.mrf.mxu0
        %6657 = vdwg.mxu0
        %6658 = vmatpush.bf16.msra.mxu0 0
        %6659 = vmatpush.bf16.msra.mxu0 0
        %6660 = vmatpush.bf16.msra.mxu0 0
        %6661 = vmatpush.bf16.msra.mxu0 0
        %6662 = vmatpush.bf16.msra.mxu0 0
        %6663 = vmatpush.bf16.msra.mxu0 0
        %6664 = vmatpush.bf16.msra.mxu0 %v6402
        %6665 = vmatpush.bf16.msra.mxu0 %v6401
        %6666 = vmatmul.bf16.gmra.mxu0 %v6630
        %v6667 = vpop.f32.mrf.mxu0
        %v6668 = vadd.f32 %v6655, %v6667
        %v6669 = vpop.f32.mrf.mxu0
        %6670 = vdwg.mxu0
        %v6671 = vmax.f32 %v6668, 0.0
        %s6672 = scalar_lea.vmem [#allocation6], 32
        %6673 = vst.msk [vmem:[%s6672] sm:$0x3f] %vm6464, %v6671
        %s6674 = scalar_lea.vmem [#allocation5], 120
        %v6675 = vld [vmem:[%s6674] sm:$0x3f]
        %v6676 = vld [vmem:[%s6674 + $0x8] sm:$0x3f]
        %v6677 = vld [vmem:[%s6674 + $0x10] sm:$0x3f]
        %v6678 = vpack.c.bf16 %v6675, %v6675
        %v6679 = vpack.c.bf16 %v6676, %v6676
        %v6680 = vpack.c.bf16 %v6677, %v6677
        %v6682 = vsel %vm5257, %v6680, 0
        %6684 = vmatpush.bf16.msra.mxu0 %v6392
        %6685 = vmatpush.bf16.msra.mxu0 %v6391
        %6686 = vmatpush.bf16.msra.mxu0 %v6390
        %6687 = vmatpush.bf16.msra.mxu0 %v6389
        %6688 = vmatpush.bf16.msra.mxu0 %v6388
        %6689 = vmatpush.bf16.msra.mxu0 %v6387
        %6690 = vmatpush.bf16.msra.mxu0 %v6386
        %6691 = vmatpush.bf16.msra.mxu0 %v6385
        %6692 = vmatmul.bf16.gmra.mxu0 %v6678
        %v6693 = vpop.f32.mrf.mxu0
        %v6694 = vadd.f32 %v6311, %v6693
        %v6695 = vpop.f32.mrf.mxu0
        %6696 = vdwg.mxu0
        %6697 = vmatpush.bf16.msra.mxu0 %v6400
        %6698 = vmatpush.bf16.msra.mxu0 %v6399
        %6699 = vmatpush.bf16.msra.mxu0 %v6398
        %6700 = vmatpush.bf16.msra.mxu0 %v6397
        %6701 = vmatpush.bf16.msra.mxu0 %v6396
        %6702 = vmatpush.bf16.msra.mxu0 %v6395
        %6703 = vmatpush.bf16.msra.mxu0 %v6394
        %6704 = vmatpush.bf16.msra.mxu0 %v6393
        %6705 = vmatmul.bf16.gmra.mxu0 %v6679
        %v6706 = vpop.f32.mrf.mxu0
        %v6707 = vadd.f32 %v6694, %v6706
        %v6708 = vpop.f32.mrf.mxu0
        %6709 = vdwg.mxu0
        %6710 = vmatpush.bf16.msra.mxu0 0
        %6711 = vmatpush.bf16.msra.mxu0 0
        %6712 = vmatpush.bf16.msra.mxu0 0
        %6713 = vmatpush.bf16.msra.mxu0 0
        %6714 = vmatpush.bf16.msra.mxu0 0
        %6715 = vmatpush.bf16.msra.mxu0 0
        %6716 = vmatpush.bf16.msra.mxu0 %v6402
        %6717 = vmatpush.bf16.msra.mxu0 %v6401
        %6718 = vmatmul.bf16.gmra.mxu0 %v6682
        %v6719 = vpop.f32.mrf.mxu0
        %v6720 = vadd.f32 %v6707, %v6719
        %v6721 = vpop.f32.mrf.mxu0
        %6722 = vdwg.mxu0
        %v6723 = vmax.f32 %v6720, 0.0
        %s6724 = scalar_lea.vmem [#allocation6], 40
        %6725 = vst.msk [vmem:[%s6724] sm:$0x3f] %vm6464, %v6723
        %v6726 = vld [vmem:[#allocation6] sm:$0x3f]
        %v6727 = vld [vmem:[%s6516] sm:$0x3f]
        %v6728 = vmax.f32 %v6726, %v6727
        %vm6729 = vcmask 48128
        %v6730 = vsel %vm6729, %v655, 0
        %vm6732 = vcmask 1045504
        %v6734 = vsel %vm6732, %v6728, 0
        %6736 = vmatpush.msra.mxu0 0.0
        %6737 = vmatpush.msra.mxu0 0.0
        %6738 = vmatpush.msra.mxu0 0.0
        %6739 = vmatpush.msra.mxu0 0.0
        %6740 = vmatpush.msra.mxu0 0.0
        %6741 = vmatpush.msra.mxu0 0.0
        %6742 = vmatpush.msra.mxu0 0.0
        %6743 = vmatpush.msra.mxu0 0.0
        %6744 = vmatpush.msra.mxu0 0.0
        %6745 = vmatpush.msra.mxu0 0.0
        %6746 = vmatpush.msra.mxu0 0.0
        %6747 = vmatpush.msra.mxu0 0.0
        %6748 = vmatpush.msra.mxu0 0.0
        %6749 = vmatpush.msra.mxu0 0.0
        %6750 = vmatpush.msra.mxu0 0.0
        %6751 = vmatpush.msra.mxu0 %v6734
        %6752 = vmatmul.f32.gmra.mxu0 %v6730
        %v6753 = vpop.f32.mrf.mxu0
        %v6754 = vadd.f32 0.0, %v6753
        %6755 = vdwg.mxu0
        %v6756 = vsel %vm6729, %v659, 0
        %6758 = vmatpush.msra.mxu0 0.0
        %6759 = vmatpush.msra.mxu0 0.0
        %6760 = vmatpush.msra.mxu0 0.0
        %6761 = vmatpush.msra.mxu0 0.0
        %6762 = vmatpush.msra.mxu0 0.0
        %6763 = vmatpush.msra.mxu0 0.0
        %6764 = vmatpush.msra.mxu0 0.0
        %6765 = vmatpush.msra.mxu0 0.0
        %6766 = vmatpush.msra.mxu0 0.0
        %6767 = vmatpush.msra.mxu0 0.0
        %6768 = vmatpush.msra.mxu0 0.0
        %6769 = vmatpush.msra.mxu0 0.0
        %6770 = vmatpush.msra.mxu0 0.0
        %6771 = vmatpush.msra.mxu0 0.0
        %6772 = vmatpush.msra.mxu0 0.0
        %6773 = vmatpush.msra.mxu0 %v6734
        %6774 = vmatmul.f32.gmra.mxu0 %v6756
        %v6775 = vpop.f32.mrf.mxu0
        %v6776 = vadd.f32 0.0, %v6775
        %6777 = vdwg.mxu0
        %v6778 = vmax.f32 %v6754, %v6776
        %vm6779 = vcmask 518144
        %6780 = vst.msk [vmem:[#allocation7] sm:$0x7] %vm6779, %v6778
        %v6781 = vld [vmem:[%s6568] sm:$0x3f]
        %v6782 = vld [vmem:[%s6620] sm:$0x3f]
        %v6783 = vmax.f32 %v6781, %v6782
        %v6785 = vsel %vm6732, %v6783, 0
        %6787 = vmatpush.msra.mxu0 0.0
        %6788 = vmatpush.msra.mxu0 0.0
        %6789 = vmatpush.msra.mxu0 0.0
        %6790 = vmatpush.msra.mxu0 0.0
        %6791 = vmatpush.msra.mxu0 0.0
        %6792 = vmatpush.msra.mxu0 0.0
        %6793 = vmatpush.msra.mxu0 0.0
        %6794 = vmatpush.msra.mxu0 0.0
        %6795 = vmatpush.msra.mxu0 0.0
        %6796 = vmatpush.msra.mxu0 0.0
        %6797 = vmatpush.msra.mxu0 0.0
        %6798 = vmatpush.msra.mxu0 0.0
        %6799 = vmatpush.msra.mxu0 0.0
        %6800 = vmatpush.msra.mxu0 0.0
        %6801 = vmatpush.msra.mxu0 0.0
        %6802 = vmatpush.msra.mxu0 %v6785
        %6803 = vmatmul.f32.gmra.mxu0 %v6730
        %v6804 = vpop.f32.mrf.mxu0
        %v6805 = vadd.f32 0.0, %v6804
        %6806 = vdwg.mxu0
        %6807 = vmatpush.msra.mxu0 0.0
        %6808 = vmatpush.msra.mxu0 0.0
        %6809 = vmatpush.msra.mxu0 0.0
        %6810 = vmatpush.msra.mxu0 0.0
        %6811 = vmatpush.msra.mxu0 0.0
        %6812 = vmatpush.msra.mxu0 0.0
        %6813 = vmatpush.msra.mxu0 0.0
        %6814 = vmatpush.msra.mxu0 0.0
        %6815 = vmatpush.msra.mxu0 0.0
        %6816 = vmatpush.msra.mxu0 0.0
        %6817 = vmatpush.msra.mxu0 0.0
        %6818 = vmatpush.msra.mxu0 0.0
        %6819 = vmatpush.msra.mxu0 0.0
        %6820 = vmatpush.msra.mxu0 0.0
        %6821 = vmatpush.msra.mxu0 0.0
        %6822 = vmatpush.msra.mxu0 %v6785
        %6823 = vmatmul.f32.gmra.mxu0 %v6756
        %v6824 = vpop.f32.mrf.mxu0
        %v6825 = vadd.f32 0.0, %v6824
        %6826 = vdwg.mxu0
        %v6827 = vmax.f32 %v6805, %v6825
        %s6828 = scalar_lea.vmem [#allocation7], 4
        %6829 = vst.msk [vmem:[%s6828] sm:$0x7] %vm6779, %v6827
        %v6830 = vld [vmem:[%s6672] sm:$0x3f]
        %v6831 = vld [vmem:[%s6724] sm:$0x3f]
        %v6832 = vmax.f32 %v6830, %v6831
        %v6834 = vsel %vm6732, %v6832, 0
        %6836 = vmatpush.msra.mxu0 0.0
        %6837 = vmatpush.msra.mxu0 0.0
        %6838 = vmatpush.msra.mxu0 0.0
        %6839 = vmatpush.msra.mxu0 0.0
        %6840 = vmatpush.msra.mxu0 0.0
        %6841 = vmatpush.msra.mxu0 0.0
        %6842 = vmatpush.msra.mxu0 0.0
        %6843 = vmatpush.msra.mxu0 0.0
        %6844 = vmatpush.msra.mxu0 0.0
        %6845 = vmatpush.msra.mxu0 0.0
        %6846 = vmatpush.msra.mxu0 0.0
        %6847 = vmatpush.msra.mxu0 0.0
        %6848 = vmatpush.msra.mxu0 0.0
        %6849 = vmatpush.msra.mxu0 0.0
        %6850 = vmatpush.msra.mxu0 0.0
        %6851 = vmatpush.msra.mxu0 %v6834
        %6852 = vmatmul.f32.gmra.mxu0 %v6730
        %v6853 = vpop.f32.mrf.mxu0
        %v6854 = vadd.f32 0.0, %v6853
        %6855 = vdwg.mxu0
        %6856 = vmatpush.msra.mxu0 0.0
        %6857 = vmatpush.msra.mxu0 0.0
        %6858 = vmatpush.msra.mxu0 0.0
        %6859 = vmatpush.msra.mxu0 0.0
        %6860 = vmatpush.msra.mxu0 0.0
        %6861 = vmatpush.msra.mxu0 0.0
        %6862 = vmatpush.msra.mxu0 0.0
        %6863 = vmatpush.msra.mxu0 0.0
        %6864 = vmatpush.msra.mxu0 0.0
        %6865 = vmatpush.msra.mxu0 0.0
        %6866 = vmatpush.msra.mxu0 0.0
        %6867 = vmatpush.msra.mxu0 0.0
        %6868 = vmatpush.msra.mxu0 0.0
        %6869 = vmatpush.msra.mxu0 0.0
        %6870 = vmatpush.msra.mxu0 0.0
        %6871 = vmatpush.msra.mxu0 %v6834
        %6872 = vmatmul.f32.gmra.mxu0 %v6756
        %v6873 = vpop.f32.mrf.mxu0
        %v6874 = vadd.f32 0.0, %v6873
        %6875 = vdwg.mxu0
        %v6876 = vmax.f32 %v6854, %v6874
        %s6877 = scalar_lea.vmem [#allocation7], 8
        %6878 = vst.msk [vmem:[%s6877] sm:$0x7] %vm6779, %v6876
        %v6879 = vld [vmem:[#allocation7] sm:$0x1]
        %v6880 = vlaneseq
        %vm6881 = vcmp.ge.s32.totalorder %v6880, 0
        %vm6882 = vcmp.lt.s32.totalorder %v6880, 64
        %vm6883 = vmand %vm6881, %vm6882
        %6884 = vst.msk [vmem:[#allocation8] sm:$0x1] %vm6883, %v6879
        %v6885 = vld [vmem:[#allocation7 + $0x1] sm:$0x1]
        %6887 = vrot.lane.b32.xlu0 %v6885, 64
        %v6888 = vpop.permute.xlu0 %6887
        %vm6890 = vcmp.ge.s32.totalorder %v6880, 64
        %vm6891 = vcmp.lt.s32.totalorder %v6880, 128
        %vm6892 = vmand %vm6890, %vm6891
        %6893 = vst.msk [vmem:[#allocation8] sm:$0x1] %vm6892, %v6888
        %v6894 = vld [vmem:[#allocation7 + $0x2] sm:$0x1]
        %6895 = vst.msk [vmem:[#allocation8 + $0x1] sm:$0x1] %vm6883, %v6894
        %v6896 = vld [vmem:[%s6828] sm:$0x1]
        %6898 = vrot.lane.b32.xlu0 %v6896, 64
        %v6899 = vpop.permute.xlu0 %6898
        %6901 = vst.msk [vmem:[#allocation8 + $0x1] sm:$0x1] %vm6892, %v6899
        %v6902 = vld [vmem:[%s6828 + $0x1] sm:$0x1]
        %6903 = vst.msk [vmem:[#allocation8 + $0x2] sm:$0x1] %vm6883, %v6902
        %v6904 = vld [vmem:[%s6828 + $0x2] sm:$0x1]
        %6906 = vrot.lane.b32.xlu0 %v6904, 64
        %v6907 = vpop.permute.xlu0 %6906
        %6909 = vst.msk [vmem:[#allocation8 + $0x2] sm:$0x1] %vm6892, %v6907
        %v6910 = vld [vmem:[%s6877] sm:$0x1]
        %6911 = vst.msk [vmem:[#allocation8 + $0x3] sm:$0x1] %vm6883, %v6910
        %v6912 = vld [vmem:[%s6877 + $0x1] sm:$0x1]
        %6914 = vrot.lane.b32.xlu0 %v6912, 64
        %v6915 = vpop.permute.xlu0 %6914
        %6917 = vst.msk [vmem:[#allocation8 + $0x3] sm:$0x1] %vm6892, %v6915
        %v6918 = vld [vmem:[%s6877 + $0x2] sm:$0x1]
        %6919 = vst.msk [vmem:[#allocation8 + $0x4] sm:$0x1] %vm6883, %v6918
        %v6920 = vld [vmem:[#allocation8] sm:$0x1f]
        %v6922 = vperm.slane %v6920, 0
        %v6923 = vperm.slane %v6920, 1
        %v6924 = vperm.slane %v6920, 2
        %v6925 = vperm.slane %v6920, 3
        %v6926 = vperm.slane %v6920, 4
        %v6932 = vpack.c.bf16 %v6922, %v6922
        %v6933 = vpack.c.bf16 %v6923, %v6923
        %v6934 = vpack.c.bf16 %v6924, %v6924
        %v6935 = vpack.c.bf16 %v6925, %v6925
        %v6936 = vpack.c.bf16 %v6926, %v6926
        %v7009 = vunpack.c.l.b16 %v491
        %v7010 = vunpack.c.l.b16 %v492
        %v7011 = vunpack.c.l.b16 %v493
        %v7012 = vunpack.c.l.b16 %v494
        %v7013 = vunpack.c.l.b16 %v495
        %v7014 = vunpack.c.l.b16 %v496
        %v7015 = vunpack.c.l.b16 %v497
        %v7016 = vunpack.c.l.b16 %v498
        %v7017 = vunpack.c.l.b16 %v499
        %v7018 = vunpack.c.l.b16 %v500
        %v7019 = vunpack.c.l.b16 %v501
        %v7020 = vunpack.c.l.b16 %v502
        %v7021 = vunpack.c.l.b16 %v503
        %v7022 = vunpack.c.l.b16 %v504
        %v7023 = vunpack.c.l.b16 %v505
        %v7024 = vunpack.c.l.b16 %v506
        %v7025 = vunpack.c.l.b16 %v507
        %v7026 = vunpack.c.l.b16 %v508
        %v7027 = vunpack.c.l.b16 %v509
        %v7028 = vunpack.c.l.b16 %v510
        %v7029 = vunpack.c.l.b16 %v511
        %v7030 = vunpack.c.l.b16 %v512
        %v7031 = vunpack.c.l.b16 %v513
        %v7032 = vunpack.c.l.b16 %v514
        %v7033 = vunpack.c.l.b16 %v515
        %v7034 = vunpack.c.l.b16 %v516
        %v7035 = vunpack.c.l.b16 %v517
        %v7036 = vunpack.c.l.b16 %v518
        %v7037 = vunpack.c.l.b16 %v519
        %v7038 = vunpack.c.l.b16 %v520
        %v7039 = vunpack.c.l.b16 %v521
        %v7040 = vunpack.c.l.b16 %v522
        %v7041 = vunpack.c.l.b16 %v523
        %v7042 = vunpack.c.l.b16 %v524
        %v7043 = vunpack.c.l.b16 %v525
        %v7044 = vunpack.c.l.b16 %v526
        %v7045 = vunpack.c.l.b16 %v527
        %v7046 = vunpack.c.l.b16 %v528
        %v7047 = vunpack.c.l.b16 %v529
        %v7048 = vunpack.c.l.b16 %v530
        %v7049 = vunpack.c.l.b16 %v531
        %v7050 = vunpack.c.l.b16 %v532
        %v7051 = vunpack.c.l.b16 %v533
        %v7052 = vunpack.c.l.b16 %v534
        %v7053 = vunpack.c.l.b16 %v535
        %v7054 = vunpack.c.l.b16 %v536
        %v7055 = vunpack.c.l.b16 %v537
        %v7056 = vunpack.c.l.b16 %v538
        %v7057 = vunpack.c.l.b16 %v539
        %v7058 = vunpack.c.l.b16 %v540
        %v7059 = vunpack.c.l.b16 %v541
        %v7060 = vunpack.c.l.b16 %v542
        %v7061 = vunpack.c.l.b16 %v543
        %v7062 = vunpack.c.l.b16 %v544
        %v7063 = vunpack.c.l.b16 %v545
        %v7064 = vunpack.c.l.b16 %v546
        %v7065 = vunpack.c.l.b16 %v547
        %v7066 = vunpack.c.l.b16 %v548
        %v7067 = vunpack.c.l.b16 %v549
        %v7068 = vunpack.c.l.b16 %v550
        %v7069 = vunpack.c.l.b16 %v551
        %v7070 = vunpack.c.l.b16 %v552
        %v7071 = vunpack.c.l.b16 %v553
        %v7072 = vunpack.c.l.b16 %v554
        %v7073 = vunpack.c.l.b16 %v555
        %v7074 = vunpack.c.l.b16 %v556
        %v7075 = vunpack.c.l.b16 %v557
        %v7076 = vunpack.c.l.b16 %v558
        %v7077 = vunpack.c.l.b16 %v559
        %v7078 = vunpack.c.l.b16 %v560
        %v7079 = vunpack.c.l.b16 %v561
        %v7080 = vunpack.c.l.b16 %v562
        %v7081 = vpack.c.b16 %v7010, %v7009
        %v7082 = vpack.c.b16 %v7012, %v7011
        %v7083 = vpack.c.b16 %v7014, %v7013
        %v7084 = vpack.c.b16 %v7016, %v7015
        %v7085 = vpack.c.b16 %v7018, %v7017
        %v7086 = vpack.c.b16 %v7020, %v7019
        %v7087 = vpack.c.b16 %v7022, %v7021
        %v7088 = vpack.c.b16 %v7024, %v7023
        %v7089 = vpack.c.b16 %v7026, %v7025
        %v7090 = vpack.c.b16 %v7028, %v7027
        %v7091 = vpack.c.b16 %v7030, %v7029
        %v7092 = vpack.c.b16 %v7032, %v7031
        %v7093 = vpack.c.b16 %v7034, %v7033
        %v7094 = vpack.c.b16 %v7036, %v7035
        %v7095 = vpack.c.b16 %v7038, %v7037
        %v7096 = vpack.c.b16 %v7040, %v7039
        %v7097 = vpack.c.b16 %v7042, %v7041
        %v7098 = vpack.c.b16 %v7044, %v7043
        %v7099 = vpack.c.b16 %v7046, %v7045
        %v7100 = vpack.c.b16 %v7048, %v7047
        %v7101 = vpack.c.b16 %v7050, %v7049
        %v7102 = vpack.c.b16 %v7052, %v7051
        %v7103 = vpack.c.b16 %v7054, %v7053
        %v7104 = vpack.c.b16 %v7056, %v7055
        %v7105 = vpack.c.b16 %v7058, %v7057
        %v7106 = vpack.c.b16 %v7060, %v7059
        %v7107 = vpack.c.b16 %v7062, %v7061
        %v7108 = vpack.c.b16 %v7064, %v7063
        %v7109 = vpack.c.b16 %v7066, %v7065
        %v7110 = vpack.c.b16 %v7068, %v7067
        %v7111 = vpack.c.b16 %v7070, %v7069
        %v7112 = vpack.c.b16 %v7072, %v7071
        %v7113 = vpack.c.b16 %v7074, %v7073
        %v7114 = vpack.c.b16 %v7076, %v7075
        %v7115 = vpack.c.b16 %v7078, %v7077
        %v7116 = vpack.c.b16 %v7080, %v7079
        %vm7153 = vcmask 523264
        %v7155 = vsel %vm7153, %v6936, 0
        %7157 = vmatpush.bf16.msra.mxu0 %v7088
        %7158 = vmatpush.bf16.msra.mxu0 %v7087
        %7159 = vmatpush.bf16.msra.mxu0 %v7086
        %7160 = vmatpush.bf16.msra.mxu0 %v7085
        %7161 = vmatpush.bf16.msra.mxu0 %v7084
        %7162 = vmatpush.bf16.msra.mxu0 %v7083
        %7163 = vmatpush.bf16.msra.mxu0 %v7082
        %7164 = vmatpush.bf16.msra.mxu0 %v7081
        %7165 = vmatmul.bf16.gmra.mxu0 %v6932
        %v7166 = vpop.f32.mrf.mxu0
        %v7167 = vadd.f32 %v645, %v7166
        %v7168 = vpop.f32.mrf.mxu0
        %7169 = vdwg.mxu0
        %7170 = vmatpush.bf16.msra.mxu0 %v7096
        %7171 = vmatpush.bf16.msra.mxu0 %v7095
        %7172 = vmatpush.bf16.msra.mxu0 %v7094
        %7173 = vmatpush.bf16.msra.mxu0 %v7093
        %7174 = vmatpush.bf16.msra.mxu0 %v7092
        %7175 = vmatpush.bf16.msra.mxu0 %v7091
        %7176 = vmatpush.bf16.msra.mxu0 %v7090
        %7177 = vmatpush.bf16.msra.mxu0 %v7089
        %7178 = vmatmul.bf16.gmra.mxu0 %v6933
        %v7179 = vpop.f32.mrf.mxu0
        %v7180 = vadd.f32 %v7167, %v7179
        %v7181 = vpop.f32.mrf.mxu0
        %7182 = vdwg.mxu0
        %7183 = vmatpush.bf16.msra.mxu0 %v7104
        %7184 = vmatpush.bf16.msra.mxu0 %v7103
        %7185 = vmatpush.bf16.msra.mxu0 %v7102
        %7186 = vmatpush.bf16.msra.mxu0 %v7101
        %7187 = vmatpush.bf16.msra.mxu0 %v7100
        %7188 = vmatpush.bf16.msra.mxu0 %v7099
        %7189 = vmatpush.bf16.msra.mxu0 %v7098
        %7190 = vmatpush.bf16.msra.mxu0 %v7097
        %7191 = vmatmul.bf16.gmra.mxu0 %v6934
        %v7192 = vpop.f32.mrf.mxu0
        %v7193 = vadd.f32 %v7180, %v7192
        %v7194 = vpop.f32.mrf.mxu0
        %7195 = vdwg.mxu0
        %7196 = vmatpush.bf16.msra.mxu0 %v7112
        %7197 = vmatpush.bf16.msra.mxu0 %v7111
        %7198 = vmatpush.bf16.msra.mxu0 %v7110
        %7199 = vmatpush.bf16.msra.mxu0 %v7109
        %7200 = vmatpush.bf16.msra.mxu0 %v7108
        %7201 = vmatpush.bf16.msra.mxu0 %v7107
        %7202 = vmatpush.bf16.msra.mxu0 %v7106
        %7203 = vmatpush.bf16.msra.mxu0 %v7105
        %7204 = vmatmul.bf16.gmra.mxu0 %v6935
        %v7205 = vpop.f32.mrf.mxu0
        %v7206 = vadd.f32 %v7193, %v7205
        %v7207 = vpop.f32.mrf.mxu0
        %7208 = vdwg.mxu0
        %7209 = vmatpush.bf16.msra.mxu0 0
        %7210 = vmatpush.bf16.msra.mxu0 0
        %7211 = vmatpush.bf16.msra.mxu0 0
        %7212 = vmatpush.bf16.msra.mxu0 0
        %7213 = vmatpush.bf16.msra.mxu0 %v7116
        %7214 = vmatpush.bf16.msra.mxu0 %v7115
        %7215 = vmatpush.bf16.msra.mxu0 %v7114
        %7216 = vmatpush.bf16.msra.mxu0 %v7113
        %7217 = vmatmul.bf16.gmra.mxu0 %v7155
        %v7218 = vpop.f32.mrf.mxu0
        %v7219 = vadd.f32 %v7206, %v7218
        %v7220 = vpop.f32.mrf.mxu0
        %7221 = vdwg.mxu0
        %v7222 = vmax.f32 %v7219, 0.0
        %v7223 = vpack.c.bf16 %v7222, %v7222
        %v7240 = vunpack.c.l.b16 %v563
        %v7241 = vunpack.c.h.b16 %v563
        %v7242 = vunpack.c.l.b16 %v564
        %v7243 = vunpack.c.h.b16 %v564
        %v7244 = vunpack.c.l.b16 %v565
        %v7245 = vunpack.c.h.b16 %v565
        %v7246 = vunpack.c.l.b16 %v566
        %v7247 = vunpack.c.h.b16 %v566
        %v7248 = vunpack.c.l.b16 %v567
        %v7249 = vunpack.c.h.b16 %v567
        %v7250 = vunpack.c.l.b16 %v568
        %v7251 = vunpack.c.h.b16 %v568
        %v7252 = vunpack.c.l.b16 %v569
        %v7253 = vunpack.c.h.b16 %v569
        %v7254 = vunpack.c.l.b16 %v570
        %v7255 = vunpack.c.h.b16 %v570
        %v7256 = vunpack.c.l.b16 %v571
        %v7257 = vunpack.c.h.b16 %v571
        %v7258 = vunpack.c.l.b16 %v572
        %v7259 = vunpack.c.h.b16 %v572
        %v7260 = vunpack.c.l.b16 %v573
        %v7261 = vunpack.c.h.b16 %v573
        %v7262 = vunpack.c.l.b16 %v574
        %v7263 = vunpack.c.h.b16 %v574
        %v7264 = vunpack.c.l.b16 %v575
        %v7265 = vunpack.c.h.b16 %v575
        %v7266 = vunpack.c.l.b16 %v576
        %v7267 = vunpack.c.h.b16 %v576
        %v7268 = vunpack.c.l.b16 %v577
        %v7269 = vunpack.c.h.b16 %v577
        %v7270 = vunpack.c.l.b16 %v578
        %v7271 = vunpack.c.h.b16 %v578
        %v7272 = vpack.c.b16 %v7244, %v7240
        %v7273 = vpack.c.b16 %v7245, %v7241
        %v7274 = vpack.c.b16 %v7246, %v7242
        %v7275 = vpack.c.b16 %v7247, %v7243
        %v7276 = vpack.c.b16 %v7252, %v7248
        %v7277 = vpack.c.b16 %v7253, %v7249
        %v7278 = vpack.c.b16 %v7254, %v7250
        %v7279 = vpack.c.b16 %v7255, %v7251
        %v7280 = vpack.c.b16 %v7260, %v7256
        %v7281 = vpack.c.b16 %v7261, %v7257
        %v7282 = vpack.c.b16 %v7262, %v7258
        %v7283 = vpack.c.b16 %v7263, %v7259
        %v7284 = vpack.c.b16 %v7268, %v7264
        %v7285 = vpack.c.b16 %v7269, %v7265
        %v7286 = vpack.c.b16 %v7270, %v7266
        %v7287 = vpack.c.b16 %v7271, %v7267
        %v7305 = vperm.slane %v646, 0
        %v7306 = vperm.slane %v646, 1
        %v7307 = vperm.slane %v646, 2
        %v7308 = vperm.slane %v646, 3
        %v7314 = vsel %vm7153, %v7223, 0
        %7316 = vmatpush.bf16.msra.mxu0 0
        %7317 = vmatpush.bf16.msra.mxu0 0
        %7318 = vmatpush.bf16.msra.mxu0 0
        %7319 = vmatpush.bf16.msra.mxu0 0
        %7320 = vmatpush.bf16.msra.mxu0 %v7284
        %7321 = vmatpush.bf16.msra.mxu0 %v7280
        %7322 = vmatpush.bf16.msra.mxu0 %v7276
        %7323 = vmatpush.bf16.msra.mxu0 %v7272
        %7324 = vmatmul.bf16.gmra.mxu0 %v7314
        %v7325 = vpop.f32.mrf.mxu0
        %v7326 = vadd.f32 %v7305, %v7325
        %v7327 = vpop.f32.mrf.mxu0
        %7328 = vdwg.mxu0
        %7329 = vmatpush.bf16.msra.mxu0 0
        %7330 = vmatpush.bf16.msra.mxu0 0
        %7331 = vmatpush.bf16.msra.mxu0 0
        %7332 = vmatpush.bf16.msra.mxu0 0
        %7333 = vmatpush.bf16.msra.mxu0 %v7285
        %7334 = vmatpush.bf16.msra.mxu0 %v7281
        %7335 = vmatpush.bf16.msra.mxu0 %v7277
        %7336 = vmatpush.bf16.msra.mxu0 %v7273
        %7337 = vmatmul.bf16.gmra.mxu0 %v7314
        %v7338 = vpop.f32.mrf.mxu0
        %v7339 = vadd.f32 %v7306, %v7338
        %v7340 = vpop.f32.mrf.mxu0
        %7341 = vdwg.mxu0
        %7342 = vmatpush.bf16.msra.mxu0 0
        %7343 = vmatpush.bf16.msra.mxu0 0
        %7344 = vmatpush.bf16.msra.mxu0 0
        %7345 = vmatpush.bf16.msra.mxu0 0
        %7346 = vmatpush.bf16.msra.mxu0 %v7286
        %7347 = vmatpush.bf16.msra.mxu0 %v7282
        %7348 = vmatpush.bf16.msra.mxu0 %v7278
        %7349 = vmatpush.bf16.msra.mxu0 %v7274
        %7350 = vmatmul.bf16.gmra.mxu0 %v7314
        %v7351 = vpop.f32.mrf.mxu0
        %v7352 = vadd.f32 %v7307, %v7351
        %v7353 = vpop.f32.mrf.mxu0
        %7354 = vdwg.mxu0
        %7355 = vmatpush.bf16.msra.mxu0 0
        %7356 = vmatpush.bf16.msra.mxu0 0
        %7357 = vmatpush.bf16.msra.mxu0 0
        %7358 = vmatpush.bf16.msra.mxu0 0
        %7359 = vmatpush.bf16.msra.mxu0 %v7287
        %7360 = vmatpush.bf16.msra.mxu0 %v7283
        %7361 = vmatpush.bf16.msra.mxu0 %v7279
        %7362 = vmatpush.bf16.msra.mxu0 %v7275
        %7363 = vmatmul.bf16.gmra.mxu0 %v7314
        %v7364 = vpop.f32.mrf.mxu0
        %v7365 = vadd.f32 %v7308, %v7364
        %v7366 = vpop.f32.mrf.mxu0
        %7367 = vdwg.mxu0
        %v7368 = vmax.f32 %v7326, 0.0
        %v7369 = vmax.f32 %v7339, 0.0
        %v7370 = vmax.f32 %v7352, 0.0
        %v7371 = vmax.f32 %v7365, 0.0
        %v7372 = vpack.c.bf16 %v7368, %v7368
        %v7373 = vpack.c.bf16 %v7369, %v7369
        %v7374 = vpack.c.bf16 %v7370, %v7370
        %v7375 = vpack.c.bf16 %v7371, %v7371
        %v7440 = vunpack.c.l.b16 %v579
        %v7441 = vunpack.c.l.b16 %v580
        %v7442 = vunpack.c.l.b16 %v581
        %v7443 = vunpack.c.l.b16 %v582
        %v7444 = vunpack.c.l.b16 %v583
        %v7445 = vunpack.c.l.b16 %v584
        %v7446 = vunpack.c.l.b16 %v585
        %v7447 = vunpack.c.l.b16 %v586
        %v7448 = vunpack.c.l.b16 %v587
        %v7449 = vunpack.c.l.b16 %v588
        %v7450 = vunpack.c.l.b16 %v589
        %v7451 = vunpack.c.l.b16 %v590
        %v7452 = vunpack.c.l.b16 %v591
        %v7453 = vunpack.c.l.b16 %v592
        %v7454 = vunpack.c.l.b16 %v593
        %v7455 = vunpack.c.l.b16 %v594
        %v7456 = vunpack.c.l.b16 %v595
        %v7457 = vunpack.c.l.b16 %v596
        %v7458 = vunpack.c.l.b16 %v597
        %v7459 = vunpack.c.l.b16 %v598
        %v7460 = vunpack.c.l.b16 %v599
        %v7461 = vunpack.c.l.b16 %v600
        %v7462 = vunpack.c.l.b16 %v601
        %v7463 = vunpack.c.l.b16 %v602
        %v7464 = vunpack.c.l.b16 %v603
        %v7465 = vunpack.c.l.b16 %v604
        %v7466 = vunpack.c.l.b16 %v605
        %v7467 = vunpack.c.l.b16 %v606
        %v7468 = vunpack.c.l.b16 %v607
        %v7469 = vunpack.c.l.b16 %v608
        %v7470 = vunpack.c.l.b16 %v609
        %v7471 = vunpack.c.l.b16 %v610
        %v7472 = vunpack.c.l.b16 %v611
        %v7473 = vunpack.c.l.b16 %v612
        %v7474 = vunpack.c.l.b16 %v613
        %v7475 = vunpack.c.l.b16 %v614
        %v7476 = vunpack.c.l.b16 %v615
        %v7477 = vunpack.c.l.b16 %v616
        %v7478 = vunpack.c.l.b16 %v617
        %v7479 = vunpack.c.l.b16 %v618
        %v7480 = vunpack.c.l.b16 %v619
        %v7481 = vunpack.c.l.b16 %v620
        %v7482 = vunpack.c.l.b16 %v621
        %v7483 = vunpack.c.l.b16 %v622
        %v7484 = vunpack.c.l.b16 %v623
        %v7485 = vunpack.c.l.b16 %v624
        %v7486 = vunpack.c.l.b16 %v625
        %v7487 = vunpack.c.l.b16 %v626
        %v7488 = vunpack.c.l.b16 %v627
        %v7489 = vunpack.c.l.b16 %v628
        %v7490 = vunpack.c.l.b16 %v629
        %v7491 = vunpack.c.l.b16 %v630
        %v7492 = vunpack.c.l.b16 %v631
        %v7493 = vunpack.c.l.b16 %v632
        %v7494 = vunpack.c.l.b16 %v633
        %v7495 = vunpack.c.l.b16 %v634
        %v7496 = vunpack.c.l.b16 %v635
        %v7497 = vunpack.c.l.b16 %v636
        %v7498 = vunpack.c.l.b16 %v637
        %v7499 = vunpack.c.l.b16 %v638
        %v7500 = vunpack.c.l.b16 %v639
        %v7501 = vunpack.c.l.b16 %v640
        %v7502 = vunpack.c.l.b16 %v641
        %v7503 = vunpack.c.l.b16 %v642
        %v7504 = vpack.c.b16 %v7441, %v7440
        %v7505 = vpack.c.b16 %v7443, %v7442
        %v7506 = vpack.c.b16 %v7445, %v7444
        %v7507 = vpack.c.b16 %v7447, %v7446
        %v7508 = vpack.c.b16 %v7449, %v7448
        %v7509 = vpack.c.b16 %v7451, %v7450
        %v7510 = vpack.c.b16 %v7453, %v7452
        %v7511 = vpack.c.b16 %v7455, %v7454
        %v7512 = vpack.c.b16 %v7457, %v7456
        %v7513 = vpack.c.b16 %v7459, %v7458
        %v7514 = vpack.c.b16 %v7461, %v7460
        %v7515 = vpack.c.b16 %v7463, %v7462
        %v7516 = vpack.c.b16 %v7465, %v7464
        %v7517 = vpack.c.b16 %v7467, %v7466
        %v7518 = vpack.c.b16 %v7469, %v7468
        %v7519 = vpack.c.b16 %v7471, %v7470
        %v7520 = vpack.c.b16 %v7473, %v7472
        %v7521 = vpack.c.b16 %v7475, %v7474
        %v7522 = vpack.c.b16 %v7477, %v7476
        %v7523 = vpack.c.b16 %v7479, %v7478
        %v7524 = vpack.c.b16 %v7481, %v7480
        %v7525 = vpack.c.b16 %v7483, %v7482
        %v7526 = vpack.c.b16 %v7485, %v7484
        %v7527 = vpack.c.b16 %v7487, %v7486
        %v7528 = vpack.c.b16 %v7489, %v7488
        %v7529 = vpack.c.b16 %v7491, %v7490
        %v7530 = vpack.c.b16 %v7493, %v7492
        %v7531 = vpack.c.b16 %v7495, %v7494
        %v7532 = vpack.c.b16 %v7497, %v7496
        %v7533 = vpack.c.b16 %v7499, %v7498
        %v7534 = vpack.c.b16 %v7501, %v7500
        %v7535 = vpack.c.b16 %v7503, %v7502
        %7568 = vmatpush.bf16.msra.mxu0 %v7511
        %7569 = vmatpush.bf16.msra.mxu0 %v7510
        %7570 = vmatpush.bf16.msra.mxu0 %v7509
        %7571 = vmatpush.bf16.msra.mxu0 %v7508
        %7572 = vmatpush.bf16.msra.mxu0 %v7507
        %7573 = vmatpush.bf16.msra.mxu0 %v7506
        %7574 = vmatpush.bf16.msra.mxu0 %v7505
        %7575 = vmatpush.bf16.msra.mxu0 %v7504
        %7576 = vmatmul.bf16.gmra.mxu0 %v7372
        %v7577 = vpop.f32.mrf.mxu0
        %v7578 = vadd.f32 %v647, %v7577
        %v7579 = vpop.f32.mrf.mxu0
        %7580 = vdwg.mxu0
        %7581 = vmatpush.bf16.msra.mxu0 %v7519
        %7582 = vmatpush.bf16.msra.mxu0 %v7518
        %7583 = vmatpush.bf16.msra.mxu0 %v7517
        %7584 = vmatpush.bf16.msra.mxu0 %v7516
        %7585 = vmatpush.bf16.msra.mxu0 %v7515
        %7586 = vmatpush.bf16.msra.mxu0 %v7514
        %7587 = vmatpush.bf16.msra.mxu0 %v7513
        %7588 = vmatpush.bf16.msra.mxu0 %v7512
        %7589 = vmatmul.bf16.gmra.mxu0 %v7373
        %v7590 = vpop.f32.mrf.mxu0
        %v7591 = vadd.f32 %v7578, %v7590
        %v7592 = vpop.f32.mrf.mxu0
        %7593 = vdwg.mxu0
        %7594 = vmatpush.bf16.msra.mxu0 %v7527
        %7595 = vmatpush.bf16.msra.mxu0 %v7526
        %7596 = vmatpush.bf16.msra.mxu0 %v7525
        %7597 = vmatpush.bf16.msra.mxu0 %v7524
        %7598 = vmatpush.bf16.msra.mxu0 %v7523
        %7599 = vmatpush.bf16.msra.mxu0 %v7522
        %7600 = vmatpush.bf16.msra.mxu0 %v7521
        %7601 = vmatpush.bf16.msra.mxu0 %v7520
        %7602 = vmatmul.bf16.gmra.mxu0 %v7374
        %v7603 = vpop.f32.mrf.mxu0
        %v7604 = vadd.f32 %v7591, %v7603
        %v7605 = vpop.f32.mrf.mxu0
        %7606 = vdwg.mxu0
        %7607 = vmatpush.bf16.msra.mxu0 %v7535
        %7608 = vmatpush.bf16.msra.mxu0 %v7534
        %7609 = vmatpush.bf16.msra.mxu0 %v7533
        %7610 = vmatpush.bf16.msra.mxu0 %v7532
        %7611 = vmatpush.bf16.msra.mxu0 %v7531
        %7612 = vmatpush.bf16.msra.mxu0 %v7530
        %7613 = vmatpush.bf16.msra.mxu0 %v7529
        %7614 = vmatpush.bf16.msra.mxu0 %v7528
        %7615 = vmatmul.bf16.gmra.mxu0 %v7375
        %v7616 = vpop.f32.mrf.mxu0
        %v7617 = vadd.f32 %v7604, %v7616
        %v7618 = vpop.f32.mrf.mxu0
        %7619 = vdwg.mxu0
        %vm7620 = vcmp.eq.s32.totalorder %v651, 0
        %vm7621 = vcmp.eq.s32.totalorder %v651, 3
        %vm7622 = vmor %vm7620, %vm7621
        %vm7623 = vcmp.eq.s32.totalorder %v651, 4
        %vm7624 = vmor %vm7622, %vm7623
        %vm7625 = vcmp.eq.s32.totalorder %v651, 7
        %vm7626 = vmor %vm7624, %vm7625
        %v7627 = vxor.u32 %v7617, 2147483648
        %v7628 = vmul.f32 %v7627, 1.442695
        %v7629 = vpow.pop %v7628
        %v7630 = vadd.f32 %v7629, 1.0
        %v7631 = vrcp.pop %v7630
        %v7632 = vmul.f32 %v7630, %v7631
        %v7633 = vsub.f32 1.0, %v7632
        %v7634 = vmul.f32 %v7631, %v7633
        %v7635 = vadd.f32 %v7631, %v7634
        %vm7636 = vweird.f32 %v7630
        %vm7637 = vweird.f32 %v7631
        %vm7638 = vmor %vm7636, %vm7637
        %v7639 = vsel %vm7638, %v7631, %v7635
        %v7640 = vand.u32 2147483647, %v7630
        %vm7641 = vcmp.eq.f32.partialorder %v7640, 8.507059e+37
        %v7642 = vand.u32 %v7630, 2147483648
        %v7643 = vor.u32 1.1754944e-38, %v7642
        %v7644 = vsel %vm7641, %v7643, %v7639
        %v7645 = vmul.f32 1.0, %v7644
        %v7646 = vsel %vm7626, %v7645, %v7617
        %vm7647 = vcmask 57344
        %7648 = vst.msk [vmem:[%s378] sm:$0x1] %vm7647, %v7646
        %s7649 = sand.u32 %s269, 1
        %s7650 = scalar_lea.sflag [#allocation10], %s7649
        %s7651 = sand.u32 %s269, 1
        %s7652 = scalar_lea.vmem [#allocation9], %s7651
        // Predicated region
        $region65: #{detect_cnn_forward.1} parent=63 // pred_check
          %p7653 = pneg %p279
        $region66: #{detect_cnn_forward.1} parent=63 // pred_check_branch
          %7655 = sbr.rel (%p7653) target = $region68
        $region67: #{detect_cnn_forward.1} parent=63 // pred_region
          %7657 = vsyncadd %s7650, 0
          %s7658 = scalar_lea.hbm %s11, %s25
          %s7660 = sshll.u32 %s7652, 4
          %s7661 = int_to_ptr.vmem [resolvable:$true] %s7660
          %s7662 = sshll.u32 %s7658, 4
          %s7663 = int_to_ptr.hbm [resolvable:$true] %s7662
          %7665 = dma.vmem_to_hbm [thread:$0]  %s7661, 16, %s7663, %s7650
        $region68: #{detect_cnn_forward.1} parent=63 // pred_fallthru
          _
      $region64: #{detect_cnn_forward.1} parent=5 // pred_fallthru
        _
      %p7666 = scmp.le.s32.totalorder 2, %s20
      // Predicated region
      $region69: #{detect_cnn_forward.1} parent=5 // pred_check
        %p7667 = pneg %p7666
      $region70: #{detect_cnn_forward.1} parent=5 // pred_check_branch
        %7669 = sbr.rel (%p7667) target = $region72
      $region71: #{detect_cnn_forward.1} parent=5 // pred_region
        %s7670 = ssub.s32 %s20, 2
        // Predicated region
        $region73: #{detect_cnn_forward.1} parent=71 // pred_check
          %p7671 = pneg %p285
        $region74: #{detect_cnn_forward.1} parent=71 // pred_check_branch
          %7673 = sbr.rel (%p7671) target = $region76
        $region75: #{detect_cnn_forward.1} parent=71 // pred_region
          %s7674 = sand.u32 %s270, 1
          %s7675 = scalar_lea.sflag [#allocation10], %s7674
          %s7676 = sand.u32 %s270, 1
          %s7677 = scalar_lea.vmem [#allocation9], %s7676
          %7679 = dma.done %s7675, 16
        $region76: #{detect_cnn_forward.1} parent=71 // pred_fallthru
          _
      $region72: #{detect_cnn_forward.1} parent=5 // pred_fallthru
        _
    $region6: #{detect_cnn_forward.1} parent=1 // loop_footer
      %s24 = sadd.s32 1, %s20
    $region7: #{detect_cnn_forward.1} parent=1 // loop_footer_branch
      %19 = sbr.rel target = $region3
    $region8: #{detect_cnn_forward.1} parent=1 // loop_exit
      _
    %7680 = vsyncpa [#allocation10], 1
    %s7681 = scalar_lea.sflag [#allocation10], 1
    %7682 = vsyncpa %s7681, 1

</llo_original>
